<compile_context>
chip_gen: v5e
topology: v5e:2x2
jax: 0.10.0
libtpu: 0.0.40
codegen_flags: <defaults>
</compile_context>

<pallas_src>
import functools

import jax
import jax.numpy as jnp
from jax.experimental import pallas as pl
from jax.experimental.pallas import tpu as pltpu

# ------------------------- tiny Whisper-like config -------------------------
N_MELS = 8           # whisper-base: 80
N_FRAMES = 16        # whisper-base: 3000
D_MODEL = 128        # lane-dense (whisper-base: 512)
N_HEADS = 4
HEAD_DIM = D_MODEL // N_HEADS
FFN = 256            # lane-dense
ENC_LAYERS = 2
DEC_LAYERS = 2       # == num_layers in the wrapper
VOCAB = 128          # lane-dense
T_ENC = N_FRAMES // 2
MAX_POS = 8
MAX_NEW_TOKENS = 4
DECODER_START = 1
LAYER = 2            # wrapper's `self.layer`; ==DEC_LAYERS -> post-final-LN hidden (HF semantics)

_VMEM = pltpu.MemorySpace.VMEM
_SMEM = pltpu.MemorySpace.SMEM


# --------------------------- in-kernel math helpers --------------------------
def _gelu(x):
    c = jnp.float32(0.7978845608028654)  # sqrt(2/pi), tanh-approx GELU
    return 0.5 * x * (1.0 + jnp.tanh(c * (x + 0.044715 * x * x * x)))


def _layer_norm(x, g, b, eps=1e-5):
    mu = jnp.mean(x, axis=-1, keepdims=True)
    xc = x - mu
    var = jnp.mean(xc * xc, axis=-1, keepdims=True)
    return xc * jax.lax.rsqrt(var + eps) * g + b


def _mha(q, k, v, bias=None):
    """Multi-head attention on already-projected q:(T,D), k/v:(S,D); D stays on lanes."""
    scale = jnp.float32(HEAD_DIM ** -0.5)
    outs = []
    for h in range(N_HEADS):
        sl = slice(h * HEAD_DIM, (h + 1) * HEAD_DIM)
        qh = q[:, sl] * scale
        kh = k[:, sl]
        vh = v[:, sl]
        s = jax.lax.dot_general(qh, kh, (((1,), (1,)), ((), ())),
                                preferred_element_type=jnp.float32)        # (T, S)
        if bias is not None:
            s = s + bias
        m = jnp.max(s, axis=-1, keepdims=True)
        p = jnp.exp(s - m)
        p = p * pl.reciprocal(jnp.sum(p, axis=-1, keepdims=True), approx=True)
        outs.append(jnp.dot(p, vh, preferred_element_type=jnp.float32))     # (T, hd)
    return jnp.concatenate(outs, axis=1)                                    # (T, D)


# ------------------------------ encoder kernel -------------------------------
# One fused call: conv1(as matmul)+GELU -> in-kernel im2col -> conv2+GELU ->
# pos-embed -> ENC_LAYERS transformer layers -> final LN -> cross-attn K/V for
# every decoder layer.
def _encoder_kernel(patches1_ref, w1_ref, b1_ref, w2_ref, b2_ref, pos_ref,
                    mats_ref, vecs_ref, fc1w_ref, fc1b_ref, fc2w_ref, encln_ref,
                    caw_ref, cab_ref,
                    cak_ref, cav_ref):
    f32 = jnp.float32

    # conv1 (stride 1, pad 1) as im2col matmul + GELU; time on sublanes, D lane-dense.
    h1 = _gelu(jnp.dot(patches1_ref[...], w1_ref[...], preferred_element_type=f32)
               + b1_ref[...])                                               # (N_FRAMES, D)

    # conv2 (stride 2, pad 1): im2col patches built in-kernel with static slices.
    rows = []
    for t in range(T_ENC):
        pieces = []
        for k in range(3):
            r = 2 * t + k - 1
            if 0 <= r < N_FRAMES:
                pieces.append(h1[r:r + 1, :])
            else:
                pieces.append(jnp.zeros((1, D_MODEL), f32))
        rows.append(jnp.concatenate(pieces, axis=1))                        # (1, 3*D)
    patches2 = jnp.concatenate(rows, axis=0)                                # (T_ENC, 3*D)
    h = _gelu(jnp.dot(patches2, w2_ref[...], preferred_element_type=f32) + b2_ref[...])
    h = h + pos_ref[...]                                                    # (T_ENC, D)

    # encoder transformer layers (pre-LN)
    for l in range(ENC_LAYERS):
        V = vecs_ref[l]                                                     # (9, D)
        x = _layer_norm(h, V[4:5], V[5:6])
        q = jnp.dot(x, mats_ref[4 * l + 0], preferred_element_type=f32) + V[0:1]
        k = jnp.dot(x, mats_ref[4 * l + 1], preferred_element_type=f32) + V[1:2]
        v = jnp.dot(x, mats_ref[4 * l + 2], preferred_element_type=f32) + V[2:3]
        a = _mha(q, k, v)
        h = h + jnp.dot(a, mats_ref[4 * l + 3], preferred_element_type=f32) + V[3:4]

        x = _layer_norm(h, V[6:7], V[7:8])
        x = _gelu(jnp.dot(x, fc1w_ref[l], preferred_element_type=f32) + fc1b_ref[l])
        h = h + jnp.dot(x, fc2w_ref[l], preferred_element_type=f32) + V[8:9]

    enc = _layer_norm(h, encln_ref[0:1, :], encln_ref[1:2, :])              # (T_ENC, D)

    # cross-attention K/V for every decoder layer, computed once per utterance.
    for l in range(DEC_LAYERS):
        B = cab_ref[l]                                                      # (2, D)
        cak_ref[l] = jnp.dot(enc, caw_ref[2 * l + 0], preferred_element_type=f32) + B[0:1]
        cav_ref[l] = jnp.dot(enc, caw_ref[2 * l + 1], preferred_element_type=f32) + B[1:2]


_encoder_call = pl.pallas_call(
    _encoder_kernel,
    in_specs=[pl.BlockSpec(memory_space=_VMEM)] * 14,
    out_specs=(pl.BlockSpec(memory_space=_VMEM),) * 2,
    out_shape=(
        jax.ShapeDtypeStruct((DEC_LAYERS, T_ENC, D_MODEL), jnp.float32),
        jax.ShapeDtypeStruct((DEC_LAYERS, T_ENC, D_MODEL), jnp.float32),
    ),
)


# ----------------------------- decode-step kernel -----------------------------
# One fused call per generated token: embedding (one-hot matmul), all decoder
# layers (self-attn w/ fixed-shape KV cache, cross-attn on precomputed K/V,
# FFN), final LN, tied-embedding logits, and the HF-style per-step hidden stack.
def _decode_step_kernel(info_ref, emb_ref, dpos_ref, mats_ref, vecs_ref,
                        fc1w_ref, fc1b_ref, fc2w_ref, cak_ref, cav_ref,
                        kin_ref, vin_ref, decln_ref,
                        hid_ref, logits_ref, kout_ref, vout_ref):
    f32 = jnp.float32
    tok = info_ref[0]
    pos = info_ref[1]

    # token + positional embedding via one-hot matmuls (no dynamic gathers).
    voc_iota = jax.lax.broadcasted_iota(jnp.int32, (1, VOCAB), 1)
    pos_iota = jax.lax.broadcasted_iota(jnp.int32, (1, MAX_POS), 1)
    tok_oh = (voc_iota == tok).astype(f32)
    pos_oh = (pos_iota == pos).astype(f32)
    h = (jnp.dot(tok_oh, emb_ref[...], preferred_element_type=f32)
         + jnp.dot(pos_oh, dpos_ref[...], preferred_element_type=f32))      # (1, D)
    hid_ref[0:1, :] = h                                                     # embeddings

    attn_bias = jnp.where(pos_iota <= pos, f32(0.0), f32(-1e30))            # (1, MAX_POS)
    row_iota = jax.lax.broadcasted_iota(jnp.int32, (MAX_POS, D_MODEL), 0)

    for l in range(DEC_LAYERS):
        V = vecs_ref[l]                                                     # (13, D)

        # --- self-attention: only the new token is projected; cache updated in-kernel ---
        res = h
        x = _layer_norm(h, V[6:7], V[7:8])
        q = jnp.dot(x, mats_ref[6 * l + 0], preferred_element_type=f32) + V[0:1]
        kn = jnp.dot(x, mats_ref[6 * l + 1], preferred_element_type=f32) + V[1:2]
        vn = jnp.dot(x, mats_ref[6 * l + 2], preferred_element_type=f32) + V[2:3]
        k_all = jnp.where(row_iota == pos, kn, kin_ref[l])                  # (MAX_POS, D)
        v_all = jnp.where(row_iota == pos, vn, vin_ref[l])
        kout_ref[l] = k_all
        vout_ref[l] = v_all
        a = _mha(q, k_all, v_all, bias=attn_bias)
        h = res + jnp.dot(a, mats_ref[6 * l + 3], preferred_element_type=f32) + V[3:4]

        # --- cross-attention (K/V precomputed once in the encoder kernel) ---
        res = h
        x = _layer_norm(h, V[8:9], V[9:10])
        q = jnp.dot(x, mats_ref[6 * l + 4], preferred_element_type=f32) + V[4:5]
        a = _mha(q, cak_ref[l], cav_ref[l])
        h = res + jnp.dot(a, mats_ref[6 * l + 5], preferred_element_type=f32) + V[5:6]

        # --- FFN ---
        res = h
        x = _layer_norm(h, V[10:11], V[11:12])
        x = _gelu(jnp.dot(x, fc1w_ref[l], preferred_element_type=f32) + fc1b_ref[l])
        h = res + jnp.dot(x, fc2w_ref[l], preferred_element_type=f32) + V[12:13]

        if l < DEC_LAYERS - 1:
            hid_ref[l + 1:l + 2, :] = h                                     # layer-l output

    # HF semantics: last hidden_states entry is the post-final-layer-norm state.
    hn = _layer_norm(h, decln_ref[0:1, :], decln_ref[1:2, :])
    hid_ref[DEC_LAYERS:DEC_LAYERS + 1, :] = hn

    # tied-embedding logits: contract the model dim against the embedding table.
    logits_ref[...] = jax.lax.dot_general(
        hn, emb_ref[...], (((1,), (1,)), ((), ())), preferred_element_type=f32)


_decode_call = pl.pallas_call(
    _decode_step_kernel,
    in_specs=[pl.BlockSpec(memory_space=_SMEM)]
             + [pl.BlockSpec(memory_space=_VMEM)] * 12,
    out_specs=(pl.BlockSpec(memory_space=_VMEM),) * 4,
    out_shape=(
        jax.ShapeDtypeStruct((DEC_LAYERS + 1, D_MODEL), jnp.float32),       # per-step hiddens
        jax.ShapeDtypeStruct((1, VOCAB), jnp.float32),                      # logits
        jax.ShapeDtypeStruct((DEC_LAYERS, MAX_POS, D_MODEL), jnp.float32),  # new K cache
        jax.ShapeDtypeStruct((DEC_LAYERS, MAX_POS, D_MODEL), jnp.float32),  # new V cache
    ),
)


# ------------------------------ parameter init ------------------------------
def init_params(key):
    keys = iter(jax.random.split(key, 128))

    def nrm(shape, scale=0.05):
        return scale * jax.random.normal(next(keys), shape, dtype=jnp.float32)

    ones = lambda s: jnp.ones(s, jnp.float32)
    zeros = lambda s: jnp.zeros(s, jnp.float32)

    conv1_w = nrm((D_MODEL, N_MELS, 3))     # PyTorch Conv1d layout (C_out, C_in, K)
    conv1_b = nrm((D_MODEL,))
    conv2_w = nrm((D_MODEL, D_MODEL, 3))
    conv2_b = nrm((D_MODEL,))

    p = {
        "w1col": conv1_w.transpose(2, 1, 0).reshape(3 * N_MELS, D_MODEL),
        "b1": conv1_b.reshape(1, D_MODEL),
        "w2col": conv2_w.transpose(2, 1, 0).reshape(3 * D_MODEL, D_MODEL),
        "b2": conv2_b.reshape(1, D_MODEL),
        "enc_pos": nrm((T_ENC, D_MODEL)),
        "enc_ln": jnp.stack([ones((D_MODEL,)), zeros((D_MODEL,))]),
        "dec_ln": jnp.stack([ones((D_MODEL,)), zeros((D_MODEL,))]),
        "embed": nrm((VOCAB, D_MODEL)),
        "dec_pos": nrm((MAX_POS, D_MODEL)),
    }

    # encoder layers (stacked, matrices flattened on the leading axis)
    enc_mats, enc_vecs, efc1w, efc1b, efc2w = [], [], [], [], []
    for _ in range(ENC_LAYERS):
        enc_mats += [nrm((D_MODEL, D_MODEL)) for _ in range(4)]  # q_w, k_w, v_w, o_w
        enc_vecs.append(jnp.stack([
            nrm((D_MODEL,)), zeros((D_MODEL,)), nrm((D_MODEL,)), nrm((D_MODEL,)),  # q/k/v/o bias
            ones((D_MODEL,)), zeros((D_MODEL,)),                                   # ln1 g,b
            ones((D_MODEL,)), zeros((D_MODEL,)),                                   # ln2 g,b
            nrm((D_MODEL,)),                                                       # fc2 bias
        ]))
        efc1w.append(nrm((D_MODEL, FFN)))
        efc1b.append(nrm((1, FFN)))
        efc2w.append(nrm((FFN, D_MODEL)))
    p["enc_mats"] = jnp.stack(enc_mats)          # (ENC_LAYERS*4, D, D)
    p["enc_vecs"] = jnp.stack(enc_vecs)          # (ENC_LAYERS, 9, D)
    p["enc_fc1_w"] = jnp.stack(efc1w)
    p["enc_fc1_b"] = jnp.stack(efc1b)
    p["enc_fc2_w"] = jnp.stack(efc2w)

    # decoder layers (stacked)
    dmats, dvecs, dfc1w, dfc1b, dfc2w, caw, cab = [], [], [], [], [], [], []
    for _ in range(DEC_LAYERS):
        dmats += [nrm((D_MODEL, D_MODEL)) for _ in range(6)]  # sa_q, sa_k, sa_v, sa_o, ca_q, ca_o
        dvecs.append(jnp.stack([
            nrm((D_MODEL,)), zeros((D_MODEL,)), nrm((D_MODEL,)), nrm((D_MODEL,)),  # sa q/k/v/o bias
            nrm((D_MODEL,)), nrm((D_MODEL,)),                                      # ca q/o bias
            ones((D_MODEL,)), zeros((D_MODEL,)),                                   # ln1 g,b
            ones((D_MODEL,)), zeros((D_MODEL,)),                                   # ln2 g,b
            ones((D_MODEL,)), zeros((D_MODEL,)),                                   # ln3 g,b
            nrm((D_MODEL,)),                                                       # fc2 bias
        ]))
        dfc1w.append(nrm((D_MODEL, FFN)))
        dfc1b.append(nrm((1, FFN)))
        dfc2w.append(nrm((FFN, D_MODEL)))
        caw += [nrm((D_MODEL, D_MODEL)), nrm((D_MODEL, D_MODEL))]                  # ca_k_w, ca_v_w
        cab.append(jnp.stack([zeros((D_MODEL,)), nrm((D_MODEL,))]))                # ca_k_b, ca_v_b
    p["dec_mats"] = jnp.stack(dmats)             # (DEC_LAYERS*6, D, D)
    p["dec_vecs"] = jnp.stack(dvecs)             # (DEC_LAYERS, 13, D)
    p["dec_fc1_w"] = jnp.stack(dfc1w)
    p["dec_fc1_b"] = jnp.stack(dfc1b)
    p["dec_fc2_w"] = jnp.stack(dfc2w)
    p["ca_w"] = jnp.stack(caw)                   # (DEC_LAYERS*2, D, D)
    p["ca_b"] = jnp.stack(cab)                   # (DEC_LAYERS, 2, D)
    return p


# ---------------------------- wrapper forward pass ---------------------------
@functools.partial(jax.jit, static_argnames=("layer",))
def whisper_wrapper_forward(p, data, layer=LAYER):
    """Mimics WhisperWrapperBase.forward: data is input_features [1, n_mels, n_frames]."""
    # One-time im2col of the raw log-mel features for conv1 (stride 1, pad 1).
    mel = data[0]                                                  # (N_MELS, N_FRAMES)
    xp = jnp.pad(mel, ((0, 0), (1, 1)))
    patches1 = jnp.concatenate([xp[:, k:k + N_FRAMES].T for k in range(3)], axis=1)

    # Fused encoder + per-decoder-layer cross-attention K/V (computed once).
    ca_k, ca_v = _encoder_call(
        patches1, p["w1col"], p["b1"], p["w2col"], p["b2"], p["enc_pos"],
        p["enc_mats"], p["enc_vecs"], p["enc_fc1_w"], p["enc_fc1_b"],
        p["enc_fc2_w"], p["enc_ln"], p["ca_w"], p["ca_b"])

    # Fixed-length greedy generation, fully on-device (no host syncs, no recompiles).
    def step(s, carry):
        tok, k_cache, v_cache, hid_buf = carry
        info = jnp.stack([tok, s]).astype(jnp.int32)
        hiddens, logits, k_cache, v_cache = _decode_call(
            info, p["embed"], p["dec_pos"], p["dec_mats"], p["dec_vecs"],
            p["dec_fc1_w"], p["dec_fc1_b"], p["dec_fc2_w"],
            ca_k, ca_v, k_cache, v_cache, p["dec_ln"])
        hid_buf = jax.lax.dynamic_update_slice(hid_buf, hiddens[None], (s, 0, 0))
        next_tok = jnp.argmax(logits[0]).astype(jnp.int32)
        return next_tok, k_cache, v_cache, hid_buf

    carry0 = (
        jnp.array(DECODER_START, dtype=jnp.int32),
        jnp.zeros((DEC_LAYERS, MAX_POS, D_MODEL), jnp.float32),
        jnp.zeros((DEC_LAYERS, MAX_POS, D_MODEL), jnp.float32),
        jnp.zeros((MAX_NEW_TOKENS, DEC_LAYERS + 1, D_MODEL), jnp.float32),
    )
    _, _, _, hid_buf = jax.lax.fori_loop(0, MAX_NEW_TOKENS, step, carry0)

    # hid_buf[word, i] == HF outputs.decoder_hidden_states[word][i][0][0]
    if layer == -1:
        # torch wrapper's -1 branch: [1, n_words, D, num_layers]
        return jnp.transpose(hid_buf[:, :DEC_LAYERS, :], (0, 2, 1))[None]
    return hid_buf[:, layer, :][None]                              # [1, n_words, D]


# ------------------------------------ main -----------------------------------
if __name__ == "__main__":
    key = jax.random.PRNGKey(0)
    pkey, dkey = jax.random.split(key)
    params = init_params(pkey)

    # input_features, PyTorch layout [batch, n_mels, n_frames] (NCW)
    data = jax.random.normal(dkey, (1, N_MELS, N_FRAMES), dtype=jnp.float32)

    out = whisper_wrapper_forward(params, data)
    out = jax.block_until_ready(out)
    assert out.shape == (1, MAX_NEW_TOKENS, D_MODEL), out.shape
    assert bool(jnp.all(jnp.isfinite(out)))
    print("KERNEL_OK")
</pallas_src>

<mosaic_0001>
module attributes {stable_mosaic.version = 11 : i64} {
  func.func @_decode_step_kernel(%arg0: memref<2xi32, #tpu.memory_space<smem>>, %arg1: memref<128x128xf32, #tpu.memory_space<vmem>>, %arg2: memref<8x128xf32, #tpu.memory_space<vmem>>, %arg3: memref<12x128x128xf32, #tpu.memory_space<vmem>>, %arg4: memref<2x13x128xf32, #tpu.memory_space<vmem>>, %arg5: memref<2x128x256xf32, #tpu.memory_space<vmem>>, %arg6: memref<2x1x256xf32, #tpu.memory_space<vmem>>, %arg7: memref<2x256x128xf32, #tpu.memory_space<vmem>>, %arg8: memref<2x8x128xf32, #tpu.memory_space<vmem>>, %arg9: memref<2x8x128xf32, #tpu.memory_space<vmem>>, %arg10: memref<2x8x128xf32, #tpu.memory_space<vmem>>, %arg11: memref<2x8x128xf32, #tpu.memory_space<vmem>>, %arg12: memref<2x128xf32, #tpu.memory_space<vmem>>, %arg13: memref<3x128xf32, #tpu.memory_space<vmem>>, %arg14: memref<1x128xf32, #tpu.memory_space<vmem>>, %arg15: memref<2x8x128xf32, #tpu.memory_space<vmem>>, %arg16: memref<2x8x128xf32, #tpu.memory_space<vmem>>) attributes {dimension_semantics = [], scalar_prefetch = 0 : i64, scratch_operands = 0 : i64, tpu.core_type = #tpu.core_type<tc>} {
    %c0 = arith.constant 0 : index
    %0 = memref.load %arg0[%c0] : memref<2xi32, #tpu.memory_space<smem>>
    %c1 = arith.constant 1 : index
    %1 = memref.load %arg0[%c1] : memref<2xi32, #tpu.memory_space<smem>>
    %2 = tpu.iota {dimensions = array<i32: 1>} : vector<1x128xi32>
    %3 = tpu.iota {dimensions = array<i32: 1>} : vector<1x8xi32>
    %4 = vector.broadcast %0 : i32 to vector<1x128xi32>
    %5 = arith.cmpi eq, %2, %4 : vector<1x128xi32>
    %6 = arith.extui %5 : vector<1x128xi1> to vector<1x128xi32>
    %7 = arith.sitofp %6 : vector<1x128xi32> to vector<1x128xf32>
    %8 = vector.broadcast %1 : i32 to vector<1x8xi32>
    %9 = arith.cmpi eq, %3, %8 : vector<1x8xi32>
    %10 = arith.extui %9 : vector<1x8xi1> to vector<1x8xi32>
    %11 = arith.sitofp %10 : vector<1x8xi32> to vector<1x8xf32>
    %c0_0 = arith.constant 0 : index
    %c0_1 = arith.constant 0 : index
    %12 = vector.load %arg1[%c0_0, %c0_1] : memref<128x128xf32, #tpu.memory_space<vmem>>, vector<128x128xf32>
    %cst = arith.constant dense<0.000000e+00> : vector<1x128xf32>
    %13 = tpu.matmul %7, %12, %cst {dimension_numbers = #tpu.dot_dimension_numbers<[1], [0], [0], [1], [0, 0, 1, 1], [], []>} : vector<1x128xf32>, vector<128x128xf32>, vector<1x128xf32> -> vector<1x128xf32>
    %c0_2 = arith.constant 0 : index
    %c0_3 = arith.constant 0 : index
    %14 = vector.load %arg2[%c0_2, %c0_3] : memref<8x128xf32, #tpu.memory_space<vmem>>, vector<8x128xf32>
    %cst_4 = arith.constant dense<0.000000e+00> : vector<1x128xf32>
    %15 = tpu.matmul %11, %14, %cst_4 {dimension_numbers = #tpu.dot_dimension_numbers<[1], [0], [0], [1], [0, 0, 1, 1], [], []>} : vector<1x8xf32>, vector<8x128xf32>, vector<1x128xf32> -> vector<1x128xf32>
    %16 = arith.addf %13, %15 : vector<1x128xf32>
    %c0_5 = arith.constant 0 : index
    %c0_6 = arith.constant 0 : index
    %17 = vector.load %arg13[%c0_5, %c0_6] : memref<3x128xf32, #tpu.memory_space<vmem>>, vector<1x128xf32>
    tpu.vector_store %arg13[%c0_5, %c0_6], %16 {strides = array<i32>} : memref<3x128xf32, #tpu.memory_space<vmem>>, vector<1x128xf32>,
    %18 = vector.broadcast %1 : i32 to vector<1x8xi32>
    %19 = arith.cmpi sle, %3, %18 : vector<1x8xi32>
    %cst_7 = arith.constant 0.000000e+00 : f32
    %cst_8 = arith.constant -1.000000e+30 : f32
    %20 = vector.broadcast %cst_7 : f32 to vector<1x8xf32>
    %21 = vector.broadcast %cst_8 : f32 to vector<1x8xf32>
    %22 = arith.select %19, %20, %21 : vector<1x8xi1>, vector<1x8xf32>
    %23 = tpu.iota {dimensions = array<i32: 0>} : vector<8x128xi32>
    %c0_9 = arith.constant 0 : index
    %c0_10 = arith.constant 0 : index
    %c0_11 = arith.constant 0 : index
    %24 = vector.load %arg4[%c0_9, %c0_10, %c0_11] : memref<2x13x128xf32, #tpu.memory_space<vmem>>, vector<1x13x128xf32>
    %25 = vector.shape_cast %24 : vector<1x13x128xf32> to vector<13x128xf32>
    %26 = vector.extract_strided_slice %25 {offsets = [6, 0], sizes = [1, 128], strides = [1, 1]} : vector<13x128xf32> to vector<1x128xf32>
    %27 = vector.extract_strided_slice %25 {offsets = [7, 0], sizes = [1, 128], strides = [1, 1]} : vector<13x128xf32> to vector<1x128xf32>
    %cst_12 = arith.constant dense<0.000000e+00> : vector<1xf32>
    %28 = vector.multi_reduction <add>, %16, %cst_12 [1] : vector<1x128xf32> to vector<1xf32>
    %29 = vector.shape_cast %28 : vector<1xf32> to vector<1x1xf32>
    %cst_13 = arith.constant 1.280000e+02 : f32
    %30 = vector.broadcast %cst_13 : f32 to vector<1x1xf32>
    %31 = arith.divf %29, %30 : vector<1x1xf32>
    %32 = vector.broadcast %31 : vector<1x1xf32> to vector<1x128xf32>
    %33 = arith.subf %16, %32 : vector<1x128xf32>
    %34 = arith.mulf %33, %33 : vector<1x128xf32>
    %cst_14 = arith.constant dense<0.000000e+00> : vector<1xf32>
    %35 = vector.multi_reduction <add>, %34, %cst_14 [1] : vector<1x128xf32> to vector<1xf32>
    %36 = vector.shape_cast %35 : vector<1xf32> to vector<1x1xf32>
    %cst_15 = arith.constant 1.280000e+02 : f32
    %37 = vector.broadcast %cst_15 : f32 to vector<1x1xf32>
    %38 = arith.divf %36, %37 : vector<1x1xf32>
    %cst_16 = arith.constant 9.99999974E-6 : f32
    %39 = vector.broadcast %cst_16 : f32 to vector<1x1xf32>
    %40 = arith.addf %38, %39 : vector<1x1xf32>
    %41 = math.rsqrt %40 : vector<1x1xf32>
    %42 = vector.broadcast %41 : vector<1x1xf32> to vector<1x128xf32>
    %43 = arith.mulf %33, %42 : vector<1x128xf32>
    %44 = arith.mulf %43, %26 : vector<1x128xf32>
    %45 = arith.addf %44, %27 : vector<1x128xf32>
    %c0_17 = arith.constant 0 : index
    %c0_18 = arith.constant 0 : index
    %c0_19 = arith.constant 0 : index
    %46 = vector.load %arg3[%c0_17, %c0_18, %c0_19] : memref<12x128x128xf32, #tpu.memory_space<vmem>>, vector<1x128x128xf32>
    %47 = vector.shape_cast %46 : vector<1x128x128xf32> to vector<128x128xf32>
    %cst_20 = arith.constant dense<0.000000e+00> : vector<1x128xf32>
    %48 = tpu.matmul %45, %47, %cst_20 {dimension_numbers = #tpu.dot_dimension_numbers<[1], [0], [0], [1], [0, 0, 1, 1], [], []>} : vector<1x128xf32>, vector<128x128xf32>, vector<1x128xf32> -> vector<1x128xf32>
    %49 = vector.extract_strided_slice %25 {offsets = [0, 0], sizes = [1, 128], strides = [1, 1]} : vector<13x128xf32> to vector<1x128xf32>
    %50 = arith.addf %48, %49 : vector<1x128xf32>
    %c1_21 = arith.constant 1 : index
    %c0_22 = arith.constant 0 : index
    %c0_23 = arith.constant 0 : index
    %51 = vector.load %arg3[%c1_21, %c0_22, %c0_23] : memref<12x128x128xf32, #tpu.memory_space<vmem>>, vector<1x128x128xf32>
    %52 = vector.shape_cast %51 : vector<1x128x128xf32> to vector<128x128xf32>
    %cst_24 = arith.constant dense<0.000000e+00> : vector<1x128xf32>
    %53 = tpu.matmul %45, %52, %cst_24 {dimension_numbers = #tpu.dot_dimension_numbers<[1], [0], [0], [1], [0, 0, 1, 1], [], []>} : vector<1x128xf32>, vector<128x128xf32>, vector<1x128xf32> -> vector<1x128xf32>
    %54 = vector.extract_strided_slice %25 {offsets = [1, 0], sizes = [1, 128], strides = [1, 1]} : vector<13x128xf32> to vector<1x128xf32>
    %55 = arith.addf %53, %54 : vector<1x128xf32>
    %c2 = arith.constant 2 : index
    %c0_25 = arith.constant 0 : index
    %c0_26 = arith.constant 0 : index
    %56 = vector.load %arg3[%c2, %c0_25, %c0_26] : memref<12x128x128xf32, #tpu.memory_space<vmem>>, vector<1x128x128xf32>
    %57 = vector.shape_cast %56 : vector<1x128x128xf32> to vector<128x128xf32>
    %cst_27 = arith.constant dense<0.000000e+00> : vector<1x128xf32>
    %58 = tpu.matmul %45, %57, %cst_27 {dimension_numbers = #tpu.dot_dimension_numbers<[1], [0], [0], [1], [0, 0, 1, 1], [], []>} : vector<1x128xf32>, vector<128x128xf32>, vector<1x128xf32> -> vector<1x128xf32>
    %59 = vector.extract_strided_slice %25 {offsets = [2, 0], sizes = [1, 128], strides = [1, 1]} : vector<13x128xf32> to vector<1x128xf32>
    %60 = arith.addf %58, %59 : vector<1x128xf32>
    %61 = vector.broadcast %1 : i32 to vector<8x128xi32>
    %62 = arith.cmpi eq, %23, %61 : vector<8x128xi32>
    %c0_28 = arith.constant 0 : index
    %c0_29 = arith.constant 0 : index
    %c0_30 = arith.constant 0 : index
    %63 = vector.load %arg10[%c0_28, %c0_29, %c0_30] : memref<2x8x128xf32, #tpu.memory_space<vmem>>, vector<1x8x128xf32>
    %64 = vector.shape_cast %63 : vector<1x8x128xf32> to vector<8x128xf32>
    %65 = vector.shape_cast %55 : vector<1x128xf32> to vector<1x128xf32>
    %66 = vector.broadcast %65 : vector<1x128xf32> to vector<8x128xf32>
    %67 = arith.select %62, %66, %64 : vector<8x128xi1>, vector<8x128xf32>
    %68 = vector.broadcast %1 : i32 to vector<8x128xi32>
    %69 = arith.cmpi eq, %23, %68 : vector<8x128xi32>
    %c0_31 = arith.constant 0 : index
    %c0_32 = arith.constant 0 : index
    %c0_33 = arith.constant 0 : index
    %70 = vector.load %arg11[%c0_31, %c0_32, %c0_33] : memref<2x8x128xf32, #tpu.memory_space<vmem>>, vector<1x8x128xf32>
    %71 = vector.shape_cast %70 : vector<1x8x128xf32> to vector<8x128xf32>
    %72 = vector.shape_cast %60 : vector<1x128xf32> to vector<1x128xf32>
    %73 = vector.broadcast %72 : vector<1x128xf32> to vector<8x128xf32>
    %74 = arith.select %69, %73, %71 : vector<8x128xi1>, vector<8x128xf32>
    %c0_34 = arith.constant 0 : index
    %c0_35 = arith.constant 0 : index
    %c0_36 = arith.constant 0 : index
    %75 = vector.load %arg15[%c0_34, %c0_35, %c0_36] : memref<2x8x128xf32, #tpu.memory_space<vmem>>, vector<1x8x128xf32>
    %76 = vector.shape_cast %75 : vector<1x8x128xf32> to vector<8x128xf32>
    %77 = vector.shape_cast %67 : vector<8x128xf32> to vector<1x8x128xf32>
    tpu.vector_store %arg15[%c0_34, %c0_35, %c0_36], %77 {strides = array<i32>} : memref<2x8x128xf32, #tpu.memory_space<vmem>>, vector<1x8x128xf32>,
    %c0_37 = arith.constant 0 : index
    %c0_38 = arith.constant 0 : index
    %c0_39 = arith.constant 0 : index
    %78 = vector.load %arg16[%c0_37, %c0_38, %c0_39] : memref<2x8x128xf32, #tpu.memory_space<vmem>>, vector<1x8x128xf32>
    %79 = vector.shape_cast %78 : vector<1x8x128xf32> to vector<8x128xf32>
    %80 = vector.shape_cast %74 : vector<8x128xf32> to vector<1x8x128xf32>
    tpu.vector_store %arg16[%c0_37, %c0_38, %c0_39], %80 {strides = array<i32>} : memref<2x8x128xf32, #tpu.memory_space<vmem>>, vector<1x8x128xf32>,
    %81 = vector.extract_strided_slice %50 {offsets = [0, 0], sizes = [1, 32], strides = [1, 1]} : vector<1x128xf32> to vector<1x32xf32>
    %cst_40 = arith.constant 0.176776692 : f32
    %82 = vector.broadcast %cst_40 : f32 to vector<1x32xf32>
    %83 = arith.mulf %81, %82 : vector<1x32xf32>
    %84 = vector.extract_strided_slice %67 {offsets = [0, 0], sizes = [8, 32], strides = [1, 1]} : vector<8x128xf32> to vector<8x32xf32>
    %85 = vector.extract_strided_slice %74 {offsets = [0, 0], sizes = [8, 32], strides = [1, 1]} : vector<8x128xf32> to vector<8x32xf32>
    %cst_41 = arith.constant dense<0.000000e+00> : vector<1x8xf32>
    %86 = tpu.matmul %83, %84, %cst_41 {dimension_numbers = #tpu.dot_dimension_numbers<[1], [1], [0], [0], [0, 0, 1, 0], [], []>} : vector<1x32xf32>, vector<8x32xf32>, vector<1x8xf32> -> vector<1x8xf32>
    %87 = arith.addf %86, %22 : vector<1x8xf32>
    %cst_42 = arith.constant dense<0xFF800000> : vector<1xf32>
    %88 = vector.multi_reduction <maximumf>, %87, %cst_42 [1] : vector<1x8xf32> to vector<1xf32>
    %89 = vector.shape_cast %88 : vector<1xf32> to vector<1x1xf32>
    %90 = vector.broadcast %89 : vector<1x1xf32> to vector<1x8xf32>
    %91 = arith.subf %87, %90 : vector<1x8xf32>
    %92 = math.exp %91 : vector<1x8xf32>
    %cst_43 = arith.constant dense<0.000000e+00> : vector<1xf32>
    %93 = vector.multi_reduction <add>, %92, %cst_43 [1] : vector<1x8xf32> to vector<1xf32>
    %94 = vector.shape_cast %93 : vector<1xf32> to vector<1x1xf32>
    %95 = tpu.reciprocal %94 {approx = true} : vector<1x1xf32> -> vector<1x1xf32>
    %96 = vector.broadcast %95 : vector<1x1xf32> to vector<1x8xf32>
    %97 = arith.mulf %92, %96 : vector<1x8xf32>
    %cst_44 = arith.constant dense<0.000000e+00> : vector<1x32xf32>
    %98 = tpu.matmul %97, %85, %cst_44 {dimension_numbers = #tpu.dot_dimension_numbers<[1], [0], [0], [1], [0, 0, 1, 1], [], []>} : vector<1x8xf32>, vector<8x32xf32>, vector<1x32xf32> -> vector<1x32xf32>
    %99 = vector.extract_strided_slice %50 {offsets = [0, 32], sizes = [1, 32], strides = [1, 1]} : vector<1x128xf32> to vector<1x32xf32>
    %cst_45 = arith.constant 0.176776692 : f32
    %100 = vector.broadcast %cst_45 : f32 to vector<1x32xf32>
    %101 = arith.mulf %99, %100 : vector<1x32xf32>
    %102 = vector.extract_strided_slice %67 {offsets = [0, 32], sizes = [8, 32], strides = [1, 1]} : vector<8x128xf32> to vector<8x32xf32>
    %103 = vector.extract_strided_slice %74 {offsets = [0, 32], sizes = [8, 32], strides = [1, 1]} : vector<8x128xf32> to vector<8x32xf32>
    %cst_46 = arith.constant dense<0.000000e+00> : vector<1x8xf32>
    %104 = tpu.matmul %101, %102, %cst_46 {dimension_numbers = #tpu.dot_dimension_numbers<[1], [1], [0], [0], [0, 0, 1, 0], [], []>} : vector<1x32xf32>, vector<8x32xf32>, vector<1x8xf32> -> vector<1x8xf32>
    %105 = arith.addf %104, %22 : vector<1x8xf32>
    %cst_47 = arith.constant dense<0xFF800000> : vector<1xf32>
    %106 = vector.multi_reduction <maximumf>, %105, %cst_47 [1] : vector<1x8xf32> to vector<1xf32>
    %107 = vector.shape_cast %106 : vector<1xf32> to vector<1x1xf32>
    %108 = vector.broadcast %107 : vector<1x1xf32> to vector<1x8xf32>
    %109 = arith.subf %105, %108 : vector<1x8xf32>
    %110 = math.exp %109 : vector<1x8xf32>
    %cst_48 = arith.constant dense<0.000000e+00> : vector<1xf32>
    %111 = vector.multi_reduction <add>, %110, %cst_48 [1] : vector<1x8xf32> to vector<1xf32>
    %112 = vector.shape_cast %111 : vector<1xf32> to vector<1x1xf32>
    %113 = tpu.reciprocal %112 {approx = true} : vector<1x1xf32> -> vector<1x1xf32>
    %114 = vector.broadcast %113 : vector<1x1xf32> to vector<1x8xf32>
    %115 = arith.mulf %110, %114 : vector<1x8xf32>
    %cst_49 = arith.constant dense<0.000000e+00> : vector<1x32xf32>
    %116 = tpu.matmul %115, %103, %cst_49 {dimension_numbers = #tpu.dot_dimension_numbers<[1], [0], [0], [1], [0, 0, 1, 1], [], []>} : vector<1x8xf32>, vector<8x32xf32>, vector<1x32xf32> -> vector<1x32xf32>
    %117 = vector.extract_strided_slice %50 {offsets = [0, 64], sizes = [1, 32], strides = [1, 1]} : vector<1x128xf32> to vector<1x32xf32>
    %cst_50 = arith.constant 0.176776692 : f32
    %118 = vector.broadcast %cst_50 : f32 to vector<1x32xf32>
    %119 = arith.mulf %117, %118 : vector<1x32xf32>
    %120 = vector.extract_strided_slice %67 {offsets = [0, 64], sizes = [8, 32], strides = [1, 1]} : vector<8x128xf32> to vector<8x32xf32>
    %121 = vector.extract_strided_slice %74 {offsets = [0, 64], sizes = [8, 32], strides = [1, 1]} : vector<8x128xf32> to vector<8x32xf32>
    %cst_51 = arith.constant dense<0.000000e+00> : vector<1x8xf32>
    %122 = tpu.matmul %119, %120, %cst_51 {dimension_numbers = #tpu.dot_dimension_numbers<[1], [1], [0], [0], [0, 0, 1, 0], [], []>} : vector<1x32xf32>, vector<8x32xf32>, vector<1x8xf32> -> vector<1x8xf32>
    %123 = arith.addf %122, %22 : vector<1x8xf32>
    %cst_52 = arith.constant dense<0xFF800000> : vector<1xf32>
    %124 = vector.multi_reduction <maximumf>, %123, %cst_52 [1] : vector<1x8xf32> to vector<1xf32>
    %125 = vector.shape_cast %124 : vector<1xf32> to vector<1x1xf32>
    %126 = vector.broadcast %125 : vector<1x1xf32> to vector<1x8xf32>
    %127 = arith.subf %123, %126 : vector<1x8xf32>
    %128 = math.exp %127 : vector<1x8xf32>
    %cst_53 = arith.constant dense<0.000000e+00> : vector<1xf32>
    %129 = vector.multi_reduction <add>, %128, %cst_53 [1] : vector<1x8xf32> to vector<1xf32>
    %130 = vector.shape_cast %129 : vector<1xf32> to vector<1x1xf32>
    %131 = tpu.reciprocal %130 {approx = true} : vector<1x1xf32> -> vector<1x1xf32>
    %132 = vector.broadcast %131 : vector<1x1xf32> to vector<1x8xf32>
    %133 = arith.mulf %128, %132 : vector<1x8xf32>
    %cst_54 = arith.constant dense<0.000000e+00> : vector<1x32xf32>
    %134 = tpu.matmul %133, %121, %cst_54 {dimension_numbers = #tpu.dot_dimension_numbers<[1], [0], [0], [1], [0, 0, 1, 1], [], []>} : vector<1x8xf32>, vector<8x32xf32>, vector<1x32xf32> -> vector<1x32xf32>
    %135 = vector.extract_strided_slice %50 {offsets = [0, 96], sizes = [1, 32], strides = [1, 1]} : vector<1x128xf32> to vector<1x32xf32>
    %cst_55 = arith.constant 0.176776692 : f32
    %136 = vector.broadcast %cst_55 : f32 to vector<1x32xf32>
    %137 = arith.mulf %135, %136 : vector<1x32xf32>
    %138 = vector.extract_strided_slice %67 {offsets = [0, 96], sizes = [8, 32], strides = [1, 1]} : vector<8x128xf32> to vector<8x32xf32>
    %139 = vector.extract_strided_slice %74 {offsets = [0, 96], sizes = [8, 32], strides = [1, 1]} : vector<8x128xf32> to vector<8x32xf32>
    %cst_56 = arith.constant dense<0.000000e+00> : vector<1x8xf32>
    %140 = tpu.matmul %137, %138, %cst_56 {dimension_numbers = #tpu.dot_dimension_numbers<[1], [1], [0], [0], [0, 0, 1, 0], [], []>} : vector<1x32xf32>, vector<8x32xf32>, vector<1x8xf32> -> vector<1x8xf32>
    %141 = arith.addf %140, %22 : vector<1x8xf32>
    %cst_57 = arith.constant dense<0xFF800000> : vector<1xf32>
    %142 = vector.multi_reduction <maximumf>, %141, %cst_57 [1] : vector<1x8xf32> to vector<1xf32>
    %143 = vector.shape_cast %142 : vector<1xf32> to vector<1x1xf32>
    %144 = vector.broadcast %143 : vector<1x1xf32> to vector<1x8xf32>
    %145 = arith.subf %141, %144 : vector<1x8xf32>
    %146 = math.exp %145 : vector<1x8xf32>
    %cst_58 = arith.constant dense<0.000000e+00> : vector<1xf32>
    %147 = vector.multi_reduction <add>, %146, %cst_58 [1] : vector<1x8xf32> to vector<1xf32>
    %148 = vector.shape_cast %147 : vector<1xf32> to vector<1x1xf32>
    %149 = tpu.reciprocal %148 {approx = true} : vector<1x1xf32> -> vector<1x1xf32>
    %150 = vector.broadcast %149 : vector<1x1xf32> to vector<1x8xf32>
    %151 = arith.mulf %146, %150 : vector<1x8xf32>
    %cst_59 = arith.constant dense<0.000000e+00> : vector<1x32xf32>
    %152 = tpu.matmul %151, %139, %cst_59 {dimension_numbers = #tpu.dot_dimension_numbers<[1], [0], [0], [1], [0, 0, 1, 1], [], []>} : vector<1x8xf32>, vector<8x32xf32>, vector<1x32xf32> -> vector<1x32xf32>
    %153 = tpu.concatenate %98, %116, %134, %152 in 1 : vector<1x32xf32>, vector<1x32xf32>, vector<1x32xf32>, vector<1x32xf32> -> vector<1x128xf32>
    %c3 = arith.constant 3 : index
    %c0_60 = arith.constant 0 : index
    %c0_61 = arith.constant 0 : index
    %154 = vector.load %arg3[%c3, %c0_60, %c0_61] : memref<12x128x128xf32, #tpu.memory_space<vmem>>, vector<1x128x128xf32>
    %155 = vector.shape_cast %154 : vector<1x128x128xf32> to vector<128x128xf32>
    %cst_62 = arith.constant dense<0.000000e+00> : vector<1x128xf32>
    %156 = tpu.matmul %153, %155, %cst_62 {dimension_numbers = #tpu.dot_dimension_numbers<[1], [0], [0], [1], [0, 0, 1, 1], [], []>} : vector<1x128xf32>, vector<128x128xf32>, vector<1x128xf32> -> vector<1x128xf32>
    %157 = arith.addf %16, %156 : vector<1x128xf32>
    %158 = vector.extract_strided_slice %25 {offsets = [3, 0], sizes = [1, 128], strides = [1, 1]} : vector<13x128xf32> to vector<1x128xf32>
    %159 = arith.addf %157, %158 : vector<1x128xf32>
    %160 = vector.extract_strided_slice %25 {offsets = [8, 0], sizes = [1, 128], strides = [1, 1]} : vector<13x128xf32> to vector<1x128xf32>
    %161 = vector.extract_strided_slice %25 {offsets = [9, 0], sizes = [1, 128], strides = [1, 1]} : vector<13x128xf32> to vector<1x128xf32>
    %cst_63 = arith.constant dense<0.000000e+00> : vector<1xf32>
    %162 = vector.multi_reduction <add>, %159, %cst_63 [1] : vector<1x128xf32> to vector<1xf32>
    %163 = vector.shape_cast %162 : vector<1xf32> to vector<1x1xf32>
    %cst_64 = arith.constant 1.280000e+02 : f32
    %164 = vector.broadcast %cst_64 : f32 to vector<1x1xf32>
    %165 = arith.divf %163, %164 : vector<1x1xf32>
    %166 = vector.broadcast %165 : vector<1x1xf32> to vector<1x128xf32>
    %167 = arith.subf %159, %166 : vector<1x128xf32>
    %168 = arith.mulf %167, %167 : vector<1x128xf32>
    %cst_65 = arith.constant dense<0.000000e+00> : vector<1xf32>
    %169 = vector.multi_reduction <add>, %168, %cst_65 [1] : vector<1x128xf32> to vector<1xf32>
    %170 = vector.shape_cast %169 : vector<1xf32> to vector<1x1xf32>
    %cst_66 = arith.constant 1.280000e+02 : f32
    %171 = vector.broadcast %cst_66 : f32 to vector<1x1xf32>
    %172 = arith.divf %170, %171 : vector<1x1xf32>
    %cst_67 = arith.constant 9.99999974E-6 : f32
    %173 = vector.broadcast %cst_67 : f32 to vector<1x1xf32>
    %174 = arith.addf %172, %173 : vector<1x1xf32>
    %175 = math.rsqrt %174 : vector<1x1xf32>
    %176 = vector.broadcast %175 : vector<1x1xf32> to vector<1x128xf32>
    %177 = arith.mulf %167, %176 : vector<1x128xf32>
    %178 = arith.mulf %177, %160 : vector<1x128xf32>
    %179 = arith.addf %178, %161 : vector<1x128xf32>
    %c4 = arith.constant 4 : index
    %c0_68 = arith.constant 0 : index
    %c0_69 = arith.constant 0 : index
    %180 = vector.load %arg3[%c4, %c0_68, %c0_69] : memref<12x128x128xf32, #tpu.memory_space<vmem>>, vector<1x128x128xf32>
    %181 = vector.shape_cast %180 : vector<1x128x128xf32> to vector<128x128xf32>
    %cst_70 = arith.constant dense<0.000000e+00> : vector<1x128xf32>
    %182 = tpu.matmul %179, %181, %cst_70 {dimension_numbers = #tpu.dot_dimension_numbers<[1], [0], [0], [1], [0, 0, 1, 1], [], []>} : vector<1x128xf32>, vector<128x128xf32>, vector<1x128xf32> -> vector<1x128xf32>
    %183 = vector.extract_strided_slice %25 {offsets = [4, 0], sizes = [1, 128], strides = [1, 1]} : vector<13x128xf32> to vector<1x128xf32>
    %184 = arith.addf %182, %183 : vector<1x128xf32>
    %c0_71 = arith.constant 0 : index
    %c0_72 = arith.constant 0 : index
    %c0_73 = arith.constant 0 : index
    %185 = vector.load %arg8[%c0_71, %c0_72, %c0_73] : memref<2x8x128xf32, #tpu.memory_space<vmem>>, vector<1x8x128xf32>
    %186 = vector.shape_cast %185 : vector<1x8x128xf32> to vector<8x128xf32>
    %c0_74 = arith.constant 0 : index
    %c0_75 = arith.constant 0 : index
    %c0_76 = arith.constant 0 : index
    %187 = vector.load %arg9[%c0_74, %c0_75, %c0_76] : memref<2x8x128xf32, #tpu.memory_space<vmem>>, vector<1x8x128xf32>
    %188 = vector.shape_cast %187 : vector<1x8x128xf32> to vector<8x128xf32>
    %189 = vector.extract_strided_slice %184 {offsets = [0, 0], sizes = [1, 32], strides = [1, 1]} : vector<1x128xf32> to vector<1x32xf32>
    %cst_77 = arith.constant 0.176776692 : f32
    %190 = vector.broadcast %cst_77 : f32 to vector<1x32xf32>
    %191 = arith.mulf %189, %190 : vector<1x32xf32>
    %192 = vector.extract_strided_slice %186 {offsets = [0, 0], sizes = [8, 32], strides = [1, 1]} : vector<8x128xf32> to vector<8x32xf32>
    %193 = vector.extract_strided_slice %188 {offsets = [0, 0], sizes = [8, 32], strides = [1, 1]} : vector<8x128xf32> to vector<8x32xf32>
    %cst_78 = arith.constant dense<0.000000e+00> : vector<1x8xf32>
    %194 = tpu.matmul %191, %192, %cst_78 {dimension_numbers = #tpu.dot_dimension_numbers<[1], [1], [0], [0], [0, 0, 1, 0], [], []>} : vector<1x32xf32>, vector<8x32xf32>, vector<1x8xf32> -> vector<1x8xf32>
    %cst_79 = arith.constant dense<0xFF800000> : vector<1xf32>
    %195 = vector.multi_reduction <maximumf>, %194, %cst_79 [1] : vector<1x8xf32> to vector<1xf32>
    %196 = vector.shape_cast %195 : vector<1xf32> to vector<1x1xf32>
    %197 = vector.broadcast %196 : vector<1x1xf32> to vector<1x8xf32>
    %198 = arith.subf %194, %197 : vector<1x8xf32>
    %199 = math.exp %198 : vector<1x8xf32>
    %cst_80 = arith.constant dense<0.000000e+00> : vector<1xf32>
    %200 = vector.multi_reduction <add>, %199, %cst_80 [1] : vector<1x8xf32> to vector<1xf32>
    %201 = vector.shape_cast %200 : vector<1xf32> to vector<1x1xf32>
    %202 = tpu.reciprocal %201 {approx = true} : vector<1x1xf32> -> vector<1x1xf32>
    %203 = vector.broadcast %202 : vector<1x1xf32> to vector<1x8xf32>
    %204 = arith.mulf %199, %203 : vector<1x8xf32>
    %cst_81 = arith.constant dense<0.000000e+00> : vector<1x32xf32>
    %205 = tpu.matmul %204, %193, %cst_81 {dimension_numbers = #tpu.dot_dimension_numbers<[1], [0], [0], [1], [0, 0, 1, 1], [], []>} : vector<1x8xf32>, vector<8x32xf32>, vector<1x32xf32> -> vector<1x32xf32>
    %206 = vector.extract_strided_slice %184 {offsets = [0, 32], sizes = [1, 32], strides = [1, 1]} : vector<1x128xf32> to vector<1x32xf32>
    %cst_82 = arith.constant 0.176776692 : f32
    %207 = vector.broadcast %cst_82 : f32 to vector<1x32xf32>
    %208 = arith.mulf %206, %207 : vector<1x32xf32>
    %209 = vector.extract_strided_slice %186 {offsets = [0, 32], sizes = [8, 32], strides = [1, 1]} : vector<8x128xf32> to vector<8x32xf32>
    %210 = vector.extract_strided_slice %188 {offsets = [0, 32], sizes = [8, 32], strides = [1, 1]} : vector<8x128xf32> to vector<8x32xf32>
    %cst_83 = arith.constant dense<0.000000e+00> : vector<1x8xf32>
    %211 = tpu.matmul %208, %209, %cst_83 {dimension_numbers = #tpu.dot_dimension_numbers<[1], [1], [0], [0], [0, 0, 1, 0], [], []>} : vector<1x32xf32>, vector<8x32xf32>, vector<1x8xf32> -> vector<1x8xf32>
    %cst_84 = arith.constant dense<0xFF800000> : vector<1xf32>
    %212 = vector.multi_reduction <maximumf>, %211, %cst_84 [1] : vector<1x8xf32> to vector<1xf32>
    %213 = vector.shape_cast %212 : vector<1xf32> to vector<1x1xf32>
    %214 = vector.broadcast %213 : vector<1x1xf32> to vector<1x8xf32>
    %215 = arith.subf %211, %214 : vector<1x8xf32>
    %216 = math.exp %215 : vector<1x8xf32>
    %cst_85 = arith.constant dense<0.000000e+00> : vector<1xf32>
    %217 = vector.multi_reduction <add>, %216, %cst_85 [1] : vector<1x8xf32> to vector<1xf32>
    %218 = vector.shape_cast %217 : vector<1xf32> to vector<1x1xf32>
    %219 = tpu.reciprocal %218 {approx = true} : vector<1x1xf32> -> vector<1x1xf32>
    %220 = vector.broadcast %219 : vector<1x1xf32> to vector<1x8xf32>
    %221 = arith.mulf %216, %220 : vector<1x8xf32>
    %cst_86 = arith.constant dense<0.000000e+00> : vector<1x32xf32>
    %222 = tpu.matmul %221, %210, %cst_86 {dimension_numbers = #tpu.dot_dimension_numbers<[1], [0], [0], [1], [0, 0, 1, 1], [], []>} : vector<1x8xf32>, vector<8x32xf32>, vector<1x32xf32> -> vector<1x32xf32>
    %223 = vector.extract_strided_slice %184 {offsets = [0, 64], sizes = [1, 32], strides = [1, 1]} : vector<1x128xf32> to vector<1x32xf32>
    %cst_87 = arith.constant 0.176776692 : f32
    %224 = vector.broadcast %cst_87 : f32 to vector<1x32xf32>
    %225 = arith.mulf %223, %224 : vector<1x32xf32>
    %226 = vector.extract_strided_slice %186 {offsets = [0, 64], sizes = [8, 32], strides = [1, 1]} : vector<8x128xf32> to vector<8x32xf32>
    %227 = vector.extract_strided_slice %188 {offsets = [0, 64], sizes = [8, 32], strides = [1, 1]} : vector<8x128xf32> to vector<8x32xf32>
    %cst_88 = arith.constant dense<0.000000e+00> : vector<1x8xf32>
    %228 = tpu.matmul %225, %226, %cst_88 {dimension_numbers = #tpu.dot_dimension_numbers<[1], [1], [0], [0], [0, 0, 1, 0], [], []>} : vector<1x32xf32>, vector<8x32xf32>, vector<1x8xf32> -> vector<1x8xf32>
    %cst_89 = arith.constant dense<0xFF800000> : vector<1xf32>
    %229 = vector.multi_reduction <maximumf>, %228, %cst_89 [1] : vector<1x8xf32> to vector<1xf32>
    %230 = vector.shape_cast %229 : vector<1xf32> to vector<1x1xf32>
    %231 = vector.broadcast %230 : vector<1x1xf32> to vector<1x8xf32>
    %232 = arith.subf %228, %231 : vector<1x8xf32>
    %233 = math.exp %232 : vector<1x8xf32>
    %cst_90 = arith.constant dense<0.000000e+00> : vector<1xf32>
    %234 = vector.multi_reduction <add>, %233, %cst_90 [1] : vector<1x8xf32> to vector<1xf32>
    %235 = vector.shape_cast %234 : vector<1xf32> to vector<1x1xf32>
    %236 = tpu.reciprocal %235 {approx = true} : vector<1x1xf32> -> vector<1x1xf32>
    %237 = vector.broadcast %236 : vector<1x1xf32> to vector<1x8xf32>
    %238 = arith.mulf %233, %237 : vector<1x8xf32>
    %cst_91 = arith.constant dense<0.000000e+00> : vector<1x32xf32>
    %239 = tpu.matmul %238, %227, %cst_91 {dimension_numbers = #tpu.dot_dimension_numbers<[1], [0], [0], [1], [0, 0, 1, 1], [], []>} : vector<1x8xf32>, vector<8x32xf32>, vector<1x32xf32> -> vector<1x32xf32>
    %240 = vector.extract_strided_slice %184 {offsets = [0, 96], sizes = [1, 32], strides = [1, 1]} : vector<1x128xf32> to vector<1x32xf32>
    %cst_92 = arith.constant 0.176776692 : f32
    %241 = vector.broadcast %cst_92 : f32 to vector<1x32xf32>
    %242 = arith.mulf %240, %241 : vector<1x32xf32>
    %243 = vector.extract_strided_slice %186 {offsets = [0, 96], sizes = [8, 32], strides = [1, 1]} : vector<8x128xf32> to vector<8x32xf32>
    %244 = vector.extract_strided_slice %188 {offsets = [0, 96], sizes = [8, 32], strides = [1, 1]} : vector<8x128xf32> to vector<8x32xf32>
    %cst_93 = arith.constant dense<0.000000e+00> : vector<1x8xf32>
    %245 = tpu.matmul %242, %243, %cst_93 {dimension_numbers = #tpu.dot_dimension_numbers<[1], [1], [0], [0], [0, 0, 1, 0], [], []>} : vector<1x32xf32>, vector<8x32xf32>, vector<1x8xf32> -> vector<1x8xf32>
    %cst_94 = arith.constant dense<0xFF800000> : vector<1xf32>
    %246 = vector.multi_reduction <maximumf>, %245, %cst_94 [1] : vector<1x8xf32> to vector<1xf32>
    %247 = vector.shape_cast %246 : vector<1xf32> to vector<1x1xf32>
    %248 = vector.broadcast %247 : vector<1x1xf32> to vector<1x8xf32>
    %249 = arith.subf %245, %248 : vector<1x8xf32>
    %250 = math.exp %249 : vector<1x8xf32>
    %cst_95 = arith.constant dense<0.000000e+00> : vector<1xf32>
    %251 = vector.multi_reduction <add>, %250, %cst_95 [1] : vector<1x8xf32> to vector<1xf32>
    %252 = vector.shape_cast %251 : vector<1xf32> to vector<1x1xf32>
    %253 = tpu.reciprocal %252 {approx = true} : vector<1x1xf32> -> vector<1x1xf32>
    %254 = vector.broadcast %253 : vector<1x1xf32> to vector<1x8xf32>
    %255 = arith.mulf %250, %254 : vector<1x8xf32>
    %cst_96 = arith.constant dense<0.000000e+00> : vector<1x32xf32>
    %256 = tpu.matmul %255, %244, %cst_96 {dimension_numbers = #tpu.dot_dimension_numbers<[1], [0], [0], [1], [0, 0, 1, 1], [], []>} : vector<1x8xf32>, vector<8x32xf32>, vector<1x32xf32> -> vector<1x32xf32>
    %257 = tpu.concatenate %205, %222, %239, %256 in 1 : vector<1x32xf32>, vector<1x32xf32>, vector<1x32xf32>, vector<1x32xf32> -> vector<1x128xf32>
    %c5 = arith.constant 5 : index
    %c0_97 = arith.constant 0 : index
    %c0_98 = arith.constant 0 : index
    %258 = vector.load %arg3[%c5, %c0_97, %c0_98] : memref<12x128x128xf32, #tpu.memory_space<vmem>>, vector<1x128x128xf32>
    %259 = vector.shape_cast %258 : vector<1x128x128xf32> to vector<128x128xf32>
    %cst_99 = arith.constant dense<0.000000e+00> : vector<1x128xf32>
    %260 = tpu.matmul %257, %259, %cst_99 {dimension_numbers = #tpu.dot_dimension_numbers<[1], [0], [0], [1], [0, 0, 1, 1], [], []>} : vector<1x128xf32>, vector<128x128xf32>, vector<1x128xf32> -> vector<1x128xf32>
    %261 = arith.addf %159, %260 : vector<1x128xf32>
    %262 = vector.extract_strided_slice %25 {offsets = [5, 0], sizes = [1, 128], strides = [1, 1]} : vector<13x128xf32> to vector<1x128xf32>
    %263 = arith.addf %261, %262 : vector<1x128xf32>
    %264 = vector.extract_strided_slice %25 {offsets = [10, 0], sizes = [1, 128], strides = [1, 1]} : vector<13x128xf32> to vector<1x128xf32>
    %265 = vector.extract_strided_slice %25 {offsets = [11, 0], sizes = [1, 128], strides = [1, 1]} : vector<13x128xf32> to vector<1x128xf32>
    %cst_100 = arith.constant dense<0.000000e+00> : vector<1xf32>
    %266 = vector.multi_reduction <add>, %263, %cst_100 [1] : vector<1x128xf32> to vector<1xf32>
    %267 = vector.shape_cast %266 : vector<1xf32> to vector<1x1xf32>
    %cst_101 = arith.constant 1.280000e+02 : f32
    %268 = vector.broadcast %cst_101 : f32 to vector<1x1xf32>
    %269 = arith.divf %267, %268 : vector<1x1xf32>
    %270 = vector.broadcast %269 : vector<1x1xf32> to vector<1x128xf32>
    %271 = arith.subf %263, %270 : vector<1x128xf32>
    %272 = arith.mulf %271, %271 : vector<1x128xf32>
    %cst_102 = arith.constant dense<0.000000e+00> : vector<1xf32>
    %273 = vector.multi_reduction <add>, %272, %cst_102 [1] : vector<1x128xf32> to vector<1xf32>
    %274 = vector.shape_cast %273 : vector<1xf32> to vector<1x1xf32>
    %cst_103 = arith.constant 1.280000e+02 : f32
    %275 = vector.broadcast %cst_103 : f32 to vector<1x1xf32>
    %276 = arith.divf %274, %275 : vector<1x1xf32>
    %cst_104 = arith.constant 9.99999974E-6 : f32
    %277 = vector.broadcast %cst_104 : f32 to vector<1x1xf32>
    %278 = arith.addf %276, %277 : vector<1x1xf32>
    %279 = math.rsqrt %278 : vector<1x1xf32>
    %280 = vector.broadcast %279 : vector<1x1xf32> to vector<1x128xf32>
    %281 = arith.mulf %271, %280 : vector<1x128xf32>
    %282 = arith.mulf %281, %264 : vector<1x128xf32>
    %283 = arith.addf %282, %265 : vector<1x128xf32>
    %c0_105 = arith.constant 0 : index
    %c0_106 = arith.constant 0 : index
    %c0_107 = arith.constant 0 : index
    %284 = vector.load %arg5[%c0_105, %c0_106, %c0_107] : memref<2x128x256xf32, #tpu.memory_space<vmem>>, vector<1x128x256xf32>
    %285 = vector.shape_cast %284 : vector<1x128x256xf32> to vector<128x256xf32>
    %cst_108 = arith.constant dense<0.000000e+00> : vector<1x256xf32>
    %286 = tpu.matmul %283, %285, %cst_108 {dimension_numbers = #tpu.dot_dimension_numbers<[1], [0], [0], [1], [0, 0, 1, 1], [], []>} : vector<1x128xf32>, vector<128x256xf32>, vector<1x256xf32> -> vector<1x256xf32>
    %c0_109 = arith.constant 0 : index
    %c0_110 = arith.constant 0 : index
    %c0_111 = arith.constant 0 : index
    %287 = vector.load %arg6[%c0_109, %c0_110, %c0_111] : memref<2x1x256xf32, #tpu.memory_space<vmem>>, vector<1x1x256xf32>
    %288 = vector.shape_cast %287 : vector<1x1x256xf32> to vector<1x256xf32>
    %289 = arith.addf %286, %288 : vector<1x256xf32>
    %cst_112 = arith.constant 5.000000e-01 : f32
    %290 = vector.broadcast %cst_112 : f32 to vector<1x256xf32>
    %291 = arith.mulf %290, %289 : vector<1x256xf32>
    %cst_113 = arith.constant 4.471500e-02 : f32
    %292 = vector.broadcast %cst_113 : f32 to vector<1x256xf32>
    %293 = arith.mulf %292, %289 : vector<1x256xf32>
    %294 = arith.mulf %293, %289 : vector<1x256xf32>
    %295 = arith.mulf %294, %289 : vector<1x256xf32>
    %296 = arith.addf %289, %295 : vector<1x256xf32>
    %cst_114 = arith.constant 0.797884583 : f32
    %297 = vector.broadcast %cst_114 : f32 to vector<1x256xf32>
    %298 = arith.mulf %297, %296 : vector<1x256xf32>
    %299 = math.tanh %298 : vector<1x256xf32>
    %cst_115 = arith.constant 1.000000e+00 : f32
    %300 = vector.broadcast %cst_115 : f32 to vector<1x256xf32>
    %301 = arith.addf %300, %299 : vector<1x256xf32>
    %302 = arith.mulf %291, %301 : vector<1x256xf32>
    %c0_116 = arith.constant 0 : index
    %c0_117 = arith.constant 0 : index
    %c0_118 = arith.constant 0 : index
    %303 = vector.load %arg7[%c0_116, %c0_117, %c0_118] : memref<2x256x128xf32, #tpu.memory_space<vmem>>, vector<1x256x128xf32>
    %304 = vector.shape_cast %303 : vector<1x256x128xf32> to vector<256x128xf32>
    %cst_119 = arith.constant dense<0.000000e+00> : vector<1x128xf32>
    %305 = tpu.matmul %302, %304, %cst_119 {dimension_numbers = #tpu.dot_dimension_numbers<[1], [0], [0], [1], [0, 0, 1, 1], [], []>} : vector<1x256xf32>, vector<256x128xf32>, vector<1x128xf32> -> vector<1x128xf32>
    %306 = arith.addf %263, %305 : vector<1x128xf32>
    %307 = vector.extract_strided_slice %25 {offsets = [12, 0], sizes = [1, 128], strides = [1, 1]} : vector<13x128xf32> to vector<1x128xf32>
    %308 = arith.addf %306, %307 : vector<1x128xf32>
    %c1_120 = arith.constant 1 : index
    %c0_121 = arith.constant 0 : index
    %309 = vector.load %arg13[%c1_120, %c0_121] : memref<3x128xf32, #tpu.memory_space<vmem>>, vector<1x128xf32>
    tpu.vector_store %arg13[%c1_120, %c0_121], %308 {strides = array<i32>} : memref<3x128xf32, #tpu.memory_space<vmem>>, vector<1x128xf32>,
    %c1_122 = arith.constant 1 : index
    %c0_123 = arith.constant 0 : index
    %c0_124 = arith.constant 0 : index
    %310 = vector.load %arg4[%c1_122, %c0_123, %c0_124] : memref<2x13x128xf32, #tpu.memory_space<vmem>>, vector<1x13x128xf32>
    %311 = vector.shape_cast %310 : vector<1x13x128xf32> to vector<13x128xf32>
    %312 = vector.extract_strided_slice %311 {offsets = [6, 0], sizes = [1, 128], strides = [1, 1]} : vector<13x128xf32> to vector<1x128xf32>
    %313 = vector.extract_strided_slice %311 {offsets = [7, 0], sizes = [1, 128], strides = [1, 1]} : vector<13x128xf32> to vector<1x128xf32>
    %cst_125 = arith.constant dense<0.000000e+00> : vector<1xf32>
    %314 = vector.multi_reduction <add>, %308, %cst_125 [1] : vector<1x128xf32> to vector<1xf32>
    %315 = vector.shape_cast %314 : vector<1xf32> to vector<1x1xf32>
    %cst_126 = arith.constant 1.280000e+02 : f32
    %316 = vector.broadcast %cst_126 : f32 to vector<1x1xf32>
    %317 = arith.divf %315, %316 : vector<1x1xf32>
    %318 = vector.broadcast %317 : vector<1x1xf32> to vector<1x128xf32>
    %319 = arith.subf %308, %318 : vector<1x128xf32>
    %320 = arith.mulf %319, %319 : vector<1x128xf32>
    %cst_127 = arith.constant dense<0.000000e+00> : vector<1xf32>
    %321 = vector.multi_reduction <add>, %320, %cst_127 [1] : vector<1x128xf32> to vector<1xf32>
    %322 = vector.shape_cast %321 : vector<1xf32> to vector<1x1xf32>
    %cst_128 = arith.constant 1.280000e+02 : f32
    %323 = vector.broadcast %cst_128 : f32 to vector<1x1xf32>
    %324 = arith.divf %322, %323 : vector<1x1xf32>
    %cst_129 = arith.constant 9.99999974E-6 : f32
    %325 = vector.broadcast %cst_129 : f32 to vector<1x1xf32>
    %326 = arith.addf %324, %325 : vector<1x1xf32>
    %327 = math.rsqrt %326 : vector<1x1xf32>
    %328 = vector.broadcast %327 : vector<1x1xf32> to vector<1x128xf32>
    %329 = arith.mulf %319, %328 : vector<1x128xf32>
    %330 = arith.mulf %329, %312 : vector<1x128xf32>
    %331 = arith.addf %330, %313 : vector<1x128xf32>
    %c6 = arith.constant 6 : index
    %c0_130 = arith.constant 0 : index
    %c0_131 = arith.constant 0 : index
    %332 = vector.load %arg3[%c6, %c0_130, %c0_131] : memref<12x128x128xf32, #tpu.memory_space<vmem>>, vector<1x128x128xf32>
    %333 = vector.shape_cast %332 : vector<1x128x128xf32> to vector<128x128xf32>
    %cst_132 = arith.constant dense<0.000000e+00> : vector<1x128xf32>
    %334 = tpu.matmul %331, %333, %cst_132 {dimension_numbers = #tpu.dot_dimension_numbers<[1], [0], [0], [1], [0, 0, 1, 1], [], []>} : vector<1x128xf32>, vector<128x128xf32>, vector<1x128xf32> -> vector<1x128xf32>
    %335 = vector.extract_strided_slice %311 {offsets = [0, 0], sizes = [1, 128], strides = [1, 1]} : vector<13x128xf32> to vector<1x128xf32>
    %336 = arith.addf %334, %335 : vector<1x128xf32>
    %c7 = arith.constant 7 : index
    %c0_133 = arith.constant 0 : index
    %c0_134 = arith.constant 0 : index
    %337 = vector.load %arg3[%c7, %c0_133, %c0_134] : memref<12x128x128xf32, #tpu.memory_space<vmem>>, vector<1x128x128xf32>
    %338 = vector.shape_cast %337 : vector<1x128x128xf32> to vector<128x128xf32>
    %cst_135 = arith.constant dense<0.000000e+00> : vector<1x128xf32>
    %339 = tpu.matmul %331, %338, %cst_135 {dimension_numbers = #tpu.dot_dimension_numbers<[1], [0], [0], [1], [0, 0, 1, 1], [], []>} : vector<1x128xf32>, vector<128x128xf32>, vector<1x128xf32> -> vector<1x128xf32>
    %340 = vector.extract_strided_slice %311 {offsets = [1, 0], sizes = [1, 128], strides = [1, 1]} : vector<13x128xf32> to vector<1x128xf32>
    %341 = arith.addf %339, %340 : vector<1x128xf32>
    %c8 = arith.constant 8 : index
    %c0_136 = arith.constant 0 : index
    %c0_137 = arith.constant 0 : index
    %342 = vector.load %arg3[%c8, %c0_136, %c0_137] : memref<12x128x128xf32, #tpu.memory_space<vmem>>, vector<1x128x128xf32>
    %343 = vector.shape_cast %342 : vector<1x128x128xf32> to vector<128x128xf32>
    %cst_138 = arith.constant dense<0.000000e+00> : vector<1x128xf32>
    %344 = tpu.matmul %331, %343, %cst_138 {dimension_numbers = #tpu.dot_dimension_numbers<[1], [0], [0], [1], [0, 0, 1, 1], [], []>} : vector<1x128xf32>, vector<128x128xf32>, vector<1x128xf32> -> vector<1x128xf32>
    %345 = vector.extract_strided_slice %311 {offsets = [2, 0], sizes = [1, 128], strides = [1, 1]} : vector<13x128xf32> to vector<1x128xf32>
    %346 = arith.addf %344, %345 : vector<1x128xf32>
    %347 = vector.broadcast %1 : i32 to vector<8x128xi32>
    %348 = arith.cmpi eq, %23, %347 : vector<8x128xi32>
    %c1_139 = arith.constant 1 : index
    %c0_140 = arith.constant 0 : index
    %c0_141 = arith.constant 0 : index
    %349 = vector.load %arg10[%c1_139, %c0_140, %c0_141] : memref<2x8x128xf32, #tpu.memory_space<vmem>>, vector<1x8x128xf32>
    %350 = vector.shape_cast %349 : vector<1x8x128xf32> to vector<8x128xf32>
    %351 = vector.shape_cast %341 : vector<1x128xf32> to vector<1x128xf32>
    %352 = vector.broadcast %351 : vector<1x128xf32> to vector<8x128xf32>
    %353 = arith.select %348, %352, %350 : vector<8x128xi1>, vector<8x128xf32>
    %354 = vector.broadcast %1 : i32 to vector<8x128xi32>
    %355 = arith.cmpi eq, %23, %354 : vector<8x128xi32>
    %c1_142 = arith.constant 1 : index
    %c0_143 = arith.constant 0 : index
    %c0_144 = arith.constant 0 : index
    %356 = vector.load %arg11[%c1_142, %c0_143, %c0_144] : memref<2x8x128xf32, #tpu.memory_space<vmem>>, vector<1x8x128xf32>
    %357 = vector.shape_cast %356 : vector<1x8x128xf32> to vector<8x128xf32>
    %358 = vector.shape_cast %346 : vector<1x128xf32> to vector<1x128xf32>
    %359 = vector.broadcast %358 : vector<1x128xf32> to vector<8x128xf32>
    %360 = arith.select %355, %359, %357 : vector<8x128xi1>, vector<8x128xf32>
    %c1_145 = arith.constant 1 : index
    %c0_146 = arith.constant 0 : index
    %c0_147 = arith.constant 0 : index
    %361 = vector.load %arg15[%c1_145, %c0_146, %c0_147] : memref<2x8x128xf32, #tpu.memory_space<vmem>>, vector<1x8x128xf32>
    %362 = vector.shape_cast %361 : vector<1x8x128xf32> to vector<8x128xf32>
    %363 = vector.shape_cast %353 : vector<8x128xf32> to vector<1x8x128xf32>
    tpu.vector_store %arg15[%c1_145, %c0_146, %c0_147], %363 {strides = array<i32>} : memref<2x8x128xf32, #tpu.memory_space<vmem>>, vector<1x8x128xf32>,
    %c1_148 = arith.constant 1 : index
    %c0_149 = arith.constant 0 : index
    %c0_150 = arith.constant 0 : index
    %364 = vector.load %arg16[%c1_148, %c0_149, %c0_150] : memref<2x8x128xf32, #tpu.memory_space<vmem>>, vector<1x8x128xf32>
    %365 = vector.shape_cast %364 : vector<1x8x128xf32> to vector<8x128xf32>
    %366 = vector.shape_cast %360 : vector<8x128xf32> to vector<1x8x128xf32>
    tpu.vector_store %arg16[%c1_148, %c0_149, %c0_150], %366 {strides = array<i32>} : memref<2x8x128xf32, #tpu.memory_space<vmem>>, vector<1x8x128xf32>,
    %367 = vector.extract_strided_slice %336 {offsets = [0, 0], sizes = [1, 32], strides = [1, 1]} : vector<1x128xf32> to vector<1x32xf32>
    %cst_151 = arith.constant 0.176776692 : f32
    %368 = vector.broadcast %cst_151 : f32 to vector<1x32xf32>
    %369 = arith.mulf %367, %368 : vector<1x32xf32>
    %370 = vector.extract_strided_slice %353 {offsets = [0, 0], sizes = [8, 32], strides = [1, 1]} : vector<8x128xf32> to vector<8x32xf32>
    %371 = vector.extract_strided_slice %360 {offsets = [0, 0], sizes = [8, 32], strides = [1, 1]} : vector<8x128xf32> to vector<8x32xf32>
    %cst_152 = arith.constant dense<0.000000e+00> : vector<1x8xf32>
    %372 = tpu.matmul %369, %370, %cst_152 {dimension_numbers = #tpu.dot_dimension_numbers<[1], [1], [0], [0], [0, 0, 1, 0], [], []>} : vector<1x32xf32>, vector<8x32xf32>, vector<1x8xf32> -> vector<1x8xf32>
    %373 = arith.addf %372, %22 : vector<1x8xf32>
    %cst_153 = arith.constant dense<0xFF800000> : vector<1xf32>
    %374 = vector.multi_reduction <maximumf>, %373, %cst_153 [1] : vector<1x8xf32> to vector<1xf32>
    %375 = vector.shape_cast %374 : vector<1xf32> to vector<1x1xf32>
    %376 = vector.broadcast %375 : vector<1x1xf32> to vector<1x8xf32>
    %377 = arith.subf %373, %376 : vector<1x8xf32>
    %378 = math.exp %377 : vector<1x8xf32>
    %cst_154 = arith.constant dense<0.000000e+00> : vector<1xf32>
    %379 = vector.multi_reduction <add>, %378, %cst_154 [1] : vector<1x8xf32> to vector<1xf32>
    %380 = vector.shape_cast %379 : vector<1xf32> to vector<1x1xf32>
    %381 = tpu.reciprocal %380 {approx = true} : vector<1x1xf32> -> vector<1x1xf32>
    %382 = vector.broadcast %381 : vector<1x1xf32> to vector<1x8xf32>
    %383 = arith.mulf %378, %382 : vector<1x8xf32>
    %cst_155 = arith.constant dense<0.000000e+00> : vector<1x32xf32>
    %384 = tpu.matmul %383, %371, %cst_155 {dimension_numbers = #tpu.dot_dimension_numbers<[1], [0], [0], [1], [0, 0, 1, 1], [], []>} : vector<1x8xf32>, vector<8x32xf32>, vector<1x32xf32> -> vector<1x32xf32>
    %385 = vector.extract_strided_slice %336 {offsets = [0, 32], sizes = [1, 32], strides = [1, 1]} : vector<1x128xf32> to vector<1x32xf32>
    %cst_156 = arith.constant 0.176776692 : f32
    %386 = vector.broadcast %cst_156 : f32 to vector<1x32xf32>
    %387 = arith.mulf %385, %386 : vector<1x32xf32>
    %388 = vector.extract_strided_slice %353 {offsets = [0, 32], sizes = [8, 32], strides = [1, 1]} : vector<8x128xf32> to vector<8x32xf32>
    %389 = vector.extract_strided_slice %360 {offsets = [0, 32], sizes = [8, 32], strides = [1, 1]} : vector<8x128xf32> to vector<8x32xf32>
    %cst_157 = arith.constant dense<0.000000e+00> : vector<1x8xf32>
    %390 = tpu.matmul %387, %388, %cst_157 {dimension_numbers = #tpu.dot_dimension_numbers<[1], [1], [0], [0], [0, 0, 1, 0], [], []>} : vector<1x32xf32>, vector<8x32xf32>, vector<1x8xf32> -> vector<1x8xf32>
    %391 = arith.addf %390, %22 : vector<1x8xf32>
    %cst_158 = arith.constant dense<0xFF800000> : vector<1xf32>
    %392 = vector.multi_reduction <maximumf>, %391, %cst_158 [1] : vector<1x8xf32> to vector<1xf32>
    %393 = vector.shape_cast %392 : vector<1xf32> to vector<1x1xf32>
    %394 = vector.broadcast %393 : vector<1x1xf32> to vector<1x8xf32>
    %395 = arith.subf %391, %394 : vector<1x8xf32>
    %396 = math.exp %395 : vector<1x8xf32>
    %cst_159 = arith.constant dense<0.000000e+00> : vector<1xf32>
    %397 = vector.multi_reduction <add>, %396, %cst_159 [1] : vector<1x8xf32> to vector<1xf32>
    %398 = vector.shape_cast %397 : vector<1xf32> to vector<1x1xf32>
    %399 = tpu.reciprocal %398 {approx = true} : vector<1x1xf32> -> vector<1x1xf32>
    %400 = vector.broadcast %399 : vector<1x1xf32> to vector<1x8xf32>
    %401 = arith.mulf %396, %400 : vector<1x8xf32>
    %cst_160 = arith.constant dense<0.000000e+00> : vector<1x32xf32>
    %402 = tpu.matmul %401, %389, %cst_160 {dimension_numbers = #tpu.dot_dimension_numbers<[1], [0], [0], [1], [0, 0, 1, 1], [], []>} : vector<1x8xf32>, vector<8x32xf32>, vector<1x32xf32> -> vector<1x32xf32>
    %403 = vector.extract_strided_slice %336 {offsets = [0, 64], sizes = [1, 32], strides = [1, 1]} : vector<1x128xf32> to vector<1x32xf32>
    %cst_161 = arith.constant 0.176776692 : f32
    %404 = vector.broadcast %cst_161 : f32 to vector<1x32xf32>
    %405 = arith.mulf %403, %404 : vector<1x32xf32>
    %406 = vector.extract_strided_slice %353 {offsets = [0, 64], sizes = [8, 32], strides = [1, 1]} : vector<8x128xf32> to vector<8x32xf32>
    %407 = vector.extract_strided_slice %360 {offsets = [0, 64], sizes = [8, 32], strides = [1, 1]} : vector<8x128xf32> to vector<8x32xf32>
    %cst_162 = arith.constant dense<0.000000e+00> : vector<1x8xf32>
    %408 = tpu.matmul %405, %406, %cst_162 {dimension_numbers = #tpu.dot_dimension_numbers<[1], [1], [0], [0], [0, 0, 1, 0], [], []>} : vector<1x32xf32>, vector<8x32xf32>, vector<1x8xf32> -> vector<1x8xf32>
    %409 = arith.addf %408, %22 : vector<1x8xf32>
    %cst_163 = arith.constant dense<0xFF800000> : vector<1xf32>
    %410 = vector.multi_reduction <maximumf>, %409, %cst_163 [1] : vector<1x8xf32> to vector<1xf32>
    %411 = vector.shape_cast %410 : vector<1xf32> to vector<1x1xf32>
    %412 = vector.broadcast %411 : vector<1x1xf32> to vector<1x8xf32>
    %413 = arith.subf %409, %412 : vector<1x8xf32>
    %414 = math.exp %413 : vector<1x8xf32>
    %cst_164 = arith.constant dense<0.000000e+00> : vector<1xf32>
    %415 = vector.multi_reduction <add>, %414, %cst_164 [1] : vector<1x8xf32> to vector<1xf32>
    %416 = vector.shape_cast %415 : vector<1xf32> to vector<1x1xf32>
    %417 = tpu.reciprocal %416 {approx = true} : vector<1x1xf32> -> vector<1x1xf32>
    %418 = vector.broadcast %417 : vector<1x1xf32> to vector<1x8xf32>
    %419 = arith.mulf %414, %418 : vector<1x8xf32>
    %cst_165 = arith.constant dense<0.000000e+00> : vector<1x32xf32>
    %420 = tpu.matmul %419, %407, %cst_165 {dimension_numbers = #tpu.dot_dimension_numbers<[1], [0], [0], [1], [0, 0, 1, 1], [], []>} : vector<1x8xf32>, vector<8x32xf32>, vector<1x32xf32> -> vector<1x32xf32>
    %421 = vector.extract_strided_slice %336 {offsets = [0, 96], sizes = [1, 32], strides = [1, 1]} : vector<1x128xf32> to vector<1x32xf32>
    %cst_166 = arith.constant 0.176776692 : f32
    %422 = vector.broadcast %cst_166 : f32 to vector<1x32xf32>
    %423 = arith.mulf %421, %422 : vector<1x32xf32>
    %424 = vector.extract_strided_slice %353 {offsets = [0, 96], sizes = [8, 32], strides = [1, 1]} : vector<8x128xf32> to vector<8x32xf32>
    %425 = vector.extract_strided_slice %360 {offsets = [0, 96], sizes = [8, 32], strides = [1, 1]} : vector<8x128xf32> to vector<8x32xf32>
    %cst_167 = arith.constant dense<0.000000e+00> : vector<1x8xf32>
    %426 = tpu.matmul %423, %424, %cst_167 {dimension_numbers = #tpu.dot_dimension_numbers<[1], [1], [0], [0], [0, 0, 1, 0], [], []>} : vector<1x32xf32>, vector<8x32xf32>, vector<1x8xf32> -> vector<1x8xf32>
    %427 = arith.addf %426, %22 : vector<1x8xf32>
    %cst_168 = arith.constant dense<0xFF800000> : vector<1xf32>
    %428 = vector.multi_reduction <maximumf>, %427, %cst_168 [1] : vector<1x8xf32> to vector<1xf32>
    %429 = vector.shape_cast %428 : vector<1xf32> to vector<1x1xf32>
    %430 = vector.broadcast %429 : vector<1x1xf32> to vector<1x8xf32>
    %431 = arith.subf %427, %430 : vector<1x8xf32>
    %432 = math.exp %431 : vector<1x8xf32>
    %cst_169 = arith.constant dense<0.000000e+00> : vector<1xf32>
    %433 = vector.multi_reduction <add>, %432, %cst_169 [1] : vector<1x8xf32> to vector<1xf32>
    %434 = vector.shape_cast %433 : vector<1xf32> to vector<1x1xf32>
    %435 = tpu.reciprocal %434 {approx = true} : vector<1x1xf32> -> vector<1x1xf32>
    %436 = vector.broadcast %435 : vector<1x1xf32> to vector<1x8xf32>
    %437 = arith.mulf %432, %436 : vector<1x8xf32>
    %cst_170 = arith.constant dense<0.000000e+00> : vector<1x32xf32>
    %438 = tpu.matmul %437, %425, %cst_170 {dimension_numbers = #tpu.dot_dimension_numbers<[1], [0], [0], [1], [0, 0, 1, 1], [], []>} : vector<1x8xf32>, vector<8x32xf32>, vector<1x32xf32> -> vector<1x32xf32>
    %439 = tpu.concatenate %384, %402, %420, %438 in 1 : vector<1x32xf32>, vector<1x32xf32>, vector<1x32xf32>, vector<1x32xf32> -> vector<1x128xf32>
    %c9 = arith.constant 9 : index
    %c0_171 = arith.constant 0 : index
    %c0_172 = arith.constant 0 : index
    %440 = vector.load %arg3[%c9, %c0_171, %c0_172] : memref<12x128x128xf32, #tpu.memory_space<vmem>>, vector<1x128x128xf32>
    %441 = vector.shape_cast %440 : vector<1x128x128xf32> to vector<128x128xf32>
    %cst_173 = arith.constant dense<0.000000e+00> : vector<1x128xf32>
    %442 = tpu.matmul %439, %441, %cst_173 {dimension_numbers = #tpu.dot_dimension_numbers<[1], [0], [0], [1], [0, 0, 1, 1], [], []>} : vector<1x128xf32>, vector<128x128xf32>, vector<1x128xf32> -> vector<1x128xf32>
    %443 = arith.addf %308, %442 : vector<1x128xf32>
    %444 = vector.extract_strided_slice %311 {offsets = [3, 0], sizes = [1, 128], strides = [1, 1]} : vector<13x128xf32> to vector<1x128xf32>
    %445 = arith.addf %443, %444 : vector<1x128xf32>
    %446 = vector.extract_strided_slice %311 {offsets = [8, 0], sizes = [1, 128], strides = [1, 1]} : vector<13x128xf32> to vector<1x128xf32>
    %447 = vector.extract_strided_slice %311 {offsets = [9, 0], sizes = [1, 128], strides = [1, 1]} : vector<13x128xf32> to vector<1x128xf32>
    %cst_174 = arith.constant dense<0.000000e+00> : vector<1xf32>
    %448 = vector.multi_reduction <add>, %445, %cst_174 [1] : vector<1x128xf32> to vector<1xf32>
    %449 = vector.shape_cast %448 : vector<1xf32> to vector<1x1xf32>
    %cst_175 = arith.constant 1.280000e+02 : f32
    %450 = vector.broadcast %cst_175 : f32 to vector<1x1xf32>
    %451 = arith.divf %449, %450 : vector<1x1xf32>
    %452 = vector.broadcast %451 : vector<1x1xf32> to vector<1x128xf32>
    %453 = arith.subf %445, %452 : vector<1x128xf32>
    %454 = arith.mulf %453, %453 : vector<1x128xf32>
    %cst_176 = arith.constant dense<0.000000e+00> : vector<1xf32>
    %455 = vector.multi_reduction <add>, %454, %cst_176 [1] : vector<1x128xf32> to vector<1xf32>
    %456 = vector.shape_cast %455 : vector<1xf32> to vector<1x1xf32>
    %cst_177 = arith.constant 1.280000e+02 : f32
    %457 = vector.broadcast %cst_177 : f32 to vector<1x1xf32>
    %458 = arith.divf %456, %457 : vector<1x1xf32>
    %cst_178 = arith.constant 9.99999974E-6 : f32
    %459 = vector.broadcast %cst_178 : f32 to vector<1x1xf32>
    %460 = arith.addf %458, %459 : vector<1x1xf32>
    %461 = math.rsqrt %460 : vector<1x1xf32>
    %462 = vector.broadcast %461 : vector<1x1xf32> to vector<1x128xf32>
    %463 = arith.mulf %453, %462 : vector<1x128xf32>
    %464 = arith.mulf %463, %446 : vector<1x128xf32>
    %465 = arith.addf %464, %447 : vector<1x128xf32>
    %c10 = arith.constant 10 : index
    %c0_179 = arith.constant 0 : index
    %c0_180 = arith.constant 0 : index
    %466 = vector.load %arg3[%c10, %c0_179, %c0_180] : memref<12x128x128xf32, #tpu.memory_space<vmem>>, vector<1x128x128xf32>
    %467 = vector.shape_cast %466 : vector<1x128x128xf32> to vector<128x128xf32>
    %cst_181 = arith.constant dense<0.000000e+00> : vector<1x128xf32>
    %468 = tpu.matmul %465, %467, %cst_181 {dimension_numbers = #tpu.dot_dimension_numbers<[1], [0], [0], [1], [0, 0, 1, 1], [], []>} : vector<1x128xf32>, vector<128x128xf32>, vector<1x128xf32> -> vector<1x128xf32>
    %469 = vector.extract_strided_slice %311 {offsets = [4, 0], sizes = [1, 128], strides = [1, 1]} : vector<13x128xf32> to vector<1x128xf32>
    %470 = arith.addf %468, %469 : vector<1x128xf32>
    %c1_182 = arith.constant 1 : index
    %c0_183 = arith.constant 0 : index
    %c0_184 = arith.constant 0 : index
    %471 = vector.load %arg8[%c1_182, %c0_183, %c0_184] : memref<2x8x128xf32, #tpu.memory_space<vmem>>, vector<1x8x128xf32>
    %472 = vector.shape_cast %471 : vector<1x8x128xf32> to vector<8x128xf32>
    %c1_185 = arith.constant 1 : index
    %c0_186 = arith.constant 0 : index
    %c0_187 = arith.constant 0 : index
    %473 = vector.load %arg9[%c1_185, %c0_186, %c0_187] : memref<2x8x128xf32, #tpu.memory_space<vmem>>, vector<1x8x128xf32>
    %474 = vector.shape_cast %473 : vector<1x8x128xf32> to vector<8x128xf32>
    %475 = vector.extract_strided_slice %470 {offsets = [0, 0], sizes = [1, 32], strides = [1, 1]} : vector<1x128xf32> to vector<1x32xf32>
    %cst_188 = arith.constant 0.176776692 : f32
    %476 = vector.broadcast %cst_188 : f32 to vector<1x32xf32>
    %477 = arith.mulf %475, %476 : vector<1x32xf32>
    %478 = vector.extract_strided_slice %472 {offsets = [0, 0], sizes = [8, 32], strides = [1, 1]} : vector<8x128xf32> to vector<8x32xf32>
    %479 = vector.extract_strided_slice %474 {offsets = [0, 0], sizes = [8, 32], strides = [1, 1]} : vector<8x128xf32> to vector<8x32xf32>
    %cst_189 = arith.constant dense<0.000000e+00> : vector<1x8xf32>
    %480 = tpu.matmul %477, %478, %cst_189 {dimension_numbers = #tpu.dot_dimension_numbers<[1], [1], [0], [0], [0, 0, 1, 0], [], []>} : vector<1x32xf32>, vector<8x32xf32>, vector<1x8xf32> -> vector<1x8xf32>
    %cst_190 = arith.constant dense<0xFF800000> : vector<1xf32>
    %481 = vector.multi_reduction <maximumf>, %480, %cst_190 [1] : vector<1x8xf32> to vector<1xf32>
    %482 = vector.shape_cast %481 : vector<1xf32> to vector<1x1xf32>
    %483 = vector.broadcast %482 : vector<1x1xf32> to vector<1x8xf32>
    %484 = arith.subf %480, %483 : vector<1x8xf32>
    %485 = math.exp %484 : vector<1x8xf32>
    %cst_191 = arith.constant dense<0.000000e+00> : vector<1xf32>
    %486 = vector.multi_reduction <add>, %485, %cst_191 [1] : vector<1x8xf32> to vector<1xf32>
    %487 = vector.shape_cast %486 : vector<1xf32> to vector<1x1xf32>
    %488 = tpu.reciprocal %487 {approx = true} : vector<1x1xf32> -> vector<1x1xf32>
    %489 = vector.broadcast %488 : vector<1x1xf32> to vector<1x8xf32>
    %490 = arith.mulf %485, %489 : vector<1x8xf32>
    %cst_192 = arith.constant dense<0.000000e+00> : vector<1x32xf32>
    %491 = tpu.matmul %490, %479, %cst_192 {dimension_numbers = #tpu.dot_dimension_numbers<[1], [0], [0], [1], [0, 0, 1, 1], [], []>} : vector<1x8xf32>, vector<8x32xf32>, vector<1x32xf32> -> vector<1x32xf32>
    %492 = vector.extract_strided_slice %470 {offsets = [0, 32], sizes = [1, 32], strides = [1, 1]} : vector<1x128xf32> to vector<1x32xf32>
    %cst_193 = arith.constant 0.176776692 : f32
    %493 = vector.broadcast %cst_193 : f32 to vector<1x32xf32>
    %494 = arith.mulf %492, %493 : vector<1x32xf32>
    %495 = vector.extract_strided_slice %472 {offsets = [0, 32], sizes = [8, 32], strides = [1, 1]} : vector<8x128xf32> to vector<8x32xf32>
    %496 = vector.extract_strided_slice %474 {offsets = [0, 32], sizes = [8, 32], strides = [1, 1]} : vector<8x128xf32> to vector<8x32xf32>
    %cst_194 = arith.constant dense<0.000000e+00> : vector<1x8xf32>
    %497 = tpu.matmul %494, %495, %cst_194 {dimension_numbers = #tpu.dot_dimension_numbers<[1], [1], [0], [0], [0, 0, 1, 0], [], []>} : vector<1x32xf32>, vector<8x32xf32>, vector<1x8xf32> -> vector<1x8xf32>
    %cst_195 = arith.constant dense<0xFF800000> : vector<1xf32>
    %498 = vector.multi_reduction <maximumf>, %497, %cst_195 [1] : vector<1x8xf32> to vector<1xf32>
    %499 = vector.shape_cast %498 : vector<1xf32> to vector<1x1xf32>
    %500 = vector.broadcast %499 : vector<1x1xf32> to vector<1x8xf32>
    %501 = arith.subf %497, %500 : vector<1x8xf32>
    %502 = math.exp %501 : vector<1x8xf32>
    %cst_196 = arith.constant dense<0.000000e+00> : vector<1xf32>
    %503 = vector.multi_reduction <add>, %502, %cst_196 [1] : vector<1x8xf32> to vector<1xf32>
    %504 = vector.shape_cast %503 : vector<1xf32> to vector<1x1xf32>
    %505 = tpu.reciprocal %504 {approx = true} : vector<1x1xf32> -> vector<1x1xf32>
    %506 = vector.broadcast %505 : vector<1x1xf32> to vector<1x8xf32>
    %507 = arith.mulf %502, %506 : vector<1x8xf32>
    %cst_197 = arith.constant dense<0.000000e+00> : vector<1x32xf32>
    %508 = tpu.matmul %507, %496, %cst_197 {dimension_numbers = #tpu.dot_dimension_numbers<[1], [0], [0], [1], [0, 0, 1, 1], [], []>} : vector<1x8xf32>, vector<8x32xf32>, vector<1x32xf32> -> vector<1x32xf32>
    %509 = vector.extract_strided_slice %470 {offsets = [0, 64], sizes = [1, 32], strides = [1, 1]} : vector<1x128xf32> to vector<1x32xf32>
    %cst_198 = arith.constant 0.176776692 : f32
    %510 = vector.broadcast %cst_198 : f32 to vector<1x32xf32>
    %511 = arith.mulf %509, %510 : vector<1x32xf32>
    %512 = vector.extract_strided_slice %472 {offsets = [0, 64], sizes = [8, 32], strides = [1, 1]} : vector<8x128xf32> to vector<8x32xf32>
    %513 = vector.extract_strided_slice %474 {offsets = [0, 64], sizes = [8, 32], strides = [1, 1]} : vector<8x128xf32> to vector<8x32xf32>
    %cst_199 = arith.constant dense<0.000000e+00> : vector<1x8xf32>
    %514 = tpu.matmul %511, %512, %cst_199 {dimension_numbers = #tpu.dot_dimension_numbers<[1], [1], [0], [0], [0, 0, 1, 0], [], []>} : vector<1x32xf32>, vector<8x32xf32>, vector<1x8xf32> -> vector<1x8xf32>
    %cst_200 = arith.constant dense<0xFF800000> : vector<1xf32>
    %515 = vector.multi_reduction <maximumf>, %514, %cst_200 [1] : vector<1x8xf32> to vector<1xf32>
    %516 = vector.shape_cast %515 : vector<1xf32> to vector<1x1xf32>
    %517 = vector.broadcast %516 : vector<1x1xf32> to vector<1x8xf32>
    %518 = arith.subf %514, %517 : vector<1x8xf32>
    %519 = math.exp %518 : vector<1x8xf32>
    %cst_201 = arith.constant dense<0.000000e+00> : vector<1xf32>
    %520 = vector.multi_reduction <add>, %519, %cst_201 [1] : vector<1x8xf32> to vector<1xf32>
    %521 = vector.shape_cast %520 : vector<1xf32> to vector<1x1xf32>
    %522 = tpu.reciprocal %521 {approx = true} : vector<1x1xf32> -> vector<1x1xf32>
    %523 = vector.broadcast %522 : vector<1x1xf32> to vector<1x8xf32>
    %524 = arith.mulf %519, %523 : vector<1x8xf32>
    %cst_202 = arith.constant dense<0.000000e+00> : vector<1x32xf32>
    %525 = tpu.matmul %524, %513, %cst_202 {dimension_numbers = #tpu.dot_dimension_numbers<[1], [0], [0], [1], [0, 0, 1, 1], [], []>} : vector<1x8xf32>, vector<8x32xf32>, vector<1x32xf32> -> vector<1x32xf32>
    %526 = vector.extract_strided_slice %470 {offsets = [0, 96], sizes = [1, 32], strides = [1, 1]} : vector<1x128xf32> to vector<1x32xf32>
    %cst_203 = arith.constant 0.176776692 : f32
    %527 = vector.broadcast %cst_203 : f32 to vector<1x32xf32>
    %528 = arith.mulf %526, %527 : vector<1x32xf32>
    %529 = vector.extract_strided_slice %472 {offsets = [0, 96], sizes = [8, 32], strides = [1, 1]} : vector<8x128xf32> to vector<8x32xf32>
    %530 = vector.extract_strided_slice %474 {offsets = [0, 96], sizes = [8, 32], strides = [1, 1]} : vector<8x128xf32> to vector<8x32xf32>
    %cst_204 = arith.constant dense<0.000000e+00> : vector<1x8xf32>
    %531 = tpu.matmul %528, %529, %cst_204 {dimension_numbers = #tpu.dot_dimension_numbers<[1], [1], [0], [0], [0, 0, 1, 0], [], []>} : vector<1x32xf32>, vector<8x32xf32>, vector<1x8xf32> -> vector<1x8xf32>
    %cst_205 = arith.constant dense<0xFF800000> : vector<1xf32>
    %532 = vector.multi_reduction <maximumf>, %531, %cst_205 [1] : vector<1x8xf32> to vector<1xf32>
    %533 = vector.shape_cast %532 : vector<1xf32> to vector<1x1xf32>
    %534 = vector.broadcast %533 : vector<1x1xf32> to vector<1x8xf32>
    %535 = arith.subf %531, %534 : vector<1x8xf32>
    %536 = math.exp %535 : vector<1x8xf32>
    %cst_206 = arith.constant dense<0.000000e+00> : vector<1xf32>
    %537 = vector.multi_reduction <add>, %536, %cst_206 [1] : vector<1x8xf32> to vector<1xf32>
    %538 = vector.shape_cast %537 : vector<1xf32> to vector<1x1xf32>
    %539 = tpu.reciprocal %538 {approx = true} : vector<1x1xf32> -> vector<1x1xf32>
    %540 = vector.broadcast %539 : vector<1x1xf32> to vector<1x8xf32>
    %541 = arith.mulf %536, %540 : vector<1x8xf32>
    %cst_207 = arith.constant dense<0.000000e+00> : vector<1x32xf32>
    %542 = tpu.matmul %541, %530, %cst_207 {dimension_numbers = #tpu.dot_dimension_numbers<[1], [0], [0], [1], [0, 0, 1, 1], [], []>} : vector<1x8xf32>, vector<8x32xf32>, vector<1x32xf32> -> vector<1x32xf32>
    %543 = tpu.concatenate %491, %508, %525, %542 in 1 : vector<1x32xf32>, vector<1x32xf32>, vector<1x32xf32>, vector<1x32xf32> -> vector<1x128xf32>
    %c11 = arith.constant 11 : index
    %c0_208 = arith.constant 0 : index
    %c0_209 = arith.constant 0 : index
    %544 = vector.load %arg3[%c11, %c0_208, %c0_209] : memref<12x128x128xf32, #tpu.memory_space<vmem>>, vector<1x128x128xf32>
    %545 = vector.shape_cast %544 : vector<1x128x128xf32> to vector<128x128xf32>
    %cst_210 = arith.constant dense<0.000000e+00> : vector<1x128xf32>
    %546 = tpu.matmul %543, %545, %cst_210 {dimension_numbers = #tpu.dot_dimension_numbers<[1], [0], [0], [1], [0, 0, 1, 1], [], []>} : vector<1x128xf32>, vector<128x128xf32>, vector<1x128xf32> -> vector<1x128xf32>
    %547 = arith.addf %445, %546 : vector<1x128xf32>
    %548 = vector.extract_strided_slice %311 {offsets = [5, 0], sizes = [1, 128], strides = [1, 1]} : vector<13x128xf32> to vector<1x128xf32>
    %549 = arith.addf %547, %548 : vector<1x128xf32>
    %550 = vector.extract_strided_slice %311 {offsets = [10, 0], sizes = [1, 128], strides = [1, 1]} : vector<13x128xf32> to vector<1x128xf32>
    %551 = vector.extract_strided_slice %311 {offsets = [11, 0], sizes = [1, 128], strides = [1, 1]} : vector<13x128xf32> to vector<1x128xf32>
    %cst_211 = arith.constant dense<0.000000e+00> : vector<1xf32>
    %552 = vector.multi_reduction <add>, %549, %cst_211 [1] : vector<1x128xf32> to vector<1xf32>
    %553 = vector.shape_cast %552 : vector<1xf32> to vector<1x1xf32>
    %cst_212 = arith.constant 1.280000e+02 : f32
    %554 = vector.broadcast %cst_212 : f32 to vector<1x1xf32>
    %555 = arith.divf %553, %554 : vector<1x1xf32>
    %556 = vector.broadcast %555 : vector<1x1xf32> to vector<1x128xf32>
    %557 = arith.subf %549, %556 : vector<1x128xf32>
    %558 = arith.mulf %557, %557 : vector<1x128xf32>
    %cst_213 = arith.constant dense<0.000000e+00> : vector<1xf32>
    %559 = vector.multi_reduction <add>, %558, %cst_213 [1] : vector<1x128xf32> to vector<1xf32>
    %560 = vector.shape_cast %559 : vector<1xf32> to vector<1x1xf32>
    %cst_214 = arith.constant 1.280000e+02 : f32
    %561 = vector.broadcast %cst_214 : f32 to vector<1x1xf32>
    %562 = arith.divf %560, %561 : vector<1x1xf32>
    %cst_215 = arith.constant 9.99999974E-6 : f32
    %563 = vector.broadcast %cst_215 : f32 to vector<1x1xf32>
    %564 = arith.addf %562, %563 : vector<1x1xf32>
    %565 = math.rsqrt %564 : vector<1x1xf32>
    %566 = vector.broadcast %565 : vector<1x1xf32> to vector<1x128xf32>
    %567 = arith.mulf %557, %566 : vector<1x128xf32>
    %568 = arith.mulf %567, %550 : vector<1x128xf32>
    %569 = arith.addf %568, %551 : vector<1x128xf32>
    %c1_216 = arith.constant 1 : index
    %c0_217 = arith.constant 0 : index
    %c0_218 = arith.constant 0 : index
    %570 = vector.load %arg5[%c1_216, %c0_217, %c0_218] : memref<2x128x256xf32, #tpu.memory_space<vmem>>, vector<1x128x256xf32>
    %571 = vector.shape_cast %570 : vector<1x128x256xf32> to vector<128x256xf32>
    %cst_219 = arith.constant dense<0.000000e+00> : vector<1x256xf32>
    %572 = tpu.matmul %569, %571, %cst_219 {dimension_numbers = #tpu.dot_dimension_numbers<[1], [0], [0], [1], [0, 0, 1, 1], [], []>} : vector<1x128xf32>, vector<128x256xf32>, vector<1x256xf32> -> vector<1x256xf32>
    %c1_220 = arith.constant 1 : index
    %c0_221 = arith.constant 0 : index
    %c0_222 = arith.constant 0 : index
    %573 = vector.load %arg6[%c1_220, %c0_221, %c0_222] : memref<2x1x256xf32, #tpu.memory_space<vmem>>, vector<1x1x256xf32>
    %574 = vector.shape_cast %573 : vector<1x1x256xf32> to vector<1x256xf32>
    %575 = arith.addf %572, %574 : vector<1x256xf32>
    %cst_223 = arith.constant 5.000000e-01 : f32
    %576 = vector.broadcast %cst_223 : f32 to vector<1x256xf32>
    %577 = arith.mulf %576, %575 : vector<1x256xf32>
    %cst_224 = arith.constant 4.471500e-02 : f32
    %578 = vector.broadcast %cst_224 : f32 to vector<1x256xf32>
    %579 = arith.mulf %578, %575 : vector<1x256xf32>
    %580 = arith.mulf %579, %575 : vector<1x256xf32>
    %581 = arith.mulf %580, %575 : vector<1x256xf32>
    %582 = arith.addf %575, %581 : vector<1x256xf32>
    %cst_225 = arith.constant 0.797884583 : f32
    %583 = vector.broadcast %cst_225 : f32 to vector<1x256xf32>
    %584 = arith.mulf %583, %582 : vector<1x256xf32>
    %585 = math.tanh %584 : vector<1x256xf32>
    %cst_226 = arith.constant 1.000000e+00 : f32
    %586 = vector.broadcast %cst_226 : f32 to vector<1x256xf32>
    %587 = arith.addf %586, %585 : vector<1x256xf32>
    %588 = arith.mulf %577, %587 : vector<1x256xf32>
    %c1_227 = arith.constant 1 : index
    %c0_228 = arith.constant 0 : index
    %c0_229 = arith.constant 0 : index
    %589 = vector.load %arg7[%c1_227, %c0_228, %c0_229] : memref<2x256x128xf32, #tpu.memory_space<vmem>>, vector<1x256x128xf32>
    %590 = vector.shape_cast %589 : vector<1x256x128xf32> to vector<256x128xf32>
    %cst_230 = arith.constant dense<0.000000e+00> : vector<1x128xf32>
    %591 = tpu.matmul %588, %590, %cst_230 {dimension_numbers = #tpu.dot_dimension_numbers<[1], [0], [0], [1], [0, 0, 1, 1], [], []>} : vector<1x256xf32>, vector<256x128xf32>, vector<1x128xf32> -> vector<1x128xf32>
    %592 = arith.addf %549, %591 : vector<1x128xf32>
    %593 = vector.extract_strided_slice %311 {offsets = [12, 0], sizes = [1, 128], strides = [1, 1]} : vector<13x128xf32> to vector<1x128xf32>
    %594 = arith.addf %592, %593 : vector<1x128xf32>
    %c0_231 = arith.constant 0 : index
    %c0_232 = arith.constant 0 : index
    %595 = vector.load %arg12[%c0_231, %c0_232] : memref<2x128xf32, #tpu.memory_space<vmem>>, vector<1x128xf32>
    %c1_233 = arith.constant 1 : index
    %c0_234 = arith.constant 0 : index
    %596 = vector.load %arg12[%c1_233, %c0_234] : memref<2x128xf32, #tpu.memory_space<vmem>>, vector<1x128xf32>
    %cst_235 = arith.constant dense<0.000000e+00> : vector<1xf32>
    %597 = vector.multi_reduction <add>, %594, %cst_235 [1] : vector<1x128xf32> to vector<1xf32>
    %598 = vector.shape_cast %597 : vector<1xf32> to vector<1x1xf32>
    %cst_236 = arith.constant 1.280000e+02 : f32
    %599 = vector.broadcast %cst_236 : f32 to vector<1x1xf32>
    %600 = arith.divf %598, %599 : vector<1x1xf32>
    %601 = vector.broadcast %600 : vector<1x1xf32> to vector<1x128xf32>
    %602 = arith.subf %594, %601 : vector<1x128xf32>
    %603 = arith.mulf %602, %602 : vector<1x128xf32>
    %cst_237 = arith.constant dense<0.000000e+00> : vector<1xf32>
    %604 = vector.multi_reduction <add>, %603, %cst_237 [1] : vector<1x128xf32> to vector<1xf32>
    %605 = vector.shape_cast %604 : vector<1xf32> to vector<1x1xf32>
    %cst_238 = arith.constant 1.280000e+02 : f32
    %606 = vector.broadcast %cst_238 : f32 to vector<1x1xf32>
    %607 = arith.divf %605, %606 : vector<1x1xf32>
    %cst_239 = arith.constant 9.99999974E-6 : f32
    %608 = vector.broadcast %cst_239 : f32 to vector<1x1xf32>
    %609 = arith.addf %607, %608 : vector<1x1xf32>
    %610 = math.rsqrt %609 : vector<1x1xf32>
    %611 = vector.broadcast %610 : vector<1x1xf32> to vector<1x128xf32>
    %612 = arith.mulf %602, %611 : vector<1x128xf32>
    %613 = arith.mulf %612, %595 : vector<1x128xf32>
    %614 = arith.addf %613, %596 : vector<1x128xf32>
    %c2_240 = arith.constant 2 : index
    %c0_241 = arith.constant 0 : index
    %615 = vector.load %arg13[%c2_240, %c0_241] : memref<3x128xf32, #tpu.memory_space<vmem>>, vector<1x128xf32>
    tpu.vector_store %arg13[%c2_240, %c0_241], %614 {strides = array<i32>} : memref<3x128xf32, #tpu.memory_space<vmem>>, vector<1x128xf32>,
    %c0_242 = arith.constant 0 : index
    %c0_243 = arith.constant 0 : index
    %616 = vector.load %arg1[%c0_242, %c0_243] : memref<128x128xf32, #tpu.memory_space<vmem>>, vector<128x128xf32>
    %cst_244 = arith.constant dense<0.000000e+00> : vector<1x128xf32>
    %617 = tpu.matmul %614, %616, %cst_244 {dimension_numbers = #tpu.dot_dimension_numbers<[1], [1], [0], [0], [0, 0, 1, 0], [], []>} : vector<1x128xf32>, vector<128x128xf32>, vector<1x128xf32> -> vector<1x128xf32>
    %c0_245 = arith.constant 0 : index
    %c0_246 = arith.constant 0 : index
    %618 = vector.load %arg14[%c0_245, %c0_246] : memref<1x128xf32, #tpu.memory_space<vmem>>, vector<1x128xf32>
    tpu.vector_store %arg14[%c0_245, %c0_246], %617 {strides = array<i32>} : memref<1x128xf32, #tpu.memory_space<vmem>>, vector<1x128xf32>,
    return
  }
}

module attributes {stable_mosaic.version = 11 : i64} {
  func.func @_encoder_kernel(%arg0: memref<16x24xf32, #tpu.memory_space<vmem>>, %arg1: memref<24x128xf32, #tpu.memory_space<vmem>>, %arg2: memref<1x128xf32, #tpu.memory_space<vmem>>, %arg3: memref<384x128xf32, #tpu.memory_space<vmem>>, %arg4: memref<1x128xf32, #tpu.memory_space<vmem>>, %arg5: memref<8x128xf32, #tpu.memory_space<vmem>>, %arg6: memref<8x128x128xf32, #tpu.memory_space<vmem>>, %arg7: memref<2x9x128xf32, #tpu.memory_space<vmem>>, %arg8: memref<2x128x256xf32, #tpu.memory_space<vmem>>, %arg9: memref<2x1x256xf32, #tpu.memory_space<vmem>>, %arg10: memref<2x256x128xf32, #tpu.memory_space<vmem>>, %arg11: memref<2x128xf32, #tpu.memory_space<vmem>>, %arg12: memref<4x128x128xf32, #tpu.memory_space<vmem>>, %arg13: memref<2x2x128xf32, #tpu.memory_space<vmem>>, %arg14: memref<2x8x128xf32, #tpu.memory_space<vmem>>, %arg15: memref<2x8x128xf32, #tpu.memory_space<vmem>>) attributes {dimension_semantics = [], scalar_prefetch = 0 : i64, scratch_operands = 0 : i64, tpu.core_type = #tpu.core_type<tc>} {
    %c0 = arith.constant 0 : index
    %c0_0 = arith.constant 0 : index
    %0 = vector.load %arg0[%c0, %c0_0] : memref<16x24xf32, #tpu.memory_space<vmem>>, vector<16x24xf32>
    %c0_1 = arith.constant 0 : index
    %c0_2 = arith.constant 0 : index
    %1 = vector.load %arg1[%c0_1, %c0_2] : memref<24x128xf32, #tpu.memory_space<vmem>>, vector<24x128xf32>
    %cst = arith.constant dense<0.000000e+00> : vector<16x128xf32>
    %2 = tpu.matmul %0, %1, %cst {dimension_numbers = #tpu.dot_dimension_numbers<[1], [0], [0], [1], [0, 0, 1, 1], [], []>} : vector<16x24xf32>, vector<24x128xf32>, vector<16x128xf32> -> vector<16x128xf32>
    %c0_3 = arith.constant 0 : index
    %c0_4 = arith.constant 0 : index
    %3 = vector.load %arg2[%c0_3, %c0_4] : memref<1x128xf32, #tpu.memory_space<vmem>>, vector<1x128xf32>
    %4 = vector.broadcast %3 : vector<1x128xf32> to vector<16x128xf32>
    %5 = arith.addf %2, %4 : vector<16x128xf32>
    %cst_5 = arith.constant 5.000000e-01 : f32
    %6 = vector.broadcast %cst_5 : f32 to vector<16x128xf32>
    %7 = arith.mulf %6, %5 : vector<16x128xf32>
    %cst_6 = arith.constant 4.471500e-02 : f32
    %8 = vector.broadcast %cst_6 : f32 to vector<16x128xf32>
    %9 = arith.mulf %8, %5 : vector<16x128xf32>
    %10 = arith.mulf %9, %5 : vector<16x128xf32>
    %11 = arith.mulf %10, %5 : vector<16x128xf32>
    %12 = arith.addf %5, %11 : vector<16x128xf32>
    %cst_7 = arith.constant 0.797884583 : f32
    %13 = vector.broadcast %cst_7 : f32 to vector<16x128xf32>
    %14 = arith.mulf %13, %12 : vector<16x128xf32>
    %15 = math.tanh %14 : vector<16x128xf32>
    %cst_8 = arith.constant 1.000000e+00 : f32
    %16 = vector.broadcast %cst_8 : f32 to vector<16x128xf32>
    %17 = arith.addf %16, %15 : vector<16x128xf32>
    %18 = arith.mulf %7, %17 : vector<16x128xf32>
    %cst_9 = arith.constant 0.000000e+00 : f32
    %19 = vector.broadcast %cst_9 : f32 to vector<1x128xf32>
    %20 = vector.extract_strided_slice %18 {offsets = [0, 0], sizes = [1, 128], strides = [1, 1]} : vector<16x128xf32> to vector<1x128xf32>
    %21 = vector.extract_strided_slice %18 {offsets = [1, 0], sizes = [1, 128], strides = [1, 1]} : vector<16x128xf32> to vector<1x128xf32>
    %22 = tpu.concatenate %19, %20, %21 in 1 : vector<1x128xf32>, vector<1x128xf32>, vector<1x128xf32> -> vector<1x384xf32>
    %23 = vector.extract_strided_slice %18 {offsets = [1, 0], sizes = [1, 128], strides = [1, 1]} : vector<16x128xf32> to vector<1x128xf32>
    %24 = vector.extract_strided_slice %18 {offsets = [2, 0], sizes = [1, 128], strides = [1, 1]} : vector<16x128xf32> to vector<1x128xf32>
    %25 = vector.extract_strided_slice %18 {offsets = [3, 0], sizes = [1, 128], strides = [1, 1]} : vector<16x128xf32> to vector<1x128xf32>
    %26 = tpu.concatenate %23, %24, %25 in 1 : vector<1x128xf32>, vector<1x128xf32>, vector<1x128xf32> -> vector<1x384xf32>
    %27 = vector.extract_strided_slice %18 {offsets = [3, 0], sizes = [1, 128], strides = [1, 1]} : vector<16x128xf32> to vector<1x128xf32>
    %28 = vector.extract_strided_slice %18 {offsets = [4, 0], sizes = [1, 128], strides = [1, 1]} : vector<16x128xf32> to vector<1x128xf32>
    %29 = vector.extract_strided_slice %18 {offsets = [5, 0], sizes = [1, 128], strides = [1, 1]} : vector<16x128xf32> to vector<1x128xf32>
    %30 = tpu.concatenate %27, %28, %29 in 1 : vector<1x128xf32>, vector<1x128xf32>, vector<1x128xf32> -> vector<1x384xf32>
    %31 = vector.extract_strided_slice %18 {offsets = [5, 0], sizes = [1, 128], strides = [1, 1]} : vector<16x128xf32> to vector<1x128xf32>
    %32 = vector.extract_strided_slice %18 {offsets = [6, 0], sizes = [1, 128], strides = [1, 1]} : vector<16x128xf32> to vector<1x128xf32>
    %33 = vector.extract_strided_slice %18 {offsets = [7, 0], sizes = [1, 128], strides = [1, 1]} : vector<16x128xf32> to vector<1x128xf32>
    %34 = tpu.concatenate %31, %32, %33 in 1 : vector<1x128xf32>, vector<1x128xf32>, vector<1x128xf32> -> vector<1x384xf32>
    %35 = vector.extract_strided_slice %18 {offsets = [7, 0], sizes = [1, 128], strides = [1, 1]} : vector<16x128xf32> to vector<1x128xf32>
    %36 = vector.extract_strided_slice %18 {offsets = [8, 0], sizes = [1, 128], strides = [1, 1]} : vector<16x128xf32> to vector<1x128xf32>
    %37 = vector.extract_strided_slice %18 {offsets = [9, 0], sizes = [1, 128], strides = [1, 1]} : vector<16x128xf32> to vector<1x128xf32>
    %38 = tpu.concatenate %35, %36, %37 in 1 : vector<1x128xf32>, vector<1x128xf32>, vector<1x128xf32> -> vector<1x384xf32>
    %39 = vector.extract_strided_slice %18 {offsets = [9, 0], sizes = [1, 128], strides = [1, 1]} : vector<16x128xf32> to vector<1x128xf32>
    %40 = vector.extract_strided_slice %18 {offsets = [10, 0], sizes = [1, 128], strides = [1, 1]} : vector<16x128xf32> to vector<1x128xf32>
    %41 = vector.extract_strided_slice %18 {offsets = [11, 0], sizes = [1, 128], strides = [1, 1]} : vector<16x128xf32> to vector<1x128xf32>
    %42 = tpu.concatenate %39, %40, %41 in 1 : vector<1x128xf32>, vector<1x128xf32>, vector<1x128xf32> -> vector<1x384xf32>
    %43 = vector.extract_strided_slice %18 {offsets = [11, 0], sizes = [1, 128], strides = [1, 1]} : vector<16x128xf32> to vector<1x128xf32>
    %44 = vector.extract_strided_slice %18 {offsets = [12, 0], sizes = [1, 128], strides = [1, 1]} : vector<16x128xf32> to vector<1x128xf32>
    %45 = vector.extract_strided_slice %18 {offsets = [13, 0], sizes = [1, 128], strides = [1, 1]} : vector<16x128xf32> to vector<1x128xf32>
    %46 = tpu.concatenate %43, %44, %45 in 1 : vector<1x128xf32>, vector<1x128xf32>, vector<1x128xf32> -> vector<1x384xf32>
    %47 = vector.extract_strided_slice %18 {offsets = [13, 0], sizes = [1, 128], strides = [1, 1]} : vector<16x128xf32> to vector<1x128xf32>
    %48 = vector.extract_strided_slice %18 {offsets = [14, 0], sizes = [1, 128], strides = [1, 1]} : vector<16x128xf32> to vector<1x128xf32>
    %49 = vector.extract_strided_slice %18 {offsets = [15, 0], sizes = [1, 128], strides = [1, 1]} : vector<16x128xf32> to vector<1x128xf32>
    %50 = tpu.concatenate %47, %48, %49 in 1 : vector<1x128xf32>, vector<1x128xf32>, vector<1x128xf32> -> vector<1x384xf32>
    %51 = tpu.concatenate %22, %26, %30, %34, %38, %42, %46, %50 in 0 : vector<1x384xf32>, vector<1x384xf32>, vector<1x384xf32>, vector<1x384xf32>, vector<1x384xf32>, vector<1x384xf32>, vector<1x384xf32>, vector<1x384xf32> -> vector<8x384xf32>
    %c0_10 = arith.constant 0 : index
    %c0_11 = arith.constant 0 : index
    %52 = vector.load %arg3[%c0_10, %c0_11] : memref<384x128xf32, #tpu.memory_space<vmem>>, vector<384x128xf32>
    %cst_12 = arith.constant dense<0.000000e+00> : vector<8x128xf32>
    %53 = tpu.matmul %51, %52, %cst_12 {dimension_numbers = #tpu.dot_dimension_numbers<[1], [0], [0], [1], [0, 0, 1, 1], [], []>} : vector<8x384xf32>, vector<384x128xf32>, vector<8x128xf32> -> vector<8x128xf32>
    %c0_13 = arith.constant 0 : index
    %c0_14 = arith.constant 0 : index
    %54 = vector.load %arg4[%c0_13, %c0_14] : memref<1x128xf32, #tpu.memory_space<vmem>>, vector<1x128xf32>
    %55 = vector.broadcast %54 : vector<1x128xf32> to vector<8x128xf32>
    %56 = arith.addf %53, %55 : vector<8x128xf32>
    %cst_15 = arith.constant 5.000000e-01 : f32
    %57 = vector.broadcast %cst_15 : f32 to vector<8x128xf32>
    %58 = arith.mulf %57, %56 : vector<8x128xf32>
    %cst_16 = arith.constant 4.471500e-02 : f32
    %59 = vector.broadcast %cst_16 : f32 to vector<8x128xf32>
    %60 = arith.mulf %59, %56 : vector<8x128xf32>
    %61 = arith.mulf %60, %56 : vector<8x128xf32>
    %62 = arith.mulf %61, %56 : vector<8x128xf32>
    %63 = arith.addf %56, %62 : vector<8x128xf32>
    %cst_17 = arith.constant 0.797884583 : f32
    %64 = vector.broadcast %cst_17 : f32 to vector<8x128xf32>
    %65 = arith.mulf %64, %63 : vector<8x128xf32>
    %66 = math.tanh %65 : vector<8x128xf32>
    %cst_18 = arith.constant 1.000000e+00 : f32
    %67 = vector.broadcast %cst_18 : f32 to vector<8x128xf32>
    %68 = arith.addf %67, %66 : vector<8x128xf32>
    %69 = arith.mulf %58, %68 : vector<8x128xf32>
    %c0_19 = arith.constant 0 : index
    %c0_20 = arith.constant 0 : index
    %70 = vector.load %arg5[%c0_19, %c0_20] : memref<8x128xf32, #tpu.memory_space<vmem>>, vector<8x128xf32>
    %71 = arith.addf %69, %70 : vector<8x128xf32>
    %c0_21 = arith.constant 0 : index
    %c0_22 = arith.constant 0 : index
    %c0_23 = arith.constant 0 : index
    %72 = vector.load %arg7[%c0_21, %c0_22, %c0_23] : memref<2x9x128xf32, #tpu.memory_space<vmem>>, vector<1x9x128xf32>
    %73 = vector.shape_cast %72 : vector<1x9x128xf32> to vector<9x128xf32>
    %74 = vector.extract_strided_slice %73 {offsets = [4, 0], sizes = [1, 128], strides = [1, 1]} : vector<9x128xf32> to vector<1x128xf32>
    %75 = vector.extract_strided_slice %73 {offsets = [5, 0], sizes = [1, 128], strides = [1, 1]} : vector<9x128xf32> to vector<1x128xf32>
    %cst_24 = arith.constant dense<0.000000e+00> : vector<8xf32>
    %76 = vector.multi_reduction <add>, %71, %cst_24 [1] : vector<8x128xf32> to vector<8xf32>
    %77 = vector.shape_cast %76 : vector<8xf32> to vector<8x1xf32>
    %cst_25 = arith.constant 1.280000e+02 : f32
    %78 = vector.broadcast %cst_25 : f32 to vector<8x1xf32>
    %79 = arith.divf %77, %78 : vector<8x1xf32>
    %80 = vector.broadcast %79 : vector<8x1xf32> to vector<8x128xf32>
    %81 = arith.subf %71, %80 : vector<8x128xf32>
    %82 = arith.mulf %81, %81 : vector<8x128xf32>
    %cst_26 = arith.constant dense<0.000000e+00> : vector<8xf32>
    %83 = vector.multi_reduction <add>, %82, %cst_26 [1] : vector<8x128xf32> to vector<8xf32>
    %84 = vector.shape_cast %83 : vector<8xf32> to vector<8x1xf32>
    %cst_27 = arith.constant 1.280000e+02 : f32
    %85 = vector.broadcast %cst_27 : f32 to vector<8x1xf32>
    %86 = arith.divf %84, %85 : vector<8x1xf32>
    %cst_28 = arith.constant 9.99999974E-6 : f32
    %87 = vector.broadcast %cst_28 : f32 to vector<8x1xf32>
    %88 = arith.addf %86, %87 : vector<8x1xf32>
    %89 = math.rsqrt %88 : vector<8x1xf32>
    %90 = vector.broadcast %89 : vector<8x1xf32> to vector<8x128xf32>
    %91 = arith.mulf %81, %90 : vector<8x128xf32>
    %92 = vector.broadcast %74 : vector<1x128xf32> to vector<8x128xf32>
    %93 = arith.mulf %91, %92 : vector<8x128xf32>
    %94 = vector.broadcast %75 : vector<1x128xf32> to vector<8x128xf32>
    %95 = arith.addf %93, %94 : vector<8x128xf32>
    %c0_29 = arith.constant 0 : index
    %c0_30 = arith.constant 0 : index
    %c0_31 = arith.constant 0 : index
    %96 = vector.load %arg6[%c0_29, %c0_30, %c0_31] : memref<8x128x128xf32, #tpu.memory_space<vmem>>, vector<1x128x128xf32>
    %97 = vector.shape_cast %96 : vector<1x128x128xf32> to vector<128x128xf32>
    %cst_32 = arith.constant dense<0.000000e+00> : vector<8x128xf32>
    %98 = tpu.matmul %95, %97, %cst_32 {dimension_numbers = #tpu.dot_dimension_numbers<[1], [0], [0], [1], [0, 0, 1, 1], [], []>} : vector<8x128xf32>, vector<128x128xf32>, vector<8x128xf32> -> vector<8x128xf32>
    %99 = vector.extract_strided_slice %73 {offsets = [0, 0], sizes = [1, 128], strides = [1, 1]} : vector<9x128xf32> to vector<1x128xf32>
    %100 = vector.broadcast %99 : vector<1x128xf32> to vector<8x128xf32>
    %101 = arith.addf %98, %100 : vector<8x128xf32>
    %c1 = arith.constant 1 : index
    %c0_33 = arith.constant 0 : index
    %c0_34 = arith.constant 0 : index
    %102 = vector.load %arg6[%c1, %c0_33, %c0_34] : memref<8x128x128xf32, #tpu.memory_space<vmem>>, vector<1x128x128xf32>
    %103 = vector.shape_cast %102 : vector<1x128x128xf32> to vector<128x128xf32>
    %cst_35 = arith.constant dense<0.000000e+00> : vector<8x128xf32>
    %104 = tpu.matmul %95, %103, %cst_35 {dimension_numbers = #tpu.dot_dimension_numbers<[1], [0], [0], [1], [0, 0, 1, 1], [], []>} : vector<8x128xf32>, vector<128x128xf32>, vector<8x128xf32> -> vector<8x128xf32>
    %105 = vector.extract_strided_slice %73 {offsets = [1, 0], sizes = [1, 128], strides = [1, 1]} : vector<9x128xf32> to vector<1x128xf32>
    %106 = vector.broadcast %105 : vector<1x128xf32> to vector<8x128xf32>
    %107 = arith.addf %104, %106 : vector<8x128xf32>
    %c2 = arith.constant 2 : index
    %c0_36 = arith.constant 0 : index
    %c0_37 = arith.constant 0 : index
    %108 = vector.load %arg6[%c2, %c0_36, %c0_37] : memref<8x128x128xf32, #tpu.memory_space<vmem>>, vector<1x128x128xf32>
    %109 = vector.shape_cast %108 : vector<1x128x128xf32> to vector<128x128xf32>
    %cst_38 = arith.constant dense<0.000000e+00> : vector<8x128xf32>
    %110 = tpu.matmul %95, %109, %cst_38 {dimension_numbers = #tpu.dot_dimension_numbers<[1], [0], [0], [1], [0, 0, 1, 1], [], []>} : vector<8x128xf32>, vector<128x128xf32>, vector<8x128xf32> -> vector<8x128xf32>
    %111 = vector.extract_strided_slice %73 {offsets = [2, 0], sizes = [1, 128], strides = [1, 1]} : vector<9x128xf32> to vector<1x128xf32>
    %112 = vector.broadcast %111 : vector<1x128xf32> to vector<8x128xf32>
    %113 = arith.addf %110, %112 : vector<8x128xf32>
    %114 = vector.extract_strided_slice %101 {offsets = [0, 0], sizes = [8, 32], strides = [1, 1]} : vector<8x128xf32> to vector<8x32xf32>
    %cst_39 = arith.constant 0.176776692 : f32
    %115 = vector.broadcast %cst_39 : f32 to vector<8x32xf32>
    %116 = arith.mulf %114, %115 : vector<8x32xf32>
    %117 = vector.extract_strided_slice %107 {offsets = [0, 0], sizes = [8, 32], strides = [1, 1]} : vector<8x128xf32> to vector<8x32xf32>
    %118 = vector.extract_strided_slice %113 {offsets = [0, 0], sizes = [8, 32], strides = [1, 1]} : vector<8x128xf32> to vector<8x32xf32>
    %cst_40 = arith.constant dense<0.000000e+00> : vector<8x8xf32>
    %119 = tpu.matmul %116, %117, %cst_40 {dimension_numbers = #tpu.dot_dimension_numbers<[1], [1], [0], [0], [0, 0, 1, 0], [], []>} : vector<8x32xf32>, vector<8x32xf32>, vector<8x8xf32> -> vector<8x8xf32>
    %cst_41 = arith.constant dense<0xFF800000> : vector<8xf32>
    %120 = vector.multi_reduction <maximumf>, %119, %cst_41 [1] : vector<8x8xf32> to vector<8xf32>
    %121 = vector.shape_cast %120 : vector<8xf32> to vector<8x1xf32>
    %122 = vector.broadcast %121 : vector<8x1xf32> to vector<8x8xf32>
    %123 = arith.subf %119, %122 : vector<8x8xf32>
    %124 = math.exp %123 : vector<8x8xf32>
    %cst_42 = arith.constant dense<0.000000e+00> : vector<8xf32>
    %125 = vector.multi_reduction <add>, %124, %cst_42 [1] : vector<8x8xf32> to vector<8xf32>
    %126 = vector.shape_cast %125 : vector<8xf32> to vector<8x1xf32>
    %127 = tpu.reciprocal %126 {approx = true} : vector<8x1xf32> -> vector<8x1xf32>
    %128 = vector.broadcast %127 : vector<8x1xf32> to vector<8x8xf32>
    %129 = arith.mulf %124, %128 : vector<8x8xf32>
    %cst_43 = arith.constant dense<0.000000e+00> : vector<8x32xf32>
    %130 = tpu.matmul %129, %118, %cst_43 {dimension_numbers = #tpu.dot_dimension_numbers<[1], [0], [0], [1], [0, 0, 1, 1], [], []>} : vector<8x8xf32>, vector<8x32xf32>, vector<8x32xf32> -> vector<8x32xf32>
    %131 = vector.extract_strided_slice %101 {offsets = [0, 32], sizes = [8, 32], strides = [1, 1]} : vector<8x128xf32> to vector<8x32xf32>
    %cst_44 = arith.constant 0.176776692 : f32
    %132 = vector.broadcast %cst_44 : f32 to vector<8x32xf32>
    %133 = arith.mulf %131, %132 : vector<8x32xf32>
    %134 = vector.extract_strided_slice %107 {offsets = [0, 32], sizes = [8, 32], strides = [1, 1]} : vector<8x128xf32> to vector<8x32xf32>
    %135 = vector.extract_strided_slice %113 {offsets = [0, 32], sizes = [8, 32], strides = [1, 1]} : vector<8x128xf32> to vector<8x32xf32>
    %cst_45 = arith.constant dense<0.000000e+00> : vector<8x8xf32>
    %136 = tpu.matmul %133, %134, %cst_45 {dimension_numbers = #tpu.dot_dimension_numbers<[1], [1], [0], [0], [0, 0, 1, 0], [], []>} : vector<8x32xf32>, vector<8x32xf32>, vector<8x8xf32> -> vector<8x8xf32>
    %cst_46 = arith.constant dense<0xFF800000> : vector<8xf32>
    %137 = vector.multi_reduction <maximumf>, %136, %cst_46 [1] : vector<8x8xf32> to vector<8xf32>
    %138 = vector.shape_cast %137 : vector<8xf32> to vector<8x1xf32>
    %139 = vector.broadcast %138 : vector<8x1xf32> to vector<8x8xf32>
    %140 = arith.subf %136, %139 : vector<8x8xf32>
    %141 = math.exp %140 : vector<8x8xf32>
    %cst_47 = arith.constant dense<0.000000e+00> : vector<8xf32>
    %142 = vector.multi_reduction <add>, %141, %cst_47 [1] : vector<8x8xf32> to vector<8xf32>
    %143 = vector.shape_cast %142 : vector<8xf32> to vector<8x1xf32>
    %144 = tpu.reciprocal %143 {approx = true} : vector<8x1xf32> -> vector<8x1xf32>
    %145 = vector.broadcast %144 : vector<8x1xf32> to vector<8x8xf32>
    %146 = arith.mulf %141, %145 : vector<8x8xf32>
    %cst_48 = arith.constant dense<0.000000e+00> : vector<8x32xf32>
    %147 = tpu.matmul %146, %135, %cst_48 {dimension_numbers = #tpu.dot_dimension_numbers<[1], [0], [0], [1], [0, 0, 1, 1], [], []>} : vector<8x8xf32>, vector<8x32xf32>, vector<8x32xf32> -> vector<8x32xf32>
    %148 = vector.extract_strided_slice %101 {offsets = [0, 64], sizes = [8, 32], strides = [1, 1]} : vector<8x128xf32> to vector<8x32xf32>
    %cst_49 = arith.constant 0.176776692 : f32
    %149 = vector.broadcast %cst_49 : f32 to vector<8x32xf32>
    %150 = arith.mulf %148, %149 : vector<8x32xf32>
    %151 = vector.extract_strided_slice %107 {offsets = [0, 64], sizes = [8, 32], strides = [1, 1]} : vector<8x128xf32> to vector<8x32xf32>
    %152 = vector.extract_strided_slice %113 {offsets = [0, 64], sizes = [8, 32], strides = [1, 1]} : vector<8x128xf32> to vector<8x32xf32>
    %cst_50 = arith.constant dense<0.000000e+00> : vector<8x8xf32>
    %153 = tpu.matmul %150, %151, %cst_50 {dimension_numbers = #tpu.dot_dimension_numbers<[1], [1], [0], [0], [0, 0, 1, 0], [], []>} : vector<8x32xf32>, vector<8x32xf32>, vector<8x8xf32> -> vector<8x8xf32>
    %cst_51 = arith.constant dense<0xFF800000> : vector<8xf32>
    %154 = vector.multi_reduction <maximumf>, %153, %cst_51 [1] : vector<8x8xf32> to vector<8xf32>
    %155 = vector.shape_cast %154 : vector<8xf32> to vector<8x1xf32>
    %156 = vector.broadcast %155 : vector<8x1xf32> to vector<8x8xf32>
    %157 = arith.subf %153, %156 : vector<8x8xf32>
    %158 = math.exp %157 : vector<8x8xf32>
    %cst_52 = arith.constant dense<0.000000e+00> : vector<8xf32>
    %159 = vector.multi_reduction <add>, %158, %cst_52 [1] : vector<8x8xf32> to vector<8xf32>
    %160 = vector.shape_cast %159 : vector<8xf32> to vector<8x1xf32>
    %161 = tpu.reciprocal %160 {approx = true} : vector<8x1xf32> -> vector<8x1xf32>
    %162 = vector.broadcast %161 : vector<8x1xf32> to vector<8x8xf32>
    %163 = arith.mulf %158, %162 : vector<8x8xf32>
    %cst_53 = arith.constant dense<0.000000e+00> : vector<8x32xf32>
    %164 = tpu.matmul %163, %152, %cst_53 {dimension_numbers = #tpu.dot_dimension_numbers<[1], [0], [0], [1], [0, 0, 1, 1], [], []>} : vector<8x8xf32>, vector<8x32xf32>, vector<8x32xf32> -> vector<8x32xf32>
    %165 = vector.extract_strided_slice %101 {offsets = [0, 96], sizes = [8, 32], strides = [1, 1]} : vector<8x128xf32> to vector<8x32xf32>
    %cst_54 = arith.constant 0.176776692 : f32
    %166 = vector.broadcast %cst_54 : f32 to vector<8x32xf32>
    %167 = arith.mulf %165, %166 : vector<8x32xf32>
    %168 = vector.extract_strided_slice %107 {offsets = [0, 96], sizes = [8, 32], strides = [1, 1]} : vector<8x128xf32> to vector<8x32xf32>
    %169 = vector.extract_strided_slice %113 {offsets = [0, 96], sizes = [8, 32], strides = [1, 1]} : vector<8x128xf32> to vector<8x32xf32>
    %cst_55 = arith.constant dense<0.000000e+00> : vector<8x8xf32>
    %170 = tpu.matmul %167, %168, %cst_55 {dimension_numbers = #tpu.dot_dimension_numbers<[1], [1], [0], [0], [0, 0, 1, 0], [], []>} : vector<8x32xf32>, vector<8x32xf32>, vector<8x8xf32> -> vector<8x8xf32>
    %cst_56 = arith.constant dense<0xFF800000> : vector<8xf32>
    %171 = vector.multi_reduction <maximumf>, %170, %cst_56 [1] : vector<8x8xf32> to vector<8xf32>
    %172 = vector.shape_cast %171 : vector<8xf32> to vector<8x1xf32>
    %173 = vector.broadcast %172 : vector<8x1xf32> to vector<8x8xf32>
    %174 = arith.subf %170, %173 : vector<8x8xf32>
    %175 = math.exp %174 : vector<8x8xf32>
    %cst_57 = arith.constant dense<0.000000e+00> : vector<8xf32>
    %176 = vector.multi_reduction <add>, %175, %cst_57 [1] : vector<8x8xf32> to vector<8xf32>
    %177 = vector.shape_cast %176 : vector<8xf32> to vector<8x1xf32>
    %178 = tpu.reciprocal %177 {approx = true} : vector<8x1xf32> -> vector<8x1xf32>
    %179 = vector.broadcast %178 : vector<8x1xf32> to vector<8x8xf32>
    %180 = arith.mulf %175, %179 : vector<8x8xf32>
    %cst_58 = arith.constant dense<0.000000e+00> : vector<8x32xf32>
    %181 = tpu.matmul %180, %169, %cst_58 {dimension_numbers = #tpu.dot_dimension_numbers<[1], [0], [0], [1], [0, 0, 1, 1], [], []>} : vector<8x8xf32>, vector<8x32xf32>, vector<8x32xf32> -> vector<8x32xf32>
    %182 = tpu.concatenate %130, %147, %164, %181 in 1 : vector<8x32xf32>, vector<8x32xf32>, vector<8x32xf32>, vector<8x32xf32> -> vector<8x128xf32>
    %c3 = arith.constant 3 : index
    %c0_59 = arith.constant 0 : index
    %c0_60 = arith.constant 0 : index
    %183 = vector.load %arg6[%c3, %c0_59, %c0_60] : memref<8x128x128xf32, #tpu.memory_space<vmem>>, vector<1x128x128xf32>
    %184 = vector.shape_cast %183 : vector<1x128x128xf32> to vector<128x128xf32>
    %cst_61 = arith.constant dense<0.000000e+00> : vector<8x128xf32>
    %185 = tpu.matmul %182, %184, %cst_61 {dimension_numbers = #tpu.dot_dimension_numbers<[1], [0], [0], [1], [0, 0, 1, 1], [], []>} : vector<8x128xf32>, vector<128x128xf32>, vector<8x128xf32> -> vector<8x128xf32>
    %186 = arith.addf %71, %185 : vector<8x128xf32>
    %187 = vector.extract_strided_slice %73 {offsets = [3, 0], sizes = [1, 128], strides = [1, 1]} : vector<9x128xf32> to vector<1x128xf32>
    %188 = vector.broadcast %187 : vector<1x128xf32> to vector<8x128xf32>
    %189 = arith.addf %186, %188 : vector<8x128xf32>
    %190 = vector.extract_strided_slice %73 {offsets = [6, 0], sizes = [1, 128], strides = [1, 1]} : vector<9x128xf32> to vector<1x128xf32>
    %191 = vector.extract_strided_slice %73 {offsets = [7, 0], sizes = [1, 128], strides = [1, 1]} : vector<9x128xf32> to vector<1x128xf32>
    %cst_62 = arith.constant dense<0.000000e+00> : vector<8xf32>
    %192 = vector.multi_reduction <add>, %189, %cst_62 [1] : vector<8x128xf32> to vector<8xf32>
    %193 = vector.shape_cast %192 : vector<8xf32> to vector<8x1xf32>
    %cst_63 = arith.constant 1.280000e+02 : f32
    %194 = vector.broadcast %cst_63 : f32 to vector<8x1xf32>
    %195 = arith.divf %193, %194 : vector<8x1xf32>
    %196 = vector.broadcast %195 : vector<8x1xf32> to vector<8x128xf32>
    %197 = arith.subf %189, %196 : vector<8x128xf32>
    %198 = arith.mulf %197, %197 : vector<8x128xf32>
    %cst_64 = arith.constant dense<0.000000e+00> : vector<8xf32>
    %199 = vector.multi_reduction <add>, %198, %cst_64 [1] : vector<8x128xf32> to vector<8xf32>
    %200 = vector.shape_cast %199 : vector<8xf32> to vector<8x1xf32>
    %cst_65 = arith.constant 1.280000e+02 : f32
    %201 = vector.broadcast %cst_65 : f32 to vector<8x1xf32>
    %202 = arith.divf %200, %201 : vector<8x1xf32>
    %cst_66 = arith.constant 9.99999974E-6 : f32
    %203 = vector.broadcast %cst_66 : f32 to vector<8x1xf32>
    %204 = arith.addf %202, %203 : vector<8x1xf32>
    %205 = math.rsqrt %204 : vector<8x1xf32>
    %206 = vector.broadcast %205 : vector<8x1xf32> to vector<8x128xf32>
    %207 = arith.mulf %197, %206 : vector<8x128xf32>
    %208 = vector.broadcast %190 : vector<1x128xf32> to vector<8x128xf32>
    %209 = arith.mulf %207, %208 : vector<8x128xf32>
    %210 = vector.broadcast %191 : vector<1x128xf32> to vector<8x128xf32>
    %211 = arith.addf %209, %210 : vector<8x128xf32>
    %c0_67 = arith.constant 0 : index
    %c0_68 = arith.constant 0 : index
    %c0_69 = arith.constant 0 : index
    %212 = vector.load %arg8[%c0_67, %c0_68, %c0_69] : memref<2x128x256xf32, #tpu.memory_space<vmem>>, vector<1x128x256xf32>
    %213 = vector.shape_cast %212 : vector<1x128x256xf32> to vector<128x256xf32>
    %cst_70 = arith.constant dense<0.000000e+00> : vector<8x256xf32>
    %214 = tpu.matmul %211, %213, %cst_70 {dimension_numbers = #tpu.dot_dimension_numbers<[1], [0], [0], [1], [0, 0, 1, 1], [], []>} : vector<8x128xf32>, vector<128x256xf32>, vector<8x256xf32> -> vector<8x256xf32>
    %c0_71 = arith.constant 0 : index
    %c0_72 = arith.constant 0 : index
    %c0_73 = arith.constant 0 : index
    %215 = vector.load %arg9[%c0_71, %c0_72, %c0_73] : memref<2x1x256xf32, #tpu.memory_space<vmem>>, vector<1x1x256xf32>
    %216 = vector.shape_cast %215 : vector<1x1x256xf32> to vector<1x256xf32>
    %217 = vector.broadcast %216 : vector<1x256xf32> to vector<8x256xf32>
    %218 = arith.addf %214, %217 : vector<8x256xf32>
    %cst_74 = arith.constant 5.000000e-01 : f32
    %219 = vector.broadcast %cst_74 : f32 to vector<8x256xf32>
    %220 = arith.mulf %219, %218 : vector<8x256xf32>
    %cst_75 = arith.constant 4.471500e-02 : f32
    %221 = vector.broadcast %cst_75 : f32 to vector<8x256xf32>
    %222 = arith.mulf %221, %218 : vector<8x256xf32>
    %223 = arith.mulf %222, %218 : vector<8x256xf32>
    %224 = arith.mulf %223, %218 : vector<8x256xf32>
    %225 = arith.addf %218, %224 : vector<8x256xf32>
    %cst_76 = arith.constant 0.797884583 : f32
    %226 = vector.broadcast %cst_76 : f32 to vector<8x256xf32>
    %227 = arith.mulf %226, %225 : vector<8x256xf32>
    %228 = math.tanh %227 : vector<8x256xf32>
    %cst_77 = arith.constant 1.000000e+00 : f32
    %229 = vector.broadcast %cst_77 : f32 to vector<8x256xf32>
    %230 = arith.addf %229, %228 : vector<8x256xf32>
    %231 = arith.mulf %220, %230 : vector<8x256xf32>
    %c0_78 = arith.constant 0 : index
    %c0_79 = arith.constant 0 : index
    %c0_80 = arith.constant 0 : index
    %232 = vector.load %arg10[%c0_78, %c0_79, %c0_80] : memref<2x256x128xf32, #tpu.memory_space<vmem>>, vector<1x256x128xf32>
    %233 = vector.shape_cast %232 : vector<1x256x128xf32> to vector<256x128xf32>
    %cst_81 = arith.constant dense<0.000000e+00> : vector<8x128xf32>
    %234 = tpu.matmul %231, %233, %cst_81 {dimension_numbers = #tpu.dot_dimension_numbers<[1], [0], [0], [1], [0, 0, 1, 1], [], []>} : vector<8x256xf32>, vector<256x128xf32>, vector<8x128xf32> -> vector<8x128xf32>
    %235 = arith.addf %189, %234 : vector<8x128xf32>
    %236 = vector.extract_strided_slice %73 {offsets = [8, 0], sizes = [1, 128], strides = [1, 1]} : vector<9x128xf32> to vector<1x128xf32>
    %237 = vector.broadcast %236 : vector<1x128xf32> to vector<8x128xf32>
    %238 = arith.addf %235, %237 : vector<8x128xf32>
    %c1_82 = arith.constant 1 : index
    %c0_83 = arith.constant 0 : index
    %c0_84 = arith.constant 0 : index
    %239 = vector.load %arg7[%c1_82, %c0_83, %c0_84] : memref<2x9x128xf32, #tpu.memory_space<vmem>>, vector<1x9x128xf32>
    %240 = vector.shape_cast %239 : vector<1x9x128xf32> to vector<9x128xf32>
    %241 = vector.extract_strided_slice %240 {offsets = [4, 0], sizes = [1, 128], strides = [1, 1]} : vector<9x128xf32> to vector<1x128xf32>
    %242 = vector.extract_strided_slice %240 {offsets = [5, 0], sizes = [1, 128], strides = [1, 1]} : vector<9x128xf32> to vector<1x128xf32>
    %cst_85 = arith.constant dense<0.000000e+00> : vector<8xf32>
    %243 = vector.multi_reduction <add>, %238, %cst_85 [1] : vector<8x128xf32> to vector<8xf32>
    %244 = vector.shape_cast %243 : vector<8xf32> to vector<8x1xf32>
    %cst_86 = arith.constant 1.280000e+02 : f32
    %245 = vector.broadcast %cst_86 : f32 to vector<8x1xf32>
    %246 = arith.divf %244, %245 : vector<8x1xf32>
    %247 = vector.broadcast %246 : vector<8x1xf32> to vector<8x128xf32>
    %248 = arith.subf %238, %247 : vector<8x128xf32>
    %249 = arith.mulf %248, %248 : vector<8x128xf32>
    %cst_87 = arith.constant dense<0.000000e+00> : vector<8xf32>
    %250 = vector.multi_reduction <add>, %249, %cst_87 [1] : vector<8x128xf32> to vector<8xf32>
    %251 = vector.shape_cast %250 : vector<8xf32> to vector<8x1xf32>
    %cst_88 = arith.constant 1.280000e+02 : f32
    %252 = vector.broadcast %cst_88 : f32 to vector<8x1xf32>
    %253 = arith.divf %251, %252 : vector<8x1xf32>
    %cst_89 = arith.constant 9.99999974E-6 : f32
    %254 = vector.broadcast %cst_89 : f32 to vector<8x1xf32>
    %255 = arith.addf %253, %254 : vector<8x1xf32>
    %256 = math.rsqrt %255 : vector<8x1xf32>
    %257 = vector.broadcast %256 : vector<8x1xf32> to vector<8x128xf32>
    %258 = arith.mulf %248, %257 : vector<8x128xf32>
    %259 = vector.broadcast %241 : vector<1x128xf32> to vector<8x128xf32>
    %260 = arith.mulf %258, %259 : vector<8x128xf32>
    %261 = vector.broadcast %242 : vector<1x128xf32> to vector<8x128xf32>
    %262 = arith.addf %260, %261 : vector<8x128xf32>
    %c4 = arith.constant 4 : index
    %c0_90 = arith.constant 0 : index
    %c0_91 = arith.constant 0 : index
    %263 = vector.load %arg6[%c4, %c0_90, %c0_91] : memref<8x128x128xf32, #tpu.memory_space<vmem>>, vector<1x128x128xf32>
    %264 = vector.shape_cast %263 : vector<1x128x128xf32> to vector<128x128xf32>
    %cst_92 = arith.constant dense<0.000000e+00> : vector<8x128xf32>
    %265 = tpu.matmul %262, %264, %cst_92 {dimension_numbers = #tpu.dot_dimension_numbers<[1], [0], [0], [1], [0, 0, 1, 1], [], []>} : vector<8x128xf32>, vector<128x128xf32>, vector<8x128xf32> -> vector<8x128xf32>
    %266 = vector.extract_strided_slice %240 {offsets = [0, 0], sizes = [1, 128], strides = [1, 1]} : vector<9x128xf32> to vector<1x128xf32>
    %267 = vector.broadcast %266 : vector<1x128xf32> to vector<8x128xf32>
    %268 = arith.addf %265, %267 : vector<8x128xf32>
    %c5 = arith.constant 5 : index
    %c0_93 = arith.constant 0 : index
    %c0_94 = arith.constant 0 : index
    %269 = vector.load %arg6[%c5, %c0_93, %c0_94] : memref<8x128x128xf32, #tpu.memory_space<vmem>>, vector<1x128x128xf32>
    %270 = vector.shape_cast %269 : vector<1x128x128xf32> to vector<128x128xf32>
    %cst_95 = arith.constant dense<0.000000e+00> : vector<8x128xf32>
    %271 = tpu.matmul %262, %270, %cst_95 {dimension_numbers = #tpu.dot_dimension_numbers<[1], [0], [0], [1], [0, 0, 1, 1], [], []>} : vector<8x128xf32>, vector<128x128xf32>, vector<8x128xf32> -> vector<8x128xf32>
    %272 = vector.extract_strided_slice %240 {offsets = [1, 0], sizes = [1, 128], strides = [1, 1]} : vector<9x128xf32> to vector<1x128xf32>
    %273 = vector.broadcast %272 : vector<1x128xf32> to vector<8x128xf32>
    %274 = arith.addf %271, %273 : vector<8x128xf32>
    %c6 = arith.constant 6 : index
    %c0_96 = arith.constant 0 : index
    %c0_97 = arith.constant 0 : index
    %275 = vector.load %arg6[%c6, %c0_96, %c0_97] : memref<8x128x128xf32, #tpu.memory_space<vmem>>, vector<1x128x128xf32>
    %276 = vector.shape_cast %275 : vector<1x128x128xf32> to vector<128x128xf32>
    %cst_98 = arith.constant dense<0.000000e+00> : vector<8x128xf32>
    %277 = tpu.matmul %262, %276, %cst_98 {dimension_numbers = #tpu.dot_dimension_numbers<[1], [0], [0], [1], [0, 0, 1, 1], [], []>} : vector<8x128xf32>, vector<128x128xf32>, vector<8x128xf32> -> vector<8x128xf32>
    %278 = vector.extract_strided_slice %240 {offsets = [2, 0], sizes = [1, 128], strides = [1, 1]} : vector<9x128xf32> to vector<1x128xf32>
    %279 = vector.broadcast %278 : vector<1x128xf32> to vector<8x128xf32>
    %280 = arith.addf %277, %279 : vector<8x128xf32>
    %281 = vector.extract_strided_slice %268 {offsets = [0, 0], sizes = [8, 32], strides = [1, 1]} : vector<8x128xf32> to vector<8x32xf32>
    %cst_99 = arith.constant 0.176776692 : f32
    %282 = vector.broadcast %cst_99 : f32 to vector<8x32xf32>
    %283 = arith.mulf %281, %282 : vector<8x32xf32>
    %284 = vector.extract_strided_slice %274 {offsets = [0, 0], sizes = [8, 32], strides = [1, 1]} : vector<8x128xf32> to vector<8x32xf32>
    %285 = vector.extract_strided_slice %280 {offsets = [0, 0], sizes = [8, 32], strides = [1, 1]} : vector<8x128xf32> to vector<8x32xf32>
    %cst_100 = arith.constant dense<0.000000e+00> : vector<8x8xf32>
    %286 = tpu.matmul %283, %284, %cst_100 {dimension_numbers = #tpu.dot_dimension_numbers<[1], [1], [0], [0], [0, 0, 1, 0], [], []>} : vector<8x32xf32>, vector<8x32xf32>, vector<8x8xf32> -> vector<8x8xf32>
    %cst_101 = arith.constant dense<0xFF800000> : vector<8xf32>
    %287 = vector.multi_reduction <maximumf>, %286, %cst_101 [1] : vector<8x8xf32> to vector<8xf32>
    %288 = vector.shape_cast %287 : vector<8xf32> to vector<8x1xf32>
    %289 = vector.broadcast %288 : vector<8x1xf32> to vector<8x8xf32>
    %290 = arith.subf %286, %289 : vector<8x8xf32>
    %291 = math.exp %290 : vector<8x8xf32>
    %cst_102 = arith.constant dense<0.000000e+00> : vector<8xf32>
    %292 = vector.multi_reduction <add>, %291, %cst_102 [1] : vector<8x8xf32> to vector<8xf32>
    %293 = vector.shape_cast %292 : vector<8xf32> to vector<8x1xf32>
    %294 = tpu.reciprocal %293 {approx = true} : vector<8x1xf32> -> vector<8x1xf32>
    %295 = vector.broadcast %294 : vector<8x1xf32> to vector<8x8xf32>
    %296 = arith.mulf %291, %295 : vector<8x8xf32>
    %cst_103 = arith.constant dense<0.000000e+00> : vector<8x32xf32>
    %297 = tpu.matmul %296, %285, %cst_103 {dimension_numbers = #tpu.dot_dimension_numbers<[1], [0], [0], [1], [0, 0, 1, 1], [], []>} : vector<8x8xf32>, vector<8x32xf32>, vector<8x32xf32> -> vector<8x32xf32>
    %298 = vector.extract_strided_slice %268 {offsets = [0, 32], sizes = [8, 32], strides = [1, 1]} : vector<8x128xf32> to vector<8x32xf32>
    %cst_104 = arith.constant 0.176776692 : f32
    %299 = vector.broadcast %cst_104 : f32 to vector<8x32xf32>
    %300 = arith.mulf %298, %299 : vector<8x32xf32>
    %301 = vector.extract_strided_slice %274 {offsets = [0, 32], sizes = [8, 32], strides = [1, 1]} : vector<8x128xf32> to vector<8x32xf32>
    %302 = vector.extract_strided_slice %280 {offsets = [0, 32], sizes = [8, 32], strides = [1, 1]} : vector<8x128xf32> to vector<8x32xf32>
    %cst_105 = arith.constant dense<0.000000e+00> : vector<8x8xf32>
    %303 = tpu.matmul %300, %301, %cst_105 {dimension_numbers = #tpu.dot_dimension_numbers<[1], [1], [0], [0], [0, 0, 1, 0], [], []>} : vector<8x32xf32>, vector<8x32xf32>, vector<8x8xf32> -> vector<8x8xf32>
    %cst_106 = arith.constant dense<0xFF800000> : vector<8xf32>
    %304 = vector.multi_reduction <maximumf>, %303, %cst_106 [1] : vector<8x8xf32> to vector<8xf32>
    %305 = vector.shape_cast %304 : vector<8xf32> to vector<8x1xf32>
    %306 = vector.broadcast %305 : vector<8x1xf32> to vector<8x8xf32>
    %307 = arith.subf %303, %306 : vector<8x8xf32>
    %308 = math.exp %307 : vector<8x8xf32>
    %cst_107 = arith.constant dense<0.000000e+00> : vector<8xf32>
    %309 = vector.multi_reduction <add>, %308, %cst_107 [1] : vector<8x8xf32> to vector<8xf32>
    %310 = vector.shape_cast %309 : vector<8xf32> to vector<8x1xf32>
    %311 = tpu.reciprocal %310 {approx = true} : vector<8x1xf32> -> vector<8x1xf32>
    %312 = vector.broadcast %311 : vector<8x1xf32> to vector<8x8xf32>
    %313 = arith.mulf %308, %312 : vector<8x8xf32>
    %cst_108 = arith.constant dense<0.000000e+00> : vector<8x32xf32>
    %314 = tpu.matmul %313, %302, %cst_108 {dimension_numbers = #tpu.dot_dimension_numbers<[1], [0], [0], [1], [0, 0, 1, 1], [], []>} : vector<8x8xf32>, vector<8x32xf32>, vector<8x32xf32> -> vector<8x32xf32>
    %315 = vector.extract_strided_slice %268 {offsets = [0, 64], sizes = [8, 32], strides = [1, 1]} : vector<8x128xf32> to vector<8x32xf32>
    %cst_109 = arith.constant 0.176776692 : f32
    %316 = vector.broadcast %cst_109 : f32 to vector<8x32xf32>
    %317 = arith.mulf %315, %316 : vector<8x32xf32>
    %318 = vector.extract_strided_slice %274 {offsets = [0, 64], sizes = [8, 32], strides = [1, 1]} : vector<8x128xf32> to vector<8x32xf32>
    %319 = vector.extract_strided_slice %280 {offsets = [0, 64], sizes = [8, 32], strides = [1, 1]} : vector<8x128xf32> to vector<8x32xf32>
    %cst_110 = arith.constant dense<0.000000e+00> : vector<8x8xf32>
    %320 = tpu.matmul %317, %318, %cst_110 {dimension_numbers = #tpu.dot_dimension_numbers<[1], [1], [0], [0], [0, 0, 1, 0], [], []>} : vector<8x32xf32>, vector<8x32xf32>, vector<8x8xf32> -> vector<8x8xf32>
    %cst_111 = arith.constant dense<0xFF800000> : vector<8xf32>
    %321 = vector.multi_reduction <maximumf>, %320, %cst_111 [1] : vector<8x8xf32> to vector<8xf32>
    %322 = vector.shape_cast %321 : vector<8xf32> to vector<8x1xf32>
    %323 = vector.broadcast %322 : vector<8x1xf32> to vector<8x8xf32>
    %324 = arith.subf %320, %323 : vector<8x8xf32>
    %325 = math.exp %324 : vector<8x8xf32>
    %cst_112 = arith.constant dense<0.000000e+00> : vector<8xf32>
    %326 = vector.multi_reduction <add>, %325, %cst_112 [1] : vector<8x8xf32> to vector<8xf32>
    %327 = vector.shape_cast %326 : vector<8xf32> to vector<8x1xf32>
    %328 = tpu.reciprocal %327 {approx = true} : vector<8x1xf32> -> vector<8x1xf32>
    %329 = vector.broadcast %328 : vector<8x1xf32> to vector<8x8xf32>
    %330 = arith.mulf %325, %329 : vector<8x8xf32>
    %cst_113 = arith.constant dense<0.000000e+00> : vector<8x32xf32>
    %331 = tpu.matmul %330, %319, %cst_113 {dimension_numbers = #tpu.dot_dimension_numbers<[1], [0], [0], [1], [0, 0, 1, 1], [], []>} : vector<8x8xf32>, vector<8x32xf32>, vector<8x32xf32> -> vector<8x32xf32>
    %332 = vector.extract_strided_slice %268 {offsets = [0, 96], sizes = [8, 32], strides = [1, 1]} : vector<8x128xf32> to vector<8x32xf32>
    %cst_114 = arith.constant 0.176776692 : f32
    %333 = vector.broadcast %cst_114 : f32 to vector<8x32xf32>
    %334 = arith.mulf %332, %333 : vector<8x32xf32>
    %335 = vector.extract_strided_slice %274 {offsets = [0, 96], sizes = [8, 32], strides = [1, 1]} : vector<8x128xf32> to vector<8x32xf32>
    %336 = vector.extract_strided_slice %280 {offsets = [0, 96], sizes = [8, 32], strides = [1, 1]} : vector<8x128xf32> to vector<8x32xf32>
    %cst_115 = arith.constant dense<0.000000e+00> : vector<8x8xf32>
    %337 = tpu.matmul %334, %335, %cst_115 {dimension_numbers = #tpu.dot_dimension_numbers<[1], [1], [0], [0], [0, 0, 1, 0], [], []>} : vector<8x32xf32>, vector<8x32xf32>, vector<8x8xf32> -> vector<8x8xf32>
    %cst_116 = arith.constant dense<0xFF800000> : vector<8xf32>
    %338 = vector.multi_reduction <maximumf>, %337, %cst_116 [1] : vector<8x8xf32> to vector<8xf32>
    %339 = vector.shape_cast %338 : vector<8xf32> to vector<8x1xf32>
    %340 = vector.broadcast %339 : vector<8x1xf32> to vector<8x8xf32>
    %341 = arith.subf %337, %340 : vector<8x8xf32>
    %342 = math.exp %341 : vector<8x8xf32>
    %cst_117 = arith.constant dense<0.000000e+00> : vector<8xf32>
    %343 = vector.multi_reduction <add>, %342, %cst_117 [1] : vector<8x8xf32> to vector<8xf32>
    %344 = vector.shape_cast %343 : vector<8xf32> to vector<8x1xf32>
    %345 = tpu.reciprocal %344 {approx = true} : vector<8x1xf32> -> vector<8x1xf32>
    %346 = vector.broadcast %345 : vector<8x1xf32> to vector<8x8xf32>
    %347 = arith.mulf %342, %346 : vector<8x8xf32>
    %cst_118 = arith.constant dense<0.000000e+00> : vector<8x32xf32>
    %348 = tpu.matmul %347, %336, %cst_118 {dimension_numbers = #tpu.dot_dimension_numbers<[1], [0], [0], [1], [0, 0, 1, 1], [], []>} : vector<8x8xf32>, vector<8x32xf32>, vector<8x32xf32> -> vector<8x32xf32>
    %349 = tpu.concatenate %297, %314, %331, %348 in 1 : vector<8x32xf32>, vector<8x32xf32>, vector<8x32xf32>, vector<8x32xf32> -> vector<8x128xf32>
    %c7 = arith.constant 7 : index
    %c0_119 = arith.constant 0 : index
    %c0_120 = arith.constant 0 : index
    %350 = vector.load %arg6[%c7, %c0_119, %c0_120] : memref<8x128x128xf32, #tpu.memory_space<vmem>>, vector<1x128x128xf32>
    %351 = vector.shape_cast %350 : vector<1x128x128xf32> to vector<128x128xf32>
    %cst_121 = arith.constant dense<0.000000e+00> : vector<8x128xf32>
    %352 = tpu.matmul %349, %351, %cst_121 {dimension_numbers = #tpu.dot_dimension_numbers<[1], [0], [0], [1], [0, 0, 1, 1], [], []>} : vector<8x128xf32>, vector<128x128xf32>, vector<8x128xf32> -> vector<8x128xf32>
    %353 = arith.addf %238, %352 : vector<8x128xf32>
    %354 = vector.extract_strided_slice %240 {offsets = [3, 0], sizes = [1, 128], strides = [1, 1]} : vector<9x128xf32> to vector<1x128xf32>
    %355 = vector.broadcast %354 : vector<1x128xf32> to vector<8x128xf32>
    %356 = arith.addf %353, %355 : vector<8x128xf32>
    %357 = vector.extract_strided_slice %240 {offsets = [6, 0], sizes = [1, 128], strides = [1, 1]} : vector<9x128xf32> to vector<1x128xf32>
    %358 = vector.extract_strided_slice %240 {offsets = [7, 0], sizes = [1, 128], strides = [1, 1]} : vector<9x128xf32> to vector<1x128xf32>
    %cst_122 = arith.constant dense<0.000000e+00> : vector<8xf32>
    %359 = vector.multi_reduction <add>, %356, %cst_122 [1] : vector<8x128xf32> to vector<8xf32>
    %360 = vector.shape_cast %359 : vector<8xf32> to vector<8x1xf32>
    %cst_123 = arith.constant 1.280000e+02 : f32
    %361 = vector.broadcast %cst_123 : f32 to vector<8x1xf32>
    %362 = arith.divf %360, %361 : vector<8x1xf32>
    %363 = vector.broadcast %362 : vector<8x1xf32> to vector<8x128xf32>
    %364 = arith.subf %356, %363 : vector<8x128xf32>
    %365 = arith.mulf %364, %364 : vector<8x128xf32>
    %cst_124 = arith.constant dense<0.000000e+00> : vector<8xf32>
    %366 = vector.multi_reduction <add>, %365, %cst_124 [1] : vector<8x128xf32> to vector<8xf32>
    %367 = vector.shape_cast %366 : vector<8xf32> to vector<8x1xf32>
    %cst_125 = arith.constant 1.280000e+02 : f32
    %368 = vector.broadcast %cst_125 : f32 to vector<8x1xf32>
    %369 = arith.divf %367, %368 : vector<8x1xf32>
    %cst_126 = arith.constant 9.99999974E-6 : f32
    %370 = vector.broadcast %cst_126 : f32 to vector<8x1xf32>
    %371 = arith.addf %369, %370 : vector<8x1xf32>
    %372 = math.rsqrt %371 : vector<8x1xf32>
    %373 = vector.broadcast %372 : vector<8x1xf32> to vector<8x128xf32>
    %374 = arith.mulf %364, %373 : vector<8x128xf32>
    %375 = vector.broadcast %357 : vector<1x128xf32> to vector<8x128xf32>
    %376 = arith.mulf %374, %375 : vector<8x128xf32>
    %377 = vector.broadcast %358 : vector<1x128xf32> to vector<8x128xf32>
    %378 = arith.addf %376, %377 : vector<8x128xf32>
    %c1_127 = arith.constant 1 : index
    %c0_128 = arith.constant 0 : index
    %c0_129 = arith.constant 0 : index
    %379 = vector.load %arg8[%c1_127, %c0_128, %c0_129] : memref<2x128x256xf32, #tpu.memory_space<vmem>>, vector<1x128x256xf32>
    %380 = vector.shape_cast %379 : vector<1x128x256xf32> to vector<128x256xf32>
    %cst_130 = arith.constant dense<0.000000e+00> : vector<8x256xf32>
    %381 = tpu.matmul %378, %380, %cst_130 {dimension_numbers = #tpu.dot_dimension_numbers<[1], [0], [0], [1], [0, 0, 1, 1], [], []>} : vector<8x128xf32>, vector<128x256xf32>, vector<8x256xf32> -> vector<8x256xf32>
    %c1_131 = arith.constant 1 : index
    %c0_132 = arith.constant 0 : index
    %c0_133 = arith.constant 0 : index
    %382 = vector.load %arg9[%c1_131, %c0_132, %c0_133] : memref<2x1x256xf32, #tpu.memory_space<vmem>>, vector<1x1x256xf32>
    %383 = vector.shape_cast %382 : vector<1x1x256xf32> to vector<1x256xf32>
    %384 = vector.broadcast %383 : vector<1x256xf32> to vector<8x256xf32>
    %385 = arith.addf %381, %384 : vector<8x256xf32>
    %cst_134 = arith.constant 5.000000e-01 : f32
    %386 = vector.broadcast %cst_134 : f32 to vector<8x256xf32>
    %387 = arith.mulf %386, %385 : vector<8x256xf32>
    %cst_135 = arith.constant 4.471500e-02 : f32
    %388 = vector.broadcast %cst_135 : f32 to vector<8x256xf32>
    %389 = arith.mulf %388, %385 : vector<8x256xf32>
    %390 = arith.mulf %389, %385 : vector<8x256xf32>
    %391 = arith.mulf %390, %385 : vector<8x256xf32>
    %392 = arith.addf %385, %391 : vector<8x256xf32>
    %cst_136 = arith.constant 0.797884583 : f32
    %393 = vector.broadcast %cst_136 : f32 to vector<8x256xf32>
    %394 = arith.mulf %393, %392 : vector<8x256xf32>
    %395 = math.tanh %394 : vector<8x256xf32>
    %cst_137 = arith.constant 1.000000e+00 : f32
    %396 = vector.broadcast %cst_137 : f32 to vector<8x256xf32>
    %397 = arith.addf %396, %395 : vector<8x256xf32>
    %398 = arith.mulf %387, %397 : vector<8x256xf32>
    %c1_138 = arith.constant 1 : index
    %c0_139 = arith.constant 0 : index
    %c0_140 = arith.constant 0 : index
    %399 = vector.load %arg10[%c1_138, %c0_139, %c0_140] : memref<2x256x128xf32, #tpu.memory_space<vmem>>, vector<1x256x128xf32>
    %400 = vector.shape_cast %399 : vector<1x256x128xf32> to vector<256x128xf32>
    %cst_141 = arith.constant dense<0.000000e+00> : vector<8x128xf32>
    %401 = tpu.matmul %398, %400, %cst_141 {dimension_numbers = #tpu.dot_dimension_numbers<[1], [0], [0], [1], [0, 0, 1, 1], [], []>} : vector<8x256xf32>, vector<256x128xf32>, vector<8x128xf32> -> vector<8x128xf32>
    %402 = arith.addf %356, %401 : vector<8x128xf32>
    %403 = vector.extract_strided_slice %240 {offsets = [8, 0], sizes = [1, 128], strides = [1, 1]} : vector<9x128xf32> to vector<1x128xf32>
    %404 = vector.broadcast %403 : vector<1x128xf32> to vector<8x128xf32>
    %405 = arith.addf %402, %404 : vector<8x128xf32>
    %c0_142 = arith.constant 0 : index
    %c0_143 = arith.constant 0 : index
    %406 = vector.load %arg11[%c0_142, %c0_143] : memref<2x128xf32, #tpu.memory_space<vmem>>, vector<1x128xf32>
    %c1_144 = arith.constant 1 : index
    %c0_145 = arith.constant 0 : index
    %407 = vector.load %arg11[%c1_144, %c0_145] : memref<2x128xf32, #tpu.memory_space<vmem>>, vector<1x128xf32>
    %cst_146 = arith.constant dense<0.000000e+00> : vector<8xf32>
    %408 = vector.multi_reduction <add>, %405, %cst_146 [1] : vector<8x128xf32> to vector<8xf32>
    %409 = vector.shape_cast %408 : vector<8xf32> to vector<8x1xf32>
    %cst_147 = arith.constant 1.280000e+02 : f32
    %410 = vector.broadcast %cst_147 : f32 to vector<8x1xf32>
    %411 = arith.divf %409, %410 : vector<8x1xf32>
    %412 = vector.broadcast %411 : vector<8x1xf32> to vector<8x128xf32>
    %413 = arith.subf %405, %412 : vector<8x128xf32>
    %414 = arith.mulf %413, %413 : vector<8x128xf32>
    %cst_148 = arith.constant dense<0.000000e+00> : vector<8xf32>
    %415 = vector.multi_reduction <add>, %414, %cst_148 [1] : vector<8x128xf32> to vector<8xf32>
    %416 = vector.shape_cast %415 : vector<8xf32> to vector<8x1xf32>
    %cst_149 = arith.constant 1.280000e+02 : f32
    %417 = vector.broadcast %cst_149 : f32 to vector<8x1xf32>
    %418 = arith.divf %416, %417 : vector<8x1xf32>
    %cst_150 = arith.constant 9.99999974E-6 : f32
    %419 = vector.broadcast %cst_150 : f32 to vector<8x1xf32>
    %420 = arith.addf %418, %419 : vector<8x1xf32>
    %421 = math.rsqrt %420 : vector<8x1xf32>
    %422 = vector.broadcast %421 : vector<8x1xf32> to vector<8x128xf32>
    %423 = arith.mulf %413, %422 : vector<8x128xf32>
    %424 = vector.broadcast %406 : vector<1x128xf32> to vector<8x128xf32>
    %425 = arith.mulf %423, %424 : vector<8x128xf32>
    %426 = vector.broadcast %407 : vector<1x128xf32> to vector<8x128xf32>
    %427 = arith.addf %425, %426 : vector<8x128xf32>
    %c0_151 = arith.constant 0 : index
    %c0_152 = arith.constant 0 : index
    %c0_153 = arith.constant 0 : index
    %428 = vector.load %arg13[%c0_151, %c0_152, %c0_153] : memref<2x2x128xf32, #tpu.memory_space<vmem>>, vector<1x2x128xf32>
    %429 = vector.shape_cast %428 : vector<1x2x128xf32> to vector<2x128xf32>
    %c0_154 = arith.constant 0 : index
    %c0_155 = arith.constant 0 : index
    %c0_156 = arith.constant 0 : index
    %430 = vector.load %arg12[%c0_154, %c0_155, %c0_156] : memref<4x128x128xf32, #tpu.memory_space<vmem>>, vector<1x128x128xf32>
    %431 = vector.shape_cast %430 : vector<1x128x128xf32> to vector<128x128xf32>
    %cst_157 = arith.constant dense<0.000000e+00> : vector<8x128xf32>
    %432 = tpu.matmul %427, %431, %cst_157 {dimension_numbers = #tpu.dot_dimension_numbers<[1], [0], [0], [1], [0, 0, 1, 1], [], []>} : vector<8x128xf32>, vector<128x128xf32>, vector<8x128xf32> -> vector<8x128xf32>
    %433 = vector.extract_strided_slice %429 {offsets = [0, 0], sizes = [1, 128], strides = [1, 1]} : vector<2x128xf32> to vector<1x128xf32>
    %434 = vector.broadcast %433 : vector<1x128xf32> to vector<8x128xf32>
    %435 = arith.addf %432, %434 : vector<8x128xf32>
    %c0_158 = arith.constant 0 : index
    %c0_159 = arith.constant 0 : index
    %c0_160 = arith.constant 0 : index
    %436 = vector.load %arg14[%c0_158, %c0_159, %c0_160] : memref<2x8x128xf32, #tpu.memory_space<vmem>>, vector<1x8x128xf32>
    %437 = vector.shape_cast %436 : vector<1x8x128xf32> to vector<8x128xf32>
    %438 = vector.shape_cast %435 : vector<8x128xf32> to vector<1x8x128xf32>
    tpu.vector_store %arg14[%c0_158, %c0_159, %c0_160], %438 {strides = array<i32>} : memref<2x8x128xf32, #tpu.memory_space<vmem>>, vector<1x8x128xf32>,
    %c1_161 = arith.constant 1 : index
    %c0_162 = arith.constant 0 : index
    %c0_163 = arith.constant 0 : index
    %439 = vector.load %arg12[%c1_161, %c0_162, %c0_163] : memref<4x128x128xf32, #tpu.memory_space<vmem>>, vector<1x128x128xf32>
    %440 = vector.shape_cast %439 : vector<1x128x128xf32> to vector<128x128xf32>
    %cst_164 = arith.constant dense<0.000000e+00> : vector<8x128xf32>
    %441 = tpu.matmul %427, %440, %cst_164 {dimension_numbers = #tpu.dot_dimension_numbers<[1], [0], [0], [1], [0, 0, 1, 1], [], []>} : vector<8x128xf32>, vector<128x128xf32>, vector<8x128xf32> -> vector<8x128xf32>
    %442 = vector.extract_strided_slice %429 {offsets = [1, 0], sizes = [1, 128], strides = [1, 1]} : vector<2x128xf32> to vector<1x128xf32>
    %443 = vector.broadcast %442 : vector<1x128xf32> to vector<8x128xf32>
    %444 = arith.addf %441, %443 : vector<8x128xf32>
    %c0_165 = arith.constant 0 : index
    %c0_166 = arith.constant 0 : index
    %c0_167 = arith.constant 0 : index
    %445 = vector.load %arg15[%c0_165, %c0_166, %c0_167] : memref<2x8x128xf32, #tpu.memory_space<vmem>>, vector<1x8x128xf32>
    %446 = vector.shape_cast %445 : vector<1x8x128xf32> to vector<8x128xf32>
    %447 = vector.shape_cast %444 : vector<8x128xf32> to vector<1x8x128xf32>
    tpu.vector_store %arg15[%c0_165, %c0_166, %c0_167], %447 {strides = array<i32>} : memref<2x8x128xf32, #tpu.memory_space<vmem>>, vector<1x8x128xf32>,
    %c1_168 = arith.constant 1 : index
    %c0_169 = arith.constant 0 : index
    %c0_170 = arith.constant 0 : index
    %448 = vector.load %arg13[%c1_168, %c0_169, %c0_170] : memref<2x2x128xf32, #tpu.memory_space<vmem>>, vector<1x2x128xf32>
    %449 = vector.shape_cast %448 : vector<1x2x128xf32> to vector<2x128xf32>
    %c2_171 = arith.constant 2 : index
    %c0_172 = arith.constant 0 : index
    %c0_173 = arith.constant 0 : index
    %450 = vector.load %arg12[%c2_171, %c0_172, %c0_173] : memref<4x128x128xf32, #tpu.memory_space<vmem>>, vector<1x128x128xf32>
    %451 = vector.shape_cast %450 : vector<1x128x128xf32> to vector<128x128xf32>
    %cst_174 = arith.constant dense<0.000000e+00> : vector<8x128xf32>
    %452 = tpu.matmul %427, %451, %cst_174 {dimension_numbers = #tpu.dot_dimension_numbers<[1], [0], [0], [1], [0, 0, 1, 1], [], []>} : vector<8x128xf32>, vector<128x128xf32>, vector<8x128xf32> -> vector<8x128xf32>
    %453 = vector.extract_strided_slice %449 {offsets = [0, 0], sizes = [1, 128], strides = [1, 1]} : vector<2x128xf32> to vector<1x128xf32>
    %454 = vector.broadcast %453 : vector<1x128xf32> to vector<8x128xf32>
    %455 = arith.addf %452, %454 : vector<8x128xf32>
    %c1_175 = arith.constant 1 : index
    %c0_176 = arith.constant 0 : index
    %c0_177 = arith.constant 0 : index
    %456 = vector.load %arg14[%c1_175, %c0_176, %c0_177] : memref<2x8x128xf32, #tpu.memory_space<vmem>>, vector<1x8x128xf32>
    %457 = vector.shape_cast %456 : vector<1x8x128xf32> to vector<8x128xf32>
    %458 = vector.shape_cast %455 : vector<8x128xf32> to vector<1x8x128xf32>
    tpu.vector_store %arg14[%c1_175, %c0_176, %c0_177], %458 {strides = array<i32>} : memref<2x8x128xf32, #tpu.memory_space<vmem>>, vector<1x8x128xf32>,
    %c3_178 = arith.constant 3 : index
    %c0_179 = arith.constant 0 : index
    %c0_180 = arith.constant 0 : index
    %459 = vector.load %arg12[%c3_178, %c0_179, %c0_180] : memref<4x128x128xf32, #tpu.memory_space<vmem>>, vector<1x128x128xf32>
    %460 = vector.shape_cast %459 : vector<1x128x128xf32> to vector<128x128xf32>
    %cst_181 = arith.constant dense<0.000000e+00> : vector<8x128xf32>
    %461 = tpu.matmul %427, %460, %cst_181 {dimension_numbers = #tpu.dot_dimension_numbers<[1], [0], [0], [1], [0, 0, 1, 1], [], []>} : vector<8x128xf32>, vector<128x128xf32>, vector<8x128xf32> -> vector<8x128xf32>
    %462 = vector.extract_strided_slice %449 {offsets = [1, 0], sizes = [1, 128], strides = [1, 1]} : vector<2x128xf32> to vector<1x128xf32>
    %463 = vector.broadcast %462 : vector<1x128xf32> to vector<8x128xf32>
    %464 = arith.addf %461, %463 : vector<8x128xf32>
    %c1_182 = arith.constant 1 : index
    %c0_183 = arith.constant 0 : index
    %c0_184 = arith.constant 0 : index
    %465 = vector.load %arg15[%c1_182, %c0_183, %c0_184] : memref<2x8x128xf32, #tpu.memory_space<vmem>>, vector<1x8x128xf32>
    %466 = vector.shape_cast %465 : vector<1x8x128xf32> to vector<8x128xf32>
    %467 = vector.shape_cast %464 : vector<8x128xf32> to vector<1x8x128xf32>
    tpu.vector_store %arg15[%c1_182, %c0_183, %c0_184], %467 {strides = array<i32>} : memref<2x8x128xf32, #tpu.memory_space<vmem>>, vector<1x8x128xf32>,
    return
  }
}

</mosaic_0001>

<llo_original>
// kernel: custom-call
$region0: #{custom-call}
  %s0 = inlined_call_operand.vmem [shape: f32[4,3,128], index: 0, kind: output, shape index: {}]

// kernel: whisper_wrapper_forward.1
$region0: #{whisper_wrapper_forward.1}
  #allocation0 [shape = 'u32[]', space=smem, size = 0x4, offset = 0x4, fixed_abs, tag = 'smem constant byte address 0x4 - core index']
  #allocation1 [shape = 'u32[72,128]{1,0:T(1,128)}', space=vmem, size = 0x9000, scoped, tag = 'internal scratch']
  %s0 = inlined_call_operand.vmem [shape: f32[16,24], index: 0, kind: input, shape index: {}]
  %s1 = inlined_call_operand.vmem [shape: f32[24,128], index: 1, kind: input, shape index: {}]
  %s2 = inlined_call_operand.vmem [shape: f32[1,128], index: 2, kind: input, shape index: {}]
  %s3 = inlined_call_operand.hbm [shape: f32[384,128], index: 3, kind: input, shape index: {}]
  %s4 = inlined_call_operand.vmem [shape: f32[1,128], index: 4, kind: input, shape index: {}]
  %s5 = inlined_call_operand.vmem [shape: f32[8,128], index: 5, kind: input, shape index: {}]
  %s6 = inlined_call_operand.hbm [shape: f32[8,128,128], index: 6, kind: input, shape index: {}]
  %s7 = inlined_call_operand.vmem [shape: f32[2,9,128], index: 7, kind: input, shape index: {}]
  %s8 = inlined_call_operand.hbm [shape: f32[2,128,256], index: 8, kind: input, shape index: {}]
  %s9 = inlined_call_operand.vmem [shape: f32[2,1,256], index: 9, kind: input, shape index: {}]
  %s10 = inlined_call_operand.hbm [shape: f32[2,256,128], index: 10, kind: input, shape index: {}]
  %s11 = inlined_call_operand.vmem [shape: f32[2,128], index: 11, kind: input, shape index: {}]
  %s12 = inlined_call_operand.hbm [shape: f32[4,128,128], index: 12, kind: input, shape index: {}]
  %s13 = inlined_call_operand.vmem [shape: f32[2,2,128], index: 13, kind: input, shape index: {}]
  %s14 = inlined_call_operand.vmem [shape: f32[2,8,128], index: 14, kind: output, shape index: {0}]
  %s15 = inlined_call_operand.vmem [shape: f32[2,8,128], index: 15, kind: output, shape index: {1}]
  %16 = xla_tuple %s14, %s15
  %s17 = sld [smem:[#allocation0]]
  $region94: #{whisper_wrapper_forward.1} parent=0
    _
  %s19 = ssub.s32 1, %s17
  %s20 = scalar_select 0, %s19, %s17
  $region1: #{whisper_wrapper_forward.1} parent=0
    #allocation2 [shape = 'u8[196608]{0}', space=vmem, size = 0x30000, scoped, tag = 'input window, operand 3, single buffered']
    #allocation3 [shape = 's32[1]{0}', space=sflag, size = 0x4, scoped, tag = 'scoped memory for whisper_wrapper_forward.1']
    #allocation4 [shape = 'u8[524288]{0}', space=vmem, size = 0x80000, scoped, tag = 'input window, operand 6, single buffered']
    #allocation5 [shape = 's32[1]{0}', space=sflag, size = 0x4, scoped, tag = 'scoped memory for whisper_wrapper_forward.1']
    #allocation6 [shape = 'u8[262144]{0}', space=vmem, size = 0x40000, scoped, tag = 'input window, operand 8, single buffered']
    #allocation7 [shape = 'u8[262144]{0}', space=vmem, size = 0x40000, scoped, tag = 'input window, operand 10, single buffered']
    #allocation8 [shape = 's32[1]{0}', space=sflag, size = 0x4, scoped, tag = 'scoped memory for whisper_wrapper_forward.1']
    #allocation9 [shape = 'u8[262144]{0}', space=vmem, size = 0x40000, scoped, tag = 'input window, operand 12, single buffered']
    %21 = vsyncpa [#allocation3], 0
    %22 = vsyncpa [#allocation5], 0
    %23 = vsyncpa [#allocation8], 0
    // Predicated region
    $region2: #{whisper_wrapper_forward.1} parent=1 // pred_check
      _
    $region3: #{whisper_wrapper_forward.1} parent=1 // pred_check_branch
      %25 = sbr.rel (0) target = $region5
    $region4: #{whisper_wrapper_forward.1} parent=1 // pred_region
      _
    $region5: #{whisper_wrapper_forward.1} parent=1 // pred_fallthru
      _
    // Predicated region
    $region6: #{whisper_wrapper_forward.1} parent=1 // pred_check
      _
    $region7: #{whisper_wrapper_forward.1} parent=1 // pred_check_branch
      %27 = sbr.rel (0) target = $region9
    $region8: #{whisper_wrapper_forward.1} parent=1 // pred_region
      _
    $region9: #{whisper_wrapper_forward.1} parent=1 // pred_fallthru
      _
    // Predicated region
    $region10: #{whisper_wrapper_forward.1} parent=1 // pred_check
      _
    $region11: #{whisper_wrapper_forward.1} parent=1 // pred_check_branch
      %29 = sbr.rel (0) target = $region13
    $region12: #{whisper_wrapper_forward.1} parent=1 // pred_region
      _
    $region13: #{whisper_wrapper_forward.1} parent=1 // pred_fallthru
      _
    // Predicated region
    $region14: #{whisper_wrapper_forward.1} parent=1 // pred_check
      _
    $region15: #{whisper_wrapper_forward.1} parent=1 // pred_check_branch
      %31 = sbr.rel (0) target = $region17
    $region16: #{whisper_wrapper_forward.1} parent=1 // pred_region
      %33 = vsyncadd [#allocation3], 0
      %s34 = sshll.u32 %s3, 4
      %s35 = int_to_ptr.hbm [resolvable:$true] %s34
      %s36 = sshll.u32 [#allocation2], 4
      %s37 = int_to_ptr.vmem [resolvable:$true] %s36
      %42 = dma.hbm_to_vmem [thread:$0]  %s35, 6144, %s37, [#allocation3], 128, 128, 8
    $region17: #{whisper_wrapper_forward.1} parent=1 // pred_fallthru
      _
    // Predicated region
    $region18: #{whisper_wrapper_forward.1} parent=1 // pred_check
      _
    $region19: #{whisper_wrapper_forward.1} parent=1 // pred_check_branch
      %44 = sbr.rel (0) target = $region21
    $region20: #{whisper_wrapper_forward.1} parent=1 // pred_region
      _
    $region21: #{whisper_wrapper_forward.1} parent=1 // pred_fallthru
      _
    // Predicated region
    $region22: #{whisper_wrapper_forward.1} parent=1 // pred_check
      _
    $region23: #{whisper_wrapper_forward.1} parent=1 // pred_check_branch
      %46 = sbr.rel (0) target = $region25
    $region24: #{whisper_wrapper_forward.1} parent=1 // pred_region
      _
    $region25: #{whisper_wrapper_forward.1} parent=1 // pred_fallthru
      _
    // Predicated region
    $region26: #{whisper_wrapper_forward.1} parent=1 // pred_check
      _
    $region27: #{whisper_wrapper_forward.1} parent=1 // pred_check_branch
      %48 = sbr.rel (0) target = $region29
    $region28: #{whisper_wrapper_forward.1} parent=1 // pred_region
      %50 = vsyncadd [#allocation5], 0
      %s51 = sshll.u32 %s6, 4
      %s52 = int_to_ptr.hbm [resolvable:$true] %s51
      %s53 = sshll.u32 [#allocation4], 4
      %s54 = int_to_ptr.vmem [resolvable:$true] %s53
      %59 = dma.hbm_to_vmem [thread:$0]  %s52, 16384, %s54, [#allocation5], 128, 128, 8
    $region29: #{whisper_wrapper_forward.1} parent=1 // pred_fallthru
      _
    // Predicated region
    $region30: #{whisper_wrapper_forward.1} parent=1 // pred_check
      _
    $region31: #{whisper_wrapper_forward.1} parent=1 // pred_check_branch
      %61 = sbr.rel (0) target = $region33
    $region32: #{whisper_wrapper_forward.1} parent=1 // pred_region
      _
    $region33: #{whisper_wrapper_forward.1} parent=1 // pred_fallthru
      _
    // Predicated region
    $region34: #{whisper_wrapper_forward.1} parent=1 // pred_check
      _
    $region35: #{whisper_wrapper_forward.1} parent=1 // pred_check_branch
      %63 = sbr.rel (0) target = $region37
    $region36: #{whisper_wrapper_forward.1} parent=1 // pred_region
      %65 = vsyncadd [#allocation5], 0
      %s66 = sshll.u32 %s8, 4
      %s67 = int_to_ptr.hbm [resolvable:$true] %s66
      %s68 = sshll.u32 [#allocation6], 4
      %s69 = int_to_ptr.vmem [resolvable:$true] %s68
      %74 = dma.hbm_to_vmem [thread:$0]  %s67, 8192, %s69, [#allocation5], 256, 256, 16
    $region37: #{whisper_wrapper_forward.1} parent=1 // pred_fallthru
      _
    // Predicated region
    $region38: #{whisper_wrapper_forward.1} parent=1 // pred_check
      _
    $region39: #{whisper_wrapper_forward.1} parent=1 // pred_check_branch
      %76 = sbr.rel (0) target = $region41
    $region40: #{whisper_wrapper_forward.1} parent=1 // pred_region
      _
    $region41: #{whisper_wrapper_forward.1} parent=1 // pred_fallthru
      _
    // Predicated region
    $region42: #{whisper_wrapper_forward.1} parent=1 // pred_check
      _
    $region43: #{whisper_wrapper_forward.1} parent=1 // pred_check_branch
      %78 = sbr.rel (0) target = $region45
    $region44: #{whisper_wrapper_forward.1} parent=1 // pred_region
      %80 = vsyncadd [#allocation8], 0
      %s81 = sshll.u32 %s10, 4
      %s82 = int_to_ptr.hbm [resolvable:$true] %s81
      %s83 = sshll.u32 [#allocation7], 4
      %s84 = int_to_ptr.vmem [resolvable:$true] %s83
      %89 = dma.hbm_to_vmem [thread:$0]  %s82, 8192, %s84, [#allocation8], 128, 128, 8
    $region45: #{whisper_wrapper_forward.1} parent=1 // pred_fallthru
      _
    // Predicated region
    $region46: #{whisper_wrapper_forward.1} parent=1 // pred_check
      _
    $region47: #{whisper_wrapper_forward.1} parent=1 // pred_check_branch
      %91 = sbr.rel (0) target = $region49
    $region48: #{whisper_wrapper_forward.1} parent=1 // pred_region
      _
    $region49: #{whisper_wrapper_forward.1} parent=1 // pred_fallthru
      _
    // Predicated region
    $region50: #{whisper_wrapper_forward.1} parent=1 // pred_check
      _
    $region51: #{whisper_wrapper_forward.1} parent=1 // pred_check_branch
      %93 = sbr.rel (0) target = $region53
    $region52: #{whisper_wrapper_forward.1} parent=1 // pred_region
      %95 = vsyncadd [#allocation8], 0
      %s96 = sshll.u32 %s12, 4
      %s97 = int_to_ptr.hbm [resolvable:$true] %s96
      %s98 = sshll.u32 [#allocation9], 4
      %s99 = int_to_ptr.vmem [resolvable:$true] %s98
      %104 = dma.hbm_to_vmem [thread:$0]  %s97, 8192, %s99, [#allocation8], 128, 128, 8
    $region53: #{whisper_wrapper_forward.1} parent=1 // pred_fallthru
      _
    // Predicated region
    $region54: #{whisper_wrapper_forward.1} parent=1 // pred_check
      _
    $region55: #{whisper_wrapper_forward.1} parent=1 // pred_check_branch
      %106 = sbr.rel (0) target = $region57
    $region56: #{whisper_wrapper_forward.1} parent=1 // pred_region
      _
    $region57: #{whisper_wrapper_forward.1} parent=1 // pred_fallthru
      _
    // Predicated region
    $region58: #{whisper_wrapper_forward.1} parent=1 // pred_check
      _
    $region59: #{whisper_wrapper_forward.1} parent=1 // pred_check_branch
      %108 = sbr.rel (0) target = $region61
    $region60: #{whisper_wrapper_forward.1} parent=1 // pred_region
      %110 = dma.done [#allocation3], 6144
    $region61: #{whisper_wrapper_forward.1} parent=1 // pred_fallthru
      _
    // Predicated region
    $region62: #{whisper_wrapper_forward.1} parent=1 // pred_check
      _
    $region63: #{whisper_wrapper_forward.1} parent=1 // pred_check_branch
      %112 = sbr.rel (0) target = $region65
    $region64: #{whisper_wrapper_forward.1} parent=1 // pred_region
      %114 = dma.done [#allocation5], 16384
    $region65: #{whisper_wrapper_forward.1} parent=1 // pred_fallthru
      _
    // Predicated region
    $region66: #{whisper_wrapper_forward.1} parent=1 // pred_check
      _
    $region67: #{whisper_wrapper_forward.1} parent=1 // pred_check_branch
      %116 = sbr.rel (0) target = $region69
    $region68: #{whisper_wrapper_forward.1} parent=1 // pred_region
      %118 = dma.done [#allocation5], 8192
    $region69: #{whisper_wrapper_forward.1} parent=1 // pred_fallthru
      _
    // Predicated region
    $region70: #{whisper_wrapper_forward.1} parent=1 // pred_check
      _
    $region71: #{whisper_wrapper_forward.1} parent=1 // pred_check_branch
      %120 = sbr.rel (0) target = $region73
    $region72: #{whisper_wrapper_forward.1} parent=1 // pred_region
      %122 = dma.done [#allocation8], 8192
    $region73: #{whisper_wrapper_forward.1} parent=1 // pred_fallthru
      _
    // Predicated region
    $region74: #{whisper_wrapper_forward.1} parent=1 // pred_check
      _
    $region75: #{whisper_wrapper_forward.1} parent=1 // pred_check_branch
      %124 = sbr.rel (0) target = $region77
    $region76: #{whisper_wrapper_forward.1} parent=1 // pred_region
      %126 = dma.done [#allocation8], 8192
    $region77: #{whisper_wrapper_forward.1} parent=1 // pred_fallthru
      _
    %v127 = vld [vmem:[%s0] sm:$0xff]
    %v128 = vld [vmem:[%s0 + $0x8] sm:$0xff]
    %v129 = vld [vmem:[%s1] sm:$0xff]
    %v130 = vld [vmem:[%s1 + $0x8] sm:$0xff]
    %v131 = vld [vmem:[%s1 + $0x10] sm:$0xff]
    %v132 = vld [vmem:[%s2] sm:$0x1]
    %v134 = vperm.slane %v132, 0
    %vm136 = vcmask 195584
    %v138 = vsel %vm136, %v127, 0
    %v141 = vsel %vm136, %v128, 0
    %143 = vmatpush.msra.mxu0 0.0
    %144 = vmatpush.msra.mxu0 0.0
    %145 = vmatpush.msra.mxu0 0.0
    %146 = vmatpush.msra.mxu0 0.0
    %147 = vmatpush.msra.mxu0 0.0
    %148 = vmatpush.msra.mxu0 0.0
    %149 = vmatpush.msra.mxu0 0.0
    %150 = vmatpush.msra.mxu0 0.0
    %151 = vmatpush.msra.mxu0 0.0
    %152 = vmatpush.msra.mxu0 0.0
    %153 = vmatpush.msra.mxu0 0.0
    %154 = vmatpush.msra.mxu0 0.0
    %155 = vmatpush.msra.mxu0 0.0
    %156 = vmatpush.msra.mxu0 %v131
    %157 = vmatpush.msra.mxu0 %v130
    %158 = vmatpush.msra.mxu0 %v129
    %159 = vmatmul.f32.gmra.mxu0 %v138
    %v160 = vpop.f32.mrf.mxu0
    %v161 = vadd.f32 %v134, %v160
    %162 = vmatmul.f32.gmra.mxu0 %v141
    %v163 = vpop.f32.mrf.mxu0
    %v164 = vadd.f32 %v134, %v163
    %165 = vdwg.mxu0
    %v166 = vmul.f32 %v161, 0.5
    %v167 = vmul.f32 %v164, 0.5
    %v168 = vmul.f32 %v161, 0.044715
    %v169 = vmul.f32 %v164, 0.044715
    %v170 = vmul.f32 %v168, %v161
    %v171 = vmul.f32 %v169, %v164
    %v172 = vmul.f32 %v170, %v161
    %v173 = vmul.f32 %v171, %v164
    %v174 = vadd.f32 %v161, %v172
    %v175 = vadd.f32 %v164, %v173
    %v176 = vmul.f32 %v174, 0.7978846
    %v177 = vmul.f32 %v175, 0.7978846
    %v178 = vtanh.pop %v176
    %v179 = vtanh.pop %v177
    %v180 = vadd.f32 %v178, 1.0
    %v181 = vadd.f32 %v179, 1.0
    %v182 = vmul.f32 %v166, %v180
    %v183 = vmul.f32 %v167, %v181
    %v185 = vrot.slane %v182, 1
    %v187 = vrot.slane %v182, 2
    %v190 = vrot.slane %v183, 1
    %v191 = vrot.slane %v183, 2
    %v192 = vrot.slane %v185, 1
    %v193 = vrot.slane %v187, 1
    %v196 = vrot.slane %v185, 2
    %v197 = vrot.slane %v187, 2
    %v200 = vrot.slane %v182, 3
    %v201 = vrot.slane %v190, 3
    %v202 = vrot.slane %v191, 3
    %v206 = vrot.slane %v183, 4
    %v207 = vrot.slane %v190, 4
    %v208 = vrot.slane %v191, 4
    %v212 = vrot.slane %v183, 5
    %v213 = vrot.slane %v190, 5
    %v214 = vrot.slane %v191, 5
    %v218 = vrot.slane %v183, 6
    %v219 = vrot.slane %v190, 6
    %v220 = vrot.slane %v191, 6
    %vm224 = vcmask 1040384
    %v225 = vsel %vm224, 0.0, %v182
    %v226 = vsel %vm224, %v182, %v185
    %v227 = vsel %vm224, %v185, %v187
    %vm228 = vcmask 1041408
    %v229 = vsel %vm228, %v225, %v185
    %v230 = vsel %vm228, %v226, %v192
    %v231 = vsel %vm228, %v227, %v193
    %vm232 = vcmask 1042432
    %v233 = vsel %vm232, %v229, %v187
    %v234 = vsel %vm232, %v230, %v196
    %v235 = vsel %vm232, %v231, %v197
    %vm236 = vcmask 1043456
    %v237 = vsel %vm236, %v233, %v200
    %v238 = vsel %vm236, %v234, %v201
    %v239 = vsel %vm236, %v235, %v202
    %vm240 = vcmask 1044480
    %v241 = vsel %vm240, %v237, %v206
    %v242 = vsel %vm240, %v238, %v207
    %v243 = vsel %vm240, %v239, %v208
    %vm244 = vcmask 1045504
    %v245 = vsel %vm244, %v241, %v212
    %v246 = vsel %vm244, %v242, %v213
    %v247 = vsel %vm244, %v243, %v214
    %vm248 = vcmask 1046528
    %v249 = vsel %vm248, %v245, %v218
    %v250 = vsel %vm248, %v246, %v219
    %v251 = vsel %vm248, %v247, %v220
    %v252 = vld [vmem:[#allocation2] sm:$0xff]
    %v253 = vld [vmem:[#allocation2 + $0x8] sm:$0xff]
    %v254 = vld [vmem:[#allocation2 + $0x10] sm:$0xff]
    %v255 = vld [vmem:[#allocation2 + $0x18] sm:$0xff]
    %v256 = vld [vmem:[#allocation2 + $0x20] sm:$0xff]
    %v257 = vld [vmem:[#allocation2 + $0x28] sm:$0xff]
    %v258 = vld [vmem:[#allocation2 + $0x30] sm:$0xff]
    %v259 = vld [vmem:[#allocation2 + $0x38] sm:$0xff]
    %v260 = vld [vmem:[#allocation2 + $0x40] sm:$0xff]
    %v261 = vld [vmem:[#allocation2 + $0x48] sm:$0xff]
    %v262 = vld [vmem:[#allocation2 + $0x50] sm:$0xff]
    %v263 = vld [vmem:[#allocation2 + $0x58] sm:$0xff]
    %v264 = vld [vmem:[#allocation2 + $0x60] sm:$0xff]
    %v265 = vld [vmem:[#allocation2 + $0x68] sm:$0xff]
    %v266 = vld [vmem:[#allocation2 + $0x70] sm:$0xff]
    %v267 = vld [vmem:[#allocation2 + $0x78] sm:$0xff]
    %v268 = vld [vmem:[#allocation2 + $0x80] sm:$0xff]
    %v269 = vld [vmem:[#allocation2 + $0x88] sm:$0xff]
    %v270 = vld [vmem:[#allocation2 + $0x90] sm:$0xff]
    %v271 = vld [vmem:[#allocation2 + $0x98] sm:$0xff]
    %v272 = vld [vmem:[#allocation2 + $0xa0] sm:$0xff]
    %v273 = vld [vmem:[#allocation2 + $0xa8] sm:$0xff]
    %v274 = vld [vmem:[#allocation2 + $0xb0] sm:$0xff]
    %v275 = vld [vmem:[#allocation2 + $0xb8] sm:$0xff]
    %v276 = vld [vmem:[#allocation2 + $0xc0] sm:$0xff]
    %v277 = vld [vmem:[#allocation2 + $0xc8] sm:$0xff]
    %v278 = vld [vmem:[#allocation2 + $0xd0] sm:$0xff]
    %v279 = vld [vmem:[#allocation2 + $0xd8] sm:$0xff]
    %v280 = vld [vmem:[#allocation2 + $0xe0] sm:$0xff]
    %v281 = vld [vmem:[#allocation2 + $0xe8] sm:$0xff]
    %v282 = vld [vmem:[#allocation2 + $0xf0] sm:$0xff]
    %v283 = vld [vmem:[#allocation2 + $0xf8] sm:$0xff]
    %v284 = vld [vmem:[#allocation2 + $0x100] sm:$0xff]
    %v285 = vld [vmem:[#allocation2 + $0x108] sm:$0xff]
    %v286 = vld [vmem:[#allocation2 + $0x110] sm:$0xff]
    %v287 = vld [vmem:[#allocation2 + $0x118] sm:$0xff]
    %v288 = vld [vmem:[#allocation2 + $0x120] sm:$0xff]
    %v289 = vld [vmem:[#allocation2 + $0x128] sm:$0xff]
    %v290 = vld [vmem:[#allocation2 + $0x130] sm:$0xff]
    %v291 = vld [vmem:[#allocation2 + $0x138] sm:$0xff]
    %v292 = vld [vmem:[#allocation2 + $0x140] sm:$0xff]
    %v293 = vld [vmem:[#allocation2 + $0x148] sm:$0xff]
    %v294 = vld [vmem:[#allocation2 + $0x150] sm:$0xff]
    %v295 = vld [vmem:[#allocation2 + $0x158] sm:$0xff]
    %v296 = vld [vmem:[#allocation2 + $0x160] sm:$0xff]
    %v297 = vld [vmem:[#allocation2 + $0x168] sm:$0xff]
    %v298 = vld [vmem:[#allocation2 + $0x170] sm:$0xff]
    %v299 = vld [vmem:[#allocation2 + $0x178] sm:$0xff]
    %v300 = vld [vmem:[%s4] sm:$0x1]
    %v302 = vperm.slane %v300, 0
    %304 = vmatpush.msra.mxu0 %v267
    %305 = vmatpush.msra.mxu0 %v266
    %306 = vmatpush.msra.mxu0 %v265
    %307 = vmatpush.msra.mxu0 %v264
    %308 = vmatpush.msra.mxu0 %v263
    %309 = vmatpush.msra.mxu0 %v262
    %310 = vmatpush.msra.mxu0 %v261
    %311 = vmatpush.msra.mxu0 %v260
    %312 = vmatpush.msra.mxu0 %v259
    %313 = vmatpush.msra.mxu0 %v258
    %314 = vmatpush.msra.mxu0 %v257
    %315 = vmatpush.msra.mxu0 %v256
    %316 = vmatpush.msra.mxu0 %v255
    %317 = vmatpush.msra.mxu0 %v254
    %318 = vmatpush.msra.mxu0 %v253
    %319 = vmatpush.msra.mxu0 %v252
    %320 = vmatmul.f32.gmra.mxu0 %v249
    %v321 = vpop.f32.mrf.mxu0
    %v322 = vadd.f32 %v302, %v321
    %323 = vdwg.mxu0
    %324 = vmatpush.msra.mxu0 %v283
    %325 = vmatpush.msra.mxu0 %v282
    %326 = vmatpush.msra.mxu0 %v281
    %327 = vmatpush.msra.mxu0 %v280
    %328 = vmatpush.msra.mxu0 %v279
    %329 = vmatpush.msra.mxu0 %v278
    %330 = vmatpush.msra.mxu0 %v277
    %331 = vmatpush.msra.mxu0 %v276
    %332 = vmatpush.msra.mxu0 %v275
    %333 = vmatpush.msra.mxu0 %v274
    %334 = vmatpush.msra.mxu0 %v273
    %335 = vmatpush.msra.mxu0 %v272
    %336 = vmatpush.msra.mxu0 %v271
    %337 = vmatpush.msra.mxu0 %v270
    %338 = vmatpush.msra.mxu0 %v269
    %339 = vmatpush.msra.mxu0 %v268
    %340 = vmatmul.f32.gmra.mxu0 %v250
    %v341 = vpop.f32.mrf.mxu0
    %v342 = vadd.f32 %v322, %v341
    %343 = vdwg.mxu0
    %344 = vmatpush.msra.mxu0 %v299
    %345 = vmatpush.msra.mxu0 %v298
    %346 = vmatpush.msra.mxu0 %v297
    %347 = vmatpush.msra.mxu0 %v296
    %348 = vmatpush.msra.mxu0 %v295
    %349 = vmatpush.msra.mxu0 %v294
    %350 = vmatpush.msra.mxu0 %v293
    %351 = vmatpush.msra.mxu0 %v292
    %352 = vmatpush.msra.mxu0 %v291
    %353 = vmatpush.msra.mxu0 %v290
    %354 = vmatpush.msra.mxu0 %v289
    %355 = vmatpush.msra.mxu0 %v288
    %356 = vmatpush.msra.mxu0 %v287
    %357 = vmatpush.msra.mxu0 %v286
    %358 = vmatpush.msra.mxu0 %v285
    %359 = vmatpush.msra.mxu0 %v284
    %360 = vmatmul.f32.gmra.mxu0 %v251
    %v361 = vpop.f32.mrf.mxu0
    %v362 = vadd.f32 %v342, %v361
    %363 = vdwg.mxu0
    %v364 = vmul.f32 %v362, 0.5
    %v365 = vmul.f32 %v362, 0.044715
    %v366 = vmul.f32 %v365, %v362
    %v367 = vmul.f32 %v366, %v362
    %v368 = vadd.f32 %v362, %v367
    %v369 = vmul.f32 %v368, 0.7978846
    %v370 = vtanh.pop %v369
    %v371 = vadd.f32 %v370, 1.0
    %v372 = vmul.f32 %v364, %v371
    %v373 = vld [vmem:[%s5] sm:$0xff]
    %v374 = vadd.f32 %v372, %v373
    %v375 = vld [vmem:[%s7] sm:$0xff]
    %v376 = vld [vmem:[%s7 + $0x8] sm:$0x1]
    %377 = vadd.xlane.f32.xlu0 %v374
    %v378 = vpop.xlane.xlu0 %377
    %v379 = vrcp.pop 128.0
    %v380 = vmul.f32 128.0, %v379
    %v381 = vsub.f32 1.0, %v380
    %v382 = vmul.f32 %v379, %v381
    %v383 = vadd.f32 %v379, %v382
    %vm384 = vweird.f32 %v379
    %v385 = vsel %vm384, %v379, %v383
    %v386 = vmul.f32 %v378, %v385
    %v387 = vsub.f32 %v374, %v386
    %v388 = vmul.f32 %v387, %v387
    %389 = vadd.xlane.f32.xlu0 %v388
    %v390 = vpop.xlane.xlu0 %389
    %v391 = vmul.f32 %v390, %v385
    %v392 = vadd.f32 %v391, 1e-05
    %v393 = vrsqrt.pop %v392
    %v394 = vmul.f32 %v393, %v392
    %v395 = vmul.f32 %v394, %v393
    %v396 = vmul.f32 0.5, %v395
    %v397 = vsub.f32 1.5, %v396
    %v398 = vmul.f32 %v393, %v397
    %vm399 = vweird.f32 %v392
    %vm400 = vweird.f32 %v393
    %vm401 = vmor %vm399, %vm400
    %v402 = vsel %vm401, %v393, %v398
    %v403 = vmul.f32 %v387, %v402
    %v404 = vperm.slane %v375, 4
    %v405 = vmul.f32 %v403, %v404
    %v406 = vperm.slane %v375, 5
    %v407 = vadd.f32 %v405, %v406
    %v408 = vld [vmem:[#allocation4] sm:$0xff]
    %v409 = vld [vmem:[#allocation4 + $0x8] sm:$0xff]
    %v410 = vld [vmem:[#allocation4 + $0x10] sm:$0xff]
    %v411 = vld [vmem:[#allocation4 + $0x18] sm:$0xff]
    %v412 = vld [vmem:[#allocation4 + $0x20] sm:$0xff]
    %v413 = vld [vmem:[#allocation4 + $0x28] sm:$0xff]
    %v414 = vld [vmem:[#allocation4 + $0x30] sm:$0xff]
    %v415 = vld [vmem:[#allocation4 + $0x38] sm:$0xff]
    %v416 = vld [vmem:[#allocation4 + $0x40] sm:$0xff]
    %v417 = vld [vmem:[#allocation4 + $0x48] sm:$0xff]
    %v418 = vld [vmem:[#allocation4 + $0x50] sm:$0xff]
    %v419 = vld [vmem:[#allocation4 + $0x58] sm:$0xff]
    %v420 = vld [vmem:[#allocation4 + $0x60] sm:$0xff]
    %v421 = vld [vmem:[#allocation4 + $0x68] sm:$0xff]
    %v422 = vld [vmem:[#allocation4 + $0x70] sm:$0xff]
    %v423 = vld [vmem:[#allocation4 + $0x78] sm:$0xff]
    %v424 = vperm.slane %v375, 0
    %425 = vmatpush.msra.mxu0 %v423
    %426 = vmatpush.msra.mxu0 %v422
    %427 = vmatpush.msra.mxu0 %v421
    %428 = vmatpush.msra.mxu0 %v420
    %429 = vmatpush.msra.mxu0 %v419
    %430 = vmatpush.msra.mxu0 %v418
    %431 = vmatpush.msra.mxu0 %v417
    %432 = vmatpush.msra.mxu0 %v416
    %433 = vmatpush.msra.mxu0 %v415
    %434 = vmatpush.msra.mxu0 %v414
    %435 = vmatpush.msra.mxu0 %v413
    %436 = vmatpush.msra.mxu0 %v412
    %437 = vmatpush.msra.mxu0 %v411
    %438 = vmatpush.msra.mxu0 %v410
    %439 = vmatpush.msra.mxu0 %v409
    %440 = vmatpush.msra.mxu0 %v408
    %441 = vmatmul.f32.gmra.mxu0 %v407
    %v442 = vpop.f32.mrf.mxu0
    %v443 = vadd.f32 %v424, %v442
    %444 = vdwg.mxu0
    %s445 = scalar_lea.vmem [#allocation4], 128
    %v446 = vld [vmem:[%s445] sm:$0xff]
    %v447 = vld [vmem:[%s445 + $0x8] sm:$0xff]
    %v448 = vld [vmem:[%s445 + $0x10] sm:$0xff]
    %v449 = vld [vmem:[%s445 + $0x18] sm:$0xff]
    %v450 = vld [vmem:[%s445 + $0x20] sm:$0xff]
    %v451 = vld [vmem:[%s445 + $0x28] sm:$0xff]
    %v452 = vld [vmem:[%s445 + $0x30] sm:$0xff]
    %v453 = vld [vmem:[%s445 + $0x38] sm:$0xff]
    %v454 = vld [vmem:[%s445 + $0x40] sm:$0xff]
    %v455 = vld [vmem:[%s445 + $0x48] sm:$0xff]
    %v456 = vld [vmem:[%s445 + $0x50] sm:$0xff]
    %v457 = vld [vmem:[%s445 + $0x58] sm:$0xff]
    %v458 = vld [vmem:[%s445 + $0x60] sm:$0xff]
    %v459 = vld [vmem:[%s445 + $0x68] sm:$0xff]
    %v460 = vld [vmem:[%s445 + $0x70] sm:$0xff]
    %v461 = vld [vmem:[%s445 + $0x78] sm:$0xff]
    %v462 = vperm.slane %v375, 1
    %463 = vmatpush.msra.mxu0 %v461
    %464 = vmatpush.msra.mxu0 %v460
    %465 = vmatpush.msra.mxu0 %v459
    %466 = vmatpush.msra.mxu0 %v458
    %467 = vmatpush.msra.mxu0 %v457
    %468 = vmatpush.msra.mxu0 %v456
    %469 = vmatpush.msra.mxu0 %v455
    %470 = vmatpush.msra.mxu0 %v454
    %471 = vmatpush.msra.mxu0 %v453
    %472 = vmatpush.msra.mxu0 %v452
    %473 = vmatpush.msra.mxu0 %v451
    %474 = vmatpush.msra.mxu0 %v450
    %475 = vmatpush.msra.mxu0 %v449
    %476 = vmatpush.msra.mxu0 %v448
    %477 = vmatpush.msra.mxu0 %v447
    %478 = vmatpush.msra.mxu0 %v446
    %479 = vmatmul.f32.gmra.mxu0 %v407
    %v480 = vpop.f32.mrf.mxu0
    %v481 = vadd.f32 %v462, %v480
    %482 = vdwg.mxu0
    %s483 = scalar_lea.vmem [#allocation4], 256
    %v484 = vld [vmem:[%s483] sm:$0xff]
    %v485 = vld [vmem:[%s483 + $0x8] sm:$0xff]
    %v486 = vld [vmem:[%s483 + $0x10] sm:$0xff]
    %v487 = vld [vmem:[%s483 + $0x18] sm:$0xff]
    %v488 = vld [vmem:[%s483 + $0x20] sm:$0xff]
    %v489 = vld [vmem:[%s483 + $0x28] sm:$0xff]
    %v490 = vld [vmem:[%s483 + $0x30] sm:$0xff]
    %v491 = vld [vmem:[%s483 + $0x38] sm:$0xff]
    %v492 = vld [vmem:[%s483 + $0x40] sm:$0xff]
    %v493 = vld [vmem:[%s483 + $0x48] sm:$0xff]
    %v494 = vld [vmem:[%s483 + $0x50] sm:$0xff]
    %v495 = vld [vmem:[%s483 + $0x58] sm:$0xff]
    %v496 = vld [vmem:[%s483 + $0x60] sm:$0xff]
    %v497 = vld [vmem:[%s483 + $0x68] sm:$0xff]
    %v498 = vld [vmem:[%s483 + $0x70] sm:$0xff]
    %v499 = vld [vmem:[%s483 + $0x78] sm:$0xff]
    %v500 = vperm.slane %v375, 2
    %501 = vmatpush.msra.mxu0 %v499
    %502 = vmatpush.msra.mxu0 %v498
    %503 = vmatpush.msra.mxu0 %v497
    %504 = vmatpush.msra.mxu0 %v496
    %505 = vmatpush.msra.mxu0 %v495
    %506 = vmatpush.msra.mxu0 %v494
    %507 = vmatpush.msra.mxu0 %v493
    %508 = vmatpush.msra.mxu0 %v492
    %509 = vmatpush.msra.mxu0 %v491
    %510 = vmatpush.msra.mxu0 %v490
    %511 = vmatpush.msra.mxu0 %v489
    %512 = vmatpush.msra.mxu0 %v488
    %513 = vmatpush.msra.mxu0 %v487
    %514 = vmatpush.msra.mxu0 %v486
    %515 = vmatpush.msra.mxu0 %v485
    %516 = vmatpush.msra.mxu0 %v484
    %517 = vmatmul.f32.gmra.mxu0 %v407
    %v518 = vpop.f32.mrf.mxu0
    %v519 = vadd.f32 %v500, %v518
    %520 = vdwg.mxu0
    %v521 = vmul.f32 %v443, 0.17677669
    %vm522 = vcmask 261120
    %v524 = vsel %vm522, %v521, 0
    %v527 = vsel %vm522, %v481, 0
    %529 = vmatpush.xpose.msra.mxu0 0.0
    %530 = vmatpush.xpose.msra.mxu0 0.0
    %531 = vmatpush.xpose.msra.mxu0 0.0
    %532 = vmatpush.xpose.msra.mxu0 0.0
    %533 = vmatpush.xpose.msra.mxu0 0.0
    %534 = vmatpush.xpose.msra.mxu0 0.0
    %535 = vmatpush.xpose.msra.mxu0 0.0
    %536 = vmatpush.xpose.msra.mxu0 0.0
    %537 = vmatpush.xpose.msra.mxu0 0.0
    %538 = vmatpush.xpose.msra.mxu0 0.0
    %539 = vmatpush.xpose.msra.mxu0 0.0
    %540 = vmatpush.xpose.msra.mxu0 0.0
    %541 = vmatpush.xpose.msra.mxu0 0.0
    %542 = vmatpush.xpose.msra.mxu0 0.0
    %543 = vmatpush.xpose.msra.mxu0 0.0
    %544 = vmatpush.xpose.msra.mxu0 %v527
    %545 = vmatmul.f32.gmra.mxu0 %v524
    %v546 = vpop.f32.mrf.mxu0
    %v547 = vadd.f32 0.0, %v546
    %548 = vdwg.mxu0
    %vm549 = vcmask 64512
    %v550 = vsel %vm549, %v547, -inf
    %551 = vmax.xlane.f32.xlu0 %v550
    %v552 = vpop.xlane.xlu0 %551
    %v553 = vsub.f32 %v547, %v552
    %v554 = vmul.f32 %v553, 1.442695
    %v555 = vpow.pop %v554
    %v556 = vsel %vm549, %v555, 0.0
    %557 = vadd.xlane.f32.xlu0 %v556
    %v558 = vpop.xlane.xlu0 %557
    %v559 = vrcp.pop %v558
    %v560 = vmul.f32 %v555, %v559
    %v562 = vsel %vm549, %v560, 0
    %564 = vmatpush.msra.mxu0 0.0
    %565 = vmatpush.msra.mxu0 0.0
    %566 = vmatpush.msra.mxu0 0.0
    %567 = vmatpush.msra.mxu0 0.0
    %568 = vmatpush.msra.mxu0 0.0
    %569 = vmatpush.msra.mxu0 0.0
    %570 = vmatpush.msra.mxu0 0.0
    %571 = vmatpush.msra.mxu0 0.0
    %572 = vmatpush.msra.mxu0 0.0
    %573 = vmatpush.msra.mxu0 0.0
    %574 = vmatpush.msra.mxu0 0.0
    %575 = vmatpush.msra.mxu0 0.0
    %576 = vmatpush.msra.mxu0 0.0
    %577 = vmatpush.msra.mxu0 0.0
    %578 = vmatpush.msra.mxu0 0.0
    %579 = vmatpush.msra.mxu0 %v519
    %580 = vmatmul.f32.gmra.mxu0 %v562
    %v581 = vpop.f32.mrf.mxu0
    %v582 = vadd.f32 0.0, %v581
    %583 = vdwg.mxu0
    %584 = vrot.lane.b32.xlu0 %v521, 96
    %v585 = vpop.permute.xlu0 %584
    %586 = vrot.lane.b32.xlu0 %v481, 96
    %v587 = vpop.permute.xlu0 %586
    %v588 = vsel %vm522, %v585, 0
    %v590 = vsel %vm522, %v587, 0
    %592 = vmatpush.xpose.msra.mxu0 0.0
    %593 = vmatpush.xpose.msra.mxu0 0.0
    %594 = vmatpush.xpose.msra.mxu0 0.0
    %595 = vmatpush.xpose.msra.mxu0 0.0
    %596 = vmatpush.xpose.msra.mxu0 0.0
    %597 = vmatpush.xpose.msra.mxu0 0.0
    %598 = vmatpush.xpose.msra.mxu0 0.0
    %599 = vmatpush.xpose.msra.mxu0 0.0
    %600 = vmatpush.xpose.msra.mxu0 0.0
    %601 = vmatpush.xpose.msra.mxu0 0.0
    %602 = vmatpush.xpose.msra.mxu0 0.0
    %603 = vmatpush.xpose.msra.mxu0 0.0
    %604 = vmatpush.xpose.msra.mxu0 0.0
    %605 = vmatpush.xpose.msra.mxu0 0.0
    %606 = vmatpush.xpose.msra.mxu0 0.0
    %607 = vmatpush.xpose.msra.mxu0 %v590
    %608 = vmatmul.f32.gmra.mxu0 %v588
    %v609 = vpop.f32.mrf.mxu0
    %v610 = vadd.f32 0.0, %v609
    %611 = vdwg.mxu0
    %v612 = vsel %vm549, %v610, -inf
    %613 = vmax.xlane.f32.xlu0 %v612
    %v614 = vpop.xlane.xlu0 %613
    %v615 = vsub.f32 %v610, %v614
    %v616 = vmul.f32 %v615, 1.442695
    %v617 = vpow.pop %v616
    %v618 = vsel %vm549, %v617, 0.0
    %619 = vadd.xlane.f32.xlu0 %v618
    %v620 = vpop.xlane.xlu0 %619
    %v621 = vrcp.pop %v620
    %v622 = vmul.f32 %v617, %v621
    %624 = vrot.lane.b32.xlu0 %v519, 96
    %v625 = vpop.permute.xlu0 %624
    %v628 = vsel %vm549, %v622, 0
    %630 = vmatpush.msra.mxu0 0.0
    %631 = vmatpush.msra.mxu0 0.0
    %632 = vmatpush.msra.mxu0 0.0
    %633 = vmatpush.msra.mxu0 0.0
    %634 = vmatpush.msra.mxu0 0.0
    %635 = vmatpush.msra.mxu0 0.0
    %636 = vmatpush.msra.mxu0 0.0
    %637 = vmatpush.msra.mxu0 0.0
    %638 = vmatpush.msra.mxu0 0.0
    %639 = vmatpush.msra.mxu0 0.0
    %640 = vmatpush.msra.mxu0 0.0
    %641 = vmatpush.msra.mxu0 0.0
    %642 = vmatpush.msra.mxu0 0.0
    %643 = vmatpush.msra.mxu0 0.0
    %644 = vmatpush.msra.mxu0 0.0
    %645 = vmatpush.msra.mxu0 %v625
    %646 = vmatmul.f32.gmra.mxu0 %v628
    %v647 = vpop.f32.mrf.mxu0
    %v648 = vadd.f32 0.0, %v647
    %649 = vdwg.mxu0
    %650 = vrot.lane.b32.xlu0 %v521, 64
    %v651 = vpop.permute.xlu0 %650
    %652 = vrot.lane.b32.xlu0 %v481, 64
    %v653 = vpop.permute.xlu0 %652
    %v654 = vsel %vm522, %v651, 0
    %v656 = vsel %vm522, %v653, 0
    %658 = vmatpush.xpose.msra.mxu0 0.0
    %659 = vmatpush.xpose.msra.mxu0 0.0
    %660 = vmatpush.xpose.msra.mxu0 0.0
    %661 = vmatpush.xpose.msra.mxu0 0.0
    %662 = vmatpush.xpose.msra.mxu0 0.0
    %663 = vmatpush.xpose.msra.mxu0 0.0
    %664 = vmatpush.xpose.msra.mxu0 0.0
    %665 = vmatpush.xpose.msra.mxu0 0.0
    %666 = vmatpush.xpose.msra.mxu0 0.0
    %667 = vmatpush.xpose.msra.mxu0 0.0
    %668 = vmatpush.xpose.msra.mxu0 0.0
    %669 = vmatpush.xpose.msra.mxu0 0.0
    %670 = vmatpush.xpose.msra.mxu0 0.0
    %671 = vmatpush.xpose.msra.mxu0 0.0
    %672 = vmatpush.xpose.msra.mxu0 0.0
    %673 = vmatpush.xpose.msra.mxu0 %v656
    %674 = vmatmul.f32.gmra.mxu0 %v654
    %v675 = vpop.f32.mrf.mxu0
    %v676 = vadd.f32 0.0, %v675
    %677 = vdwg.mxu0
    %v678 = vsel %vm549, %v676, -inf
    %679 = vmax.xlane.f32.xlu0 %v678
    %v680 = vpop.xlane.xlu0 %679
    %v681 = vsub.f32 %v676, %v680
    %v682 = vmul.f32 %v681, 1.442695
    %v683 = vpow.pop %v682
    %v684 = vsel %vm549, %v683, 0.0
    %685 = vadd.xlane.f32.xlu0 %v684
    %v686 = vpop.xlane.xlu0 %685
    %v687 = vrcp.pop %v686
    %v688 = vmul.f32 %v683, %v687
    %689 = vrot.lane.b32.xlu0 %v519, 64
    %v690 = vpop.permute.xlu0 %689
    %v693 = vsel %vm549, %v688, 0
    %695 = vmatpush.msra.mxu0 0.0
    %696 = vmatpush.msra.mxu0 0.0
    %697 = vmatpush.msra.mxu0 0.0
    %698 = vmatpush.msra.mxu0 0.0
    %699 = vmatpush.msra.mxu0 0.0
    %700 = vmatpush.msra.mxu0 0.0
    %701 = vmatpush.msra.mxu0 0.0
    %702 = vmatpush.msra.mxu0 0.0
    %703 = vmatpush.msra.mxu0 0.0
    %704 = vmatpush.msra.mxu0 0.0
    %705 = vmatpush.msra.mxu0 0.0
    %706 = vmatpush.msra.mxu0 0.0
    %707 = vmatpush.msra.mxu0 0.0
    %708 = vmatpush.msra.mxu0 0.0
    %709 = vmatpush.msra.mxu0 0.0
    %710 = vmatpush.msra.mxu0 %v690
    %711 = vmatmul.f32.gmra.mxu0 %v693
    %v712 = vpop.f32.mrf.mxu0
    %v713 = vadd.f32 0.0, %v712
    %714 = vdwg.mxu0
    %715 = vrot.lane.b32.xlu0 %v521, 32
    %v716 = vpop.permute.xlu0 %715
    %717 = vrot.lane.b32.xlu0 %v481, 32
    %v718 = vpop.permute.xlu0 %717
    %v719 = vsel %vm522, %v716, 0
    %v721 = vsel %vm522, %v718, 0
    %723 = vmatpush.xpose.msra.mxu0 0.0
    %724 = vmatpush.xpose.msra.mxu0 0.0
    %725 = vmatpush.xpose.msra.mxu0 0.0
    %726 = vmatpush.xpose.msra.mxu0 0.0
    %727 = vmatpush.xpose.msra.mxu0 0.0
    %728 = vmatpush.xpose.msra.mxu0 0.0
    %729 = vmatpush.xpose.msra.mxu0 0.0
    %730 = vmatpush.xpose.msra.mxu0 0.0
    %731 = vmatpush.xpose.msra.mxu0 0.0
    %732 = vmatpush.xpose.msra.mxu0 0.0
    %733 = vmatpush.xpose.msra.mxu0 0.0
    %734 = vmatpush.xpose.msra.mxu0 0.0
    %735 = vmatpush.xpose.msra.mxu0 0.0
    %736 = vmatpush.xpose.msra.mxu0 0.0
    %737 = vmatpush.xpose.msra.mxu0 0.0
    %738 = vmatpush.xpose.msra.mxu0 %v721
    %739 = vmatmul.f32.gmra.mxu0 %v719
    %v740 = vpop.f32.mrf.mxu0
    %v741 = vadd.f32 0.0, %v740
    %742 = vdwg.mxu0
    %v743 = vsel %vm549, %v741, -inf
    %744 = vmax.xlane.f32.xlu0 %v743
    %v745 = vpop.xlane.xlu0 %744
    %v746 = vsub.f32 %v741, %v745
    %v747 = vmul.f32 %v746, 1.442695
    %v748 = vpow.pop %v747
    %v749 = vsel %vm549, %v748, 0.0
    %750 = vadd.xlane.f32.xlu0 %v749
    %v751 = vpop.xlane.xlu0 %750
    %v752 = vrcp.pop %v751
    %v753 = vmul.f32 %v748, %v752
    %754 = vrot.lane.b32.xlu0 %v519, 32
    %v755 = vpop.permute.xlu0 %754
    %v758 = vsel %vm549, %v753, 0
    %760 = vmatpush.msra.mxu0 0.0
    %761 = vmatpush.msra.mxu0 0.0
    %762 = vmatpush.msra.mxu0 0.0
    %763 = vmatpush.msra.mxu0 0.0
    %764 = vmatpush.msra.mxu0 0.0
    %765 = vmatpush.msra.mxu0 0.0
    %766 = vmatpush.msra.mxu0 0.0
    %767 = vmatpush.msra.mxu0 0.0
    %768 = vmatpush.msra.mxu0 0.0
    %769 = vmatpush.msra.mxu0 0.0
    %770 = vmatpush.msra.mxu0 0.0
    %771 = vmatpush.msra.mxu0 0.0
    %772 = vmatpush.msra.mxu0 0.0
    %773 = vmatpush.msra.mxu0 0.0
    %774 = vmatpush.msra.mxu0 0.0
    %775 = vmatpush.msra.mxu0 %v755
    %776 = vmatmul.f32.gmra.mxu0 %v758
    %v777 = vpop.f32.mrf.mxu0
    %v778 = vadd.f32 0.0, %v777
    %779 = vdwg.mxu0
    %781 = vrot.lane.b32.xlu0 %v648, 32
    %v782 = vpop.permute.xlu0 %781
    %785 = vrot.lane.b32.xlu0 %v713, 64
    %v786 = vpop.permute.xlu0 %785
    %789 = vrot.lane.b32.xlu0 %v778, 96
    %v790 = vpop.permute.xlu0 %789
    %v792 = vsel %vm522, %v582, %v782
    %vm793 = vcmask 523264
    %v794 = vsel %vm793, %v792, %v786
    %vm795 = vcmask 785408
    %v796 = vsel %vm795, %v794, %v790
    %s797 = scalar_lea.vmem [#allocation4], 384
    %v798 = vld [vmem:[%s797] sm:$0xff]
    %v799 = vld [vmem:[%s797 + $0x8] sm:$0xff]
    %v800 = vld [vmem:[%s797 + $0x10] sm:$0xff]
    %v801 = vld [vmem:[%s797 + $0x18] sm:$0xff]
    %v802 = vld [vmem:[%s797 + $0x20] sm:$0xff]
    %v803 = vld [vmem:[%s797 + $0x28] sm:$0xff]
    %v804 = vld [vmem:[%s797 + $0x30] sm:$0xff]
    %v805 = vld [vmem:[%s797 + $0x38] sm:$0xff]
    %v806 = vld [vmem:[%s797 + $0x40] sm:$0xff]
    %v807 = vld [vmem:[%s797 + $0x48] sm:$0xff]
    %v808 = vld [vmem:[%s797 + $0x50] sm:$0xff]
    %v809 = vld [vmem:[%s797 + $0x58] sm:$0xff]
    %v810 = vld [vmem:[%s797 + $0x60] sm:$0xff]
    %v811 = vld [vmem:[%s797 + $0x68] sm:$0xff]
    %v812 = vld [vmem:[%s797 + $0x70] sm:$0xff]
    %v813 = vld [vmem:[%s797 + $0x78] sm:$0xff]
    %814 = vmatpush.msra.mxu0 %v813
    %815 = vmatpush.msra.mxu0 %v812
    %816 = vmatpush.msra.mxu0 %v811
    %817 = vmatpush.msra.mxu0 %v810
    %818 = vmatpush.msra.mxu0 %v809
    %819 = vmatpush.msra.mxu0 %v808
    %820 = vmatpush.msra.mxu0 %v807
    %821 = vmatpush.msra.mxu0 %v806
    %822 = vmatpush.msra.mxu0 %v805
    %823 = vmatpush.msra.mxu0 %v804
    %824 = vmatpush.msra.mxu0 %v803
    %825 = vmatpush.msra.mxu0 %v802
    %826 = vmatpush.msra.mxu0 %v801
    %827 = vmatpush.msra.mxu0 %v800
    %828 = vmatpush.msra.mxu0 %v799
    %829 = vmatpush.msra.mxu0 %v798
    %830 = vmatmul.f32.gmra.mxu0 %v796
    %v831 = vpop.f32.mrf.mxu0
    %v832 = vadd.f32 0.0, %v831
    %833 = vdwg.mxu0
    %v834 = vadd.f32 %v374, %v832
    %v835 = vperm.slane %v375, 3
    %v836 = vadd.f32 %v834, %v835
    %837 = vadd.xlane.f32.xlu0 %v836
    %v838 = vpop.xlane.xlu0 %837
    %v839 = vmul.f32 %v838, %v385
    %v840 = vsub.f32 %v836, %v839
    %v841 = vmul.f32 %v840, %v840
    %842 = vadd.xlane.f32.xlu0 %v841
    %v843 = vpop.xlane.xlu0 %842
    %v844 = vmul.f32 %v843, %v385
    %v845 = vadd.f32 %v844, 1e-05
    %v846 = vrsqrt.pop %v845
    %v847 = vmul.f32 %v846, %v845
    %v848 = vmul.f32 %v847, %v846
    %v849 = vmul.f32 0.5, %v848
    %v850 = vsub.f32 1.5, %v849
    %v851 = vmul.f32 %v846, %v850
    %vm852 = vweird.f32 %v845
    %vm853 = vweird.f32 %v846
    %vm854 = vmor %vm852, %vm853
    %v855 = vsel %vm854, %v846, %v851
    %v856 = vmul.f32 %v840, %v855
    %v857 = vperm.slane %v375, 6
    %v858 = vmul.f32 %v856, %v857
    %v859 = vperm.slane %v375, 7
    %v860 = vadd.f32 %v858, %v859
    %v861 = vld [vmem:[#allocation6] sm:$0xff]
    %v862 = vld [vmem:[#allocation6 + $0x8] sm:$0xff]
    %v863 = vld [vmem:[#allocation6 + $0x10] sm:$0xff]
    %v864 = vld [vmem:[#allocation6 + $0x18] sm:$0xff]
    %v865 = vld [vmem:[#allocation6 + $0x20] sm:$0xff]
    %v866 = vld [vmem:[#allocation6 + $0x28] sm:$0xff]
    %v867 = vld [vmem:[#allocation6 + $0x30] sm:$0xff]
    %v868 = vld [vmem:[#allocation6 + $0x38] sm:$0xff]
    %v869 = vld [vmem:[#allocation6 + $0x40] sm:$0xff]
    %v870 = vld [vmem:[#allocation6 + $0x48] sm:$0xff]
    %v871 = vld [vmem:[#allocation6 + $0x50] sm:$0xff]
    %v872 = vld [vmem:[#allocation6 + $0x58] sm:$0xff]
    %v873 = vld [vmem:[#allocation6 + $0x60] sm:$0xff]
    %v874 = vld [vmem:[#allocation6 + $0x68] sm:$0xff]
    %v875 = vld [vmem:[#allocation6 + $0x70] sm:$0xff]
    %v876 = vld [vmem:[#allocation6 + $0x78] sm:$0xff]
    %v877 = vld [vmem:[#allocation6 + $0x80] sm:$0xff]
    %v878 = vld [vmem:[#allocation6 + $0x88] sm:$0xff]
    %v879 = vld [vmem:[#allocation6 + $0x90] sm:$0xff]
    %v880 = vld [vmem:[#allocation6 + $0x98] sm:$0xff]
    %v881 = vld [vmem:[#allocation6 + $0xa0] sm:$0xff]
    %v882 = vld [vmem:[#allocation6 + $0xa8] sm:$0xff]
    %v883 = vld [vmem:[#allocation6 + $0xb0] sm:$0xff]
    %v884 = vld [vmem:[#allocation6 + $0xb8] sm:$0xff]
    %v885 = vld [vmem:[#allocation6 + $0xc0] sm:$0xff]
    %v886 = vld [vmem:[#allocation6 + $0xc8] sm:$0xff]
    %v887 = vld [vmem:[#allocation6 + $0xd0] sm:$0xff]
    %v888 = vld [vmem:[#allocation6 + $0xd8] sm:$0xff]
    %v889 = vld [vmem:[#allocation6 + $0xe0] sm:$0xff]
    %v890 = vld [vmem:[#allocation6 + $0xe8] sm:$0xff]
    %v891 = vld [vmem:[#allocation6 + $0xf0] sm:$0xff]
    %v892 = vld [vmem:[#allocation6 + $0xf8] sm:$0xff]
    %v893 = vld [vmem:[%s9] sm:$0x3]
    %v895 = vperm.slane %v893, 0
    %v896 = vperm.slane %v893, 1
    %899 = vmatpush.msra.mxu0 %v891
    %900 = vmatpush.msra.mxu0 %v889
    %901 = vmatpush.msra.mxu0 %v887
    %902 = vmatpush.msra.mxu0 %v885
    %903 = vmatpush.msra.mxu0 %v883
    %904 = vmatpush.msra.mxu0 %v881
    %905 = vmatpush.msra.mxu0 %v879
    %906 = vmatpush.msra.mxu0 %v877
    %907 = vmatpush.msra.mxu0 %v875
    %908 = vmatpush.msra.mxu0 %v873
    %909 = vmatpush.msra.mxu0 %v871
    %910 = vmatpush.msra.mxu0 %v869
    %911 = vmatpush.msra.mxu0 %v867
    %912 = vmatpush.msra.mxu0 %v865
    %913 = vmatpush.msra.mxu0 %v863
    %914 = vmatpush.msra.mxu0 %v861
    %915 = vmatmul.f32.gmra.mxu0 %v860
    %v916 = vpop.f32.mrf.mxu0
    %v917 = vadd.f32 %v895, %v916
    %918 = vdwg.mxu0
    %919 = vmatpush.msra.mxu0 %v892
    %920 = vmatpush.msra.mxu0 %v890
    %921 = vmatpush.msra.mxu0 %v888
    %922 = vmatpush.msra.mxu0 %v886
    %923 = vmatpush.msra.mxu0 %v884
    %924 = vmatpush.msra.mxu0 %v882
    %925 = vmatpush.msra.mxu0 %v880
    %926 = vmatpush.msra.mxu0 %v878
    %927 = vmatpush.msra.mxu0 %v876
    %928 = vmatpush.msra.mxu0 %v874
    %929 = vmatpush.msra.mxu0 %v872
    %930 = vmatpush.msra.mxu0 %v870
    %931 = vmatpush.msra.mxu0 %v868
    %932 = vmatpush.msra.mxu0 %v866
    %933 = vmatpush.msra.mxu0 %v864
    %934 = vmatpush.msra.mxu0 %v862
    %935 = vmatmul.f32.gmra.mxu0 %v860
    %v936 = vpop.f32.mrf.mxu0
    %v937 = vadd.f32 %v896, %v936
    %938 = vdwg.mxu0
    %v939 = vmul.f32 %v917, 0.5
    %v940 = vmul.f32 %v937, 0.5
    %v941 = vmul.f32 %v917, 0.044715
    %v942 = vmul.f32 %v937, 0.044715
    %v943 = vmul.f32 %v941, %v917
    %v944 = vmul.f32 %v942, %v937
    %v945 = vmul.f32 %v943, %v917
    %v946 = vmul.f32 %v944, %v937
    %v947 = vadd.f32 %v917, %v945
    %v948 = vadd.f32 %v937, %v946
    %v949 = vmul.f32 %v947, 0.7978846
    %v950 = vmul.f32 %v948, 0.7978846
    %v951 = vtanh.pop %v949
    %v952 = vtanh.pop %v950
    %v953 = vadd.f32 %v951, 1.0
    %v954 = vadd.f32 %v952, 1.0
    %v955 = vmul.f32 %v939, %v953
    %v956 = vmul.f32 %v940, %v954
    %v957 = vld [vmem:[#allocation7] sm:$0xff]
    %v958 = vld [vmem:[#allocation7 + $0x8] sm:$0xff]
    %v959 = vld [vmem:[#allocation7 + $0x10] sm:$0xff]
    %v960 = vld [vmem:[#allocation7 + $0x18] sm:$0xff]
    %v961 = vld [vmem:[#allocation7 + $0x20] sm:$0xff]
    %v962 = vld [vmem:[#allocation7 + $0x28] sm:$0xff]
    %v963 = vld [vmem:[#allocation7 + $0x30] sm:$0xff]
    %v964 = vld [vmem:[#allocation7 + $0x38] sm:$0xff]
    %v965 = vld [vmem:[#allocation7 + $0x40] sm:$0xff]
    %v966 = vld [vmem:[#allocation7 + $0x48] sm:$0xff]
    %v967 = vld [vmem:[#allocation7 + $0x50] sm:$0xff]
    %v968 = vld [vmem:[#allocation7 + $0x58] sm:$0xff]
    %v969 = vld [vmem:[#allocation7 + $0x60] sm:$0xff]
    %v970 = vld [vmem:[#allocation7 + $0x68] sm:$0xff]
    %v971 = vld [vmem:[#allocation7 + $0x70] sm:$0xff]
    %v972 = vld [vmem:[#allocation7 + $0x78] sm:$0xff]
    %v973 = vld [vmem:[#allocation7 + $0x80] sm:$0xff]
    %v974 = vld [vmem:[#allocation7 + $0x88] sm:$0xff]
    %v975 = vld [vmem:[#allocation7 + $0x90] sm:$0xff]
    %v976 = vld [vmem:[#allocation7 + $0x98] sm:$0xff]
    %v977 = vld [vmem:[#allocation7 + $0xa0] sm:$0xff]
    %v978 = vld [vmem:[#allocation7 + $0xa8] sm:$0xff]
    %v979 = vld [vmem:[#allocation7 + $0xb0] sm:$0xff]
    %v980 = vld [vmem:[#allocation7 + $0xb8] sm:$0xff]
    %v981 = vld [vmem:[#allocation7 + $0xc0] sm:$0xff]
    %v982 = vld [vmem:[#allocation7 + $0xc8] sm:$0xff]
    %v983 = vld [vmem:[#allocation7 + $0xd0] sm:$0xff]
    %v984 = vld [vmem:[#allocation7 + $0xd8] sm:$0xff]
    %v985 = vld [vmem:[#allocation7 + $0xe0] sm:$0xff]
    %v986 = vld [vmem:[#allocation7 + $0xe8] sm:$0xff]
    %v987 = vld [vmem:[#allocation7 + $0xf0] sm:$0xff]
    %v988 = vld [vmem:[#allocation7 + $0xf8] sm:$0xff]
    %989 = vmatpush.msra.mxu0 %v972
    %990 = vmatpush.msra.mxu0 %v971
    %991 = vmatpush.msra.mxu0 %v970
    %992 = vmatpush.msra.mxu0 %v969
    %993 = vmatpush.msra.mxu0 %v968
    %994 = vmatpush.msra.mxu0 %v967
    %995 = vmatpush.msra.mxu0 %v966
    %996 = vmatpush.msra.mxu0 %v965
    %997 = vmatpush.msra.mxu0 %v964
    %998 = vmatpush.msra.mxu0 %v963
    %999 = vmatpush.msra.mxu0 %v962
    %1000 = vmatpush.msra.mxu0 %v961
    %1001 = vmatpush.msra.mxu0 %v960
    %1002 = vmatpush.msra.mxu0 %v959
    %1003 = vmatpush.msra.mxu0 %v958
    %1004 = vmatpush.msra.mxu0 %v957
    %1005 = vmatmul.f32.gmra.mxu0 %v955
    %v1006 = vpop.f32.mrf.mxu0
    %v1007 = vadd.f32 0.0, %v1006
    %1008 = vdwg.mxu0
    %1009 = vmatpush.msra.mxu0 %v988
    %1010 = vmatpush.msra.mxu0 %v987
    %1011 = vmatpush.msra.mxu0 %v986
    %1012 = vmatpush.msra.mxu0 %v985
    %1013 = vmatpush.msra.mxu0 %v984
    %1014 = vmatpush.msra.mxu0 %v983
    %1015 = vmatpush.msra.mxu0 %v982
    %1016 = vmatpush.msra.mxu0 %v981
    %1017 = vmatpush.msra.mxu0 %v980
    %1018 = vmatpush.msra.mxu0 %v979
    %1019 = vmatpush.msra.mxu0 %v978
    %1020 = vmatpush.msra.mxu0 %v977
    %1021 = vmatpush.msra.mxu0 %v976
    %1022 = vmatpush.msra.mxu0 %v975
    %1023 = vmatpush.msra.mxu0 %v974
    %1024 = vmatpush.msra.mxu0 %v973
    %1025 = vmatmul.f32.gmra.mxu0 %v956
    %v1026 = vpop.f32.mrf.mxu0
    %v1027 = vadd.f32 %v1007, %v1026
    %1028 = vdwg.mxu0
    %v1029 = vadd.f32 %v836, %v1027
    %v1030 = vperm.slane %v376, 0
    %v1031 = vadd.f32 %v1029, %v1030
    %s1032 = scalar_lea.vmem %s7, 16
    %v1033 = vld [vmem:[%s1032] sm:$0xff]
    %v1034 = vld [vmem:[%s1032 + $0x8] sm:$0x1]
    %1035 = vadd.xlane.f32.xlu0 %v1031
    %v1036 = vpop.xlane.xlu0 %1035
    %v1037 = vmul.f32 %v1036, %v385
    %v1038 = vsub.f32 %v1031, %v1037
    %v1039 = vmul.f32 %v1038, %v1038
    %1040 = vadd.xlane.f32.xlu0 %v1039
    %v1041 = vpop.xlane.xlu0 %1040
    %v1042 = vmul.f32 %v1041, %v385
    %v1043 = vadd.f32 %v1042, 1e-05
    %v1044 = vrsqrt.pop %v1043
    %v1045 = vmul.f32 %v1044, %v1043
    %v1046 = vmul.f32 %v1045, %v1044
    %v1047 = vmul.f32 0.5, %v1046
    %v1048 = vsub.f32 1.5, %v1047
    %v1049 = vmul.f32 %v1044, %v1048
    %vm1050 = vweird.f32 %v1043
    %vm1051 = vweird.f32 %v1044
    %vm1052 = vmor %vm1050, %vm1051
    %v1053 = vsel %vm1052, %v1044, %v1049
    %v1054 = vmul.f32 %v1038, %v1053
    %v1055 = vperm.slane %v1033, 4
    %v1056 = vmul.f32 %v1054, %v1055
    %v1057 = vperm.slane %v1033, 5
    %v1058 = vadd.f32 %v1056, %v1057
    %s1059 = scalar_lea.vmem [#allocation4], 512
    %v1060 = vld [vmem:[%s1059] sm:$0xff]
    %v1061 = vld [vmem:[%s1059 + $0x8] sm:$0xff]
    %v1062 = vld [vmem:[%s1059 + $0x10] sm:$0xff]
    %v1063 = vld [vmem:[%s1059 + $0x18] sm:$0xff]
    %v1064 = vld [vmem:[%s1059 + $0x20] sm:$0xff]
    %v1065 = vld [vmem:[%s1059 + $0x28] sm:$0xff]
    %v1066 = vld [vmem:[%s1059 + $0x30] sm:$0xff]
    %v1067 = vld [vmem:[%s1059 + $0x38] sm:$0xff]
    %v1068 = vld [vmem:[%s1059 + $0x40] sm:$0xff]
    %v1069 = vld [vmem:[%s1059 + $0x48] sm:$0xff]
    %v1070 = vld [vmem:[%s1059 + $0x50] sm:$0xff]
    %v1071 = vld [vmem:[%s1059 + $0x58] sm:$0xff]
    %v1072 = vld [vmem:[%s1059 + $0x60] sm:$0xff]
    %v1073 = vld [vmem:[%s1059 + $0x68] sm:$0xff]
    %v1074 = vld [vmem:[%s1059 + $0x70] sm:$0xff]
    %v1075 = vld [vmem:[%s1059 + $0x78] sm:$0xff]
    %v1076 = vperm.slane %v1033, 0
    %1077 = vmatpush.msra.mxu0 %v1075
    %1078 = vmatpush.msra.mxu0 %v1074
    %1079 = vmatpush.msra.mxu0 %v1073
    %1080 = vmatpush.msra.mxu0 %v1072
    %1081 = vmatpush.msra.mxu0 %v1071
    %1082 = vmatpush.msra.mxu0 %v1070
    %1083 = vmatpush.msra.mxu0 %v1069
    %1084 = vmatpush.msra.mxu0 %v1068
    %1085 = vmatpush.msra.mxu0 %v1067
    %1086 = vmatpush.msra.mxu0 %v1066
    %1087 = vmatpush.msra.mxu0 %v1065
    %1088 = vmatpush.msra.mxu0 %v1064
    %1089 = vmatpush.msra.mxu0 %v1063
    %1090 = vmatpush.msra.mxu0 %v1062
    %1091 = vmatpush.msra.mxu0 %v1061
    %1092 = vmatpush.msra.mxu0 %v1060
    %1093 = vmatmul.f32.gmra.mxu0 %v1058
    %v1094 = vpop.f32.mrf.mxu0
    %v1095 = vadd.f32 %v1076, %v1094
    %1096 = vdwg.mxu0
    %s1097 = scalar_lea.vmem [#allocation4], 640
    %v1098 = vld [vmem:[%s1097] sm:$0xff]
    %v1099 = vld [vmem:[%s1097 + $0x8] sm:$0xff]
    %v1100 = vld [vmem:[%s1097 + $0x10] sm:$0xff]
    %v1101 = vld [vmem:[%s1097 + $0x18] sm:$0xff]
    %v1102 = vld [vmem:[%s1097 + $0x20] sm:$0xff]
    %v1103 = vld [vmem:[%s1097 + $0x28] sm:$0xff]
    %v1104 = vld [vmem:[%s1097 + $0x30] sm:$0xff]
    %v1105 = vld [vmem:[%s1097 + $0x38] sm:$0xff]
    %v1106 = vld [vmem:[%s1097 + $0x40] sm:$0xff]
    %v1107 = vld [vmem:[%s1097 + $0x48] sm:$0xff]
    %v1108 = vld [vmem:[%s1097 + $0x50] sm:$0xff]
    %v1109 = vld [vmem:[%s1097 + $0x58] sm:$0xff]
    %v1110 = vld [vmem:[%s1097 + $0x60] sm:$0xff]
    %v1111 = vld [vmem:[%s1097 + $0x68] sm:$0xff]
    %v1112 = vld [vmem:[%s1097 + $0x70] sm:$0xff]
    %v1113 = vld [vmem:[%s1097 + $0x78] sm:$0xff]
    %v1114 = vperm.slane %v1033, 1
    %1115 = vmatpush.msra.mxu0 %v1113
    %1116 = vmatpush.msra.mxu0 %v1112
    %1117 = vmatpush.msra.mxu0 %v1111
    %1118 = vmatpush.msra.mxu0 %v1110
    %1119 = vmatpush.msra.mxu0 %v1109
    %1120 = vmatpush.msra.mxu0 %v1108
    %1121 = vmatpush.msra.mxu0 %v1107
    %1122 = vmatpush.msra.mxu0 %v1106
    %1123 = vmatpush.msra.mxu0 %v1105
    %1124 = vmatpush.msra.mxu0 %v1104
    %1125 = vmatpush.msra.mxu0 %v1103
    %1126 = vmatpush.msra.mxu0 %v1102
    %1127 = vmatpush.msra.mxu0 %v1101
    %1128 = vmatpush.msra.mxu0 %v1100
    %1129 = vmatpush.msra.mxu0 %v1099
    %1130 = vmatpush.msra.mxu0 %v1098
    %1131 = vmatmul.f32.gmra.mxu0 %v1058
    %v1132 = vpop.f32.mrf.mxu0
    %v1133 = vadd.f32 %v1114, %v1132
    %1134 = vdwg.mxu0
    %s1135 = scalar_lea.vmem [#allocation4], 768
    %v1136 = vld [vmem:[%s1135] sm:$0xff]
    %v1137 = vld [vmem:[%s1135 + $0x8] sm:$0xff]
    %v1138 = vld [vmem:[%s1135 + $0x10] sm:$0xff]
    %v1139 = vld [vmem:[%s1135 + $0x18] sm:$0xff]
    %v1140 = vld [vmem:[%s1135 + $0x20] sm:$0xff]
    %v1141 = vld [vmem:[%s1135 + $0x28] sm:$0xff]
    %v1142 = vld [vmem:[%s1135 + $0x30] sm:$0xff]
    %v1143 = vld [vmem:[%s1135 + $0x38] sm:$0xff]
    %v1144 = vld [vmem:[%s1135 + $0x40] sm:$0xff]
    %v1145 = vld [vmem:[%s1135 + $0x48] sm:$0xff]
    %v1146 = vld [vmem:[%s1135 + $0x50] sm:$0xff]
    %v1147 = vld [vmem:[%s1135 + $0x58] sm:$0xff]
    %v1148 = vld [vmem:[%s1135 + $0x60] sm:$0xff]
    %v1149 = vld [vmem:[%s1135 + $0x68] sm:$0xff]
    %v1150 = vld [vmem:[%s1135 + $0x70] sm:$0xff]
    %v1151 = vld [vmem:[%s1135 + $0x78] sm:$0xff]
    %v1152 = vperm.slane %v1033, 2
    %1153 = vmatpush.msra.mxu0 %v1151
    %1154 = vmatpush.msra.mxu0 %v1150
    %1155 = vmatpush.msra.mxu0 %v1149
    %1156 = vmatpush.msra.mxu0 %v1148
    %1157 = vmatpush.msra.mxu0 %v1147
    %1158 = vmatpush.msra.mxu0 %v1146
    %1159 = vmatpush.msra.mxu0 %v1145
    %1160 = vmatpush.msra.mxu0 %v1144
    %1161 = vmatpush.msra.mxu0 %v1143
    %1162 = vmatpush.msra.mxu0 %v1142
    %1163 = vmatpush.msra.mxu0 %v1141
    %1164 = vmatpush.msra.mxu0 %v1140
    %1165 = vmatpush.msra.mxu0 %v1139
    %1166 = vmatpush.msra.mxu0 %v1138
    %1167 = vmatpush.msra.mxu0 %v1137
    %1168 = vmatpush.msra.mxu0 %v1136
    %1169 = vmatmul.f32.gmra.mxu0 %v1058
    %v1170 = vpop.f32.mrf.mxu0
    %v1171 = vadd.f32 %v1152, %v1170
    %1172 = vdwg.mxu0
    %v1173 = vmul.f32 %v1095, 0.17677669
    %v1175 = vsel %vm522, %v1173, 0
    %v1178 = vsel %vm522, %v1133, 0
    %1180 = vmatpush.xpose.msra.mxu0 0.0
    %1181 = vmatpush.xpose.msra.mxu0 0.0
    %1182 = vmatpush.xpose.msra.mxu0 0.0
    %1183 = vmatpush.xpose.msra.mxu0 0.0
    %1184 = vmatpush.xpose.msra.mxu0 0.0
    %1185 = vmatpush.xpose.msra.mxu0 0.0
    %1186 = vmatpush.xpose.msra.mxu0 0.0
    %1187 = vmatpush.xpose.msra.mxu0 0.0
    %1188 = vmatpush.xpose.msra.mxu0 0.0
    %1189 = vmatpush.xpose.msra.mxu0 0.0
    %1190 = vmatpush.xpose.msra.mxu0 0.0
    %1191 = vmatpush.xpose.msra.mxu0 0.0
    %1192 = vmatpush.xpose.msra.mxu0 0.0
    %1193 = vmatpush.xpose.msra.mxu0 0.0
    %1194 = vmatpush.xpose.msra.mxu0 0.0
    %1195 = vmatpush.xpose.msra.mxu0 %v1178
    %1196 = vmatmul.f32.gmra.mxu0 %v1175
    %v1197 = vpop.f32.mrf.mxu0
    %v1198 = vadd.f32 0.0, %v1197
    %1199 = vdwg.mxu0
    %v1200 = vsel %vm549, %v1198, -inf
    %1201 = vmax.xlane.f32.xlu0 %v1200
    %v1202 = vpop.xlane.xlu0 %1201
    %v1203 = vsub.f32 %v1198, %v1202
    %v1204 = vmul.f32 %v1203, 1.442695
    %v1205 = vpow.pop %v1204
    %v1206 = vsel %vm549, %v1205, 0.0
    %1207 = vadd.xlane.f32.xlu0 %v1206
    %v1208 = vpop.xlane.xlu0 %1207
    %v1209 = vrcp.pop %v1208
    %v1210 = vmul.f32 %v1205, %v1209
    %v1212 = vsel %vm549, %v1210, 0
    %1214 = vmatpush.msra.mxu0 0.0
    %1215 = vmatpush.msra.mxu0 0.0
    %1216 = vmatpush.msra.mxu0 0.0
    %1217 = vmatpush.msra.mxu0 0.0
    %1218 = vmatpush.msra.mxu0 0.0
    %1219 = vmatpush.msra.mxu0 0.0
    %1220 = vmatpush.msra.mxu0 0.0
    %1221 = vmatpush.msra.mxu0 0.0
    %1222 = vmatpush.msra.mxu0 0.0
    %1223 = vmatpush.msra.mxu0 0.0
    %1224 = vmatpush.msra.mxu0 0.0
    %1225 = vmatpush.msra.mxu0 0.0
    %1226 = vmatpush.msra.mxu0 0.0
    %1227 = vmatpush.msra.mxu0 0.0
    %1228 = vmatpush.msra.mxu0 0.0
    %1229 = vmatpush.msra.mxu0 %v1171
    %1230 = vmatmul.f32.gmra.mxu0 %v1212
    %v1231 = vpop.f32.mrf.mxu0
    %v1232 = vadd.f32 0.0, %v1231
    %1233 = vdwg.mxu0
    %1234 = vrot.lane.b32.xlu0 %v1173, 96
    %v1235 = vpop.permute.xlu0 %1234
    %1236 = vrot.lane.b32.xlu0 %v1133, 96
    %v1237 = vpop.permute.xlu0 %1236
    %v1238 = vsel %vm522, %v1235, 0
    %v1240 = vsel %vm522, %v1237, 0
    %1242 = vmatpush.xpose.msra.mxu0 0.0
    %1243 = vmatpush.xpose.msra.mxu0 0.0
    %1244 = vmatpush.xpose.msra.mxu0 0.0
    %1245 = vmatpush.xpose.msra.mxu0 0.0
    %1246 = vmatpush.xpose.msra.mxu0 0.0
    %1247 = vmatpush.xpose.msra.mxu0 0.0
    %1248 = vmatpush.xpose.msra.mxu0 0.0
    %1249 = vmatpush.xpose.msra.mxu0 0.0
    %1250 = vmatpush.xpose.msra.mxu0 0.0
    %1251 = vmatpush.xpose.msra.mxu0 0.0
    %1252 = vmatpush.xpose.msra.mxu0 0.0
    %1253 = vmatpush.xpose.msra.mxu0 0.0
    %1254 = vmatpush.xpose.msra.mxu0 0.0
    %1255 = vmatpush.xpose.msra.mxu0 0.0
    %1256 = vmatpush.xpose.msra.mxu0 0.0
    %1257 = vmatpush.xpose.msra.mxu0 %v1240
    %1258 = vmatmul.f32.gmra.mxu0 %v1238
    %v1259 = vpop.f32.mrf.mxu0
    %v1260 = vadd.f32 0.0, %v1259
    %1261 = vdwg.mxu0
    %v1262 = vsel %vm549, %v1260, -inf
    %1263 = vmax.xlane.f32.xlu0 %v1262
    %v1264 = vpop.xlane.xlu0 %1263
    %v1265 = vsub.f32 %v1260, %v1264
    %v1266 = vmul.f32 %v1265, 1.442695
    %v1267 = vpow.pop %v1266
    %v1268 = vsel %vm549, %v1267, 0.0
    %1269 = vadd.xlane.f32.xlu0 %v1268
    %v1270 = vpop.xlane.xlu0 %1269
    %v1271 = vrcp.pop %v1270
    %v1272 = vmul.f32 %v1267, %v1271
    %1274 = vrot.lane.b32.xlu0 %v1171, 96
    %v1275 = vpop.permute.xlu0 %1274
    %v1278 = vsel %vm549, %v1272, 0
    %1280 = vmatpush.msra.mxu0 0.0
    %1281 = vmatpush.msra.mxu0 0.0
    %1282 = vmatpush.msra.mxu0 0.0
    %1283 = vmatpush.msra.mxu0 0.0
    %1284 = vmatpush.msra.mxu0 0.0
    %1285 = vmatpush.msra.mxu0 0.0
    %1286 = vmatpush.msra.mxu0 0.0
    %1287 = vmatpush.msra.mxu0 0.0
    %1288 = vmatpush.msra.mxu0 0.0
    %1289 = vmatpush.msra.mxu0 0.0
    %1290 = vmatpush.msra.mxu0 0.0
    %1291 = vmatpush.msra.mxu0 0.0
    %1292 = vmatpush.msra.mxu0 0.0
    %1293 = vmatpush.msra.mxu0 0.0
    %1294 = vmatpush.msra.mxu0 0.0
    %1295 = vmatpush.msra.mxu0 %v1275
    %1296 = vmatmul.f32.gmra.mxu0 %v1278
    %v1297 = vpop.f32.mrf.mxu0
    %v1298 = vadd.f32 0.0, %v1297
    %1299 = vdwg.mxu0
    %1300 = vrot.lane.b32.xlu0 %v1173, 64
    %v1301 = vpop.permute.xlu0 %1300
    %1302 = vrot.lane.b32.xlu0 %v1133, 64
    %v1303 = vpop.permute.xlu0 %1302
    %v1304 = vsel %vm522, %v1301, 0
    %v1306 = vsel %vm522, %v1303, 0
    %1308 = vmatpush.xpose.msra.mxu0 0.0
    %1309 = vmatpush.xpose.msra.mxu0 0.0
    %1310 = vmatpush.xpose.msra.mxu0 0.0
    %1311 = vmatpush.xpose.msra.mxu0 0.0
    %1312 = vmatpush.xpose.msra.mxu0 0.0
    %1313 = vmatpush.xpose.msra.mxu0 0.0
    %1314 = vmatpush.xpose.msra.mxu0 0.0
    %1315 = vmatpush.xpose.msra.mxu0 0.0
    %1316 = vmatpush.xpose.msra.mxu0 0.0
    %1317 = vmatpush.xpose.msra.mxu0 0.0
    %1318 = vmatpush.xpose.msra.mxu0 0.0
    %1319 = vmatpush.xpose.msra.mxu0 0.0
    %1320 = vmatpush.xpose.msra.mxu0 0.0
    %1321 = vmatpush.xpose.msra.mxu0 0.0
    %1322 = vmatpush.xpose.msra.mxu0 0.0
    %1323 = vmatpush.xpose.msra.mxu0 %v1306
    %1324 = vmatmul.f32.gmra.mxu0 %v1304
    %v1325 = vpop.f32.mrf.mxu0
    %v1326 = vadd.f32 0.0, %v1325
    %1327 = vdwg.mxu0
    %v1328 = vsel %vm549, %v1326, -inf
    %1329 = vmax.xlane.f32.xlu0 %v1328
    %v1330 = vpop.xlane.xlu0 %1329
    %v1331 = vsub.f32 %v1326, %v1330
    %v1332 = vmul.f32 %v1331, 1.442695
    %v1333 = vpow.pop %v1332
    %v1334 = vsel %vm549, %v1333, 0.0
    %1335 = vadd.xlane.f32.xlu0 %v1334
    %v1336 = vpop.xlane.xlu0 %1335
    %v1337 = vrcp.pop %v1336
    %v1338 = vmul.f32 %v1333, %v1337
    %1339 = vrot.lane.b32.xlu0 %v1171, 64
    %v1340 = vpop.permute.xlu0 %1339
    %v1343 = vsel %vm549, %v1338, 0
    %1345 = vmatpush.msra.mxu0 0.0
    %1346 = vmatpush.msra.mxu0 0.0
    %1347 = vmatpush.msra.mxu0 0.0
    %1348 = vmatpush.msra.mxu0 0.0
    %1349 = vmatpush.msra.mxu0 0.0
    %1350 = vmatpush.msra.mxu0 0.0
    %1351 = vmatpush.msra.mxu0 0.0
    %1352 = vmatpush.msra.mxu0 0.0
    %1353 = vmatpush.msra.mxu0 0.0
    %1354 = vmatpush.msra.mxu0 0.0
    %1355 = vmatpush.msra.mxu0 0.0
    %1356 = vmatpush.msra.mxu0 0.0
    %1357 = vmatpush.msra.mxu0 0.0
    %1358 = vmatpush.msra.mxu0 0.0
    %1359 = vmatpush.msra.mxu0 0.0
    %1360 = vmatpush.msra.mxu0 %v1340
    %1361 = vmatmul.f32.gmra.mxu0 %v1343
    %v1362 = vpop.f32.mrf.mxu0
    %v1363 = vadd.f32 0.0, %v1362
    %1364 = vdwg.mxu0
    %1365 = vrot.lane.b32.xlu0 %v1173, 32
    %v1366 = vpop.permute.xlu0 %1365
    %1367 = vrot.lane.b32.xlu0 %v1133, 32
    %v1368 = vpop.permute.xlu0 %1367
    %v1369 = vsel %vm522, %v1366, 0
    %v1371 = vsel %vm522, %v1368, 0
    %1373 = vmatpush.xpose.msra.mxu0 0.0
    %1374 = vmatpush.xpose.msra.mxu0 0.0
    %1375 = vmatpush.xpose.msra.mxu0 0.0
    %1376 = vmatpush.xpose.msra.mxu0 0.0
    %1377 = vmatpush.xpose.msra.mxu0 0.0
    %1378 = vmatpush.xpose.msra.mxu0 0.0
    %1379 = vmatpush.xpose.msra.mxu0 0.0
    %1380 = vmatpush.xpose.msra.mxu0 0.0
    %1381 = vmatpush.xpose.msra.mxu0 0.0
    %1382 = vmatpush.xpose.msra.mxu0 0.0
    %1383 = vmatpush.xpose.msra.mxu0 0.0
    %1384 = vmatpush.xpose.msra.mxu0 0.0
    %1385 = vmatpush.xpose.msra.mxu0 0.0
    %1386 = vmatpush.xpose.msra.mxu0 0.0
    %1387 = vmatpush.xpose.msra.mxu0 0.0
    %1388 = vmatpush.xpose.msra.mxu0 %v1371
    %1389 = vmatmul.f32.gmra.mxu0 %v1369
    %v1390 = vpop.f32.mrf.mxu0
    %v1391 = vadd.f32 0.0, %v1390
    %1392 = vdwg.mxu0
    %v1393 = vsel %vm549, %v1391, -inf
    %1394 = vmax.xlane.f32.xlu0 %v1393
    %v1395 = vpop.xlane.xlu0 %1394
    %v1396 = vsub.f32 %v1391, %v1395
    %v1397 = vmul.f32 %v1396, 1.442695
    %v1398 = vpow.pop %v1397
    %v1399 = vsel %vm549, %v1398, 0.0
    %1400 = vadd.xlane.f32.xlu0 %v1399
    %v1401 = vpop.xlane.xlu0 %1400
    %v1402 = vrcp.pop %v1401
    %v1403 = vmul.f32 %v1398, %v1402
    %1404 = vrot.lane.b32.xlu0 %v1171, 32
    %v1405 = vpop.permute.xlu0 %1404
    %v1408 = vsel %vm549, %v1403, 0
    %1410 = vmatpush.msra.mxu0 0.0
    %1411 = vmatpush.msra.mxu0 0.0
    %1412 = vmatpush.msra.mxu0 0.0
    %1413 = vmatpush.msra.mxu0 0.0
    %1414 = vmatpush.msra.mxu0 0.0
    %1415 = vmatpush.msra.mxu0 0.0
    %1416 = vmatpush.msra.mxu0 0.0
    %1417 = vmatpush.msra.mxu0 0.0
    %1418 = vmatpush.msra.mxu0 0.0
    %1419 = vmatpush.msra.mxu0 0.0
    %1420 = vmatpush.msra.mxu0 0.0
    %1421 = vmatpush.msra.mxu0 0.0
    %1422 = vmatpush.msra.mxu0 0.0
    %1423 = vmatpush.msra.mxu0 0.0
    %1424 = vmatpush.msra.mxu0 0.0
    %1425 = vmatpush.msra.mxu0 %v1405
    %1426 = vmatmul.f32.gmra.mxu0 %v1408
    %v1427 = vpop.f32.mrf.mxu0
    %v1428 = vadd.f32 0.0, %v1427
    %1429 = vdwg.mxu0
    %1431 = vrot.lane.b32.xlu0 %v1298, 32
    %v1432 = vpop.permute.xlu0 %1431
    %1435 = vrot.lane.b32.xlu0 %v1363, 64
    %v1436 = vpop.permute.xlu0 %1435
    %1439 = vrot.lane.b32.xlu0 %v1428, 96
    %v1440 = vpop.permute.xlu0 %1439
    %v1442 = vsel %vm522, %v1232, %v1432
    %v1443 = vsel %vm793, %v1442, %v1436
    %v1444 = vsel %vm795, %v1443, %v1440
    %s1445 = scalar_lea.vmem [#allocation4], 896
    %v1446 = vld [vmem:[%s1445] sm:$0xff]
    %v1447 = vld [vmem:[%s1445 + $0x8] sm:$0xff]
    %v1448 = vld [vmem:[%s1445 + $0x10] sm:$0xff]
    %v1449 = vld [vmem:[%s1445 + $0x18] sm:$0xff]
    %v1450 = vld [vmem:[%s1445 + $0x20] sm:$0xff]
    %v1451 = vld [vmem:[%s1445 + $0x28] sm:$0xff]
    %v1452 = vld [vmem:[%s1445 + $0x30] sm:$0xff]
    %v1453 = vld [vmem:[%s1445 + $0x38] sm:$0xff]
    %v1454 = vld [vmem:[%s1445 + $0x40] sm:$0xff]
    %v1455 = vld [vmem:[%s1445 + $0x48] sm:$0xff]
    %v1456 = vld [vmem:[%s1445 + $0x50] sm:$0xff]
    %v1457 = vld [vmem:[%s1445 + $0x58] sm:$0xff]
    %v1458 = vld [vmem:[%s1445 + $0x60] sm:$0xff]
    %v1459 = vld [vmem:[%s1445 + $0x68] sm:$0xff]
    %v1460 = vld [vmem:[%s1445 + $0x70] sm:$0xff]
    %v1461 = vld [vmem:[%s1445 + $0x78] sm:$0xff]
    %1462 = vmatpush.msra.mxu0 %v1461
    %1463 = vmatpush.msra.mxu0 %v1460
    %1464 = vmatpush.msra.mxu0 %v1459
    %1465 = vmatpush.msra.mxu0 %v1458
    %1466 = vmatpush.msra.mxu0 %v1457
    %1467 = vmatpush.msra.mxu0 %v1456
    %1468 = vmatpush.msra.mxu0 %v1455
    %1469 = vmatpush.msra.mxu0 %v1454
    %1470 = vmatpush.msra.mxu0 %v1453
    %1471 = vmatpush.msra.mxu0 %v1452
    %1472 = vmatpush.msra.mxu0 %v1451
    %1473 = vmatpush.msra.mxu0 %v1450
    %1474 = vmatpush.msra.mxu0 %v1449
    %1475 = vmatpush.msra.mxu0 %v1448
    %1476 = vmatpush.msra.mxu0 %v1447
    %1477 = vmatpush.msra.mxu0 %v1446
    %1478 = vmatmul.f32.gmra.mxu0 %v1444
    %v1479 = vpop.f32.mrf.mxu0
    %v1480 = vadd.f32 0.0, %v1479
    %1481 = vdwg.mxu0
    %v1482 = vadd.f32 %v1031, %v1480
    %v1483 = vperm.slane %v1033, 3
    %v1484 = vadd.f32 %v1482, %v1483
    %1485 = vadd.xlane.f32.xlu0 %v1484
    %v1486 = vpop.xlane.xlu0 %1485
    %v1487 = vmul.f32 %v1486, %v385
    %v1488 = vsub.f32 %v1484, %v1487
    %v1489 = vmul.f32 %v1488, %v1488
    %1490 = vadd.xlane.f32.xlu0 %v1489
    %v1491 = vpop.xlane.xlu0 %1490
    %v1492 = vmul.f32 %v1491, %v385
    %v1493 = vadd.f32 %v1492, 1e-05
    %v1494 = vrsqrt.pop %v1493
    %v1495 = vmul.f32 %v1494, %v1493
    %v1496 = vmul.f32 %v1495, %v1494
    %v1497 = vmul.f32 0.5, %v1496
    %v1498 = vsub.f32 1.5, %v1497
    %v1499 = vmul.f32 %v1494, %v1498
    %vm1500 = vweird.f32 %v1493
    %vm1501 = vweird.f32 %v1494
    %vm1502 = vmor %vm1500, %vm1501
    %v1503 = vsel %vm1502, %v1494, %v1499
    %v1504 = vmul.f32 %v1488, %v1503
    %v1505 = vperm.slane %v1033, 6
    %v1506 = vmul.f32 %v1504, %v1505
    %v1507 = vperm.slane %v1033, 7
    %v1508 = vadd.f32 %v1506, %v1507
    %s1509 = scalar_lea.vmem [#allocation6], 256
    %v1510 = vld [vmem:[%s1509] sm:$0xff]
    %v1511 = vld [vmem:[%s1509 + $0x8] sm:$0xff]
    %v1512 = vld [vmem:[%s1509 + $0x10] sm:$0xff]
    %v1513 = vld [vmem:[%s1509 + $0x18] sm:$0xff]
    %v1514 = vld [vmem:[%s1509 + $0x20] sm:$0xff]
    %v1515 = vld [vmem:[%s1509 + $0x28] sm:$0xff]
    %v1516 = vld [vmem:[%s1509 + $0x30] sm:$0xff]
    %v1517 = vld [vmem:[%s1509 + $0x38] sm:$0xff]
    %v1518 = vld [vmem:[%s1509 + $0x40] sm:$0xff]
    %v1519 = vld [vmem:[%s1509 + $0x48] sm:$0xff]
    %v1520 = vld [vmem:[%s1509 + $0x50] sm:$0xff]
    %v1521 = vld [vmem:[%s1509 + $0x58] sm:$0xff]
    %v1522 = vld [vmem:[%s1509 + $0x60] sm:$0xff]
    %v1523 = vld [vmem:[%s1509 + $0x68] sm:$0xff]
    %v1524 = vld [vmem:[%s1509 + $0x70] sm:$0xff]
    %v1525 = vld [vmem:[%s1509 + $0x78] sm:$0xff]
    %v1526 = vld [vmem:[%s1509 + $0x80] sm:$0xff]
    %v1527 = vld [vmem:[%s1509 + $0x88] sm:$0xff]
    %v1528 = vld [vmem:[%s1509 + $0x90] sm:$0xff]
    %v1529 = vld [vmem:[%s1509 + $0x98] sm:$0xff]
    %v1530 = vld [vmem:[%s1509 + $0xa0] sm:$0xff]
    %v1531 = vld [vmem:[%s1509 + $0xa8] sm:$0xff]
    %v1532 = vld [vmem:[%s1509 + $0xb0] sm:$0xff]
    %v1533 = vld [vmem:[%s1509 + $0xb8] sm:$0xff]
    %v1534 = vld [vmem:[%s1509 + $0xc0] sm:$0xff]
    %v1535 = vld [vmem:[%s1509 + $0xc8] sm:$0xff]
    %v1536 = vld [vmem:[%s1509 + $0xd0] sm:$0xff]
    %v1537 = vld [vmem:[%s1509 + $0xd8] sm:$0xff]
    %v1538 = vld [vmem:[%s1509 + $0xe0] sm:$0xff]
    %v1539 = vld [vmem:[%s1509 + $0xe8] sm:$0xff]
    %v1540 = vld [vmem:[%s1509 + $0xf0] sm:$0xff]
    %v1541 = vld [vmem:[%s1509 + $0xf8] sm:$0xff]
    %s1542 = scalar_lea.vmem %s9, 2
    %v1543 = vld [vmem:[%s1542] sm:$0x3]
    %v1545 = vperm.slane %v1543, 0
    %v1546 = vperm.slane %v1543, 1
    %1549 = vmatpush.msra.mxu0 %v1540
    %1550 = vmatpush.msra.mxu0 %v1538
    %1551 = vmatpush.msra.mxu0 %v1536
    %1552 = vmatpush.msra.mxu0 %v1534
    %1553 = vmatpush.msra.mxu0 %v1532
    %1554 = vmatpush.msra.mxu0 %v1530
    %1555 = vmatpush.msra.mxu0 %v1528
    %1556 = vmatpush.msra.mxu0 %v1526
    %1557 = vmatpush.msra.mxu0 %v1524
    %1558 = vmatpush.msra.mxu0 %v1522
    %1559 = vmatpush.msra.mxu0 %v1520
    %1560 = vmatpush.msra.mxu0 %v1518
    %1561 = vmatpush.msra.mxu0 %v1516
    %1562 = vmatpush.msra.mxu0 %v1514
    %1563 = vmatpush.msra.mxu0 %v1512
    %1564 = vmatpush.msra.mxu0 %v1510
    %1565 = vmatmul.f32.gmra.mxu0 %v1508
    %v1566 = vpop.f32.mrf.mxu0
    %v1567 = vadd.f32 %v1545, %v1566
    %1568 = vdwg.mxu0
    %1569 = vmatpush.msra.mxu0 %v1541
    %1570 = vmatpush.msra.mxu0 %v1539
    %1571 = vmatpush.msra.mxu0 %v1537
    %1572 = vmatpush.msra.mxu0 %v1535
    %1573 = vmatpush.msra.mxu0 %v1533
    %1574 = vmatpush.msra.mxu0 %v1531
    %1575 = vmatpush.msra.mxu0 %v1529
    %1576 = vmatpush.msra.mxu0 %v1527
    %1577 = vmatpush.msra.mxu0 %v1525
    %1578 = vmatpush.msra.mxu0 %v1523
    %1579 = vmatpush.msra.mxu0 %v1521
    %1580 = vmatpush.msra.mxu0 %v1519
    %1581 = vmatpush.msra.mxu0 %v1517
    %1582 = vmatpush.msra.mxu0 %v1515
    %1583 = vmatpush.msra.mxu0 %v1513
    %1584 = vmatpush.msra.mxu0 %v1511
    %1585 = vmatmul.f32.gmra.mxu0 %v1508
    %v1586 = vpop.f32.mrf.mxu0
    %v1587 = vadd.f32 %v1546, %v1586
    %1588 = vdwg.mxu0
    %v1589 = vmul.f32 %v1567, 0.5
    %v1590 = vmul.f32 %v1587, 0.5
    %v1591 = vmul.f32 %v1567, 0.044715
    %v1592 = vmul.f32 %v1587, 0.044715
    %v1593 = vmul.f32 %v1591, %v1567
    %v1594 = vmul.f32 %v1592, %v1587
    %v1595 = vmul.f32 %v1593, %v1567
    %v1596 = vmul.f32 %v1594, %v1587
    %v1597 = vadd.f32 %v1567, %v1595
    %v1598 = vadd.f32 %v1587, %v1596
    %v1599 = vmul.f32 %v1597, 0.7978846
    %v1600 = vmul.f32 %v1598, 0.7978846
    %v1601 = vtanh.pop %v1599
    %v1602 = vtanh.pop %v1600
    %v1603 = vadd.f32 %v1601, 1.0
    %v1604 = vadd.f32 %v1602, 1.0
    %v1605 = vmul.f32 %v1589, %v1603
    %v1606 = vmul.f32 %v1590, %v1604
    %s1607 = scalar_lea.vmem [#allocation7], 256
    %v1608 = vld [vmem:[%s1607] sm:$0xff]
    %v1609 = vld [vmem:[%s1607 + $0x8] sm:$0xff]
    %v1610 = vld [vmem:[%s1607 + $0x10] sm:$0xff]
    %v1611 = vld [vmem:[%s1607 + $0x18] sm:$0xff]
    %v1612 = vld [vmem:[%s1607 + $0x20] sm:$0xff]
    %v1613 = vld [vmem:[%s1607 + $0x28] sm:$0xff]
    %v1614 = vld [vmem:[%s1607 + $0x30] sm:$0xff]
    %v1615 = vld [vmem:[%s1607 + $0x38] sm:$0xff]
    %v1616 = vld [vmem:[%s1607 + $0x40] sm:$0xff]
    %v1617 = vld [vmem:[%s1607 + $0x48] sm:$0xff]
    %v1618 = vld [vmem:[%s1607 + $0x50] sm:$0xff]
    %v1619 = vld [vmem:[%s1607 + $0x58] sm:$0xff]
    %v1620 = vld [vmem:[%s1607 + $0x60] sm:$0xff]
    %v1621 = vld [vmem:[%s1607 + $0x68] sm:$0xff]
    %v1622 = vld [vmem:[%s1607 + $0x70] sm:$0xff]
    %v1623 = vld [vmem:[%s1607 + $0x78] sm:$0xff]
    %v1624 = vld [vmem:[%s1607 + $0x80] sm:$0xff]
    %v1625 = vld [vmem:[%s1607 + $0x88] sm:$0xff]
    %v1626 = vld [vmem:[%s1607 + $0x90] sm:$0xff]
    %v1627 = vld [vmem:[%s1607 + $0x98] sm:$0xff]
    %v1628 = vld [vmem:[%s1607 + $0xa0] sm:$0xff]
    %v1629 = vld [vmem:[%s1607 + $0xa8] sm:$0xff]
    %v1630 = vld [vmem:[%s1607 + $0xb0] sm:$0xff]
    %v1631 = vld [vmem:[%s1607 + $0xb8] sm:$0xff]
    %v1632 = vld [vmem:[%s1607 + $0xc0] sm:$0xff]
    %v1633 = vld [vmem:[%s1607 + $0xc8] sm:$0xff]
    %v1634 = vld [vmem:[%s1607 + $0xd0] sm:$0xff]
    %v1635 = vld [vmem:[%s1607 + $0xd8] sm:$0xff]
    %v1636 = vld [vmem:[%s1607 + $0xe0] sm:$0xff]
    %v1637 = vld [vmem:[%s1607 + $0xe8] sm:$0xff]
    %v1638 = vld [vmem:[%s1607 + $0xf0] sm:$0xff]
    %v1639 = vld [vmem:[%s1607 + $0xf8] sm:$0xff]
    %1640 = vmatpush.msra.mxu0 %v1623
    %1641 = vmatpush.msra.mxu0 %v1622
    %1642 = vmatpush.msra.mxu0 %v1621
    %1643 = vmatpush.msra.mxu0 %v1620
    %1644 = vmatpush.msra.mxu0 %v1619
    %1645 = vmatpush.msra.mxu0 %v1618
    %1646 = vmatpush.msra.mxu0 %v1617
    %1647 = vmatpush.msra.mxu0 %v1616
    %1648 = vmatpush.msra.mxu0 %v1615
    %1649 = vmatpush.msra.mxu0 %v1614
    %1650 = vmatpush.msra.mxu0 %v1613
    %1651 = vmatpush.msra.mxu0 %v1612
    %1652 = vmatpush.msra.mxu0 %v1611
    %1653 = vmatpush.msra.mxu0 %v1610
    %1654 = vmatpush.msra.mxu0 %v1609
    %1655 = vmatpush.msra.mxu0 %v1608
    %1656 = vmatmul.f32.gmra.mxu0 %v1605
    %v1657 = vpop.f32.mrf.mxu0
    %v1658 = vadd.f32 0.0, %v1657
    %1659 = vdwg.mxu0
    %1660 = vmatpush.msra.mxu0 %v1639
    %1661 = vmatpush.msra.mxu0 %v1638
    %1662 = vmatpush.msra.mxu0 %v1637
    %1663 = vmatpush.msra.mxu0 %v1636
    %1664 = vmatpush.msra.mxu0 %v1635
    %1665 = vmatpush.msra.mxu0 %v1634
    %1666 = vmatpush.msra.mxu0 %v1633
    %1667 = vmatpush.msra.mxu0 %v1632
    %1668 = vmatpush.msra.mxu0 %v1631
    %1669 = vmatpush.msra.mxu0 %v1630
    %1670 = vmatpush.msra.mxu0 %v1629
    %1671 = vmatpush.msra.mxu0 %v1628
    %1672 = vmatpush.msra.mxu0 %v1627
    %1673 = vmatpush.msra.mxu0 %v1626
    %1674 = vmatpush.msra.mxu0 %v1625
    %1675 = vmatpush.msra.mxu0 %v1624
    %1676 = vmatmul.f32.gmra.mxu0 %v1606
    %v1677 = vpop.f32.mrf.mxu0
    %v1678 = vadd.f32 %v1658, %v1677
    %1679 = vdwg.mxu0
    %v1680 = vadd.f32 %v1484, %v1678
    %v1681 = vperm.slane %v1034, 0
    %v1682 = vadd.f32 %v1680, %v1681
    %v1683 = vld [vmem:[%s11] sm:$0x1]
    %v1684 = vld [vmem:[%s11 + $0x1] sm:$0x1]
    %1685 = vadd.xlane.f32.xlu0 %v1682
    %v1686 = vpop.xlane.xlu0 %1685
    %v1687 = vmul.f32 %v1686, %v385
    %v1688 = vsub.f32 %v1682, %v1687
    %v1689 = vmul.f32 %v1688, %v1688
    %1690 = vadd.xlane.f32.xlu0 %v1689
    %v1691 = vpop.xlane.xlu0 %1690
    %v1692 = vmul.f32 %v1691, %v385
    %v1693 = vadd.f32 %v1692, 1e-05
    %v1694 = vrsqrt.pop %v1693
    %v1695 = vmul.f32 %v1694, %v1693
    %v1696 = vmul.f32 %v1695, %v1694
    %v1697 = vmul.f32 0.5, %v1696
    %v1698 = vsub.f32 1.5, %v1697
    %v1699 = vmul.f32 %v1694, %v1698
    %vm1700 = vweird.f32 %v1693
    %vm1701 = vweird.f32 %v1694
    %vm1702 = vmor %vm1700, %vm1701
    %v1703 = vsel %vm1702, %v1694, %v1699
    %v1704 = vmul.f32 %v1688, %v1703
    %v1705 = vperm.slane %v1683, 0
    %v1706 = vmul.f32 %v1704, %v1705
    %v1707 = vperm.slane %v1684, 0
    %v1708 = vadd.f32 %v1706, %v1707
    %v1709 = vld [vmem:[%s13] sm:$0x3]
    %v1710 = vld [vmem:[#allocation9] sm:$0xff]
    %v1711 = vld [vmem:[#allocation9 + $0x8] sm:$0xff]
    %v1712 = vld [vmem:[#allocation9 + $0x10] sm:$0xff]
    %v1713 = vld [vmem:[#allocation9 + $0x18] sm:$0xff]
    %v1714 = vld [vmem:[#allocation9 + $0x20] sm:$0xff]
    %v1715 = vld [vmem:[#allocation9 + $0x28] sm:$0xff]
    %v1716 = vld [vmem:[#allocation9 + $0x30] sm:$0xff]
    %v1717 = vld [vmem:[#allocation9 + $0x38] sm:$0xff]
    %v1718 = vld [vmem:[#allocation9 + $0x40] sm:$0xff]
    %v1719 = vld [vmem:[#allocation9 + $0x48] sm:$0xff]
    %v1720 = vld [vmem:[#allocation9 + $0x50] sm:$0xff]
    %v1721 = vld [vmem:[#allocation9 + $0x58] sm:$0xff]
    %v1722 = vld [vmem:[#allocation9 + $0x60] sm:$0xff]
    %v1723 = vld [vmem:[#allocation9 + $0x68] sm:$0xff]
    %v1724 = vld [vmem:[#allocation9 + $0x70] sm:$0xff]
    %v1725 = vld [vmem:[#allocation9 + $0x78] sm:$0xff]
    %v1726 = vperm.slane %v1709, 0
    %1727 = vmatpush.msra.mxu0 %v1725
    %1728 = vmatpush.msra.mxu0 %v1724
    %1729 = vmatpush.msra.mxu0 %v1723
    %1730 = vmatpush.msra.mxu0 %v1722
    %1731 = vmatpush.msra.mxu0 %v1721
    %1732 = vmatpush.msra.mxu0 %v1720
    %1733 = vmatpush.msra.mxu0 %v1719
    %1734 = vmatpush.msra.mxu0 %v1718
    %1735 = vmatpush.msra.mxu0 %v1717
    %1736 = vmatpush.msra.mxu0 %v1716
    %1737 = vmatpush.msra.mxu0 %v1715
    %1738 = vmatpush.msra.mxu0 %v1714
    %1739 = vmatpush.msra.mxu0 %v1713
    %1740 = vmatpush.msra.mxu0 %v1712
    %1741 = vmatpush.msra.mxu0 %v1711
    %1742 = vmatpush.msra.mxu0 %v1710
    %1743 = vmatmul.f32.gmra.mxu0 %v1708
    %v1744 = vpop.f32.mrf.mxu0
    %v1745 = vadd.f32 %v1726, %v1744
    %1746 = vdwg.mxu0
    %1747 = vst [vmem:[%s14] sm:$0xff] %v1745
    %s1748 = scalar_lea.vmem [#allocation9], 128
    %v1749 = vld [vmem:[%s1748] sm:$0xff]
    %v1750 = vld [vmem:[%s1748 + $0x8] sm:$0xff]
    %v1751 = vld [vmem:[%s1748 + $0x10] sm:$0xff]
    %v1752 = vld [vmem:[%s1748 + $0x18] sm:$0xff]
    %v1753 = vld [vmem:[%s1748 + $0x20] sm:$0xff]
    %v1754 = vld [vmem:[%s1748 + $0x28] sm:$0xff]
    %v1755 = vld [vmem:[%s1748 + $0x30] sm:$0xff]
    %v1756 = vld [vmem:[%s1748 + $0x38] sm:$0xff]
    %v1757 = vld [vmem:[%s1748 + $0x40] sm:$0xff]
    %v1758 = vld [vmem:[%s1748 + $0x48] sm:$0xff]
    %v1759 = vld [vmem:[%s1748 + $0x50] sm:$0xff]
    %v1760 = vld [vmem:[%s1748 + $0x58] sm:$0xff]
    %v1761 = vld [vmem:[%s1748 + $0x60] sm:$0xff]
    %v1762 = vld [vmem:[%s1748 + $0x68] sm:$0xff]
    %v1763 = vld [vmem:[%s1748 + $0x70] sm:$0xff]
    %v1764 = vld [vmem:[%s1748 + $0x78] sm:$0xff]
    %v1765 = vperm.slane %v1709, 1
    %1766 = vmatpush.msra.mxu0 %v1764
    %1767 = vmatpush.msra.mxu0 %v1763
    %1768 = vmatpush.msra.mxu0 %v1762
    %1769 = vmatpush.msra.mxu0 %v1761
    %1770 = vmatpush.msra.mxu0 %v1760
    %1771 = vmatpush.msra.mxu0 %v1759
    %1772 = vmatpush.msra.mxu0 %v1758
    %1773 = vmatpush.msra.mxu0 %v1757
    %1774 = vmatpush.msra.mxu0 %v1756
    %1775 = vmatpush.msra.mxu0 %v1755
    %1776 = vmatpush.msra.mxu0 %v1754
    %1777 = vmatpush.msra.mxu0 %v1753
    %1778 = vmatpush.msra.mxu0 %v1752
    %1779 = vmatpush.msra.mxu0 %v1751
    %1780 = vmatpush.msra.mxu0 %v1750
    %1781 = vmatpush.msra.mxu0 %v1749
    %1782 = vmatmul.f32.gmra.mxu0 %v1708
    %v1783 = vpop.f32.mrf.mxu0
    %v1784 = vadd.f32 %v1765, %v1783
    %1785 = vdwg.mxu0
    %1786 = vst [vmem:[%s15] sm:$0xff] %v1784
    %s1787 = scalar_lea.vmem %s13, 2
    %v1788 = vld [vmem:[%s1787] sm:$0x3]
    %s1789 = scalar_lea.vmem [#allocation9], 256
    %v1790 = vld [vmem:[%s1789] sm:$0xff]
    %v1791 = vld [vmem:[%s1789 + $0x8] sm:$0xff]
    %v1792 = vld [vmem:[%s1789 + $0x10] sm:$0xff]
    %v1793 = vld [vmem:[%s1789 + $0x18] sm:$0xff]
    %v1794 = vld [vmem:[%s1789 + $0x20] sm:$0xff]
    %v1795 = vld [vmem:[%s1789 + $0x28] sm:$0xff]
    %v1796 = vld [vmem:[%s1789 + $0x30] sm:$0xff]
    %v1797 = vld [vmem:[%s1789 + $0x38] sm:$0xff]
    %v1798 = vld [vmem:[%s1789 + $0x40] sm:$0xff]
    %v1799 = vld [vmem:[%s1789 + $0x48] sm:$0xff]
    %v1800 = vld [vmem:[%s1789 + $0x50] sm:$0xff]
    %v1801 = vld [vmem:[%s1789 + $0x58] sm:$0xff]
    %v1802 = vld [vmem:[%s1789 + $0x60] sm:$0xff]
    %v1803 = vld [vmem:[%s1789 + $0x68] sm:$0xff]
    %v1804 = vld [vmem:[%s1789 + $0x70] sm:$0xff]
    %v1805 = vld [vmem:[%s1789 + $0x78] sm:$0xff]
    %v1806 = vperm.slane %v1788, 0
    %1807 = vmatpush.msra.mxu0 %v1805
    %1808 = vmatpush.msra.mxu0 %v1804
    %1809 = vmatpush.msra.mxu0 %v1803
    %1810 = vmatpush.msra.mxu0 %v1802
    %1811 = vmatpush.msra.mxu0 %v1801
    %1812 = vmatpush.msra.mxu0 %v1800
    %1813 = vmatpush.msra.mxu0 %v1799
    %1814 = vmatpush.msra.mxu0 %v1798
    %1815 = vmatpush.msra.mxu0 %v1797
    %1816 = vmatpush.msra.mxu0 %v1796
    %1817 = vmatpush.msra.mxu0 %v1795
    %1818 = vmatpush.msra.mxu0 %v1794
    %1819 = vmatpush.msra.mxu0 %v1793
    %1820 = vmatpush.msra.mxu0 %v1792
    %1821 = vmatpush.msra.mxu0 %v1791
    %1822 = vmatpush.msra.mxu0 %v1790
    %1823 = vmatmul.f32.gmra.mxu0 %v1708
    %v1824 = vpop.f32.mrf.mxu0
    %v1825 = vadd.f32 %v1806, %v1824
    %1826 = vdwg.mxu0
    %s1827 = scalar_lea.vmem %s14, 8
    %1828 = vst [vmem:[%s1827] sm:$0xff] %v1825
    %s1829 = scalar_lea.vmem [#allocation9], 384
    %v1830 = vld [vmem:[%s1829] sm:$0xff]
    %v1831 = vld [vmem:[%s1829 + $0x8] sm:$0xff]
    %v1832 = vld [vmem:[%s1829 + $0x10] sm:$0xff]
    %v1833 = vld [vmem:[%s1829 + $0x18] sm:$0xff]
    %v1834 = vld [vmem:[%s1829 + $0x20] sm:$0xff]
    %v1835 = vld [vmem:[%s1829 + $0x28] sm:$0xff]
    %v1836 = vld [vmem:[%s1829 + $0x30] sm:$0xff]
    %v1837 = vld [vmem:[%s1829 + $0x38] sm:$0xff]
    %v1838 = vld [vmem:[%s1829 + $0x40] sm:$0xff]
    %v1839 = vld [vmem:[%s1829 + $0x48] sm:$0xff]
    %v1840 = vld [vmem:[%s1829 + $0x50] sm:$0xff]
    %v1841 = vld [vmem:[%s1829 + $0x58] sm:$0xff]
    %v1842 = vld [vmem:[%s1829 + $0x60] sm:$0xff]
    %v1843 = vld [vmem:[%s1829 + $0x68] sm:$0xff]
    %v1844 = vld [vmem:[%s1829 + $0x70] sm:$0xff]
    %v1845 = vld [vmem:[%s1829 + $0x78] sm:$0xff]
    %v1846 = vperm.slane %v1788, 1
    %1847 = vmatpush.msra.mxu0 %v1845
    %1848 = vmatpush.msra.mxu0 %v1844
    %1849 = vmatpush.msra.mxu0 %v1843
    %1850 = vmatpush.msra.mxu0 %v1842
    %1851 = vmatpush.msra.mxu0 %v1841
    %1852 = vmatpush.msra.mxu0 %v1840
    %1853 = vmatpush.msra.mxu0 %v1839
    %1854 = vmatpush.msra.mxu0 %v1838
    %1855 = vmatpush.msra.mxu0 %v1837
    %1856 = vmatpush.msra.mxu0 %v1836
    %1857 = vmatpush.msra.mxu0 %v1835
    %1858 = vmatpush.msra.mxu0 %v1834
    %1859 = vmatpush.msra.mxu0 %v1833
    %1860 = vmatpush.msra.mxu0 %v1832
    %1861 = vmatpush.msra.mxu0 %v1831
    %1862 = vmatpush.msra.mxu0 %v1830
    %1863 = vmatmul.f32.gmra.mxu0 %v1708
    %v1864 = vpop.f32.mrf.mxu0
    %v1865 = vadd.f32 %v1846, %v1864
    %1866 = vdwg.mxu0
    %s1867 = scalar_lea.vmem %s15, 8
    %1868 = vst [vmem:[%s1867] sm:$0xff] %v1865
    // Predicated region
    $region78: #{whisper_wrapper_forward.1} parent=1 // pred_check
      _
    $region79: #{whisper_wrapper_forward.1} parent=1 // pred_check_branch
      %1870 = sbr.rel (0) target = $region81
    $region80: #{whisper_wrapper_forward.1} parent=1 // pred_region
      _
    $region81: #{whisper_wrapper_forward.1} parent=1 // pred_fallthru
      _
    // Predicated region
    $region82: #{whisper_wrapper_forward.1} parent=1 // pred_check
      _
    $region83: #{whisper_wrapper_forward.1} parent=1 // pred_check_branch
      %1872 = sbr.rel (0) target = $region85
    $region84: #{whisper_wrapper_forward.1} parent=1 // pred_region
      _
    $region85: #{whisper_wrapper_forward.1} parent=1 // pred_fallthru
      _
    // Predicated region
    $region86: #{whisper_wrapper_forward.1} parent=1 // pred_check
      _
    $region87: #{whisper_wrapper_forward.1} parent=1 // pred_check_branch
      %1874 = sbr.rel (0) target = $region89
    $region88: #{whisper_wrapper_forward.1} parent=1 // pred_region
      _
    $region89: #{whisper_wrapper_forward.1} parent=1 // pred_fallthru
      _
    // Predicated region
    $region90: #{whisper_wrapper_forward.1} parent=1 // pred_check
      _
    $region91: #{whisper_wrapper_forward.1} parent=1 // pred_check_branch
      %1876 = sbr.rel (0) target = $region93
    $region92: #{whisper_wrapper_forward.1} parent=1 // pred_region
      _
    $region93: #{whisper_wrapper_forward.1} parent=1 // pred_fallthru
      _
    %1877 = vsyncpa [#allocation3], 1
    %1878 = vsyncpa [#allocation5], 1
    %1879 = vsyncpa [#allocation8], 1

// kernel: closed_call.19
$region0: #{closed_call.19}
  #allocation0 [shape = 'u32[]', space=smem, size = 0x4, offset = 0x4, fixed_abs, tag = 'smem constant byte address 0x4 - core index']
  #allocation1 [shape = 'u32[72,128]{1,0:T(1,128)}', space=vmem, size = 0x9000, scoped, tag = 'internal scratch']
  %s0 = inlined_call_operand.vmem [shape: s32[2], index: 0, kind: input, shape index: {}]
  %s1 = inlined_call_operand.hbm [shape: f32[128,128], index: 1, kind: input, shape index: {}]
  %s2 = inlined_call_operand.vmem [shape: f32[8,128], index: 2, kind: input, shape index: {}]
  %s3 = inlined_call_operand.hbm [shape: f32[12,128,128], index: 3, kind: input, shape index: {}]
  %s4 = inlined_call_operand.vmem [shape: f32[2,13,128], index: 4, kind: input, shape index: {}]
  %s5 = inlined_call_operand.hbm [shape: f32[2,128,256], index: 5, kind: input, shape index: {}]
  %s6 = inlined_call_operand.vmem [shape: f32[2,1,256], index: 6, kind: input, shape index: {}]
  %s7 = inlined_call_operand.hbm [shape: f32[2,256,128], index: 7, kind: input, shape index: {}]
  %s8 = inlined_call_operand.vmem [shape: f32[2,8,128], index: 8, kind: input, shape index: {}]
  %s9 = inlined_call_operand.vmem [shape: f32[2,8,128], index: 9, kind: input, shape index: {}]
  %s10 = inlined_call_operand.vmem [shape: f32[2,8,128], index: 10, kind: input, shape index: {}]
  %s11 = inlined_call_operand.vmem [shape: f32[2,8,128], index: 11, kind: input, shape index: {}]
  %s12 = inlined_call_operand.vmem [shape: f32[2,128], index: 12, kind: input, shape index: {}]
  %s13 = inlined_call_operand.vmem [shape: f32[3,128], index: 13, kind: output, shape index: {0}]
  %s14 = inlined_call_operand.vmem [shape: f32[1,128], index: 14, kind: output, shape index: {1}]
  %s15 = inlined_call_operand.vmem [shape: f32[2,8,128], index: 15, kind: output, shape index: {2}]
  %s16 = inlined_call_operand.vmem [shape: f32[2,8,128], index: 16, kind: output, shape index: {3}]
  %17 = xla_tuple %s13, %s14, %s15, %s16
  %s18 = sld [smem:[#allocation0]]
  $region106: #{closed_call.19} parent=0
    _
  %s20 = ssub.s32 1, %s18
  %s21 = scalar_select 0, %s20, %s18
  $region1: #{closed_call.19} parent=0
    #allocation2 [shape = 'u8[512]{0}', space=smem, size = 0x200, scoped, tag = 'input window, operand 0, single buffered']
    #allocation3 [shape = 's32[1]{0}', space=sflag, size = 0x4, scoped, tag = 'scoped memory for closed_call.19']
    #allocation4 [shape = 's32[1]{0}', space=sflag, size = 0x4, scoped, tag = 'scoped memory for closed_call.19']
    #allocation5 [shape = 'u8[65536]{0}', space=vmem, size = 0x10000, scoped, tag = 'input window, operand 1, single buffered']
    #allocation6 [shape = 'u8[786432]{0}', space=vmem, size = 0xc0000, scoped, tag = 'input window, operand 3, single buffered']
    #allocation7 [shape = 's32[1]{0}', space=sflag, size = 0x4, scoped, tag = 'scoped memory for closed_call.19']
    #allocation8 [shape = 'u8[262144]{0}', space=vmem, size = 0x40000, scoped, tag = 'input window, operand 5, single buffered']
    #allocation9 [shape = 'u8[262144]{0}', space=vmem, size = 0x40000, scoped, tag = 'input window, operand 7, single buffered']
    #allocation10 [shape = 's32[1]{0}', space=sflag, size = 0x4, scoped, tag = 'scoped memory for closed_call.19']
    %22 = vsyncpa [#allocation4], 0
    %23 = vsyncpa [#allocation3], 0
    %24 = vsyncpa [#allocation7], 0
    %25 = vsyncpa [#allocation10], 0
    // Predicated region
    $region2: #{closed_call.19} parent=1 // pred_check
      _
    $region3: #{closed_call.19} parent=1 // pred_check_branch
      %27 = sbr.rel (0) target = $region5
    $region4: #{closed_call.19} parent=1 // pred_region
      %29 = vsyncadd [#allocation4], 0
      %s31 = sshll.u32 %s0, 4
      %s32 = int_to_ptr.vmem [resolvable:$true] %s31
      %34 = dma.vmem_to_smem %s32, 16, [#allocation2], [#allocation4]
    $region5: #{closed_call.19} parent=1 // pred_fallthru
      _
    // Predicated region
    $region6: #{closed_call.19} parent=1 // pred_check
      _
    $region7: #{closed_call.19} parent=1 // pred_check_branch
      %36 = sbr.rel (0) target = $region9
    $region8: #{closed_call.19} parent=1 // pred_region
      %38 = vsyncadd [#allocation3], 0
      %s39 = sshll.u32 %s1, 4
      %s40 = int_to_ptr.hbm [resolvable:$true] %s39
      %s41 = sshll.u32 [#allocation5], 4
      %s42 = int_to_ptr.vmem [resolvable:$true] %s41
      %47 = dma.hbm_to_vmem [thread:$0]  %s40, 2048, %s42, [#allocation3], 128, 128, 8
    $region9: #{closed_call.19} parent=1 // pred_fallthru
      _
    // Predicated region
    $region10: #{closed_call.19} parent=1 // pred_check
      _
    $region11: #{closed_call.19} parent=1 // pred_check_branch
      %49 = sbr.rel (0) target = $region13
    $region12: #{closed_call.19} parent=1 // pred_region
      _
    $region13: #{closed_call.19} parent=1 // pred_fallthru
      _
    // Predicated region
    $region14: #{closed_call.19} parent=1 // pred_check
      _
    $region15: #{closed_call.19} parent=1 // pred_check_branch
      %51 = sbr.rel (0) target = $region17
    $region16: #{closed_call.19} parent=1 // pred_region
      %53 = vsyncadd [#allocation7], 0
      %s54 = sshll.u32 %s3, 4
      %s55 = int_to_ptr.hbm [resolvable:$true] %s54
      %s56 = sshll.u32 [#allocation6], 4
      %s57 = int_to_ptr.vmem [resolvable:$true] %s56
      %62 = dma.hbm_to_vmem [thread:$0]  %s55, 24576, %s57, [#allocation7], 128, 128, 8
    $region17: #{closed_call.19} parent=1 // pred_fallthru
      _
    // Predicated region
    $region18: #{closed_call.19} parent=1 // pred_check
      _
    $region19: #{closed_call.19} parent=1 // pred_check_branch
      %64 = sbr.rel (0) target = $region21
    $region20: #{closed_call.19} parent=1 // pred_region
      _
    $region21: #{closed_call.19} parent=1 // pred_fallthru
      _
    // Predicated region
    $region22: #{closed_call.19} parent=1 // pred_check
      _
    $region23: #{closed_call.19} parent=1 // pred_check_branch
      %66 = sbr.rel (0) target = $region25
    $region24: #{closed_call.19} parent=1 // pred_region
      %68 = vsyncadd [#allocation7], 0
      %s69 = sshll.u32 %s5, 4
      %s70 = int_to_ptr.hbm [resolvable:$true] %s69
      %s71 = sshll.u32 [#allocation8], 4
      %s72 = int_to_ptr.vmem [resolvable:$true] %s71
      %77 = dma.hbm_to_vmem [thread:$0]  %s70, 8192, %s72, [#allocation7], 256, 256, 16
    $region25: #{closed_call.19} parent=1 // pred_fallthru
      _
    // Predicated region
    $region26: #{closed_call.19} parent=1 // pred_check
      _
    $region27: #{closed_call.19} parent=1 // pred_check_branch
      %79 = sbr.rel (0) target = $region29
    $region28: #{closed_call.19} parent=1 // pred_region
      _
    $region29: #{closed_call.19} parent=1 // pred_fallthru
      _
    // Predicated region
    $region30: #{closed_call.19} parent=1 // pred_check
      _
    $region31: #{closed_call.19} parent=1 // pred_check_branch
      %81 = sbr.rel (0) target = $region33
    $region32: #{closed_call.19} parent=1 // pred_region
      %83 = vsyncadd [#allocation10], 0
      %s84 = sshll.u32 %s7, 4
      %s85 = int_to_ptr.hbm [resolvable:$true] %s84
      %s86 = sshll.u32 [#allocation9], 4
      %s87 = int_to_ptr.vmem [resolvable:$true] %s86
      %92 = dma.hbm_to_vmem [thread:$0]  %s85, 8192, %s87, [#allocation10], 128, 128, 8
    $region33: #{closed_call.19} parent=1 // pred_fallthru
      _
    // Predicated region
    $region34: #{closed_call.19} parent=1 // pred_check
      _
    $region35: #{closed_call.19} parent=1 // pred_check_branch
      %94 = sbr.rel (0) target = $region37
    $region36: #{closed_call.19} parent=1 // pred_region
      _
    $region37: #{closed_call.19} parent=1 // pred_fallthru
      _
    // Predicated region
    $region38: #{closed_call.19} parent=1 // pred_check
      _
    $region39: #{closed_call.19} parent=1 // pred_check_branch
      %96 = sbr.rel (0) target = $region41
    $region40: #{closed_call.19} parent=1 // pred_region
      _
    $region41: #{closed_call.19} parent=1 // pred_fallthru
      _
    // Predicated region
    $region42: #{closed_call.19} parent=1 // pred_check
      _
    $region43: #{closed_call.19} parent=1 // pred_check_branch
      %98 = sbr.rel (0) target = $region45
    $region44: #{closed_call.19} parent=1 // pred_region
      _
    $region45: #{closed_call.19} parent=1 // pred_fallthru
      _
    // Predicated region
    $region46: #{closed_call.19} parent=1 // pred_check
      _
    $region47: #{closed_call.19} parent=1 // pred_check_branch
      %100 = sbr.rel (0) target = $region49
    $region48: #{closed_call.19} parent=1 // pred_region
      _
    $region49: #{closed_call.19} parent=1 // pred_fallthru
      _
    // Predicated region
    $region50: #{closed_call.19} parent=1 // pred_check
      _
    $region51: #{closed_call.19} parent=1 // pred_check_branch
      %102 = sbr.rel (0) target = $region53
    $region52: #{closed_call.19} parent=1 // pred_region
      _
    $region53: #{closed_call.19} parent=1 // pred_fallthru
      _
    // Predicated region
    $region54: #{closed_call.19} parent=1 // pred_check
      _
    $region55: #{closed_call.19} parent=1 // pred_check_branch
      %104 = sbr.rel (0) target = $region57
    $region56: #{closed_call.19} parent=1 // pred_region
      %106 = dma.done [#allocation4], 16
    $region57: #{closed_call.19} parent=1 // pred_fallthru
      _
    // Predicated region
    $region58: #{closed_call.19} parent=1 // pred_check
      _
    $region59: #{closed_call.19} parent=1 // pred_check_branch
      %108 = sbr.rel (0) target = $region61
    $region60: #{closed_call.19} parent=1 // pred_region
      %110 = dma.done [#allocation3], 2048
    $region61: #{closed_call.19} parent=1 // pred_fallthru
      _
    // Predicated region
    $region62: #{closed_call.19} parent=1 // pred_check
      _
    $region63: #{closed_call.19} parent=1 // pred_check_branch
      %112 = sbr.rel (0) target = $region65
    $region64: #{closed_call.19} parent=1 // pred_region
      %114 = dma.done [#allocation7], 24576
    $region65: #{closed_call.19} parent=1 // pred_fallthru
      _
    // Predicated region
    $region66: #{closed_call.19} parent=1 // pred_check
      _
    $region67: #{closed_call.19} parent=1 // pred_check_branch
      %116 = sbr.rel (0) target = $region69
    $region68: #{closed_call.19} parent=1 // pred_region
      %118 = dma.done [#allocation7], 8192
    $region69: #{closed_call.19} parent=1 // pred_fallthru
      _
    // Predicated region
    $region70: #{closed_call.19} parent=1 // pred_check
      _
    $region71: #{closed_call.19} parent=1 // pred_check_branch
      %120 = sbr.rel (0) target = $region73
    $region72: #{closed_call.19} parent=1 // pred_region
      %122 = dma.done [#allocation10], 8192
    $region73: #{closed_call.19} parent=1 // pred_fallthru
      _
    %123 = sfence
    %s124 = sld [smem:[#allocation2]]
    %s125 = sld [smem:[#allocation2 + $0x1]]
    %v126 = vlaneseq
    %v127 = vand.u32 %v126, 127
    %v128 = vstv %s124
    %vm129 = vcmp.eq.s32.totalorder %v127, %v128
    %v130 = vsel %vm129, 1, 0
    %v131 = vcvt.s32.f32 %v130
    %v132 = vstv %s125
    %vm133 = vcmp.eq.s32.totalorder %v127, %v132
    %v134 = vsel %vm133, 1, 0
    %v135 = vcvt.s32.f32 %v134
    %v136 = vld [vmem:[#allocation5] sm:$0xff]
    %v137 = vld [vmem:[#allocation5 + $0x8] sm:$0xff]
    %v138 = vld [vmem:[#allocation5 + $0x10] sm:$0xff]
    %v139 = vld [vmem:[#allocation5 + $0x18] sm:$0xff]
    %v140 = vld [vmem:[#allocation5 + $0x20] sm:$0xff]
    %v141 = vld [vmem:[#allocation5 + $0x28] sm:$0xff]
    %v142 = vld [vmem:[#allocation5 + $0x30] sm:$0xff]
    %v143 = vld [vmem:[#allocation5 + $0x38] sm:$0xff]
    %v144 = vld [vmem:[#allocation5 + $0x40] sm:$0xff]
    %v145 = vld [vmem:[#allocation5 + $0x48] sm:$0xff]
    %v146 = vld [vmem:[#allocation5 + $0x50] sm:$0xff]
    %v147 = vld [vmem:[#allocation5 + $0x58] sm:$0xff]
    %v148 = vld [vmem:[#allocation5 + $0x60] sm:$0xff]
    %v149 = vld [vmem:[#allocation5 + $0x68] sm:$0xff]
    %v150 = vld [vmem:[#allocation5 + $0x70] sm:$0xff]
    %v151 = vld [vmem:[#allocation5 + $0x78] sm:$0xff]
    %v152 = vld [vmem:[%s2] sm:$0xff]
    %vm153 = vcmask 64512
    %v155 = vsel %vm153, %v135, 0
    %157 = vmatpush.msra.mxu0 0.0
    %158 = vmatpush.msra.mxu0 0.0
    %159 = vmatpush.msra.mxu0 0.0
    %160 = vmatpush.msra.mxu0 0.0
    %161 = vmatpush.msra.mxu0 0.0
    %162 = vmatpush.msra.mxu0 0.0
    %163 = vmatpush.msra.mxu0 0.0
    %164 = vmatpush.msra.mxu0 0.0
    %165 = vmatpush.msra.mxu0 0.0
    %166 = vmatpush.msra.mxu0 0.0
    %167 = vmatpush.msra.mxu0 0.0
    %168 = vmatpush.msra.mxu0 0.0
    %169 = vmatpush.msra.mxu0 0.0
    %170 = vmatpush.msra.mxu0 0.0
    %171 = vmatpush.msra.mxu0 0.0
    %172 = vmatpush.msra.mxu0 %v152
    %173 = vmatmul.f32.gmra.mxu0 %v155
    %v174 = vpop.f32.mrf.mxu0
    %v175 = vadd.f32 0.0, %v174
    %176 = vdwg.mxu0
    %177 = vmatpush.msra.mxu0 %v151
    %178 = vmatpush.msra.mxu0 %v150
    %179 = vmatpush.msra.mxu0 %v149
    %180 = vmatpush.msra.mxu0 %v148
    %181 = vmatpush.msra.mxu0 %v147
    %182 = vmatpush.msra.mxu0 %v146
    %183 = vmatpush.msra.mxu0 %v145
    %184 = vmatpush.msra.mxu0 %v144
    %185 = vmatpush.msra.mxu0 %v143
    %186 = vmatpush.msra.mxu0 %v142
    %187 = vmatpush.msra.mxu0 %v141
    %188 = vmatpush.msra.mxu0 %v140
    %189 = vmatpush.msra.mxu0 %v139
    %190 = vmatpush.msra.mxu0 %v138
    %191 = vmatpush.msra.mxu0 %v137
    %192 = vmatpush.msra.mxu0 %v136
    %193 = vmatmul.f32.gmra.mxu0 %v131
    %v194 = vpop.f32.mrf.mxu0
    %v195 = vadd.f32 %v175, %v194
    %196 = vdwg.mxu0
    %197 = vst [vmem:[%s13] sm:$0x1] %v195
    %vm198 = vcmp.le.s32.totalorder %v127, %v132
    %v199 = vsel %vm198, 0.0, -1e+30
    %v200 = vlaneseq
    %v201 = vshrl.u32 %v200, 7
    %v202 = vld [vmem:[%s4] sm:$0xff]
    %v203 = vld [vmem:[%s4 + $0x8] sm:$0x1f]
    %vm204 = vcmask 1040384
    %v205 = vsel %vm204, %v195, 0.0
    %206 = vadd.xlane.f32.xlu0 %v205
    %v207 = vpop.xlane.xlu0 %206
    %v208 = vrcp.pop 128.0
    %v209 = vmul.f32 128.0, %v208
    %v210 = vsub.f32 1.0, %v209
    %v211 = vmul.f32 %v208, %v210
    %v212 = vadd.f32 %v208, %v211
    %vm213 = vweird.f32 %v208
    %v214 = vsel %vm213, %v208, %v212
    %v215 = vmul.f32 %v207, %v214
    %v216 = vsub.f32 %v195, %v215
    %v217 = vmul.f32 %v216, %v216
    %v218 = vsel %vm204, %v217, 0.0
    %219 = vadd.xlane.f32.xlu0 %v218
    %v220 = vpop.xlane.xlu0 %219
    %v221 = vmul.f32 %v220, %v214
    %v222 = vadd.f32 %v221, 1e-05
    %v223 = vrsqrt.pop %v222
    %v224 = vmul.f32 %v223, %v222
    %v225 = vmul.f32 %v224, %v223
    %v226 = vmul.f32 0.5, %v225
    %v227 = vsub.f32 1.5, %v226
    %v228 = vmul.f32 %v223, %v227
    %vm229 = vweird.f32 %v222
    %vm230 = vweird.f32 %v223
    %vm231 = vmor %vm229, %vm230
    %v232 = vsel %vm231, %v223, %v228
    %v233 = vmul.f32 %v216, %v232
    %v235 = vrot.slane %v202, 6
    %v237 = vmul.f32 %v233, %v235
    %v238 = vrot.slane %v202, 7
    %v240 = vadd.f32 %v237, %v238
    %v241 = vld [vmem:[#allocation6] sm:$0xff]
    %v242 = vld [vmem:[#allocation6 + $0x8] sm:$0xff]
    %v243 = vld [vmem:[#allocation6 + $0x10] sm:$0xff]
    %v244 = vld [vmem:[#allocation6 + $0x18] sm:$0xff]
    %v245 = vld [vmem:[#allocation6 + $0x20] sm:$0xff]
    %v246 = vld [vmem:[#allocation6 + $0x28] sm:$0xff]
    %v247 = vld [vmem:[#allocation6 + $0x30] sm:$0xff]
    %v248 = vld [vmem:[#allocation6 + $0x38] sm:$0xff]
    %v249 = vld [vmem:[#allocation6 + $0x40] sm:$0xff]
    %v250 = vld [vmem:[#allocation6 + $0x48] sm:$0xff]
    %v251 = vld [vmem:[#allocation6 + $0x50] sm:$0xff]
    %v252 = vld [vmem:[#allocation6 + $0x58] sm:$0xff]
    %v253 = vld [vmem:[#allocation6 + $0x60] sm:$0xff]
    %v254 = vld [vmem:[#allocation6 + $0x68] sm:$0xff]
    %v255 = vld [vmem:[#allocation6 + $0x70] sm:$0xff]
    %v256 = vld [vmem:[#allocation6 + $0x78] sm:$0xff]
    %257 = vmatpush.msra.mxu0 %v256
    %258 = vmatpush.msra.mxu0 %v255
    %259 = vmatpush.msra.mxu0 %v254
    %260 = vmatpush.msra.mxu0 %v253
    %261 = vmatpush.msra.mxu0 %v252
    %262 = vmatpush.msra.mxu0 %v251
    %263 = vmatpush.msra.mxu0 %v250
    %264 = vmatpush.msra.mxu0 %v249
    %265 = vmatpush.msra.mxu0 %v248
    %266 = vmatpush.msra.mxu0 %v247
    %267 = vmatpush.msra.mxu0 %v246
    %268 = vmatpush.msra.mxu0 %v245
    %269 = vmatpush.msra.mxu0 %v244
    %270 = vmatpush.msra.mxu0 %v243
    %271 = vmatpush.msra.mxu0 %v242
    %272 = vmatpush.msra.mxu0 %v241
    %273 = vmatmul.f32.gmra.mxu0 %v240
    %v274 = vpop.f32.mrf.mxu0
    %v275 = vadd.f32 %v202, %v274
    %276 = vdwg.mxu0
    %s277 = scalar_lea.vmem [#allocation6], 128
    %v278 = vld [vmem:[%s277] sm:$0xff]
    %v279 = vld [vmem:[%s277 + $0x8] sm:$0xff]
    %v280 = vld [vmem:[%s277 + $0x10] sm:$0xff]
    %v281 = vld [vmem:[%s277 + $0x18] sm:$0xff]
    %v282 = vld [vmem:[%s277 + $0x20] sm:$0xff]
    %v283 = vld [vmem:[%s277 + $0x28] sm:$0xff]
    %v284 = vld [vmem:[%s277 + $0x30] sm:$0xff]
    %v285 = vld [vmem:[%s277 + $0x38] sm:$0xff]
    %v286 = vld [vmem:[%s277 + $0x40] sm:$0xff]
    %v287 = vld [vmem:[%s277 + $0x48] sm:$0xff]
    %v288 = vld [vmem:[%s277 + $0x50] sm:$0xff]
    %v289 = vld [vmem:[%s277 + $0x58] sm:$0xff]
    %v290 = vld [vmem:[%s277 + $0x60] sm:$0xff]
    %v291 = vld [vmem:[%s277 + $0x68] sm:$0xff]
    %v292 = vld [vmem:[%s277 + $0x70] sm:$0xff]
    %v293 = vld [vmem:[%s277 + $0x78] sm:$0xff]
    %v294 = vrot.slane %v202, 1
    %296 = vmatpush.msra.mxu0 %v293
    %297 = vmatpush.msra.mxu0 %v292
    %298 = vmatpush.msra.mxu0 %v291
    %299 = vmatpush.msra.mxu0 %v290
    %300 = vmatpush.msra.mxu0 %v289
    %301 = vmatpush.msra.mxu0 %v288
    %302 = vmatpush.msra.mxu0 %v287
    %303 = vmatpush.msra.mxu0 %v286
    %304 = vmatpush.msra.mxu0 %v285
    %305 = vmatpush.msra.mxu0 %v284
    %306 = vmatpush.msra.mxu0 %v283
    %307 = vmatpush.msra.mxu0 %v282
    %308 = vmatpush.msra.mxu0 %v281
    %309 = vmatpush.msra.mxu0 %v280
    %310 = vmatpush.msra.mxu0 %v279
    %311 = vmatpush.msra.mxu0 %v278
    %312 = vmatmul.f32.gmra.mxu0 %v240
    %v313 = vpop.f32.mrf.mxu0
    %v314 = vadd.f32 %v294, %v313
    %315 = vdwg.mxu0
    %s316 = scalar_lea.vmem [#allocation6], 256
    %v317 = vld [vmem:[%s316] sm:$0xff]
    %v318 = vld [vmem:[%s316 + $0x8] sm:$0xff]
    %v319 = vld [vmem:[%s316 + $0x10] sm:$0xff]
    %v320 = vld [vmem:[%s316 + $0x18] sm:$0xff]
    %v321 = vld [vmem:[%s316 + $0x20] sm:$0xff]
    %v322 = vld [vmem:[%s316 + $0x28] sm:$0xff]
    %v323 = vld [vmem:[%s316 + $0x30] sm:$0xff]
    %v324 = vld [vmem:[%s316 + $0x38] sm:$0xff]
    %v325 = vld [vmem:[%s316 + $0x40] sm:$0xff]
    %v326 = vld [vmem:[%s316 + $0x48] sm:$0xff]
    %v327 = vld [vmem:[%s316 + $0x50] sm:$0xff]
    %v328 = vld [vmem:[%s316 + $0x58] sm:$0xff]
    %v329 = vld [vmem:[%s316 + $0x60] sm:$0xff]
    %v330 = vld [vmem:[%s316 + $0x68] sm:$0xff]
    %v331 = vld [vmem:[%s316 + $0x70] sm:$0xff]
    %v332 = vld [vmem:[%s316 + $0x78] sm:$0xff]
    %v333 = vrot.slane %v202, 2
    %335 = vmatpush.msra.mxu0 %v332
    %336 = vmatpush.msra.mxu0 %v331
    %337 = vmatpush.msra.mxu0 %v330
    %338 = vmatpush.msra.mxu0 %v329
    %339 = vmatpush.msra.mxu0 %v328
    %340 = vmatpush.msra.mxu0 %v327
    %341 = vmatpush.msra.mxu0 %v326
    %342 = vmatpush.msra.mxu0 %v325
    %343 = vmatpush.msra.mxu0 %v324
    %344 = vmatpush.msra.mxu0 %v323
    %345 = vmatpush.msra.mxu0 %v322
    %346 = vmatpush.msra.mxu0 %v321
    %347 = vmatpush.msra.mxu0 %v320
    %348 = vmatpush.msra.mxu0 %v319
    %349 = vmatpush.msra.mxu0 %v318
    %350 = vmatpush.msra.mxu0 %v317
    %351 = vmatmul.f32.gmra.mxu0 %v240
    %v352 = vpop.f32.mrf.mxu0
    %v353 = vadd.f32 %v333, %v352
    %354 = vdwg.mxu0
    %vm355 = vcmp.eq.s32.totalorder %v201, %v132
    %v356 = vld [vmem:[%s10] sm:$0xff]
    %v357 = vperm.slane %v314, 0
    %v358 = vsel %vm355, %v357, %v356
    %v359 = vld [vmem:[%s11] sm:$0xff]
    %v360 = vperm.slane %v353, 0
    %v361 = vsel %vm355, %v360, %v359
    %362 = vst [vmem:[%s15] sm:$0xff] %v358
    %363 = vst [vmem:[%s16] sm:$0xff] %v361
    %v364 = vmul.f32 %v275, 0.17677669
    %vm365 = vcmask 261120
    %v367 = vsel %vm365, %v364, 0
    %v370 = vsel %vm365, %v358, 0
    %372 = vmatpush.xpose.msra.mxu0 0.0
    %373 = vmatpush.xpose.msra.mxu0 0.0
    %374 = vmatpush.xpose.msra.mxu0 0.0
    %375 = vmatpush.xpose.msra.mxu0 0.0
    %376 = vmatpush.xpose.msra.mxu0 0.0
    %377 = vmatpush.xpose.msra.mxu0 0.0
    %378 = vmatpush.xpose.msra.mxu0 0.0
    %379 = vmatpush.xpose.msra.mxu0 0.0
    %380 = vmatpush.xpose.msra.mxu0 0.0
    %381 = vmatpush.xpose.msra.mxu0 0.0
    %382 = vmatpush.xpose.msra.mxu0 0.0
    %383 = vmatpush.xpose.msra.mxu0 0.0
    %384 = vmatpush.xpose.msra.mxu0 0.0
    %385 = vmatpush.xpose.msra.mxu0 0.0
    %386 = vmatpush.xpose.msra.mxu0 0.0
    %387 = vmatpush.xpose.msra.mxu0 %v370
    %388 = vmatmul.f32.gmra.mxu0 %v367
    %v389 = vpop.f32.mrf.mxu0
    %v390 = vadd.f32 %v199, %v389
    %391 = vdwg.mxu0
    %vm392 = vcmask 57344
    %v393 = vsel %vm392, %v390, -inf
    %394 = vmax.xlane.f32.xlu0 %v393
    %v395 = vpop.xlane.xlu0 %394
    %v396 = vsub.f32 %v390, %v395
    %v397 = vmul.f32 %v396, 1.442695
    %v398 = vpow.pop %v397
    %v399 = vsel %vm392, %v398, 0.0
    %400 = vadd.xlane.f32.xlu0 %v399
    %v401 = vpop.xlane.xlu0 %400
    %v402 = vrcp.pop %v401
    %v403 = vmul.f32 %v398, %v402
    %v405 = vsel %vm153, %v403, 0
    %407 = vmatpush.msra.mxu0 0.0
    %408 = vmatpush.msra.mxu0 0.0
    %409 = vmatpush.msra.mxu0 0.0
    %410 = vmatpush.msra.mxu0 0.0
    %411 = vmatpush.msra.mxu0 0.0
    %412 = vmatpush.msra.mxu0 0.0
    %413 = vmatpush.msra.mxu0 0.0
    %414 = vmatpush.msra.mxu0 0.0
    %415 = vmatpush.msra.mxu0 0.0
    %416 = vmatpush.msra.mxu0 0.0
    %417 = vmatpush.msra.mxu0 0.0
    %418 = vmatpush.msra.mxu0 0.0
    %419 = vmatpush.msra.mxu0 0.0
    %420 = vmatpush.msra.mxu0 0.0
    %421 = vmatpush.msra.mxu0 0.0
    %422 = vmatpush.msra.mxu0 %v361
    %423 = vmatmul.f32.gmra.mxu0 %v405
    %v424 = vpop.f32.mrf.mxu0
    %v425 = vadd.f32 0.0, %v424
    %426 = vdwg.mxu0
    %427 = vrot.lane.b32.xlu0 %v364, 96
    %v428 = vpop.permute.xlu0 %427
    %429 = vrot.lane.b32.xlu0 %v358, 96
    %v430 = vpop.permute.xlu0 %429
    %v431 = vsel %vm365, %v428, 0
    %v433 = vsel %vm365, %v430, 0
    %435 = vmatpush.xpose.msra.mxu0 0.0
    %436 = vmatpush.xpose.msra.mxu0 0.0
    %437 = vmatpush.xpose.msra.mxu0 0.0
    %438 = vmatpush.xpose.msra.mxu0 0.0
    %439 = vmatpush.xpose.msra.mxu0 0.0
    %440 = vmatpush.xpose.msra.mxu0 0.0
    %441 = vmatpush.xpose.msra.mxu0 0.0
    %442 = vmatpush.xpose.msra.mxu0 0.0
    %443 = vmatpush.xpose.msra.mxu0 0.0
    %444 = vmatpush.xpose.msra.mxu0 0.0
    %445 = vmatpush.xpose.msra.mxu0 0.0
    %446 = vmatpush.xpose.msra.mxu0 0.0
    %447 = vmatpush.xpose.msra.mxu0 0.0
    %448 = vmatpush.xpose.msra.mxu0 0.0
    %449 = vmatpush.xpose.msra.mxu0 0.0
    %450 = vmatpush.xpose.msra.mxu0 %v433
    %451 = vmatmul.f32.gmra.mxu0 %v431
    %v452 = vpop.f32.mrf.mxu0
    %v453 = vadd.f32 %v199, %v452
    %454 = vdwg.mxu0
    %v455 = vsel %vm392, %v453, -inf
    %456 = vmax.xlane.f32.xlu0 %v455
    %v457 = vpop.xlane.xlu0 %456
    %v458 = vsub.f32 %v453, %v457
    %v459 = vmul.f32 %v458, 1.442695
    %v460 = vpow.pop %v459
    %v461 = vsel %vm392, %v460, 0.0
    %462 = vadd.xlane.f32.xlu0 %v461
    %v463 = vpop.xlane.xlu0 %462
    %v464 = vrcp.pop %v463
    %v465 = vmul.f32 %v460, %v464
    %467 = vrot.lane.b32.xlu0 %v361, 96
    %v468 = vpop.permute.xlu0 %467
    %v471 = vsel %vm153, %v465, 0
    %473 = vmatpush.msra.mxu0 0.0
    %474 = vmatpush.msra.mxu0 0.0
    %475 = vmatpush.msra.mxu0 0.0
    %476 = vmatpush.msra.mxu0 0.0
    %477 = vmatpush.msra.mxu0 0.0
    %478 = vmatpush.msra.mxu0 0.0
    %479 = vmatpush.msra.mxu0 0.0
    %480 = vmatpush.msra.mxu0 0.0
    %481 = vmatpush.msra.mxu0 0.0
    %482 = vmatpush.msra.mxu0 0.0
    %483 = vmatpush.msra.mxu0 0.0
    %484 = vmatpush.msra.mxu0 0.0
    %485 = vmatpush.msra.mxu0 0.0
    %486 = vmatpush.msra.mxu0 0.0
    %487 = vmatpush.msra.mxu0 0.0
    %488 = vmatpush.msra.mxu0 %v468
    %489 = vmatmul.f32.gmra.mxu0 %v471
    %v490 = vpop.f32.mrf.mxu0
    %v491 = vadd.f32 0.0, %v490
    %492 = vdwg.mxu0
    %493 = vrot.lane.b32.xlu0 %v364, 64
    %v494 = vpop.permute.xlu0 %493
    %495 = vrot.lane.b32.xlu0 %v358, 64
    %v496 = vpop.permute.xlu0 %495
    %v497 = vsel %vm365, %v494, 0
    %v499 = vsel %vm365, %v496, 0
    %501 = vmatpush.xpose.msra.mxu0 0.0
    %502 = vmatpush.xpose.msra.mxu0 0.0
    %503 = vmatpush.xpose.msra.mxu0 0.0
    %504 = vmatpush.xpose.msra.mxu0 0.0
    %505 = vmatpush.xpose.msra.mxu0 0.0
    %506 = vmatpush.xpose.msra.mxu0 0.0
    %507 = vmatpush.xpose.msra.mxu0 0.0
    %508 = vmatpush.xpose.msra.mxu0 0.0
    %509 = vmatpush.xpose.msra.mxu0 0.0
    %510 = vmatpush.xpose.msra.mxu0 0.0
    %511 = vmatpush.xpose.msra.mxu0 0.0
    %512 = vmatpush.xpose.msra.mxu0 0.0
    %513 = vmatpush.xpose.msra.mxu0 0.0
    %514 = vmatpush.xpose.msra.mxu0 0.0
    %515 = vmatpush.xpose.msra.mxu0 0.0
    %516 = vmatpush.xpose.msra.mxu0 %v499
    %517 = vmatmul.f32.gmra.mxu0 %v497
    %v518 = vpop.f32.mrf.mxu0
    %v519 = vadd.f32 %v199, %v518
    %520 = vdwg.mxu0
    %v521 = vsel %vm392, %v519, -inf
    %522 = vmax.xlane.f32.xlu0 %v521
    %v523 = vpop.xlane.xlu0 %522
    %v524 = vsub.f32 %v519, %v523
    %v525 = vmul.f32 %v524, 1.442695
    %v526 = vpow.pop %v525
    %v527 = vsel %vm392, %v526, 0.0
    %528 = vadd.xlane.f32.xlu0 %v527
    %v529 = vpop.xlane.xlu0 %528
    %v530 = vrcp.pop %v529
    %v531 = vmul.f32 %v526, %v530
    %532 = vrot.lane.b32.xlu0 %v361, 64
    %v533 = vpop.permute.xlu0 %532
    %v536 = vsel %vm153, %v531, 0
    %538 = vmatpush.msra.mxu0 0.0
    %539 = vmatpush.msra.mxu0 0.0
    %540 = vmatpush.msra.mxu0 0.0
    %541 = vmatpush.msra.mxu0 0.0
    %542 = vmatpush.msra.mxu0 0.0
    %543 = vmatpush.msra.mxu0 0.0
    %544 = vmatpush.msra.mxu0 0.0
    %545 = vmatpush.msra.mxu0 0.0
    %546 = vmatpush.msra.mxu0 0.0
    %547 = vmatpush.msra.mxu0 0.0
    %548 = vmatpush.msra.mxu0 0.0
    %549 = vmatpush.msra.mxu0 0.0
    %550 = vmatpush.msra.mxu0 0.0
    %551 = vmatpush.msra.mxu0 0.0
    %552 = vmatpush.msra.mxu0 0.0
    %553 = vmatpush.msra.mxu0 %v533
    %554 = vmatmul.f32.gmra.mxu0 %v536
    %v555 = vpop.f32.mrf.mxu0
    %v556 = vadd.f32 0.0, %v555
    %557 = vdwg.mxu0
    %558 = vrot.lane.b32.xlu0 %v364, 32
    %v559 = vpop.permute.xlu0 %558
    %560 = vrot.lane.b32.xlu0 %v358, 32
    %v561 = vpop.permute.xlu0 %560
    %v562 = vsel %vm365, %v559, 0
    %v564 = vsel %vm365, %v561, 0
    %566 = vmatpush.xpose.msra.mxu0 0.0
    %567 = vmatpush.xpose.msra.mxu0 0.0
    %568 = vmatpush.xpose.msra.mxu0 0.0
    %569 = vmatpush.xpose.msra.mxu0 0.0
    %570 = vmatpush.xpose.msra.mxu0 0.0
    %571 = vmatpush.xpose.msra.mxu0 0.0
    %572 = vmatpush.xpose.msra.mxu0 0.0
    %573 = vmatpush.xpose.msra.mxu0 0.0
    %574 = vmatpush.xpose.msra.mxu0 0.0
    %575 = vmatpush.xpose.msra.mxu0 0.0
    %576 = vmatpush.xpose.msra.mxu0 0.0
    %577 = vmatpush.xpose.msra.mxu0 0.0
    %578 = vmatpush.xpose.msra.mxu0 0.0
    %579 = vmatpush.xpose.msra.mxu0 0.0
    %580 = vmatpush.xpose.msra.mxu0 0.0
    %581 = vmatpush.xpose.msra.mxu0 %v564
    %582 = vmatmul.f32.gmra.mxu0 %v562
    %v583 = vpop.f32.mrf.mxu0
    %v584 = vadd.f32 %v199, %v583
    %585 = vdwg.mxu0
    %v586 = vsel %vm392, %v584, -inf
    %587 = vmax.xlane.f32.xlu0 %v586
    %v588 = vpop.xlane.xlu0 %587
    %v589 = vsub.f32 %v584, %v588
    %v590 = vmul.f32 %v589, 1.442695
    %v591 = vpow.pop %v590
    %v592 = vsel %vm392, %v591, 0.0
    %593 = vadd.xlane.f32.xlu0 %v592
    %v594 = vpop.xlane.xlu0 %593
    %v595 = vrcp.pop %v594
    %v596 = vmul.f32 %v591, %v595
    %597 = vrot.lane.b32.xlu0 %v361, 32
    %v598 = vpop.permute.xlu0 %597
    %v601 = vsel %vm153, %v596, 0
    %603 = vmatpush.msra.mxu0 0.0
    %604 = vmatpush.msra.mxu0 0.0
    %605 = vmatpush.msra.mxu0 0.0
    %606 = vmatpush.msra.mxu0 0.0
    %607 = vmatpush.msra.mxu0 0.0
    %608 = vmatpush.msra.mxu0 0.0
    %609 = vmatpush.msra.mxu0 0.0
    %610 = vmatpush.msra.mxu0 0.0
    %611 = vmatpush.msra.mxu0 0.0
    %612 = vmatpush.msra.mxu0 0.0
    %613 = vmatpush.msra.mxu0 0.0
    %614 = vmatpush.msra.mxu0 0.0
    %615 = vmatpush.msra.mxu0 0.0
    %616 = vmatpush.msra.mxu0 0.0
    %617 = vmatpush.msra.mxu0 0.0
    %618 = vmatpush.msra.mxu0 %v598
    %619 = vmatmul.f32.gmra.mxu0 %v601
    %v620 = vpop.f32.mrf.mxu0
    %v621 = vadd.f32 0.0, %v620
    %622 = vdwg.mxu0
    %624 = vrot.lane.b32.xlu0 %v491, 32
    %v625 = vpop.permute.xlu0 %624
    %628 = vrot.lane.b32.xlu0 %v556, 64
    %v629 = vpop.permute.xlu0 %628
    %632 = vrot.lane.b32.xlu0 %v621, 96
    %v633 = vpop.permute.xlu0 %632
    %v635 = vsel %vm365, %v425, %v625
    %vm636 = vcmask 523264
    %v637 = vsel %vm636, %v635, %v629
    %vm638 = vcmask 785408
    %v639 = vsel %vm638, %v637, %v633
    %s640 = scalar_lea.vmem [#allocation6], 384
    %v641 = vld [vmem:[%s640] sm:$0xff]
    %v642 = vld [vmem:[%s640 + $0x8] sm:$0xff]
    %v643 = vld [vmem:[%s640 + $0x10] sm:$0xff]
    %v644 = vld [vmem:[%s640 + $0x18] sm:$0xff]
    %v645 = vld [vmem:[%s640 + $0x20] sm:$0xff]
    %v646 = vld [vmem:[%s640 + $0x28] sm:$0xff]
    %v647 = vld [vmem:[%s640 + $0x30] sm:$0xff]
    %v648 = vld [vmem:[%s640 + $0x38] sm:$0xff]
    %v649 = vld [vmem:[%s640 + $0x40] sm:$0xff]
    %v650 = vld [vmem:[%s640 + $0x48] sm:$0xff]
    %v651 = vld [vmem:[%s640 + $0x50] sm:$0xff]
    %v652 = vld [vmem:[%s640 + $0x58] sm:$0xff]
    %v653 = vld [vmem:[%s640 + $0x60] sm:$0xff]
    %v654 = vld [vmem:[%s640 + $0x68] sm:$0xff]
    %v655 = vld [vmem:[%s640 + $0x70] sm:$0xff]
    %v656 = vld [vmem:[%s640 + $0x78] sm:$0xff]
    %657 = vmatpush.msra.mxu0 %v656
    %658 = vmatpush.msra.mxu0 %v655
    %659 = vmatpush.msra.mxu0 %v654
    %660 = vmatpush.msra.mxu0 %v653
    %661 = vmatpush.msra.mxu0 %v652
    %662 = vmatpush.msra.mxu0 %v651
    %663 = vmatpush.msra.mxu0 %v650
    %664 = vmatpush.msra.mxu0 %v649
    %665 = vmatpush.msra.mxu0 %v648
    %666 = vmatpush.msra.mxu0 %v647
    %667 = vmatpush.msra.mxu0 %v646
    %668 = vmatpush.msra.mxu0 %v645
    %669 = vmatpush.msra.mxu0 %v644
    %670 = vmatpush.msra.mxu0 %v643
    %671 = vmatpush.msra.mxu0 %v642
    %672 = vmatpush.msra.mxu0 %v641
    %673 = vmatmul.f32.gmra.mxu0 %v639
    %v674 = vpop.f32.mrf.mxu0
    %v675 = vadd.f32 0.0, %v674
    %676 = vdwg.mxu0
    %v677 = vadd.f32 %v195, %v675
    %v678 = vrot.slane %v202, 3
    %v680 = vadd.f32 %v677, %v678
    %v681 = vsel %vm204, %v680, 0.0
    %682 = vadd.xlane.f32.xlu0 %v681
    %v683 = vpop.xlane.xlu0 %682
    %v684 = vmul.f32 %v683, %v214
    %v685 = vsub.f32 %v680, %v684
    %v686 = vmul.f32 %v685, %v685
    %v687 = vsel %vm204, %v686, 0.0
    %688 = vadd.xlane.f32.xlu0 %v687
    %v689 = vpop.xlane.xlu0 %688
    %v690 = vmul.f32 %v689, %v214
    %v691 = vadd.f32 %v690, 1e-05
    %v692 = vrsqrt.pop %v691
    %v693 = vmul.f32 %v692, %v691
    %v694 = vmul.f32 %v693, %v692
    %v695 = vmul.f32 0.5, %v694
    %v696 = vsub.f32 1.5, %v695
    %v697 = vmul.f32 %v692, %v696
    %vm698 = vweird.f32 %v691
    %vm699 = vweird.f32 %v692
    %vm700 = vmor %vm698, %vm699
    %v701 = vsel %vm700, %v692, %v697
    %v702 = vmul.f32 %v685, %v701
    %v703 = vmul.f32 %v702, %v203
    %v705 = vrot.slane %v203, 1
    %v707 = vadd.f32 %v703, %v705
    %s708 = scalar_lea.vmem [#allocation6], 512
    %v709 = vld [vmem:[%s708] sm:$0xff]
    %v710 = vld [vmem:[%s708 + $0x8] sm:$0xff]
    %v711 = vld [vmem:[%s708 + $0x10] sm:$0xff]
    %v712 = vld [vmem:[%s708 + $0x18] sm:$0xff]
    %v713 = vld [vmem:[%s708 + $0x20] sm:$0xff]
    %v714 = vld [vmem:[%s708 + $0x28] sm:$0xff]
    %v715 = vld [vmem:[%s708 + $0x30] sm:$0xff]
    %v716 = vld [vmem:[%s708 + $0x38] sm:$0xff]
    %v717 = vld [vmem:[%s708 + $0x40] sm:$0xff]
    %v718 = vld [vmem:[%s708 + $0x48] sm:$0xff]
    %v719 = vld [vmem:[%s708 + $0x50] sm:$0xff]
    %v720 = vld [vmem:[%s708 + $0x58] sm:$0xff]
    %v721 = vld [vmem:[%s708 + $0x60] sm:$0xff]
    %v722 = vld [vmem:[%s708 + $0x68] sm:$0xff]
    %v723 = vld [vmem:[%s708 + $0x70] sm:$0xff]
    %v724 = vld [vmem:[%s708 + $0x78] sm:$0xff]
    %v725 = vrot.slane %v202, 4
    %727 = vmatpush.msra.mxu0 %v724
    %728 = vmatpush.msra.mxu0 %v723
    %729 = vmatpush.msra.mxu0 %v722
    %730 = vmatpush.msra.mxu0 %v721
    %731 = vmatpush.msra.mxu0 %v720
    %732 = vmatpush.msra.mxu0 %v719
    %733 = vmatpush.msra.mxu0 %v718
    %734 = vmatpush.msra.mxu0 %v717
    %735 = vmatpush.msra.mxu0 %v716
    %736 = vmatpush.msra.mxu0 %v715
    %737 = vmatpush.msra.mxu0 %v714
    %738 = vmatpush.msra.mxu0 %v713
    %739 = vmatpush.msra.mxu0 %v712
    %740 = vmatpush.msra.mxu0 %v711
    %741 = vmatpush.msra.mxu0 %v710
    %742 = vmatpush.msra.mxu0 %v709
    %743 = vmatmul.f32.gmra.mxu0 %v707
    %v744 = vpop.f32.mrf.mxu0
    %v745 = vadd.f32 %v725, %v744
    %746 = vdwg.mxu0
    %v747 = vld [vmem:[%s8] sm:$0xff]
    %v748 = vld [vmem:[%s9] sm:$0xff]
    %v749 = vmul.f32 %v745, 0.17677669
    %v751 = vsel %vm365, %v749, 0
    %v754 = vsel %vm365, %v747, 0
    %756 = vmatpush.xpose.msra.mxu0 0.0
    %757 = vmatpush.xpose.msra.mxu0 0.0
    %758 = vmatpush.xpose.msra.mxu0 0.0
    %759 = vmatpush.xpose.msra.mxu0 0.0
    %760 = vmatpush.xpose.msra.mxu0 0.0
    %761 = vmatpush.xpose.msra.mxu0 0.0
    %762 = vmatpush.xpose.msra.mxu0 0.0
    %763 = vmatpush.xpose.msra.mxu0 0.0
    %764 = vmatpush.xpose.msra.mxu0 0.0
    %765 = vmatpush.xpose.msra.mxu0 0.0
    %766 = vmatpush.xpose.msra.mxu0 0.0
    %767 = vmatpush.xpose.msra.mxu0 0.0
    %768 = vmatpush.xpose.msra.mxu0 0.0
    %769 = vmatpush.xpose.msra.mxu0 0.0
    %770 = vmatpush.xpose.msra.mxu0 0.0
    %771 = vmatpush.xpose.msra.mxu0 %v754
    %772 = vmatmul.f32.gmra.mxu0 %v751
    %v773 = vpop.f32.mrf.mxu0
    %v774 = vadd.f32 0.0, %v773
    %775 = vdwg.mxu0
    %v776 = vsel %vm392, %v774, -inf
    %777 = vmax.xlane.f32.xlu0 %v776
    %v778 = vpop.xlane.xlu0 %777
    %v779 = vsub.f32 %v774, %v778
    %v780 = vmul.f32 %v779, 1.442695
    %v781 = vpow.pop %v780
    %v782 = vsel %vm392, %v781, 0.0
    %783 = vadd.xlane.f32.xlu0 %v782
    %v784 = vpop.xlane.xlu0 %783
    %v785 = vrcp.pop %v784
    %v786 = vmul.f32 %v781, %v785
    %v788 = vsel %vm153, %v786, 0
    %790 = vmatpush.msra.mxu0 0.0
    %791 = vmatpush.msra.mxu0 0.0
    %792 = vmatpush.msra.mxu0 0.0
    %793 = vmatpush.msra.mxu0 0.0
    %794 = vmatpush.msra.mxu0 0.0
    %795 = vmatpush.msra.mxu0 0.0
    %796 = vmatpush.msra.mxu0 0.0
    %797 = vmatpush.msra.mxu0 0.0
    %798 = vmatpush.msra.mxu0 0.0
    %799 = vmatpush.msra.mxu0 0.0
    %800 = vmatpush.msra.mxu0 0.0
    %801 = vmatpush.msra.mxu0 0.0
    %802 = vmatpush.msra.mxu0 0.0
    %803 = vmatpush.msra.mxu0 0.0
    %804 = vmatpush.msra.mxu0 0.0
    %805 = vmatpush.msra.mxu0 %v748
    %806 = vmatmul.f32.gmra.mxu0 %v788
    %v807 = vpop.f32.mrf.mxu0
    %v808 = vadd.f32 0.0, %v807
    %809 = vdwg.mxu0
    %810 = vrot.lane.b32.xlu0 %v749, 96
    %v811 = vpop.permute.xlu0 %810
    %812 = vrot.lane.b32.xlu0 %v747, 96
    %v813 = vpop.permute.xlu0 %812
    %v814 = vsel %vm365, %v811, 0
    %v816 = vsel %vm365, %v813, 0
    %818 = vmatpush.xpose.msra.mxu0 0.0
    %819 = vmatpush.xpose.msra.mxu0 0.0
    %820 = vmatpush.xpose.msra.mxu0 0.0
    %821 = vmatpush.xpose.msra.mxu0 0.0
    %822 = vmatpush.xpose.msra.mxu0 0.0
    %823 = vmatpush.xpose.msra.mxu0 0.0
    %824 = vmatpush.xpose.msra.mxu0 0.0
    %825 = vmatpush.xpose.msra.mxu0 0.0
    %826 = vmatpush.xpose.msra.mxu0 0.0
    %827 = vmatpush.xpose.msra.mxu0 0.0
    %828 = vmatpush.xpose.msra.mxu0 0.0
    %829 = vmatpush.xpose.msra.mxu0 0.0
    %830 = vmatpush.xpose.msra.mxu0 0.0
    %831 = vmatpush.xpose.msra.mxu0 0.0
    %832 = vmatpush.xpose.msra.mxu0 0.0
    %833 = vmatpush.xpose.msra.mxu0 %v816
    %834 = vmatmul.f32.gmra.mxu0 %v814
    %v835 = vpop.f32.mrf.mxu0
    %v836 = vadd.f32 0.0, %v835
    %837 = vdwg.mxu0
    %v838 = vsel %vm392, %v836, -inf
    %839 = vmax.xlane.f32.xlu0 %v838
    %v840 = vpop.xlane.xlu0 %839
    %v841 = vsub.f32 %v836, %v840
    %v842 = vmul.f32 %v841, 1.442695
    %v843 = vpow.pop %v842
    %v844 = vsel %vm392, %v843, 0.0
    %845 = vadd.xlane.f32.xlu0 %v844
    %v846 = vpop.xlane.xlu0 %845
    %v847 = vrcp.pop %v846
    %v848 = vmul.f32 %v843, %v847
    %850 = vrot.lane.b32.xlu0 %v748, 96
    %v851 = vpop.permute.xlu0 %850
    %v854 = vsel %vm153, %v848, 0
    %856 = vmatpush.msra.mxu0 0.0
    %857 = vmatpush.msra.mxu0 0.0
    %858 = vmatpush.msra.mxu0 0.0
    %859 = vmatpush.msra.mxu0 0.0
    %860 = vmatpush.msra.mxu0 0.0
    %861 = vmatpush.msra.mxu0 0.0
    %862 = vmatpush.msra.mxu0 0.0
    %863 = vmatpush.msra.mxu0 0.0
    %864 = vmatpush.msra.mxu0 0.0
    %865 = vmatpush.msra.mxu0 0.0
    %866 = vmatpush.msra.mxu0 0.0
    %867 = vmatpush.msra.mxu0 0.0
    %868 = vmatpush.msra.mxu0 0.0
    %869 = vmatpush.msra.mxu0 0.0
    %870 = vmatpush.msra.mxu0 0.0
    %871 = vmatpush.msra.mxu0 %v851
    %872 = vmatmul.f32.gmra.mxu0 %v854
    %v873 = vpop.f32.mrf.mxu0
    %v874 = vadd.f32 0.0, %v873
    %875 = vdwg.mxu0
    %876 = vrot.lane.b32.xlu0 %v749, 64
    %v877 = vpop.permute.xlu0 %876
    %878 = vrot.lane.b32.xlu0 %v747, 64
    %v879 = vpop.permute.xlu0 %878
    %v880 = vsel %vm365, %v877, 0
    %v882 = vsel %vm365, %v879, 0
    %884 = vmatpush.xpose.msra.mxu0 0.0
    %885 = vmatpush.xpose.msra.mxu0 0.0
    %886 = vmatpush.xpose.msra.mxu0 0.0
    %887 = vmatpush.xpose.msra.mxu0 0.0
    %888 = vmatpush.xpose.msra.mxu0 0.0
    %889 = vmatpush.xpose.msra.mxu0 0.0
    %890 = vmatpush.xpose.msra.mxu0 0.0
    %891 = vmatpush.xpose.msra.mxu0 0.0
    %892 = vmatpush.xpose.msra.mxu0 0.0
    %893 = vmatpush.xpose.msra.mxu0 0.0
    %894 = vmatpush.xpose.msra.mxu0 0.0
    %895 = vmatpush.xpose.msra.mxu0 0.0
    %896 = vmatpush.xpose.msra.mxu0 0.0
    %897 = vmatpush.xpose.msra.mxu0 0.0
    %898 = vmatpush.xpose.msra.mxu0 0.0
    %899 = vmatpush.xpose.msra.mxu0 %v882
    %900 = vmatmul.f32.gmra.mxu0 %v880
    %v901 = vpop.f32.mrf.mxu0
    %v902 = vadd.f32 0.0, %v901
    %903 = vdwg.mxu0
    %v904 = vsel %vm392, %v902, -inf
    %905 = vmax.xlane.f32.xlu0 %v904
    %v906 = vpop.xlane.xlu0 %905
    %v907 = vsub.f32 %v902, %v906
    %v908 = vmul.f32 %v907, 1.442695
    %v909 = vpow.pop %v908
    %v910 = vsel %vm392, %v909, 0.0
    %911 = vadd.xlane.f32.xlu0 %v910
    %v912 = vpop.xlane.xlu0 %911
    %v913 = vrcp.pop %v912
    %v914 = vmul.f32 %v909, %v913
    %915 = vrot.lane.b32.xlu0 %v748, 64
    %v916 = vpop.permute.xlu0 %915
    %v919 = vsel %vm153, %v914, 0
    %921 = vmatpush.msra.mxu0 0.0
    %922 = vmatpush.msra.mxu0 0.0
    %923 = vmatpush.msra.mxu0 0.0
    %924 = vmatpush.msra.mxu0 0.0
    %925 = vmatpush.msra.mxu0 0.0
    %926 = vmatpush.msra.mxu0 0.0
    %927 = vmatpush.msra.mxu0 0.0
    %928 = vmatpush.msra.mxu0 0.0
    %929 = vmatpush.msra.mxu0 0.0
    %930 = vmatpush.msra.mxu0 0.0
    %931 = vmatpush.msra.mxu0 0.0
    %932 = vmatpush.msra.mxu0 0.0
    %933 = vmatpush.msra.mxu0 0.0
    %934 = vmatpush.msra.mxu0 0.0
    %935 = vmatpush.msra.mxu0 0.0
    %936 = vmatpush.msra.mxu0 %v916
    %937 = vmatmul.f32.gmra.mxu0 %v919
    %v938 = vpop.f32.mrf.mxu0
    %v939 = vadd.f32 0.0, %v938
    %940 = vdwg.mxu0
    %941 = vrot.lane.b32.xlu0 %v749, 32
    %v942 = vpop.permute.xlu0 %941
    %943 = vrot.lane.b32.xlu0 %v747, 32
    %v944 = vpop.permute.xlu0 %943
    %v945 = vsel %vm365, %v942, 0
    %v947 = vsel %vm365, %v944, 0
    %949 = vmatpush.xpose.msra.mxu0 0.0
    %950 = vmatpush.xpose.msra.mxu0 0.0
    %951 = vmatpush.xpose.msra.mxu0 0.0
    %952 = vmatpush.xpose.msra.mxu0 0.0
    %953 = vmatpush.xpose.msra.mxu0 0.0
    %954 = vmatpush.xpose.msra.mxu0 0.0
    %955 = vmatpush.xpose.msra.mxu0 0.0
    %956 = vmatpush.xpose.msra.mxu0 0.0
    %957 = vmatpush.xpose.msra.mxu0 0.0
    %958 = vmatpush.xpose.msra.mxu0 0.0
    %959 = vmatpush.xpose.msra.mxu0 0.0
    %960 = vmatpush.xpose.msra.mxu0 0.0
    %961 = vmatpush.xpose.msra.mxu0 0.0
    %962 = vmatpush.xpose.msra.mxu0 0.0
    %963 = vmatpush.xpose.msra.mxu0 0.0
    %964 = vmatpush.xpose.msra.mxu0 %v947
    %965 = vmatmul.f32.gmra.mxu0 %v945
    %v966 = vpop.f32.mrf.mxu0
    %v967 = vadd.f32 0.0, %v966
    %968 = vdwg.mxu0
    %v969 = vsel %vm392, %v967, -inf
    %970 = vmax.xlane.f32.xlu0 %v969
    %v971 = vpop.xlane.xlu0 %970
    %v972 = vsub.f32 %v967, %v971
    %v973 = vmul.f32 %v972, 1.442695
    %v974 = vpow.pop %v973
    %v975 = vsel %vm392, %v974, 0.0
    %976 = vadd.xlane.f32.xlu0 %v975
    %v977 = vpop.xlane.xlu0 %976
    %v978 = vrcp.pop %v977
    %v979 = vmul.f32 %v974, %v978
    %980 = vrot.lane.b32.xlu0 %v748, 32
    %v981 = vpop.permute.xlu0 %980
    %v984 = vsel %vm153, %v979, 0
    %986 = vmatpush.msra.mxu0 0.0
    %987 = vmatpush.msra.mxu0 0.0
    %988 = vmatpush.msra.mxu0 0.0
    %989 = vmatpush.msra.mxu0 0.0
    %990 = vmatpush.msra.mxu0 0.0
    %991 = vmatpush.msra.mxu0 0.0
    %992 = vmatpush.msra.mxu0 0.0
    %993 = vmatpush.msra.mxu0 0.0
    %994 = vmatpush.msra.mxu0 0.0
    %995 = vmatpush.msra.mxu0 0.0
    %996 = vmatpush.msra.mxu0 0.0
    %997 = vmatpush.msra.mxu0 0.0
    %998 = vmatpush.msra.mxu0 0.0
    %999 = vmatpush.msra.mxu0 0.0
    %1000 = vmatpush.msra.mxu0 0.0
    %1001 = vmatpush.msra.mxu0 %v981
    %1002 = vmatmul.f32.gmra.mxu0 %v984
    %v1003 = vpop.f32.mrf.mxu0
    %v1004 = vadd.f32 0.0, %v1003
    %1005 = vdwg.mxu0
    %1007 = vrot.lane.b32.xlu0 %v874, 32
    %v1008 = vpop.permute.xlu0 %1007
    %1011 = vrot.lane.b32.xlu0 %v939, 64
    %v1012 = vpop.permute.xlu0 %1011
    %1015 = vrot.lane.b32.xlu0 %v1004, 96
    %v1016 = vpop.permute.xlu0 %1015
    %v1018 = vsel %vm365, %v808, %v1008
    %v1019 = vsel %vm636, %v1018, %v1012
    %v1020 = vsel %vm638, %v1019, %v1016
    %s1021 = scalar_lea.vmem [#allocation6], 640
    %v1022 = vld [vmem:[%s1021] sm:$0xff]
    %v1023 = vld [vmem:[%s1021 + $0x8] sm:$0xff]
    %v1024 = vld [vmem:[%s1021 + $0x10] sm:$0xff]
    %v1025 = vld [vmem:[%s1021 + $0x18] sm:$0xff]
    %v1026 = vld [vmem:[%s1021 + $0x20] sm:$0xff]
    %v1027 = vld [vmem:[%s1021 + $0x28] sm:$0xff]
    %v1028 = vld [vmem:[%s1021 + $0x30] sm:$0xff]
    %v1029 = vld [vmem:[%s1021 + $0x38] sm:$0xff]
    %v1030 = vld [vmem:[%s1021 + $0x40] sm:$0xff]
    %v1031 = vld [vmem:[%s1021 + $0x48] sm:$0xff]
    %v1032 = vld [vmem:[%s1021 + $0x50] sm:$0xff]
    %v1033 = vld [vmem:[%s1021 + $0x58] sm:$0xff]
    %v1034 = vld [vmem:[%s1021 + $0x60] sm:$0xff]
    %v1035 = vld [vmem:[%s1021 + $0x68] sm:$0xff]
    %v1036 = vld [vmem:[%s1021 + $0x70] sm:$0xff]
    %v1037 = vld [vmem:[%s1021 + $0x78] sm:$0xff]
    %1038 = vmatpush.msra.mxu0 %v1037
    %1039 = vmatpush.msra.mxu0 %v1036
    %1040 = vmatpush.msra.mxu0 %v1035
    %1041 = vmatpush.msra.mxu0 %v1034
    %1042 = vmatpush.msra.mxu0 %v1033
    %1043 = vmatpush.msra.mxu0 %v1032
    %1044 = vmatpush.msra.mxu0 %v1031
    %1045 = vmatpush.msra.mxu0 %v1030
    %1046 = vmatpush.msra.mxu0 %v1029
    %1047 = vmatpush.msra.mxu0 %v1028
    %1048 = vmatpush.msra.mxu0 %v1027
    %1049 = vmatpush.msra.mxu0 %v1026
    %1050 = vmatpush.msra.mxu0 %v1025
    %1051 = vmatpush.msra.mxu0 %v1024
    %1052 = vmatpush.msra.mxu0 %v1023
    %1053 = vmatpush.msra.mxu0 %v1022
    %1054 = vmatmul.f32.gmra.mxu0 %v1020
    %v1055 = vpop.f32.mrf.mxu0
    %v1056 = vadd.f32 0.0, %v1055
    %1057 = vdwg.mxu0
    %v1058 = vadd.f32 %v680, %v1056
    %v1059 = vrot.slane %v202, 5
    %v1061 = vadd.f32 %v1058, %v1059
    %v1062 = vsel %vm204, %v1061, 0.0
    %1063 = vadd.xlane.f32.xlu0 %v1062
    %v1064 = vpop.xlane.xlu0 %1063
    %v1065 = vmul.f32 %v1064, %v214
    %v1066 = vsub.f32 %v1061, %v1065
    %v1067 = vmul.f32 %v1066, %v1066
    %v1068 = vsel %vm204, %v1067, 0.0
    %1069 = vadd.xlane.f32.xlu0 %v1068
    %v1070 = vpop.xlane.xlu0 %1069
    %v1071 = vmul.f32 %v1070, %v214
    %v1072 = vadd.f32 %v1071, 1e-05
    %v1073 = vrsqrt.pop %v1072
    %v1074 = vmul.f32 %v1073, %v1072
    %v1075 = vmul.f32 %v1074, %v1073
    %v1076 = vmul.f32 0.5, %v1075
    %v1077 = vsub.f32 1.5, %v1076
    %v1078 = vmul.f32 %v1073, %v1077
    %vm1079 = vweird.f32 %v1072
    %vm1080 = vweird.f32 %v1073
    %vm1081 = vmor %vm1079, %vm1080
    %v1082 = vsel %vm1081, %v1073, %v1078
    %v1083 = vmul.f32 %v1066, %v1082
    %v1084 = vrot.slane %v203, 2
    %v1086 = vmul.f32 %v1083, %v1084
    %v1087 = vrot.slane %v203, 3
    %v1089 = vadd.f32 %v1086, %v1087
    %v1090 = vld [vmem:[#allocation8] sm:$0xff]
    %v1091 = vld [vmem:[#allocation8 + $0x8] sm:$0xff]
    %v1092 = vld [vmem:[#allocation8 + $0x10] sm:$0xff]
    %v1093 = vld [vmem:[#allocation8 + $0x18] sm:$0xff]
    %v1094 = vld [vmem:[#allocation8 + $0x20] sm:$0xff]
    %v1095 = vld [vmem:[#allocation8 + $0x28] sm:$0xff]
    %v1096 = vld [vmem:[#allocation8 + $0x30] sm:$0xff]
    %v1097 = vld [vmem:[#allocation8 + $0x38] sm:$0xff]
    %v1098 = vld [vmem:[#allocation8 + $0x40] sm:$0xff]
    %v1099 = vld [vmem:[#allocation8 + $0x48] sm:$0xff]
    %v1100 = vld [vmem:[#allocation8 + $0x50] sm:$0xff]
    %v1101 = vld [vmem:[#allocation8 + $0x58] sm:$0xff]
    %v1102 = vld [vmem:[#allocation8 + $0x60] sm:$0xff]
    %v1103 = vld [vmem:[#allocation8 + $0x68] sm:$0xff]
    %v1104 = vld [vmem:[#allocation8 + $0x70] sm:$0xff]
    %v1105 = vld [vmem:[#allocation8 + $0x78] sm:$0xff]
    %v1106 = vld [vmem:[#allocation8 + $0x80] sm:$0xff]
    %v1107 = vld [vmem:[#allocation8 + $0x88] sm:$0xff]
    %v1108 = vld [vmem:[#allocation8 + $0x90] sm:$0xff]
    %v1109 = vld [vmem:[#allocation8 + $0x98] sm:$0xff]
    %v1110 = vld [vmem:[#allocation8 + $0xa0] sm:$0xff]
    %v1111 = vld [vmem:[#allocation8 + $0xa8] sm:$0xff]
    %v1112 = vld [vmem:[#allocation8 + $0xb0] sm:$0xff]
    %v1113 = vld [vmem:[#allocation8 + $0xb8] sm:$0xff]
    %v1114 = vld [vmem:[#allocation8 + $0xc0] sm:$0xff]
    %v1115 = vld [vmem:[#allocation8 + $0xc8] sm:$0xff]
    %v1116 = vld [vmem:[#allocation8 + $0xd0] sm:$0xff]
    %v1117 = vld [vmem:[#allocation8 + $0xd8] sm:$0xff]
    %v1118 = vld [vmem:[#allocation8 + $0xe0] sm:$0xff]
    %v1119 = vld [vmem:[#allocation8 + $0xe8] sm:$0xff]
    %v1120 = vld [vmem:[#allocation8 + $0xf0] sm:$0xff]
    %v1121 = vld [vmem:[#allocation8 + $0xf8] sm:$0xff]
    %v1122 = vld [vmem:[%s6] sm:$0x3]
    %v1124 = vperm.slane %v1122, 0
    %v1125 = vperm.slane %v1122, 1
    %1128 = vmatpush.msra.mxu0 %v1120
    %1129 = vmatpush.msra.mxu0 %v1118
    %1130 = vmatpush.msra.mxu0 %v1116
    %1131 = vmatpush.msra.mxu0 %v1114
    %1132 = vmatpush.msra.mxu0 %v1112
    %1133 = vmatpush.msra.mxu0 %v1110
    %1134 = vmatpush.msra.mxu0 %v1108
    %1135 = vmatpush.msra.mxu0 %v1106
    %1136 = vmatpush.msra.mxu0 %v1104
    %1137 = vmatpush.msra.mxu0 %v1102
    %1138 = vmatpush.msra.mxu0 %v1100
    %1139 = vmatpush.msra.mxu0 %v1098
    %1140 = vmatpush.msra.mxu0 %v1096
    %1141 = vmatpush.msra.mxu0 %v1094
    %1142 = vmatpush.msra.mxu0 %v1092
    %1143 = vmatpush.msra.mxu0 %v1090
    %1144 = vmatmul.f32.gmra.mxu0 %v1089
    %v1145 = vpop.f32.mrf.mxu0
    %v1146 = vadd.f32 %v1124, %v1145
    %1147 = vdwg.mxu0
    %1148 = vmatpush.msra.mxu0 %v1121
    %1149 = vmatpush.msra.mxu0 %v1119
    %1150 = vmatpush.msra.mxu0 %v1117
    %1151 = vmatpush.msra.mxu0 %v1115
    %1152 = vmatpush.msra.mxu0 %v1113
    %1153 = vmatpush.msra.mxu0 %v1111
    %1154 = vmatpush.msra.mxu0 %v1109
    %1155 = vmatpush.msra.mxu0 %v1107
    %1156 = vmatpush.msra.mxu0 %v1105
    %1157 = vmatpush.msra.mxu0 %v1103
    %1158 = vmatpush.msra.mxu0 %v1101
    %1159 = vmatpush.msra.mxu0 %v1099
    %1160 = vmatpush.msra.mxu0 %v1097
    %1161 = vmatpush.msra.mxu0 %v1095
    %1162 = vmatpush.msra.mxu0 %v1093
    %1163 = vmatpush.msra.mxu0 %v1091
    %1164 = vmatmul.f32.gmra.mxu0 %v1089
    %v1165 = vpop.f32.mrf.mxu0
    %v1166 = vadd.f32 %v1125, %v1165
    %1167 = vdwg.mxu0
    %v1168 = vmul.f32 %v1146, 0.5
    %v1169 = vmul.f32 %v1166, 0.5
    %v1170 = vmul.f32 %v1146, 0.044715
    %v1171 = vmul.f32 %v1166, 0.044715
    %v1172 = vmul.f32 %v1170, %v1146
    %v1173 = vmul.f32 %v1171, %v1166
    %v1174 = vmul.f32 %v1172, %v1146
    %v1175 = vmul.f32 %v1173, %v1166
    %v1176 = vadd.f32 %v1146, %v1174
    %v1177 = vadd.f32 %v1166, %v1175
    %v1178 = vmul.f32 %v1176, 0.7978846
    %v1179 = vmul.f32 %v1177, 0.7978846
    %v1180 = vtanh.pop %v1178
    %v1181 = vtanh.pop %v1179
    %v1182 = vadd.f32 %v1180, 1.0
    %v1183 = vadd.f32 %v1181, 1.0
    %v1184 = vmul.f32 %v1168, %v1182
    %v1185 = vmul.f32 %v1169, %v1183
    %v1186 = vld [vmem:[#allocation9] sm:$0xff]
    %v1187 = vld [vmem:[#allocation9 + $0x8] sm:$0xff]
    %v1188 = vld [vmem:[#allocation9 + $0x10] sm:$0xff]
    %v1189 = vld [vmem:[#allocation9 + $0x18] sm:$0xff]
    %v1190 = vld [vmem:[#allocation9 + $0x20] sm:$0xff]
    %v1191 = vld [vmem:[#allocation9 + $0x28] sm:$0xff]
    %v1192 = vld [vmem:[#allocation9 + $0x30] sm:$0xff]
    %v1193 = vld [vmem:[#allocation9 + $0x38] sm:$0xff]
    %v1194 = vld [vmem:[#allocation9 + $0x40] sm:$0xff]
    %v1195 = vld [vmem:[#allocation9 + $0x48] sm:$0xff]
    %v1196 = vld [vmem:[#allocation9 + $0x50] sm:$0xff]
    %v1197 = vld [vmem:[#allocation9 + $0x58] sm:$0xff]
    %v1198 = vld [vmem:[#allocation9 + $0x60] sm:$0xff]
    %v1199 = vld [vmem:[#allocation9 + $0x68] sm:$0xff]
    %v1200 = vld [vmem:[#allocation9 + $0x70] sm:$0xff]
    %v1201 = vld [vmem:[#allocation9 + $0x78] sm:$0xff]
    %v1202 = vld [vmem:[#allocation9 + $0x80] sm:$0xff]
    %v1203 = vld [vmem:[#allocation9 + $0x88] sm:$0xff]
    %v1204 = vld [vmem:[#allocation9 + $0x90] sm:$0xff]
    %v1205 = vld [vmem:[#allocation9 + $0x98] sm:$0xff]
    %v1206 = vld [vmem:[#allocation9 + $0xa0] sm:$0xff]
    %v1207 = vld [vmem:[#allocation9 + $0xa8] sm:$0xff]
    %v1208 = vld [vmem:[#allocation9 + $0xb0] sm:$0xff]
    %v1209 = vld [vmem:[#allocation9 + $0xb8] sm:$0xff]
    %v1210 = vld [vmem:[#allocation9 + $0xc0] sm:$0xff]
    %v1211 = vld [vmem:[#allocation9 + $0xc8] sm:$0xff]
    %v1212 = vld [vmem:[#allocation9 + $0xd0] sm:$0xff]
    %v1213 = vld [vmem:[#allocation9 + $0xd8] sm:$0xff]
    %v1214 = vld [vmem:[#allocation9 + $0xe0] sm:$0xff]
    %v1215 = vld [vmem:[#allocation9 + $0xe8] sm:$0xff]
    %v1216 = vld [vmem:[#allocation9 + $0xf0] sm:$0xff]
    %v1217 = vld [vmem:[#allocation9 + $0xf8] sm:$0xff]
    %1218 = vmatpush.msra.mxu0 %v1201
    %1219 = vmatpush.msra.mxu0 %v1200
    %1220 = vmatpush.msra.mxu0 %v1199
    %1221 = vmatpush.msra.mxu0 %v1198
    %1222 = vmatpush.msra.mxu0 %v1197
    %1223 = vmatpush.msra.mxu0 %v1196
    %1224 = vmatpush.msra.mxu0 %v1195
    %1225 = vmatpush.msra.mxu0 %v1194
    %1226 = vmatpush.msra.mxu0 %v1193
    %1227 = vmatpush.msra.mxu0 %v1192
    %1228 = vmatpush.msra.mxu0 %v1191
    %1229 = vmatpush.msra.mxu0 %v1190
    %1230 = vmatpush.msra.mxu0 %v1189
    %1231 = vmatpush.msra.mxu0 %v1188
    %1232 = vmatpush.msra.mxu0 %v1187
    %1233 = vmatpush.msra.mxu0 %v1186
    %1234 = vmatmul.f32.gmra.mxu0 %v1184
    %v1235 = vpop.f32.mrf.mxu0
    %v1236 = vadd.f32 0.0, %v1235
    %1237 = vdwg.mxu0
    %1238 = vmatpush.msra.mxu0 %v1217
    %1239 = vmatpush.msra.mxu0 %v1216
    %1240 = vmatpush.msra.mxu0 %v1215
    %1241 = vmatpush.msra.mxu0 %v1214
    %1242 = vmatpush.msra.mxu0 %v1213
    %1243 = vmatpush.msra.mxu0 %v1212
    %1244 = vmatpush.msra.mxu0 %v1211
    %1245 = vmatpush.msra.mxu0 %v1210
    %1246 = vmatpush.msra.mxu0 %v1209
    %1247 = vmatpush.msra.mxu0 %v1208
    %1248 = vmatpush.msra.mxu0 %v1207
    %1249 = vmatpush.msra.mxu0 %v1206
    %1250 = vmatpush.msra.mxu0 %v1205
    %1251 = vmatpush.msra.mxu0 %v1204
    %1252 = vmatpush.msra.mxu0 %v1203
    %1253 = vmatpush.msra.mxu0 %v1202
    %1254 = vmatmul.f32.gmra.mxu0 %v1185
    %v1255 = vpop.f32.mrf.mxu0
    %v1256 = vadd.f32 %v1236, %v1255
    %1257 = vdwg.mxu0
    %v1258 = vadd.f32 %v1061, %v1256
    %v1259 = vrot.slane %v203, 4
    %v1261 = vadd.f32 %v1258, %v1259
    %1262 = vst [vmem:[%s13 + $0x1] sm:$0x1] %v1261
    %s1263 = scalar_lea.vmem %s4, 16
    %v1264 = vld [vmem:[%s1263] sm:$0xff]
    %v1265 = vld [vmem:[%s1263 + $0x8] sm:$0x1f]
    %v1266 = vsel %vm204, %v1261, 0.0
    %1267 = vadd.xlane.f32.xlu0 %v1266
    %v1268 = vpop.xlane.xlu0 %1267
    %v1269 = vmul.f32 %v1268, %v214
    %v1270 = vsub.f32 %v1261, %v1269
    %v1271 = vmul.f32 %v1270, %v1270
    %v1272 = vsel %vm204, %v1271, 0.0
    %1273 = vadd.xlane.f32.xlu0 %v1272
    %v1274 = vpop.xlane.xlu0 %1273
    %v1275 = vmul.f32 %v1274, %v214
    %v1276 = vadd.f32 %v1275, 1e-05
    %v1277 = vrsqrt.pop %v1276
    %v1278 = vmul.f32 %v1277, %v1276
    %v1279 = vmul.f32 %v1278, %v1277
    %v1280 = vmul.f32 0.5, %v1279
    %v1281 = vsub.f32 1.5, %v1280
    %v1282 = vmul.f32 %v1277, %v1281
    %vm1283 = vweird.f32 %v1276
    %vm1284 = vweird.f32 %v1277
    %vm1285 = vmor %vm1283, %vm1284
    %v1286 = vsel %vm1285, %v1277, %v1282
    %v1287 = vmul.f32 %v1270, %v1286
    %v1289 = vrot.slane %v1264, 6
    %v1291 = vmul.f32 %v1287, %v1289
    %v1292 = vrot.slane %v1264, 7
    %v1294 = vadd.f32 %v1291, %v1292
    %s1295 = scalar_lea.vmem [#allocation6], 768
    %v1296 = vld [vmem:[%s1295] sm:$0xff]
    %v1297 = vld [vmem:[%s1295 + $0x8] sm:$0xff]
    %v1298 = vld [vmem:[%s1295 + $0x10] sm:$0xff]
    %v1299 = vld [vmem:[%s1295 + $0x18] sm:$0xff]
    %v1300 = vld [vmem:[%s1295 + $0x20] sm:$0xff]
    %v1301 = vld [vmem:[%s1295 + $0x28] sm:$0xff]
    %v1302 = vld [vmem:[%s1295 + $0x30] sm:$0xff]
    %v1303 = vld [vmem:[%s1295 + $0x38] sm:$0xff]
    %v1304 = vld [vmem:[%s1295 + $0x40] sm:$0xff]
    %v1305 = vld [vmem:[%s1295 + $0x48] sm:$0xff]
    %v1306 = vld [vmem:[%s1295 + $0x50] sm:$0xff]
    %v1307 = vld [vmem:[%s1295 + $0x58] sm:$0xff]
    %v1308 = vld [vmem:[%s1295 + $0x60] sm:$0xff]
    %v1309 = vld [vmem:[%s1295 + $0x68] sm:$0xff]
    %v1310 = vld [vmem:[%s1295 + $0x70] sm:$0xff]
    %v1311 = vld [vmem:[%s1295 + $0x78] sm:$0xff]
    %1312 = vmatpush.msra.mxu0 %v1311
    %1313 = vmatpush.msra.mxu0 %v1310
    %1314 = vmatpush.msra.mxu0 %v1309
    %1315 = vmatpush.msra.mxu0 %v1308
    %1316 = vmatpush.msra.mxu0 %v1307
    %1317 = vmatpush.msra.mxu0 %v1306
    %1318 = vmatpush.msra.mxu0 %v1305
    %1319 = vmatpush.msra.mxu0 %v1304
    %1320 = vmatpush.msra.mxu0 %v1303
    %1321 = vmatpush.msra.mxu0 %v1302
    %1322 = vmatpush.msra.mxu0 %v1301
    %1323 = vmatpush.msra.mxu0 %v1300
    %1324 = vmatpush.msra.mxu0 %v1299
    %1325 = vmatpush.msra.mxu0 %v1298
    %1326 = vmatpush.msra.mxu0 %v1297
    %1327 = vmatpush.msra.mxu0 %v1296
    %1328 = vmatmul.f32.gmra.mxu0 %v1294
    %v1329 = vpop.f32.mrf.mxu0
    %v1330 = vadd.f32 %v1264, %v1329
    %1331 = vdwg.mxu0
    %s1332 = scalar_lea.vmem [#allocation6], 896
    %v1333 = vld [vmem:[%s1332] sm:$0xff]
    %v1334 = vld [vmem:[%s1332 + $0x8] sm:$0xff]
    %v1335 = vld [vmem:[%s1332 + $0x10] sm:$0xff]
    %v1336 = vld [vmem:[%s1332 + $0x18] sm:$0xff]
    %v1337 = vld [vmem:[%s1332 + $0x20] sm:$0xff]
    %v1338 = vld [vmem:[%s1332 + $0x28] sm:$0xff]
    %v1339 = vld [vmem:[%s1332 + $0x30] sm:$0xff]
    %v1340 = vld [vmem:[%s1332 + $0x38] sm:$0xff]
    %v1341 = vld [vmem:[%s1332 + $0x40] sm:$0xff]
    %v1342 = vld [vmem:[%s1332 + $0x48] sm:$0xff]
    %v1343 = vld [vmem:[%s1332 + $0x50] sm:$0xff]
    %v1344 = vld [vmem:[%s1332 + $0x58] sm:$0xff]
    %v1345 = vld [vmem:[%s1332 + $0x60] sm:$0xff]
    %v1346 = vld [vmem:[%s1332 + $0x68] sm:$0xff]
    %v1347 = vld [vmem:[%s1332 + $0x70] sm:$0xff]
    %v1348 = vld [vmem:[%s1332 + $0x78] sm:$0xff]
    %v1349 = vrot.slane %v1264, 1
    %1351 = vmatpush.msra.mxu0 %v1348
    %1352 = vmatpush.msra.mxu0 %v1347
    %1353 = vmatpush.msra.mxu0 %v1346
    %1354 = vmatpush.msra.mxu0 %v1345
    %1355 = vmatpush.msra.mxu0 %v1344
    %1356 = vmatpush.msra.mxu0 %v1343
    %1357 = vmatpush.msra.mxu0 %v1342
    %1358 = vmatpush.msra.mxu0 %v1341
    %1359 = vmatpush.msra.mxu0 %v1340
    %1360 = vmatpush.msra.mxu0 %v1339
    %1361 = vmatpush.msra.mxu0 %v1338
    %1362 = vmatpush.msra.mxu0 %v1337
    %1363 = vmatpush.msra.mxu0 %v1336
    %1364 = vmatpush.msra.mxu0 %v1335
    %1365 = vmatpush.msra.mxu0 %v1334
    %1366 = vmatpush.msra.mxu0 %v1333
    %1367 = vmatmul.f32.gmra.mxu0 %v1294
    %v1368 = vpop.f32.mrf.mxu0
    %v1369 = vadd.f32 %v1349, %v1368
    %1370 = vdwg.mxu0
    %s1371 = scalar_lea.vmem [#allocation6], 1024
    %v1372 = vld [vmem:[%s1371] sm:$0xff]
    %v1373 = vld [vmem:[%s1371 + $0x8] sm:$0xff]
    %v1374 = vld [vmem:[%s1371 + $0x10] sm:$0xff]
    %v1375 = vld [vmem:[%s1371 + $0x18] sm:$0xff]
    %v1376 = vld [vmem:[%s1371 + $0x20] sm:$0xff]
    %v1377 = vld [vmem:[%s1371 + $0x28] sm:$0xff]
    %v1378 = vld [vmem:[%s1371 + $0x30] sm:$0xff]
    %v1379 = vld [vmem:[%s1371 + $0x38] sm:$0xff]
    %v1380 = vld [vmem:[%s1371 + $0x40] sm:$0xff]
    %v1381 = vld [vmem:[%s1371 + $0x48] sm:$0xff]
    %v1382 = vld [vmem:[%s1371 + $0x50] sm:$0xff]
    %v1383 = vld [vmem:[%s1371 + $0x58] sm:$0xff]
    %v1384 = vld [vmem:[%s1371 + $0x60] sm:$0xff]
    %v1385 = vld [vmem:[%s1371 + $0x68] sm:$0xff]
    %v1386 = vld [vmem:[%s1371 + $0x70] sm:$0xff]
    %v1387 = vld [vmem:[%s1371 + $0x78] sm:$0xff]
    %v1388 = vrot.slane %v1264, 2
    %1390 = vmatpush.msra.mxu0 %v1387
    %1391 = vmatpush.msra.mxu0 %v1386
    %1392 = vmatpush.msra.mxu0 %v1385
    %1393 = vmatpush.msra.mxu0 %v1384
    %1394 = vmatpush.msra.mxu0 %v1383
    %1395 = vmatpush.msra.mxu0 %v1382
    %1396 = vmatpush.msra.mxu0 %v1381
    %1397 = vmatpush.msra.mxu0 %v1380
    %1398 = vmatpush.msra.mxu0 %v1379
    %1399 = vmatpush.msra.mxu0 %v1378
    %1400 = vmatpush.msra.mxu0 %v1377
    %1401 = vmatpush.msra.mxu0 %v1376
    %1402 = vmatpush.msra.mxu0 %v1375
    %1403 = vmatpush.msra.mxu0 %v1374
    %1404 = vmatpush.msra.mxu0 %v1373
    %1405 = vmatpush.msra.mxu0 %v1372
    %1406 = vmatmul.f32.gmra.mxu0 %v1294
    %v1407 = vpop.f32.mrf.mxu0
    %v1408 = vadd.f32 %v1388, %v1407
    %1409 = vdwg.mxu0
    %s1410 = scalar_lea.vmem %s10, 8
    %v1411 = vld [vmem:[%s1410] sm:$0xff]
    %v1412 = vperm.slane %v1369, 0
    %v1413 = vsel %vm355, %v1412, %v1411
    %s1414 = scalar_lea.vmem %s11, 8
    %v1415 = vld [vmem:[%s1414] sm:$0xff]
    %v1416 = vperm.slane %v1408, 0
    %v1417 = vsel %vm355, %v1416, %v1415
    %s1418 = scalar_lea.vmem %s15, 8
    %1419 = vst [vmem:[%s1418] sm:$0xff] %v1413
    %s1420 = scalar_lea.vmem %s16, 8
    %1421 = vst [vmem:[%s1420] sm:$0xff] %v1417
    %v1422 = vmul.f32 %v1330, 0.17677669
    %v1424 = vsel %vm365, %v1422, 0
    %v1427 = vsel %vm365, %v1413, 0
    %1429 = vmatpush.xpose.msra.mxu0 0.0
    %1430 = vmatpush.xpose.msra.mxu0 0.0
    %1431 = vmatpush.xpose.msra.mxu0 0.0
    %1432 = vmatpush.xpose.msra.mxu0 0.0
    %1433 = vmatpush.xpose.msra.mxu0 0.0
    %1434 = vmatpush.xpose.msra.mxu0 0.0
    %1435 = vmatpush.xpose.msra.mxu0 0.0
    %1436 = vmatpush.xpose.msra.mxu0 0.0
    %1437 = vmatpush.xpose.msra.mxu0 0.0
    %1438 = vmatpush.xpose.msra.mxu0 0.0
    %1439 = vmatpush.xpose.msra.mxu0 0.0
    %1440 = vmatpush.xpose.msra.mxu0 0.0
    %1441 = vmatpush.xpose.msra.mxu0 0.0
    %1442 = vmatpush.xpose.msra.mxu0 0.0
    %1443 = vmatpush.xpose.msra.mxu0 0.0
    %1444 = vmatpush.xpose.msra.mxu0 %v1427
    %1445 = vmatmul.f32.gmra.mxu0 %v1424
    %v1446 = vpop.f32.mrf.mxu0
    %v1447 = vadd.f32 %v199, %v1446
    %1448 = vdwg.mxu0
    %v1449 = vsel %vm392, %v1447, -inf
    %1450 = vmax.xlane.f32.xlu0 %v1449
    %v1451 = vpop.xlane.xlu0 %1450
    %v1452 = vsub.f32 %v1447, %v1451
    %v1453 = vmul.f32 %v1452, 1.442695
    %v1454 = vpow.pop %v1453
    %v1455 = vsel %vm392, %v1454, 0.0
    %1456 = vadd.xlane.f32.xlu0 %v1455
    %v1457 = vpop.xlane.xlu0 %1456
    %v1458 = vrcp.pop %v1457
    %v1459 = vmul.f32 %v1454, %v1458
    %v1461 = vsel %vm153, %v1459, 0
    %1463 = vmatpush.msra.mxu0 0.0
    %1464 = vmatpush.msra.mxu0 0.0
    %1465 = vmatpush.msra.mxu0 0.0
    %1466 = vmatpush.msra.mxu0 0.0
    %1467 = vmatpush.msra.mxu0 0.0
    %1468 = vmatpush.msra.mxu0 0.0
    %1469 = vmatpush.msra.mxu0 0.0
    %1470 = vmatpush.msra.mxu0 0.0
    %1471 = vmatpush.msra.mxu0 0.0
    %1472 = vmatpush.msra.mxu0 0.0
    %1473 = vmatpush.msra.mxu0 0.0
    %1474 = vmatpush.msra.mxu0 0.0
    %1475 = vmatpush.msra.mxu0 0.0
    %1476 = vmatpush.msra.mxu0 0.0
    %1477 = vmatpush.msra.mxu0 0.0
    %1478 = vmatpush.msra.mxu0 %v1417
    %1479 = vmatmul.f32.gmra.mxu0 %v1461
    %v1480 = vpop.f32.mrf.mxu0
    %v1481 = vadd.f32 0.0, %v1480
    %1482 = vdwg.mxu0
    %1483 = vrot.lane.b32.xlu0 %v1422, 96
    %v1484 = vpop.permute.xlu0 %1483
    %1485 = vrot.lane.b32.xlu0 %v1413, 96
    %v1486 = vpop.permute.xlu0 %1485
    %v1487 = vsel %vm365, %v1484, 0
    %v1489 = vsel %vm365, %v1486, 0
    %1491 = vmatpush.xpose.msra.mxu0 0.0
    %1492 = vmatpush.xpose.msra.mxu0 0.0
    %1493 = vmatpush.xpose.msra.mxu0 0.0
    %1494 = vmatpush.xpose.msra.mxu0 0.0
    %1495 = vmatpush.xpose.msra.mxu0 0.0
    %1496 = vmatpush.xpose.msra.mxu0 0.0
    %1497 = vmatpush.xpose.msra.mxu0 0.0
    %1498 = vmatpush.xpose.msra.mxu0 0.0
    %1499 = vmatpush.xpose.msra.mxu0 0.0
    %1500 = vmatpush.xpose.msra.mxu0 0.0
    %1501 = vmatpush.xpose.msra.mxu0 0.0
    %1502 = vmatpush.xpose.msra.mxu0 0.0
    %1503 = vmatpush.xpose.msra.mxu0 0.0
    %1504 = vmatpush.xpose.msra.mxu0 0.0
    %1505 = vmatpush.xpose.msra.mxu0 0.0
    %1506 = vmatpush.xpose.msra.mxu0 %v1489
    %1507 = vmatmul.f32.gmra.mxu0 %v1487
    %v1508 = vpop.f32.mrf.mxu0
    %v1509 = vadd.f32 %v199, %v1508
    %1510 = vdwg.mxu0
    %v1511 = vsel %vm392, %v1509, -inf
    %1512 = vmax.xlane.f32.xlu0 %v1511
    %v1513 = vpop.xlane.xlu0 %1512
    %v1514 = vsub.f32 %v1509, %v1513
    %v1515 = vmul.f32 %v1514, 1.442695
    %v1516 = vpow.pop %v1515
    %v1517 = vsel %vm392, %v1516, 0.0
    %1518 = vadd.xlane.f32.xlu0 %v1517
    %v1519 = vpop.xlane.xlu0 %1518
    %v1520 = vrcp.pop %v1519
    %v1521 = vmul.f32 %v1516, %v1520
    %1523 = vrot.lane.b32.xlu0 %v1417, 96
    %v1524 = vpop.permute.xlu0 %1523
    %v1527 = vsel %vm153, %v1521, 0
    %1529 = vmatpush.msra.mxu0 0.0
    %1530 = vmatpush.msra.mxu0 0.0
    %1531 = vmatpush.msra.mxu0 0.0
    %1532 = vmatpush.msra.mxu0 0.0
    %1533 = vmatpush.msra.mxu0 0.0
    %1534 = vmatpush.msra.mxu0 0.0
    %1535 = vmatpush.msra.mxu0 0.0
    %1536 = vmatpush.msra.mxu0 0.0
    %1537 = vmatpush.msra.mxu0 0.0
    %1538 = vmatpush.msra.mxu0 0.0
    %1539 = vmatpush.msra.mxu0 0.0
    %1540 = vmatpush.msra.mxu0 0.0
    %1541 = vmatpush.msra.mxu0 0.0
    %1542 = vmatpush.msra.mxu0 0.0
    %1543 = vmatpush.msra.mxu0 0.0
    %1544 = vmatpush.msra.mxu0 %v1524
    %1545 = vmatmul.f32.gmra.mxu0 %v1527
    %v1546 = vpop.f32.mrf.mxu0
    %v1547 = vadd.f32 0.0, %v1546
    %1548 = vdwg.mxu0
    %1549 = vrot.lane.b32.xlu0 %v1422, 64
    %v1550 = vpop.permute.xlu0 %1549
    %1551 = vrot.lane.b32.xlu0 %v1413, 64
    %v1552 = vpop.permute.xlu0 %1551
    %v1553 = vsel %vm365, %v1550, 0
    %v1555 = vsel %vm365, %v1552, 0
    %1557 = vmatpush.xpose.msra.mxu0 0.0
    %1558 = vmatpush.xpose.msra.mxu0 0.0
    %1559 = vmatpush.xpose.msra.mxu0 0.0
    %1560 = vmatpush.xpose.msra.mxu0 0.0
    %1561 = vmatpush.xpose.msra.mxu0 0.0
    %1562 = vmatpush.xpose.msra.mxu0 0.0
    %1563 = vmatpush.xpose.msra.mxu0 0.0
    %1564 = vmatpush.xpose.msra.mxu0 0.0
    %1565 = vmatpush.xpose.msra.mxu0 0.0
    %1566 = vmatpush.xpose.msra.mxu0 0.0
    %1567 = vmatpush.xpose.msra.mxu0 0.0
    %1568 = vmatpush.xpose.msra.mxu0 0.0
    %1569 = vmatpush.xpose.msra.mxu0 0.0
    %1570 = vmatpush.xpose.msra.mxu0 0.0
    %1571 = vmatpush.xpose.msra.mxu0 0.0
    %1572 = vmatpush.xpose.msra.mxu0 %v1555
    %1573 = vmatmul.f32.gmra.mxu0 %v1553
    %v1574 = vpop.f32.mrf.mxu0
    %v1575 = vadd.f32 %v199, %v1574
    %1576 = vdwg.mxu0
    %v1577 = vsel %vm392, %v1575, -inf
    %1578 = vmax.xlane.f32.xlu0 %v1577
    %v1579 = vpop.xlane.xlu0 %1578
    %v1580 = vsub.f32 %v1575, %v1579
    %v1581 = vmul.f32 %v1580, 1.442695
    %v1582 = vpow.pop %v1581
    %v1583 = vsel %vm392, %v1582, 0.0
    %1584 = vadd.xlane.f32.xlu0 %v1583
    %v1585 = vpop.xlane.xlu0 %1584
    %v1586 = vrcp.pop %v1585
    %v1587 = vmul.f32 %v1582, %v1586
    %1588 = vrot.lane.b32.xlu0 %v1417, 64
    %v1589 = vpop.permute.xlu0 %1588
    %v1592 = vsel %vm153, %v1587, 0
    %1594 = vmatpush.msra.mxu0 0.0
    %1595 = vmatpush.msra.mxu0 0.0
    %1596 = vmatpush.msra.mxu0 0.0
    %1597 = vmatpush.msra.mxu0 0.0
    %1598 = vmatpush.msra.mxu0 0.0
    %1599 = vmatpush.msra.mxu0 0.0
    %1600 = vmatpush.msra.mxu0 0.0
    %1601 = vmatpush.msra.mxu0 0.0
    %1602 = vmatpush.msra.mxu0 0.0
    %1603 = vmatpush.msra.mxu0 0.0
    %1604 = vmatpush.msra.mxu0 0.0
    %1605 = vmatpush.msra.mxu0 0.0
    %1606 = vmatpush.msra.mxu0 0.0
    %1607 = vmatpush.msra.mxu0 0.0
    %1608 = vmatpush.msra.mxu0 0.0
    %1609 = vmatpush.msra.mxu0 %v1589
    %1610 = vmatmul.f32.gmra.mxu0 %v1592
    %v1611 = vpop.f32.mrf.mxu0
    %v1612 = vadd.f32 0.0, %v1611
    %1613 = vdwg.mxu0
    %1614 = vrot.lane.b32.xlu0 %v1422, 32
    %v1615 = vpop.permute.xlu0 %1614
    %1616 = vrot.lane.b32.xlu0 %v1413, 32
    %v1617 = vpop.permute.xlu0 %1616
    %v1618 = vsel %vm365, %v1615, 0
    %v1620 = vsel %vm365, %v1617, 0
    %1622 = vmatpush.xpose.msra.mxu0 0.0
    %1623 = vmatpush.xpose.msra.mxu0 0.0
    %1624 = vmatpush.xpose.msra.mxu0 0.0
    %1625 = vmatpush.xpose.msra.mxu0 0.0
    %1626 = vmatpush.xpose.msra.mxu0 0.0
    %1627 = vmatpush.xpose.msra.mxu0 0.0
    %1628 = vmatpush.xpose.msra.mxu0 0.0
    %1629 = vmatpush.xpose.msra.mxu0 0.0
    %1630 = vmatpush.xpose.msra.mxu0 0.0
    %1631 = vmatpush.xpose.msra.mxu0 0.0
    %1632 = vmatpush.xpose.msra.mxu0 0.0
    %1633 = vmatpush.xpose.msra.mxu0 0.0
    %1634 = vmatpush.xpose.msra.mxu0 0.0
    %1635 = vmatpush.xpose.msra.mxu0 0.0
    %1636 = vmatpush.xpose.msra.mxu0 0.0
    %1637 = vmatpush.xpose.msra.mxu0 %v1620
    %1638 = vmatmul.f32.gmra.mxu0 %v1618
    %v1639 = vpop.f32.mrf.mxu0
    %v1640 = vadd.f32 %v199, %v1639
    %1641 = vdwg.mxu0
    %v1642 = vsel %vm392, %v1640, -inf
    %1643 = vmax.xlane.f32.xlu0 %v1642
    %v1644 = vpop.xlane.xlu0 %1643
    %v1645 = vsub.f32 %v1640, %v1644
    %v1646 = vmul.f32 %v1645, 1.442695
    %v1647 = vpow.pop %v1646
    %v1648 = vsel %vm392, %v1647, 0.0
    %1649 = vadd.xlane.f32.xlu0 %v1648
    %v1650 = vpop.xlane.xlu0 %1649
    %v1651 = vrcp.pop %v1650
    %v1652 = vmul.f32 %v1647, %v1651
    %1653 = vrot.lane.b32.xlu0 %v1417, 32
    %v1654 = vpop.permute.xlu0 %1653
    %v1657 = vsel %vm153, %v1652, 0
    %1659 = vmatpush.msra.mxu0 0.0
    %1660 = vmatpush.msra.mxu0 0.0
    %1661 = vmatpush.msra.mxu0 0.0
    %1662 = vmatpush.msra.mxu0 0.0
    %1663 = vmatpush.msra.mxu0 0.0
    %1664 = vmatpush.msra.mxu0 0.0
    %1665 = vmatpush.msra.mxu0 0.0
    %1666 = vmatpush.msra.mxu0 0.0
    %1667 = vmatpush.msra.mxu0 0.0
    %1668 = vmatpush.msra.mxu0 0.0
    %1669 = vmatpush.msra.mxu0 0.0
    %1670 = vmatpush.msra.mxu0 0.0
    %1671 = vmatpush.msra.mxu0 0.0
    %1672 = vmatpush.msra.mxu0 0.0
    %1673 = vmatpush.msra.mxu0 0.0
    %1674 = vmatpush.msra.mxu0 %v1654
    %1675 = vmatmul.f32.gmra.mxu0 %v1657
    %v1676 = vpop.f32.mrf.mxu0
    %v1677 = vadd.f32 0.0, %v1676
    %1678 = vdwg.mxu0
    %1680 = vrot.lane.b32.xlu0 %v1547, 32
    %v1681 = vpop.permute.xlu0 %1680
    %1684 = vrot.lane.b32.xlu0 %v1612, 64
    %v1685 = vpop.permute.xlu0 %1684
    %1688 = vrot.lane.b32.xlu0 %v1677, 96
    %v1689 = vpop.permute.xlu0 %1688
    %v1691 = vsel %vm365, %v1481, %v1681
    %v1692 = vsel %vm636, %v1691, %v1685
    %v1693 = vsel %vm638, %v1692, %v1689
    %s1694 = scalar_lea.vmem [#allocation6], 1152
    %v1695 = vld [vmem:[%s1694] sm:$0xff]
    %v1696 = vld [vmem:[%s1694 + $0x8] sm:$0xff]
    %v1697 = vld [vmem:[%s1694 + $0x10] sm:$0xff]
    %v1698 = vld [vmem:[%s1694 + $0x18] sm:$0xff]
    %v1699 = vld [vmem:[%s1694 + $0x20] sm:$0xff]
    %v1700 = vld [vmem:[%s1694 + $0x28] sm:$0xff]
    %v1701 = vld [vmem:[%s1694 + $0x30] sm:$0xff]
    %v1702 = vld [vmem:[%s1694 + $0x38] sm:$0xff]
    %v1703 = vld [vmem:[%s1694 + $0x40] sm:$0xff]
    %v1704 = vld [vmem:[%s1694 + $0x48] sm:$0xff]
    %v1705 = vld [vmem:[%s1694 + $0x50] sm:$0xff]
    %v1706 = vld [vmem:[%s1694 + $0x58] sm:$0xff]
    %v1707 = vld [vmem:[%s1694 + $0x60] sm:$0xff]
    %v1708 = vld [vmem:[%s1694 + $0x68] sm:$0xff]
    %v1709 = vld [vmem:[%s1694 + $0x70] sm:$0xff]
    %v1710 = vld [vmem:[%s1694 + $0x78] sm:$0xff]
    %1711 = vmatpush.msra.mxu0 %v1710
    %1712 = vmatpush.msra.mxu0 %v1709
    %1713 = vmatpush.msra.mxu0 %v1708
    %1714 = vmatpush.msra.mxu0 %v1707
    %1715 = vmatpush.msra.mxu0 %v1706
    %1716 = vmatpush.msra.mxu0 %v1705
    %1717 = vmatpush.msra.mxu0 %v1704
    %1718 = vmatpush.msra.mxu0 %v1703
    %1719 = vmatpush.msra.mxu0 %v1702
    %1720 = vmatpush.msra.mxu0 %v1701
    %1721 = vmatpush.msra.mxu0 %v1700
    %1722 = vmatpush.msra.mxu0 %v1699
    %1723 = vmatpush.msra.mxu0 %v1698
    %1724 = vmatpush.msra.mxu0 %v1697
    %1725 = vmatpush.msra.mxu0 %v1696
    %1726 = vmatpush.msra.mxu0 %v1695
    %1727 = vmatmul.f32.gmra.mxu0 %v1693
    %v1728 = vpop.f32.mrf.mxu0
    %v1729 = vadd.f32 0.0, %v1728
    %1730 = vdwg.mxu0
    %v1731 = vadd.f32 %v1261, %v1729
    %v1732 = vrot.slane %v1264, 3
    %v1734 = vadd.f32 %v1731, %v1732
    %v1735 = vsel %vm204, %v1734, 0.0
    %1736 = vadd.xlane.f32.xlu0 %v1735
    %v1737 = vpop.xlane.xlu0 %1736
    %v1738 = vmul.f32 %v1737, %v214
    %v1739 = vsub.f32 %v1734, %v1738
    %v1740 = vmul.f32 %v1739, %v1739
    %v1741 = vsel %vm204, %v1740, 0.0
    %1742 = vadd.xlane.f32.xlu0 %v1741
    %v1743 = vpop.xlane.xlu0 %1742
    %v1744 = vmul.f32 %v1743, %v214
    %v1745 = vadd.f32 %v1744, 1e-05
    %v1746 = vrsqrt.pop %v1745
    %v1747 = vmul.f32 %v1746, %v1745
    %v1748 = vmul.f32 %v1747, %v1746
    %v1749 = vmul.f32 0.5, %v1748
    %v1750 = vsub.f32 1.5, %v1749
    %v1751 = vmul.f32 %v1746, %v1750
    %vm1752 = vweird.f32 %v1745
    %vm1753 = vweird.f32 %v1746
    %vm1754 = vmor %vm1752, %vm1753
    %v1755 = vsel %vm1754, %v1746, %v1751
    %v1756 = vmul.f32 %v1739, %v1755
    %v1757 = vmul.f32 %v1756, %v1265
    %v1759 = vrot.slane %v1265, 1
    %v1761 = vadd.f32 %v1757, %v1759
    %s1762 = scalar_lea.vmem [#allocation6], 1280
    %v1763 = vld [vmem:[%s1762] sm:$0xff]
    %v1764 = vld [vmem:[%s1762 + $0x8] sm:$0xff]
    %v1765 = vld [vmem:[%s1762 + $0x10] sm:$0xff]
    %v1766 = vld [vmem:[%s1762 + $0x18] sm:$0xff]
    %v1767 = vld [vmem:[%s1762 + $0x20] sm:$0xff]
    %v1768 = vld [vmem:[%s1762 + $0x28] sm:$0xff]
    %v1769 = vld [vmem:[%s1762 + $0x30] sm:$0xff]
    %v1770 = vld [vmem:[%s1762 + $0x38] sm:$0xff]
    %v1771 = vld [vmem:[%s1762 + $0x40] sm:$0xff]
    %v1772 = vld [vmem:[%s1762 + $0x48] sm:$0xff]
    %v1773 = vld [vmem:[%s1762 + $0x50] sm:$0xff]
    %v1774 = vld [vmem:[%s1762 + $0x58] sm:$0xff]
    %v1775 = vld [vmem:[%s1762 + $0x60] sm:$0xff]
    %v1776 = vld [vmem:[%s1762 + $0x68] sm:$0xff]
    %v1777 = vld [vmem:[%s1762 + $0x70] sm:$0xff]
    %v1778 = vld [vmem:[%s1762 + $0x78] sm:$0xff]
    %v1779 = vrot.slane %v1264, 4
    %1781 = vmatpush.msra.mxu0 %v1778
    %1782 = vmatpush.msra.mxu0 %v1777
    %1783 = vmatpush.msra.mxu0 %v1776
    %1784 = vmatpush.msra.mxu0 %v1775
    %1785 = vmatpush.msra.mxu0 %v1774
    %1786 = vmatpush.msra.mxu0 %v1773
    %1787 = vmatpush.msra.mxu0 %v1772
    %1788 = vmatpush.msra.mxu0 %v1771
    %1789 = vmatpush.msra.mxu0 %v1770
    %1790 = vmatpush.msra.mxu0 %v1769
    %1791 = vmatpush.msra.mxu0 %v1768
    %1792 = vmatpush.msra.mxu0 %v1767
    %1793 = vmatpush.msra.mxu0 %v1766
    %1794 = vmatpush.msra.mxu0 %v1765
    %1795 = vmatpush.msra.mxu0 %v1764
    %1796 = vmatpush.msra.mxu0 %v1763
    %1797 = vmatmul.f32.gmra.mxu0 %v1761
    %v1798 = vpop.f32.mrf.mxu0
    %v1799 = vadd.f32 %v1779, %v1798
    %1800 = vdwg.mxu0
    %s1801 = scalar_lea.vmem %s8, 8
    %v1802 = vld [vmem:[%s1801] sm:$0xff]
    %s1803 = scalar_lea.vmem %s9, 8
    %v1804 = vld [vmem:[%s1803] sm:$0xff]
    %v1805 = vmul.f32 %v1799, 0.17677669
    %v1807 = vsel %vm365, %v1805, 0
    %v1810 = vsel %vm365, %v1802, 0
    %1812 = vmatpush.xpose.msra.mxu0 0.0
    %1813 = vmatpush.xpose.msra.mxu0 0.0
    %1814 = vmatpush.xpose.msra.mxu0 0.0
    %1815 = vmatpush.xpose.msra.mxu0 0.0
    %1816 = vmatpush.xpose.msra.mxu0 0.0
    %1817 = vmatpush.xpose.msra.mxu0 0.0
    %1818 = vmatpush.xpose.msra.mxu0 0.0
    %1819 = vmatpush.xpose.msra.mxu0 0.0
    %1820 = vmatpush.xpose.msra.mxu0 0.0
    %1821 = vmatpush.xpose.msra.mxu0 0.0
    %1822 = vmatpush.xpose.msra.mxu0 0.0
    %1823 = vmatpush.xpose.msra.mxu0 0.0
    %1824 = vmatpush.xpose.msra.mxu0 0.0
    %1825 = vmatpush.xpose.msra.mxu0 0.0
    %1826 = vmatpush.xpose.msra.mxu0 0.0
    %1827 = vmatpush.xpose.msra.mxu0 %v1810
    %1828 = vmatmul.f32.gmra.mxu0 %v1807
    %v1829 = vpop.f32.mrf.mxu0
    %v1830 = vadd.f32 0.0, %v1829
    %1831 = vdwg.mxu0
    %v1832 = vsel %vm392, %v1830, -inf
    %1833 = vmax.xlane.f32.xlu0 %v1832
    %v1834 = vpop.xlane.xlu0 %1833
    %v1835 = vsub.f32 %v1830, %v1834
    %v1836 = vmul.f32 %v1835, 1.442695
    %v1837 = vpow.pop %v1836
    %v1838 = vsel %vm392, %v1837, 0.0
    %1839 = vadd.xlane.f32.xlu0 %v1838
    %v1840 = vpop.xlane.xlu0 %1839
    %v1841 = vrcp.pop %v1840
    %v1842 = vmul.f32 %v1837, %v1841
    %v1844 = vsel %vm153, %v1842, 0
    %1846 = vmatpush.msra.mxu0 0.0
    %1847 = vmatpush.msra.mxu0 0.0
    %1848 = vmatpush.msra.mxu0 0.0
    %1849 = vmatpush.msra.mxu0 0.0
    %1850 = vmatpush.msra.mxu0 0.0
    %1851 = vmatpush.msra.mxu0 0.0
    %1852 = vmatpush.msra.mxu0 0.0
    %1853 = vmatpush.msra.mxu0 0.0
    %1854 = vmatpush.msra.mxu0 0.0
    %1855 = vmatpush.msra.mxu0 0.0
    %1856 = vmatpush.msra.mxu0 0.0
    %1857 = vmatpush.msra.mxu0 0.0
    %1858 = vmatpush.msra.mxu0 0.0
    %1859 = vmatpush.msra.mxu0 0.0
    %1860 = vmatpush.msra.mxu0 0.0
    %1861 = vmatpush.msra.mxu0 %v1804
    %1862 = vmatmul.f32.gmra.mxu0 %v1844
    %v1863 = vpop.f32.mrf.mxu0
    %v1864 = vadd.f32 0.0, %v1863
    %1865 = vdwg.mxu0
    %1866 = vrot.lane.b32.xlu0 %v1805, 96
    %v1867 = vpop.permute.xlu0 %1866
    %1868 = vrot.lane.b32.xlu0 %v1802, 96
    %v1869 = vpop.permute.xlu0 %1868
    %v1870 = vsel %vm365, %v1867, 0
    %v1872 = vsel %vm365, %v1869, 0
    %1874 = vmatpush.xpose.msra.mxu0 0.0
    %1875 = vmatpush.xpose.msra.mxu0 0.0
    %1876 = vmatpush.xpose.msra.mxu0 0.0
    %1877 = vmatpush.xpose.msra.mxu0 0.0
    %1878 = vmatpush.xpose.msra.mxu0 0.0
    %1879 = vmatpush.xpose.msra.mxu0 0.0
    %1880 = vmatpush.xpose.msra.mxu0 0.0
    %1881 = vmatpush.xpose.msra.mxu0 0.0
    %1882 = vmatpush.xpose.msra.mxu0 0.0
    %1883 = vmatpush.xpose.msra.mxu0 0.0
    %1884 = vmatpush.xpose.msra.mxu0 0.0
    %1885 = vmatpush.xpose.msra.mxu0 0.0
    %1886 = vmatpush.xpose.msra.mxu0 0.0
    %1887 = vmatpush.xpose.msra.mxu0 0.0
    %1888 = vmatpush.xpose.msra.mxu0 0.0
    %1889 = vmatpush.xpose.msra.mxu0 %v1872
    %1890 = vmatmul.f32.gmra.mxu0 %v1870
    %v1891 = vpop.f32.mrf.mxu0
    %v1892 = vadd.f32 0.0, %v1891
    %1893 = vdwg.mxu0
    %v1894 = vsel %vm392, %v1892, -inf
    %1895 = vmax.xlane.f32.xlu0 %v1894
    %v1896 = vpop.xlane.xlu0 %1895
    %v1897 = vsub.f32 %v1892, %v1896
    %v1898 = vmul.f32 %v1897, 1.442695
    %v1899 = vpow.pop %v1898
    %v1900 = vsel %vm392, %v1899, 0.0
    %1901 = vadd.xlane.f32.xlu0 %v1900
    %v1902 = vpop.xlane.xlu0 %1901
    %v1903 = vrcp.pop %v1902
    %v1904 = vmul.f32 %v1899, %v1903
    %1906 = vrot.lane.b32.xlu0 %v1804, 96
    %v1907 = vpop.permute.xlu0 %1906
    %v1910 = vsel %vm153, %v1904, 0
    %1912 = vmatpush.msra.mxu0 0.0
    %1913 = vmatpush.msra.mxu0 0.0
    %1914 = vmatpush.msra.mxu0 0.0
    %1915 = vmatpush.msra.mxu0 0.0
    %1916 = vmatpush.msra.mxu0 0.0
    %1917 = vmatpush.msra.mxu0 0.0
    %1918 = vmatpush.msra.mxu0 0.0
    %1919 = vmatpush.msra.mxu0 0.0
    %1920 = vmatpush.msra.mxu0 0.0
    %1921 = vmatpush.msra.mxu0 0.0
    %1922 = vmatpush.msra.mxu0 0.0
    %1923 = vmatpush.msra.mxu0 0.0
    %1924 = vmatpush.msra.mxu0 0.0
    %1925 = vmatpush.msra.mxu0 0.0
    %1926 = vmatpush.msra.mxu0 0.0
    %1927 = vmatpush.msra.mxu0 %v1907
    %1928 = vmatmul.f32.gmra.mxu0 %v1910
    %v1929 = vpop.f32.mrf.mxu0
    %v1930 = vadd.f32 0.0, %v1929
    %1931 = vdwg.mxu0
    %1932 = vrot.lane.b32.xlu0 %v1805, 64
    %v1933 = vpop.permute.xlu0 %1932
    %1934 = vrot.lane.b32.xlu0 %v1802, 64
    %v1935 = vpop.permute.xlu0 %1934
    %v1936 = vsel %vm365, %v1933, 0
    %v1938 = vsel %vm365, %v1935, 0
    %1940 = vmatpush.xpose.msra.mxu0 0.0
    %1941 = vmatpush.xpose.msra.mxu0 0.0
    %1942 = vmatpush.xpose.msra.mxu0 0.0
    %1943 = vmatpush.xpose.msra.mxu0 0.0
    %1944 = vmatpush.xpose.msra.mxu0 0.0
    %1945 = vmatpush.xpose.msra.mxu0 0.0
    %1946 = vmatpush.xpose.msra.mxu0 0.0
    %1947 = vmatpush.xpose.msra.mxu0 0.0
    %1948 = vmatpush.xpose.msra.mxu0 0.0
    %1949 = vmatpush.xpose.msra.mxu0 0.0
    %1950 = vmatpush.xpose.msra.mxu0 0.0
    %1951 = vmatpush.xpose.msra.mxu0 0.0
    %1952 = vmatpush.xpose.msra.mxu0 0.0
    %1953 = vmatpush.xpose.msra.mxu0 0.0
    %1954 = vmatpush.xpose.msra.mxu0 0.0
    %1955 = vmatpush.xpose.msra.mxu0 %v1938
    %1956 = vmatmul.f32.gmra.mxu0 %v1936
    %v1957 = vpop.f32.mrf.mxu0
    %v1958 = vadd.f32 0.0, %v1957
    %1959 = vdwg.mxu0
    %v1960 = vsel %vm392, %v1958, -inf
    %1961 = vmax.xlane.f32.xlu0 %v1960
    %v1962 = vpop.xlane.xlu0 %1961
    %v1963 = vsub.f32 %v1958, %v1962
    %v1964 = vmul.f32 %v1963, 1.442695
    %v1965 = vpow.pop %v1964
    %v1966 = vsel %vm392, %v1965, 0.0
    %1967 = vadd.xlane.f32.xlu0 %v1966
    %v1968 = vpop.xlane.xlu0 %1967
    %v1969 = vrcp.pop %v1968
    %v1970 = vmul.f32 %v1965, %v1969
    %1971 = vrot.lane.b32.xlu0 %v1804, 64
    %v1972 = vpop.permute.xlu0 %1971
    %v1975 = vsel %vm153, %v1970, 0
    %1977 = vmatpush.msra.mxu0 0.0
    %1978 = vmatpush.msra.mxu0 0.0
    %1979 = vmatpush.msra.mxu0 0.0
    %1980 = vmatpush.msra.mxu0 0.0
    %1981 = vmatpush.msra.mxu0 0.0
    %1982 = vmatpush.msra.mxu0 0.0
    %1983 = vmatpush.msra.mxu0 0.0
    %1984 = vmatpush.msra.mxu0 0.0
    %1985 = vmatpush.msra.mxu0 0.0
    %1986 = vmatpush.msra.mxu0 0.0
    %1987 = vmatpush.msra.mxu0 0.0
    %1988 = vmatpush.msra.mxu0 0.0
    %1989 = vmatpush.msra.mxu0 0.0
    %1990 = vmatpush.msra.mxu0 0.0
    %1991 = vmatpush.msra.mxu0 0.0
    %1992 = vmatpush.msra.mxu0 %v1972
    %1993 = vmatmul.f32.gmra.mxu0 %v1975
    %v1994 = vpop.f32.mrf.mxu0
    %v1995 = vadd.f32 0.0, %v1994
    %1996 = vdwg.mxu0
    %1997 = vrot.lane.b32.xlu0 %v1805, 32
    %v1998 = vpop.permute.xlu0 %1997
    %1999 = vrot.lane.b32.xlu0 %v1802, 32
    %v2000 = vpop.permute.xlu0 %1999
    %v2001 = vsel %vm365, %v1998, 0
    %v2003 = vsel %vm365, %v2000, 0
    %2005 = vmatpush.xpose.msra.mxu0 0.0
    %2006 = vmatpush.xpose.msra.mxu0 0.0
    %2007 = vmatpush.xpose.msra.mxu0 0.0
    %2008 = vmatpush.xpose.msra.mxu0 0.0
    %2009 = vmatpush.xpose.msra.mxu0 0.0
    %2010 = vmatpush.xpose.msra.mxu0 0.0
    %2011 = vmatpush.xpose.msra.mxu0 0.0
    %2012 = vmatpush.xpose.msra.mxu0 0.0
    %2013 = vmatpush.xpose.msra.mxu0 0.0
    %2014 = vmatpush.xpose.msra.mxu0 0.0
    %2015 = vmatpush.xpose.msra.mxu0 0.0
    %2016 = vmatpush.xpose.msra.mxu0 0.0
    %2017 = vmatpush.xpose.msra.mxu0 0.0
    %2018 = vmatpush.xpose.msra.mxu0 0.0
    %2019 = vmatpush.xpose.msra.mxu0 0.0
    %2020 = vmatpush.xpose.msra.mxu0 %v2003
    %2021 = vmatmul.f32.gmra.mxu0 %v2001
    %v2022 = vpop.f32.mrf.mxu0
    %v2023 = vadd.f32 0.0, %v2022
    %2024 = vdwg.mxu0
    %v2025 = vsel %vm392, %v2023, -inf
    %2026 = vmax.xlane.f32.xlu0 %v2025
    %v2027 = vpop.xlane.xlu0 %2026
    %v2028 = vsub.f32 %v2023, %v2027
    %v2029 = vmul.f32 %v2028, 1.442695
    %v2030 = vpow.pop %v2029
    %v2031 = vsel %vm392, %v2030, 0.0
    %2032 = vadd.xlane.f32.xlu0 %v2031
    %v2033 = vpop.xlane.xlu0 %2032
    %v2034 = vrcp.pop %v2033
    %v2035 = vmul.f32 %v2030, %v2034
    %2036 = vrot.lane.b32.xlu0 %v1804, 32
    %v2037 = vpop.permute.xlu0 %2036
    %v2040 = vsel %vm153, %v2035, 0
    %2042 = vmatpush.msra.mxu0 0.0
    %2043 = vmatpush.msra.mxu0 0.0
    %2044 = vmatpush.msra.mxu0 0.0
    %2045 = vmatpush.msra.mxu0 0.0
    %2046 = vmatpush.msra.mxu0 0.0
    %2047 = vmatpush.msra.mxu0 0.0
    %2048 = vmatpush.msra.mxu0 0.0
    %2049 = vmatpush.msra.mxu0 0.0
    %2050 = vmatpush.msra.mxu0 0.0
    %2051 = vmatpush.msra.mxu0 0.0
    %2052 = vmatpush.msra.mxu0 0.0
    %2053 = vmatpush.msra.mxu0 0.0
    %2054 = vmatpush.msra.mxu0 0.0
    %2055 = vmatpush.msra.mxu0 0.0
    %2056 = vmatpush.msra.mxu0 0.0
    %2057 = vmatpush.msra.mxu0 %v2037
    %2058 = vmatmul.f32.gmra.mxu0 %v2040
    %v2059 = vpop.f32.mrf.mxu0
    %v2060 = vadd.f32 0.0, %v2059
    %2061 = vdwg.mxu0
    %2063 = vrot.lane.b32.xlu0 %v1930, 32
    %v2064 = vpop.permute.xlu0 %2063
    %2067 = vrot.lane.b32.xlu0 %v1995, 64
    %v2068 = vpop.permute.xlu0 %2067
    %2071 = vrot.lane.b32.xlu0 %v2060, 96
    %v2072 = vpop.permute.xlu0 %2071
    %v2074 = vsel %vm365, %v1864, %v2064
    %v2075 = vsel %vm636, %v2074, %v2068
    %v2076 = vsel %vm638, %v2075, %v2072
    %s2077 = scalar_lea.vmem [#allocation6], 1408
    %v2078 = vld [vmem:[%s2077] sm:$0xff]
    %v2079 = vld [vmem:[%s2077 + $0x8] sm:$0xff]
    %v2080 = vld [vmem:[%s2077 + $0x10] sm:$0xff]
    %v2081 = vld [vmem:[%s2077 + $0x18] sm:$0xff]
    %v2082 = vld [vmem:[%s2077 + $0x20] sm:$0xff]
    %v2083 = vld [vmem:[%s2077 + $0x28] sm:$0xff]
    %v2084 = vld [vmem:[%s2077 + $0x30] sm:$0xff]
    %v2085 = vld [vmem:[%s2077 + $0x38] sm:$0xff]
    %v2086 = vld [vmem:[%s2077 + $0x40] sm:$0xff]
    %v2087 = vld [vmem:[%s2077 + $0x48] sm:$0xff]
    %v2088 = vld [vmem:[%s2077 + $0x50] sm:$0xff]
    %v2089 = vld [vmem:[%s2077 + $0x58] sm:$0xff]
    %v2090 = vld [vmem:[%s2077 + $0x60] sm:$0xff]
    %v2091 = vld [vmem:[%s2077 + $0x68] sm:$0xff]
    %v2092 = vld [vmem:[%s2077 + $0x70] sm:$0xff]
    %v2093 = vld [vmem:[%s2077 + $0x78] sm:$0xff]
    %2094 = vmatpush.msra.mxu0 %v2093
    %2095 = vmatpush.msra.mxu0 %v2092
    %2096 = vmatpush.msra.mxu0 %v2091
    %2097 = vmatpush.msra.mxu0 %v2090
    %2098 = vmatpush.msra.mxu0 %v2089
    %2099 = vmatpush.msra.mxu0 %v2088
    %2100 = vmatpush.msra.mxu0 %v2087
    %2101 = vmatpush.msra.mxu0 %v2086
    %2102 = vmatpush.msra.mxu0 %v2085
    %2103 = vmatpush.msra.mxu0 %v2084
    %2104 = vmatpush.msra.mxu0 %v2083
    %2105 = vmatpush.msra.mxu0 %v2082
    %2106 = vmatpush.msra.mxu0 %v2081
    %2107 = vmatpush.msra.mxu0 %v2080
    %2108 = vmatpush.msra.mxu0 %v2079
    %2109 = vmatpush.msra.mxu0 %v2078
    %2110 = vmatmul.f32.gmra.mxu0 %v2076
    %v2111 = vpop.f32.mrf.mxu0
    %v2112 = vadd.f32 0.0, %v2111
    %2113 = vdwg.mxu0
    %v2114 = vadd.f32 %v1734, %v2112
    %v2115 = vrot.slane %v1264, 5
    %v2117 = vadd.f32 %v2114, %v2115
    %v2118 = vsel %vm204, %v2117, 0.0
    %2119 = vadd.xlane.f32.xlu0 %v2118
    %v2120 = vpop.xlane.xlu0 %2119
    %v2121 = vmul.f32 %v2120, %v214
    %v2122 = vsub.f32 %v2117, %v2121
    %v2123 = vmul.f32 %v2122, %v2122
    %v2124 = vsel %vm204, %v2123, 0.0
    %2125 = vadd.xlane.f32.xlu0 %v2124
    %v2126 = vpop.xlane.xlu0 %2125
    %v2127 = vmul.f32 %v2126, %v214
    %v2128 = vadd.f32 %v2127, 1e-05
    %v2129 = vrsqrt.pop %v2128
    %v2130 = vmul.f32 %v2129, %v2128
    %v2131 = vmul.f32 %v2130, %v2129
    %v2132 = vmul.f32 0.5, %v2131
    %v2133 = vsub.f32 1.5, %v2132
    %v2134 = vmul.f32 %v2129, %v2133
    %vm2135 = vweird.f32 %v2128
    %vm2136 = vweird.f32 %v2129
    %vm2137 = vmor %vm2135, %vm2136
    %v2138 = vsel %vm2137, %v2129, %v2134
    %v2139 = vmul.f32 %v2122, %v2138
    %v2140 = vrot.slane %v1265, 2
    %v2142 = vmul.f32 %v2139, %v2140
    %v2143 = vrot.slane %v1265, 3
    %v2145 = vadd.f32 %v2142, %v2143
    %s2146 = scalar_lea.vmem [#allocation8], 256
    %v2147 = vld [vmem:[%s2146] sm:$0xff]
    %v2148 = vld [vmem:[%s2146 + $0x8] sm:$0xff]
    %v2149 = vld [vmem:[%s2146 + $0x10] sm:$0xff]
    %v2150 = vld [vmem:[%s2146 + $0x18] sm:$0xff]
    %v2151 = vld [vmem:[%s2146 + $0x20] sm:$0xff]
    %v2152 = vld [vmem:[%s2146 + $0x28] sm:$0xff]
    %v2153 = vld [vmem:[%s2146 + $0x30] sm:$0xff]
    %v2154 = vld [vmem:[%s2146 + $0x38] sm:$0xff]
    %v2155 = vld [vmem:[%s2146 + $0x40] sm:$0xff]
    %v2156 = vld [vmem:[%s2146 + $0x48] sm:$0xff]
    %v2157 = vld [vmem:[%s2146 + $0x50] sm:$0xff]
    %v2158 = vld [vmem:[%s2146 + $0x58] sm:$0xff]
    %v2159 = vld [vmem:[%s2146 + $0x60] sm:$0xff]
    %v2160 = vld [vmem:[%s2146 + $0x68] sm:$0xff]
    %v2161 = vld [vmem:[%s2146 + $0x70] sm:$0xff]
    %v2162 = vld [vmem:[%s2146 + $0x78] sm:$0xff]
    %v2163 = vld [vmem:[%s2146 + $0x80] sm:$0xff]
    %v2164 = vld [vmem:[%s2146 + $0x88] sm:$0xff]
    %v2165 = vld [vmem:[%s2146 + $0x90] sm:$0xff]
    %v2166 = vld [vmem:[%s2146 + $0x98] sm:$0xff]
    %v2167 = vld [vmem:[%s2146 + $0xa0] sm:$0xff]
    %v2168 = vld [vmem:[%s2146 + $0xa8] sm:$0xff]
    %v2169 = vld [vmem:[%s2146 + $0xb0] sm:$0xff]
    %v2170 = vld [vmem:[%s2146 + $0xb8] sm:$0xff]
    %v2171 = vld [vmem:[%s2146 + $0xc0] sm:$0xff]
    %v2172 = vld [vmem:[%s2146 + $0xc8] sm:$0xff]
    %v2173 = vld [vmem:[%s2146 + $0xd0] sm:$0xff]
    %v2174 = vld [vmem:[%s2146 + $0xd8] sm:$0xff]
    %v2175 = vld [vmem:[%s2146 + $0xe0] sm:$0xff]
    %v2176 = vld [vmem:[%s2146 + $0xe8] sm:$0xff]
    %v2177 = vld [vmem:[%s2146 + $0xf0] sm:$0xff]
    %v2178 = vld [vmem:[%s2146 + $0xf8] sm:$0xff]
    %s2179 = scalar_lea.vmem %s6, 2
    %v2180 = vld [vmem:[%s2179] sm:$0x3]
    %v2182 = vperm.slane %v2180, 0
    %v2183 = vperm.slane %v2180, 1
    %2186 = vmatpush.msra.mxu0 %v2177
    %2187 = vmatpush.msra.mxu0 %v2175
    %2188 = vmatpush.msra.mxu0 %v2173
    %2189 = vmatpush.msra.mxu0 %v2171
    %2190 = vmatpush.msra.mxu0 %v2169
    %2191 = vmatpush.msra.mxu0 %v2167
    %2192 = vmatpush.msra.mxu0 %v2165
    %2193 = vmatpush.msra.mxu0 %v2163
    %2194 = vmatpush.msra.mxu0 %v2161
    %2195 = vmatpush.msra.mxu0 %v2159
    %2196 = vmatpush.msra.mxu0 %v2157
    %2197 = vmatpush.msra.mxu0 %v2155
    %2198 = vmatpush.msra.mxu0 %v2153
    %2199 = vmatpush.msra.mxu0 %v2151
    %2200 = vmatpush.msra.mxu0 %v2149
    %2201 = vmatpush.msra.mxu0 %v2147
    %2202 = vmatmul.f32.gmra.mxu0 %v2145
    %v2203 = vpop.f32.mrf.mxu0
    %v2204 = vadd.f32 %v2182, %v2203
    %2205 = vdwg.mxu0
    %2206 = vmatpush.msra.mxu0 %v2178
    %2207 = vmatpush.msra.mxu0 %v2176
    %2208 = vmatpush.msra.mxu0 %v2174
    %2209 = vmatpush.msra.mxu0 %v2172
    %2210 = vmatpush.msra.mxu0 %v2170
    %2211 = vmatpush.msra.mxu0 %v2168
    %2212 = vmatpush.msra.mxu0 %v2166
    %2213 = vmatpush.msra.mxu0 %v2164
    %2214 = vmatpush.msra.mxu0 %v2162
    %2215 = vmatpush.msra.mxu0 %v2160
    %2216 = vmatpush.msra.mxu0 %v2158
    %2217 = vmatpush.msra.mxu0 %v2156
    %2218 = vmatpush.msra.mxu0 %v2154
    %2219 = vmatpush.msra.mxu0 %v2152
    %2220 = vmatpush.msra.mxu0 %v2150
    %2221 = vmatpush.msra.mxu0 %v2148
    %2222 = vmatmul.f32.gmra.mxu0 %v2145
    %v2223 = vpop.f32.mrf.mxu0
    %v2224 = vadd.f32 %v2183, %v2223
    %2225 = vdwg.mxu0
    %v2226 = vmul.f32 %v2204, 0.5
    %v2227 = vmul.f32 %v2224, 0.5
    %v2228 = vmul.f32 %v2204, 0.044715
    %v2229 = vmul.f32 %v2224, 0.044715
    %v2230 = vmul.f32 %v2228, %v2204
    %v2231 = vmul.f32 %v2229, %v2224
    %v2232 = vmul.f32 %v2230, %v2204
    %v2233 = vmul.f32 %v2231, %v2224
    %v2234 = vadd.f32 %v2204, %v2232
    %v2235 = vadd.f32 %v2224, %v2233
    %v2236 = vmul.f32 %v2234, 0.7978846
    %v2237 = vmul.f32 %v2235, 0.7978846
    %v2238 = vtanh.pop %v2236
    %v2239 = vtanh.pop %v2237
    %v2240 = vadd.f32 %v2238, 1.0
    %v2241 = vadd.f32 %v2239, 1.0
    %v2242 = vmul.f32 %v2226, %v2240
    %v2243 = vmul.f32 %v2227, %v2241
    %s2244 = scalar_lea.vmem [#allocation9], 256
    %v2245 = vld [vmem:[%s2244] sm:$0xff]
    %v2246 = vld [vmem:[%s2244 + $0x8] sm:$0xff]
    %v2247 = vld [vmem:[%s2244 + $0x10] sm:$0xff]
    %v2248 = vld [vmem:[%s2244 + $0x18] sm:$0xff]
    %v2249 = vld [vmem:[%s2244 + $0x20] sm:$0xff]
    %v2250 = vld [vmem:[%s2244 + $0x28] sm:$0xff]
    %v2251 = vld [vmem:[%s2244 + $0x30] sm:$0xff]
    %v2252 = vld [vmem:[%s2244 + $0x38] sm:$0xff]
    %v2253 = vld [vmem:[%s2244 + $0x40] sm:$0xff]
    %v2254 = vld [vmem:[%s2244 + $0x48] sm:$0xff]
    %v2255 = vld [vmem:[%s2244 + $0x50] sm:$0xff]
    %v2256 = vld [vmem:[%s2244 + $0x58] sm:$0xff]
    %v2257 = vld [vmem:[%s2244 + $0x60] sm:$0xff]
    %v2258 = vld [vmem:[%s2244 + $0x68] sm:$0xff]
    %v2259 = vld [vmem:[%s2244 + $0x70] sm:$0xff]
    %v2260 = vld [vmem:[%s2244 + $0x78] sm:$0xff]
    %v2261 = vld [vmem:[%s2244 + $0x80] sm:$0xff]
    %v2262 = vld [vmem:[%s2244 + $0x88] sm:$0xff]
    %v2263 = vld [vmem:[%s2244 + $0x90] sm:$0xff]
    %v2264 = vld [vmem:[%s2244 + $0x98] sm:$0xff]
    %v2265 = vld [vmem:[%s2244 + $0xa0] sm:$0xff]
    %v2266 = vld [vmem:[%s2244 + $0xa8] sm:$0xff]
    %v2267 = vld [vmem:[%s2244 + $0xb0] sm:$0xff]
    %v2268 = vld [vmem:[%s2244 + $0xb8] sm:$0xff]
    %v2269 = vld [vmem:[%s2244 + $0xc0] sm:$0xff]
    %v2270 = vld [vmem:[%s2244 + $0xc8] sm:$0xff]
    %v2271 = vld [vmem:[%s2244 + $0xd0] sm:$0xff]
    %v2272 = vld [vmem:[%s2244 + $0xd8] sm:$0xff]
    %v2273 = vld [vmem:[%s2244 + $0xe0] sm:$0xff]
    %v2274 = vld [vmem:[%s2244 + $0xe8] sm:$0xff]
    %v2275 = vld [vmem:[%s2244 + $0xf0] sm:$0xff]
    %v2276 = vld [vmem:[%s2244 + $0xf8] sm:$0xff]
    %2277 = vmatpush.msra.mxu0 %v2260
    %2278 = vmatpush.msra.mxu0 %v2259
    %2279 = vmatpush.msra.mxu0 %v2258
    %2280 = vmatpush.msra.mxu0 %v2257
    %2281 = vmatpush.msra.mxu0 %v2256
    %2282 = vmatpush.msra.mxu0 %v2255
    %2283 = vmatpush.msra.mxu0 %v2254
    %2284 = vmatpush.msra.mxu0 %v2253
    %2285 = vmatpush.msra.mxu0 %v2252
    %2286 = vmatpush.msra.mxu0 %v2251
    %2287 = vmatpush.msra.mxu0 %v2250
    %2288 = vmatpush.msra.mxu0 %v2249
    %2289 = vmatpush.msra.mxu0 %v2248
    %2290 = vmatpush.msra.mxu0 %v2247
    %2291 = vmatpush.msra.mxu0 %v2246
    %2292 = vmatpush.msra.mxu0 %v2245
    %2293 = vmatmul.f32.gmra.mxu0 %v2242
    %v2294 = vpop.f32.mrf.mxu0
    %v2295 = vadd.f32 0.0, %v2294
    %2296 = vdwg.mxu0
    %2297 = vmatpush.msra.mxu0 %v2276
    %2298 = vmatpush.msra.mxu0 %v2275
    %2299 = vmatpush.msra.mxu0 %v2274
    %2300 = vmatpush.msra.mxu0 %v2273
    %2301 = vmatpush.msra.mxu0 %v2272
    %2302 = vmatpush.msra.mxu0 %v2271
    %2303 = vmatpush.msra.mxu0 %v2270
    %2304 = vmatpush.msra.mxu0 %v2269
    %2305 = vmatpush.msra.mxu0 %v2268
    %2306 = vmatpush.msra.mxu0 %v2267
    %2307 = vmatpush.msra.mxu0 %v2266
    %2308 = vmatpush.msra.mxu0 %v2265
    %2309 = vmatpush.msra.mxu0 %v2264
    %2310 = vmatpush.msra.mxu0 %v2263
    %2311 = vmatpush.msra.mxu0 %v2262
    %2312 = vmatpush.msra.mxu0 %v2261
    %2313 = vmatmul.f32.gmra.mxu0 %v2243
    %v2314 = vpop.f32.mrf.mxu0
    %v2315 = vadd.f32 %v2295, %v2314
    %2316 = vdwg.mxu0
    %v2317 = vadd.f32 %v2117, %v2315
    %v2318 = vrot.slane %v1265, 4
    %v2320 = vadd.f32 %v2317, %v2318
    %v2321 = vld [vmem:[%s12] sm:$0x1]
    %v2322 = vld [vmem:[%s12 + $0x1] sm:$0x1]
    %v2323 = vsel %vm204, %v2320, 0.0
    %2324 = vadd.xlane.f32.xlu0 %v2323
    %v2325 = vpop.xlane.xlu0 %2324
    %v2326 = vmul.f32 %v2325, %v214
    %v2327 = vsub.f32 %v2320, %v2326
    %v2328 = vmul.f32 %v2327, %v2327
    %v2329 = vsel %vm204, %v2328, 0.0
    %2330 = vadd.xlane.f32.xlu0 %v2329
    %v2331 = vpop.xlane.xlu0 %2330
    %v2332 = vmul.f32 %v2331, %v214
    %v2333 = vadd.f32 %v2332, 1e-05
    %v2334 = vrsqrt.pop %v2333
    %v2335 = vmul.f32 %v2334, %v2333
    %v2336 = vmul.f32 %v2335, %v2334
    %v2337 = vmul.f32 0.5, %v2336
    %v2338 = vsub.f32 1.5, %v2337
    %v2339 = vmul.f32 %v2334, %v2338
    %vm2340 = vweird.f32 %v2333
    %vm2341 = vweird.f32 %v2334
    %vm2342 = vmor %vm2340, %vm2341
    %v2343 = vsel %vm2342, %v2334, %v2339
    %v2344 = vmul.f32 %v2327, %v2343
    %v2345 = vmul.f32 %v2344, %v2321
    %v2346 = vadd.f32 %v2345, %v2322
    %2347 = vst [vmem:[%s13 + $0x2] sm:$0x1] %v2346
    %v2348 = vld [vmem:[#allocation5] sm:$0xff]
    %v2349 = vld [vmem:[#allocation5 + $0x8] sm:$0xff]
    %v2350 = vld [vmem:[#allocation5 + $0x10] sm:$0xff]
    %v2351 = vld [vmem:[#allocation5 + $0x18] sm:$0xff]
    %v2352 = vld [vmem:[#allocation5 + $0x20] sm:$0xff]
    %v2353 = vld [vmem:[#allocation5 + $0x28] sm:$0xff]
    %v2354 = vld [vmem:[#allocation5 + $0x30] sm:$0xff]
    %v2355 = vld [vmem:[#allocation5 + $0x38] sm:$0xff]
    %v2356 = vld [vmem:[#allocation5 + $0x40] sm:$0xff]
    %v2357 = vld [vmem:[#allocation5 + $0x48] sm:$0xff]
    %v2358 = vld [vmem:[#allocation5 + $0x50] sm:$0xff]
    %v2359 = vld [vmem:[#allocation5 + $0x58] sm:$0xff]
    %v2360 = vld [vmem:[#allocation5 + $0x60] sm:$0xff]
    %v2361 = vld [vmem:[#allocation5 + $0x68] sm:$0xff]
    %v2362 = vld [vmem:[#allocation5 + $0x70] sm:$0xff]
    %v2363 = vld [vmem:[#allocation5 + $0x78] sm:$0xff]
    %2364 = vmatpush.xpose.msra.mxu0 %v2363
    %2365 = vmatpush.xpose.msra.mxu0 %v2362
    %2366 = vmatpush.xpose.msra.mxu0 %v2361
    %2367 = vmatpush.xpose.msra.mxu0 %v2360
    %2368 = vmatpush.xpose.msra.mxu0 %v2359
    %2369 = vmatpush.xpose.msra.mxu0 %v2358
    %2370 = vmatpush.xpose.msra.mxu0 %v2357
    %2371 = vmatpush.xpose.msra.mxu0 %v2356
    %2372 = vmatpush.xpose.msra.mxu0 %v2355
    %2373 = vmatpush.xpose.msra.mxu0 %v2354
    %2374 = vmatpush.xpose.msra.mxu0 %v2353
    %2375 = vmatpush.xpose.msra.mxu0 %v2352
    %2376 = vmatpush.xpose.msra.mxu0 %v2351
    %2377 = vmatpush.xpose.msra.mxu0 %v2350
    %2378 = vmatpush.xpose.msra.mxu0 %v2349
    %2379 = vmatpush.xpose.msra.mxu0 %v2348
    %2380 = vmatmul.f32.gmra.mxu0 %v2346
    %v2381 = vpop.f32.mrf.mxu0
    %v2382 = vadd.f32 0.0, %v2381
    %2383 = vdwg.mxu0
    %2384 = vst [vmem:[%s14] sm:$0x1] %v2382
    // Predicated region
    $region74: #{closed_call.19} parent=1 // pred_check
      _
    $region75: #{closed_call.19} parent=1 // pred_check_branch
      %2386 = sbr.rel (0) target = $region77
    $region76: #{closed_call.19} parent=1 // pred_region
      _
    $region77: #{closed_call.19} parent=1 // pred_fallthru
      _
    // Predicated region
    $region78: #{closed_call.19} parent=1 // pred_check
      _
    $region79: #{closed_call.19} parent=1 // pred_check_branch
      %2388 = sbr.rel (0) target = $region81
    $region80: #{closed_call.19} parent=1 // pred_region
      _
    $region81: #{closed_call.19} parent=1 // pred_fallthru
      _
    // Predicated region
    $region82: #{closed_call.19} parent=1 // pred_check
      _
    $region83: #{closed_call.19} parent=1 // pred_check_branch
      %2390 = sbr.rel (0) target = $region85
    $region84: #{closed_call.19} parent=1 // pred_region
      _
    $region85: #{closed_call.19} parent=1 // pred_fallthru
      _
    // Predicated region
    $region86: #{closed_call.19} parent=1 // pred_check
      _
    $region87: #{closed_call.19} parent=1 // pred_check_branch
      %2392 = sbr.rel (0) target = $region89
    $region88: #{closed_call.19} parent=1 // pred_region
      _
    $region89: #{closed_call.19} parent=1 // pred_fallthru
      _
    // Predicated region
    $region90: #{closed_call.19} parent=1 // pred_check
      _
    $region91: #{closed_call.19} parent=1 // pred_check_branch
      %2394 = sbr.rel (0) target = $region93
    $region92: #{closed_call.19} parent=1 // pred_region
      _
    $region93: #{closed_call.19} parent=1 // pred_fallthru
      _
    // Predicated region
    $region94: #{closed_call.19} parent=1 // pred_check
      _
    $region95: #{closed_call.19} parent=1 // pred_check_branch
      %2396 = sbr.rel (0) target = $region97
    $region96: #{closed_call.19} parent=1 // pred_region
      _
    $region97: #{closed_call.19} parent=1 // pred_fallthru
      _
    // Predicated region
    $region98: #{closed_call.19} parent=1 // pred_check
      _
    $region99: #{closed_call.19} parent=1 // pred_check_branch
      %2398 = sbr.rel (0) target = $region101
    $region100: #{closed_call.19} parent=1 // pred_region
      _
    $region101: #{closed_call.19} parent=1 // pred_fallthru
      _
    // Predicated region
    $region102: #{closed_call.19} parent=1 // pred_check
      _
    $region103: #{closed_call.19} parent=1 // pred_check_branch
      %2400 = sbr.rel (0) target = $region105
    $region104: #{closed_call.19} parent=1 // pred_region
      _
    $region105: #{closed_call.19} parent=1 // pred_fallthru
      _
    %2401 = vsyncpa [#allocation3], 1
    %2402 = vsyncpa [#allocation7], 1
    %2403 = vsyncpa [#allocation10], 1
    %2404 = vsyncpa [#allocation4], 1

</llo_original>
